<compile_context>
chip_gen: v7x
topology: tpu7x:2x2x1
jax: 0.10.0
libtpu: 0.0.40
codegen_flags: <defaults>
</compile_context>

<pallas_src>
import jax
import jax.numpy as jnp
from jax.experimental import pallas as pl
from jax.experimental.pallas import tpu as pltpu


def _round_up(n, m):
    return ((n + m - 1) // m) * m


# --------------------------- fused forward kernel ---------------------------

def _make_fused_kernel(*, n_layers, T, B, B_pad, E, H_pad, C_pad):
    """Builds the fused dense + GRU-stack + decode + BatchNorm kernel body."""
    inv_count = 1.0 / float(T * B)   # BatchNorm1d biased-variance denominator (real rows)

    def kernel(*refs):
        x_ref, dw_ref, db_ref = refs[0:3]
        layer_refs = refs[3:3 + 4 * n_layers]
        dec_w_ref, dec_b_ref, bn_g_ref, bn_b_ref = refs[3 + 4 * n_layers:7 + 4 * n_layers]
        o_ref = refs[7 + 4 * n_layers]
        d_scr, seq_scr, gi_scr, hseq_scr = refs[8 + 4 * n_layers:12 + 4 * n_layers]

        # ---- dense + ReLU (dense weight columns pre-permuted to time-major order) ----
        d_scr[...] = jnp.maximum(
            jnp.dot(x_ref[...], dw_ref[...], preferred_element_type=jnp.float32)
            + db_ref[...], 0.0)                                     # (B_pad, T*E)

        # ---- view(B, E, T).permute(2, 0, 1): scatter into time-major rows ----
        for t in range(T):
            seq_scr[t * B_pad:(t + 1) * B_pad, :] = d_scr[:, t * E:(t + 1) * E]

        layer_in = seq_scr[...]                                     # (T*B_pad, E)
        for l in range(n_layers):
            wi_ref, wh_ref, bi_ref, bh_ref = layer_refs[4 * l:4 * l + 4]
            # Hoisted input projection + fused gates: one big matmul, off the serial path.
            gi_scr[...] = (jnp.dot(layer_in, wi_ref[...],
                                   preferred_element_type=jnp.float32) + bi_ref[...])
            bh = bh_ref[...]                                        # (1, 3*H_pad)
            h = jnp.zeros((B_pad, H_pad), jnp.float32)              # PyTorch default h0 = 0
            for t in range(T):                                      # serial recurrence
                gi_t = gi_scr[t * B_pad:(t + 1) * B_pad, :]         # (B_pad, 3*H_pad)
                gh = jnp.dot(h, wh_ref[...],
                             preferred_element_type=jnp.float32) + bh
                r = jax.nn.sigmoid(gi_t[:, 0:H_pad] + gh[:, 0:H_pad])
                z = jax.nn.sigmoid(gi_t[:, H_pad:2 * H_pad] + gh[:, H_pad:2 * H_pad])
                n = jnp.tanh(gi_t[:, 2 * H_pad:] + r * gh[:, 2 * H_pad:])
                h = (1.0 - z) * n + z * h
                hseq_scr[t * B_pad:(t + 1) * B_pad, :] = h          # VMEM, lane-dense
            layer_in = hseq_scr[...]                                # (T*B_pad, H_pad)

        # ---- decode linear + BatchNorm1d (training mode, biased variance) ----
        logits = (jnp.dot(layer_in, dec_w_ref[...],
                          preferred_element_type=jnp.float32) + dec_b_ref[...])
        rows = T * B_pad
        row_id = jax.lax.broadcasted_iota(jnp.int32, (rows, C_pad), 0)
        valid = ((row_id % B_pad) < B).astype(jnp.float32)          # mask padded batch rows
        mean = jnp.sum(logits * valid, axis=0, keepdims=True) * inv_count
        diff = (logits - mean) * valid
        var = jnp.sum(diff * diff, axis=0, keepdims=True) * inv_count
        xn = (logits - mean) * jax.lax.rsqrt(var + 1e-5)
        o_ref[...] = xn * bn_g_ref[...] + bn_b_ref[...]             # (T*B_pad, C_pad)

    return kernel


# ------------------------------ wrapper --------------------------------------

def gru_decoder_forward(x, fused_arrays, meta):
    T, E, C = meta["T"], meta["E"], meta["C"]
    B, B_pad = meta["B"], meta["B_pad"]
    H_pad, C_pad = meta["H_pad"], meta["C_pad"]
    n_layers, latent = meta["n_layers"], meta["latent"]

    x_pad = jnp.zeros((B_pad, latent), jnp.float32).at[:B].set(x)
    inputs = [x_pad] + list(fused_arrays)

    kernel = _make_fused_kernel(n_layers=n_layers, T=T, B=B, B_pad=B_pad, E=E,
                                H_pad=H_pad, C_pad=C_pad)

    def full_spec(shape):
        nd = len(shape)
        return pl.BlockSpec(shape, lambda i: (0,) * nd)

    y = pl.pallas_call(
        kernel,
        out_shape=jax.ShapeDtypeStruct((T * B_pad, C_pad), jnp.float32),
        grid=(1,),
        in_specs=[full_spec(a.shape) for a in inputs],
        out_specs=full_spec((T * B_pad, C_pad)),
        scratch_shapes=[
            pltpu.VMEM((B_pad, T * E), jnp.float32),           # dense output
            pltpu.VMEM((T * B_pad, E), jnp.float32),           # time-major GRU input
            pltpu.VMEM((T * B_pad, 3 * H_pad), jnp.float32),   # hoisted gate projections
            pltpu.VMEM((T * B_pad, H_pad), jnp.float32),       # per-layer hidden sequence
        ],
        compiler_params=pltpu.CompilerParams(dimension_semantics=("arbitrary",)),
    )(*inputs)

    # (T*B_pad, C_pad) -> (B, num_char, max_len): one tiny XLA slice + transpose.
    y = y.reshape(T, B_pad, C_pad)[:, :B, :C]
    return jnp.transpose(y, (1, 2, 0))
    # TODO(synk): `h = h.detach()` and BatchNorm running-stat updates are autograd /
    #             stateful bookkeeping with no effect on the returned forward value.


# ---------------------- parameter prep (fuse / pad / permute) ----------------

def prepare_fused_inputs(params, *, max_len, embed_len, hidden, num_char, n_layers, batch):
    T, E, H, C = max_len, embed_len, hidden, num_char
    B_pad = _round_up(batch, 8)
    H_pad = _round_up(H, 128)
    C_pad = _round_up(C, 128)
    latent = params["dense_w"].shape[0]

    # Permute dense weight columns so the dense output is already time-major:
    # new column t*E + e  <-  old column e*T + t.
    dw = params["dense_w"].reshape(latent, E, T).transpose(0, 2, 1).reshape(latent, T * E)
    db = params["dense_b"].reshape(1, E, T).transpose(0, 2, 1).reshape(1, T * E)

    layer_arrays = []
    in_dim, in_dim_pad = E, E                 # layer-0 input has exactly E features
    for p in params["gru_layers"]:
        wi = jnp.zeros((in_dim_pad, 3 * H_pad), jnp.float32)
        wh = jnp.zeros((H_pad, 3 * H_pad), jnp.float32)
        bi = jnp.zeros((1, 3 * H_pad), jnp.float32)
        bh = jnp.zeros((1, 3 * H_pad), jnp.float32)
        for g, name in enumerate(("r", "z", "n")):
            col = g * H_pad
            wi = wi.at[:in_dim, col:col + H].set(p[f"wi{name}"])
            wh = wh.at[:H, col:col + H].set(p[f"wh{name}"])
            bi = bi.at[:, col:col + H].set(p[f"bi{name}"])
            bh = bh.at[:, col:col + H].set(p[f"bh{name}"])
        layer_arrays += [wi, wh, bi, bh]
        in_dim, in_dim_pad = H, H_pad

    dec_w = jnp.zeros((H_pad, C_pad), jnp.float32).at[:H, :C].set(params["dec_w"])
    dec_b = jnp.zeros((1, C_pad), jnp.float32).at[:, :C].set(params["dec_b"])
    bn_g = jnp.zeros((1, C_pad), jnp.float32).at[:, :C].set(params["bn_g"].reshape(1, C))
    bn_b = jnp.zeros((1, C_pad), jnp.float32).at[:, :C].set(params["bn_b"].reshape(1, C))

    arrays = [dw, db] + layer_arrays + [dec_w, dec_b, bn_g, bn_b]
    meta = dict(T=T, E=E, H=H, C=C, B=batch, B_pad=B_pad, H_pad=H_pad, C_pad=C_pad,
                latent=latent, n_layers=n_layers)
    return arrays, meta


# --------------------------- reference (pure JAX) ---------------------------

def reference_forward(x, params, *, max_len, embed_len):
    B = x.shape[0]
    d = jnp.maximum(x @ params["dense_w"] + params["dense_b"], 0.0)
    h_seq = jnp.transpose(d.reshape(B, embed_len, max_len), (2, 0, 1))
    for p in params["gru_layers"]:
        T = h_seq.shape[0]
        H = p["whr"].shape[1]
        h = jnp.zeros((B, H), jnp.float32)
        outs = []
        for t in range(T):
            xt = h_seq[t]
            r = jax.nn.sigmoid(xt @ p["wir"] + p["bir"] + h @ p["whr"] + p["bhr"])
            z = jax.nn.sigmoid(xt @ p["wiz"] + p["biz"] + h @ p["whz"] + p["bhz"])
            n = jnp.tanh(xt @ p["win"] + p["bin"] + r * (h @ p["whn"] + p["bhn"]))
            h = (1.0 - z) * n + z * h
            outs.append(h)
        h_seq = jnp.stack(outs, axis=0)
    y = h_seq @ params["dec_w"] + params["dec_b"]      # (T, B, C)
    y = jnp.transpose(y, (1, 2, 0))                    # (B, C, T)
    mean = jnp.mean(y, axis=(0, 2), keepdims=True)
    var = jnp.mean((y - mean) ** 2, axis=(0, 2), keepdims=True)
    yn = (y - mean) / jnp.sqrt(var + 1e-5)
    g = params["bn_g"].reshape(1, -1, 1)
    b = params["bn_b"].reshape(1, -1, 1)
    return yn * g + b


# ------------------------------ parameters ----------------------------------

def init_params(key, *, latent, max_len, embed_len, hidden, n_layers, num_char):
    keys = jax.random.split(key, 8 + 12 * n_layers)
    it = iter(keys)

    def u(shape, fan_in):
        k = 1.0 / jnp.sqrt(jnp.float32(fan_in))
        return jax.random.uniform(next(it), shape, jnp.float32, -k, k)

    params = {
        "dense_w": u((latent, max_len * embed_len), latent),
        "dense_b": u((1, max_len * embed_len), latent),
    }
    layers = []
    in_dim = embed_len
    for _ in range(n_layers):
        lp = {}
        for gate in ("r", "z", "n"):
            lp[f"wi{gate}"] = u((in_dim, hidden), hidden)
            lp[f"wh{gate}"] = u((hidden, hidden), hidden)
            lp[f"bi{gate}"] = u((1, hidden), hidden)
            lp[f"bh{gate}"] = u((1, hidden), hidden)
        layers.append(lp)
        in_dim = hidden
    params["gru_layers"] = layers
    params["dec_w"] = u((hidden, num_char), hidden)
    params["dec_b"] = u((1, num_char), hidden)
    params["bn_g"] = jnp.ones((num_char, 1), jnp.float32)   # BatchNorm1d affine defaults
    params["bn_b"] = jnp.zeros((num_char, 1), jnp.float32)
    return params


# --------------------------------- main --------------------------------------

if __name__ == "__main__":
    # Small shapes consistent with the module's forward:
    #   input_shape = (num_char, max_len), latent_size, gru_in_dim, gru_layers, gru_size
    B = 2
    latent_size = 16
    num_char, max_len = 8, 8
    gru_in_dim, gru_size, gru_layers = 16, 32, 2

    key = jax.random.PRNGKey(0)
    kx, kp = jax.random.split(key)
    x = jax.random.normal(kx, (B, latent_size), jnp.float32)
    params = init_params(kp, latent=latent_size, max_len=max_len, embed_len=gru_in_dim,
                         hidden=gru_size, n_layers=gru_layers, num_char=num_char)

    fused_arrays, meta = prepare_fused_inputs(
        params, max_len=max_len, embed_len=gru_in_dim, hidden=gru_size,
        num_char=num_char, n_layers=gru_layers, batch=B)

    fwd = jax.jit(lambda xx, aa: gru_decoder_forward(xx, aa, meta))
    out = jax.block_until_ready(fwd(x, fused_arrays))

    ref = jax.block_until_ready(
        reference_forward(x, params, max_len=max_len, embed_len=gru_in_dim))

    assert out.shape == (B, num_char, max_len), out.shape
    max_err = float(jnp.max(jnp.abs(out - ref)))
    assert jnp.allclose(out, ref, atol=2e-3, rtol=2e-3), f"max abs err {max_err}"

    print("KERNEL_OK")
</pallas_src>

<mosaic_0001>
module attributes {stable_mosaic.version = 11 : i64} {
  func.func @kernel(%arg0: i32, %arg1: memref<8x16xf32, #tpu.memory_space<vmem>>, %arg2: memref<16x128xf32, #tpu.memory_space<vmem>>, %arg3: memref<1x128xf32, #tpu.memory_space<vmem>>, %arg4: memref<16x384xf32, #tpu.memory_space<vmem>>, %arg5: memref<128x384xf32, #tpu.memory_space<vmem>>, %arg6: memref<1x384xf32, #tpu.memory_space<vmem>>, %arg7: memref<1x384xf32, #tpu.memory_space<vmem>>, %arg8: memref<128x384xf32, #tpu.memory_space<vmem>>, %arg9: memref<128x384xf32, #tpu.memory_space<vmem>>, %arg10: memref<1x384xf32, #tpu.memory_space<vmem>>, %arg11: memref<1x384xf32, #tpu.memory_space<vmem>>, %arg12: memref<128x128xf32, #tpu.memory_space<vmem>>, %arg13: memref<1x128xf32, #tpu.memory_space<vmem>>, %arg14: memref<1x128xf32, #tpu.memory_space<vmem>>, %arg15: memref<1x128xf32, #tpu.memory_space<vmem>>, %arg16: memref<64x128xf32, #tpu.memory_space<vmem>>, %arg17: memref<8x128xf32, #tpu.memory_space<vmem>>, %arg18: memref<64x16xf32, #tpu.memory_space<vmem>>, %arg19: memref<64x384xf32, #tpu.memory_space<vmem>>, %arg20: memref<64x128xf32, #tpu.memory_space<vmem>>) attributes {dimension_semantics = [#tpu.dimension_semantics<arbitrary>], iteration_bounds = array<i64: 1>, scalar_prefetch = 0 : i64, scratch_operands = 4 : i64, tpu.core_type = #tpu.core_type<tc>, window_params = [{pipeline_mode = #tpu.pipeline_mode<synchronous>, transform_indices = @transform_0, window_bounds = array<i64: 8, 16>}, {pipeline_mode = #tpu.pipeline_mode<synchronous>, transform_indices = @transform_1, window_bounds = array<i64: 16, 128>}, {pipeline_mode = #tpu.pipeline_mode<synchronous>, transform_indices = @transform_2, window_bounds = array<i64: 1, 128>}, {pipeline_mode = #tpu.pipeline_mode<synchronous>, transform_indices = @transform_3, window_bounds = array<i64: 16, 384>}, {pipeline_mode = #tpu.pipeline_mode<synchronous>, transform_indices = @transform_4, window_bounds = array<i64: 128, 384>}, {pipeline_mode = #tpu.pipeline_mode<synchronous>, transform_indices = @transform_5, window_bounds = array<i64: 1, 384>}, {pipeline_mode = #tpu.pipeline_mode<synchronous>, transform_indices = @transform_6, window_bounds = array<i64: 1, 384>}, {pipeline_mode = #tpu.pipeline_mode<synchronous>, transform_indices = @transform_7, window_bounds = array<i64: 128, 384>}, {pipeline_mode = #tpu.pipeline_mode<synchronous>, transform_indices = @transform_8, window_bounds = array<i64: 128, 384>}, {pipeline_mode = #tpu.pipeline_mode<synchronous>, transform_indices = @transform_9, window_bounds = array<i64: 1, 384>}, {pipeline_mode = #tpu.pipeline_mode<synchronous>, transform_indices = @transform_10, window_bounds = array<i64: 1, 384>}, {pipeline_mode = #tpu.pipeline_mode<synchronous>, transform_indices = @transform_11, window_bounds = array<i64: 128, 128>}, {pipeline_mode = #tpu.pipeline_mode<synchronous>, transform_indices = @transform_12, window_bounds = array<i64: 1, 128>}, {pipeline_mode = #tpu.pipeline_mode<synchronous>, transform_indices = @transform_13, window_bounds = array<i64: 1, 128>}, {pipeline_mode = #tpu.pipeline_mode<synchronous>, transform_indices = @transform_14, window_bounds = array<i64: 1, 128>}, {pipeline_mode = #tpu.pipeline_mode<synchronous>, transform_indices = @transform_15, window_bounds = array<i64: 64, 128>}]} {
    %c0 = arith.constant 0 : index
    %c0_0 = arith.constant 0 : index
    %0 = vector.load %arg1[%c0, %c0_0] : memref<8x16xf32, #tpu.memory_space<vmem>>, vector<8x16xf32>
    %c0_1 = arith.constant 0 : index
    %c0_2 = arith.constant 0 : index
    %1 = vector.load %arg2[%c0_1, %c0_2] : memref<16x128xf32, #tpu.memory_space<vmem>>, vector<16x128xf32>
    %cst = arith.constant dense<0.000000e+00> : vector<8x128xf32>
    %2 = tpu.matmul %0, %1, %cst {dimension_numbers = #tpu.dot_dimension_numbers<[1], [0], [0], [1], [0, 0, 1, 1], [], []>} : vector<8x16xf32>, vector<16x128xf32>, vector<8x128xf32> -> vector<8x128xf32>
    %c0_3 = arith.constant 0 : index
    %c0_4 = arith.constant 0 : index
    %3 = vector.load %arg3[%c0_3, %c0_4] : memref<1x128xf32, #tpu.memory_space<vmem>>, vector<1x128xf32>
    %4 = vector.broadcast %3 : vector<1x128xf32> to vector<8x128xf32>
    %5 = arith.addf %2, %4 : vector<8x128xf32>
    %cst_5 = arith.constant 0.000000e+00 : f32
    %6 = vector.broadcast %cst_5 : f32 to vector<8x128xf32>
    %7 = arith.maximumf %5, %6 : vector<8x128xf32>
    %c0_6 = arith.constant 0 : index
    %c0_7 = arith.constant 0 : index
    %8 = vector.load %arg17[%c0_6, %c0_7] : memref<8x128xf32, #tpu.memory_space<vmem>>, vector<8x128xf32>
    tpu.vector_store %arg17[%c0_6, %c0_7], %7 {strides = array<i32>} : memref<8x128xf32, #tpu.memory_space<vmem>>, vector<8x128xf32>,
    %c0_8 = arith.constant 0 : index
    %c0_9 = arith.constant 0 : index
    %9 = vector.load %arg17[%c0_8, %c0_9] : memref<8x128xf32, #tpu.memory_space<vmem>>, vector<8x16xf32>
    %c0_10 = arith.constant 0 : index
    %c0_11 = arith.constant 0 : index
    %10 = vector.load %arg18[%c0_10, %c0_11] : memref<64x16xf32, #tpu.memory_space<vmem>>, vector<8x16xf32>
    tpu.vector_store %arg18[%c0_10, %c0_11], %9 {strides = array<i32>} : memref<64x16xf32, #tpu.memory_space<vmem>>, vector<8x16xf32>,
    %c0_12 = arith.constant 0 : index
    %c16 = arith.constant 16 : index
    %11 = vector.load %arg17[%c0_12, %c16] : memref<8x128xf32, #tpu.memory_space<vmem>>, vector<8x16xf32>
    %c8 = arith.constant 8 : index
    %c0_13 = arith.constant 0 : index
    %12 = vector.load %arg18[%c8, %c0_13] : memref<64x16xf32, #tpu.memory_space<vmem>>, vector<8x16xf32>
    tpu.vector_store %arg18[%c8, %c0_13], %11 {strides = array<i32>} : memref<64x16xf32, #tpu.memory_space<vmem>>, vector<8x16xf32>,
    %c0_14 = arith.constant 0 : index
    %c32 = arith.constant 32 : index
    %13 = vector.load %arg17[%c0_14, %c32] : memref<8x128xf32, #tpu.memory_space<vmem>>, vector<8x16xf32>
    %c16_15 = arith.constant 16 : index
    %c0_16 = arith.constant 0 : index
    %14 = vector.load %arg18[%c16_15, %c0_16] : memref<64x16xf32, #tpu.memory_space<vmem>>, vector<8x16xf32>
    tpu.vector_store %arg18[%c16_15, %c0_16], %13 {strides = array<i32>} : memref<64x16xf32, #tpu.memory_space<vmem>>, vector<8x16xf32>,
    %c0_17 = arith.constant 0 : index
    %c48 = arith.constant 48 : index
    %15 = vector.load %arg17[%c0_17, %c48] : memref<8x128xf32, #tpu.memory_space<vmem>>, vector<8x16xf32>
    %c24 = arith.constant 24 : index
    %c0_18 = arith.constant 0 : index
    %16 = vector.load %arg18[%c24, %c0_18] : memref<64x16xf32, #tpu.memory_space<vmem>>, vector<8x16xf32>
    tpu.vector_store %arg18[%c24, %c0_18], %15 {strides = array<i32>} : memref<64x16xf32, #tpu.memory_space<vmem>>, vector<8x16xf32>,
    %c0_19 = arith.constant 0 : index
    %c64 = arith.constant 64 : index
    %17 = vector.load %arg17[%c0_19, %c64] : memref<8x128xf32, #tpu.memory_space<vmem>>, vector<8x16xf32>
    %c32_20 = arith.constant 32 : index
    %c0_21 = arith.constant 0 : index
    %18 = vector.load %arg18[%c32_20, %c0_21] : memref<64x16xf32, #tpu.memory_space<vmem>>, vector<8x16xf32>
    tpu.vector_store %arg18[%c32_20, %c0_21], %17 {strides = array<i32>} : memref<64x16xf32, #tpu.memory_space<vmem>>, vector<8x16xf32>,
    %c0_22 = arith.constant 0 : index
    %c80 = arith.constant 80 : index
    %19 = vector.load %arg17[%c0_22, %c80] : memref<8x128xf32, #tpu.memory_space<vmem>>, vector<8x16xf32>
    %c40 = arith.constant 40 : index
    %c0_23 = arith.constant 0 : index
    %20 = vector.load %arg18[%c40, %c0_23] : memref<64x16xf32, #tpu.memory_space<vmem>>, vector<8x16xf32>
    tpu.vector_store %arg18[%c40, %c0_23], %19 {strides = array<i32>} : memref<64x16xf32, #tpu.memory_space<vmem>>, vector<8x16xf32>,
    %c0_24 = arith.constant 0 : index
    %c96 = arith.constant 96 : index
    %21 = vector.load %arg17[%c0_24, %c96] : memref<8x128xf32, #tpu.memory_space<vmem>>, vector<8x16xf32>
    %c48_25 = arith.constant 48 : index
    %c0_26 = arith.constant 0 : index
    %22 = vector.load %arg18[%c48_25, %c0_26] : memref<64x16xf32, #tpu.memory_space<vmem>>, vector<8x16xf32>
    tpu.vector_store %arg18[%c48_25, %c0_26], %21 {strides = array<i32>} : memref<64x16xf32, #tpu.memory_space<vmem>>, vector<8x16xf32>,
    %c0_27 = arith.constant 0 : index
    %c112 = arith.constant 112 : index
    %23 = vector.load %arg17[%c0_27, %c112] : memref<8x128xf32, #tpu.memory_space<vmem>>, vector<8x16xf32>
    %c56 = arith.constant 56 : index
    %c0_28 = arith.constant 0 : index
    %24 = vector.load %arg18[%c56, %c0_28] : memref<64x16xf32, #tpu.memory_space<vmem>>, vector<8x16xf32>
    tpu.vector_store %arg18[%c56, %c0_28], %23 {strides = array<i32>} : memref<64x16xf32, #tpu.memory_space<vmem>>, vector<8x16xf32>,
    %c0_29 = arith.constant 0 : index
    %c0_30 = arith.constant 0 : index
    %25 = vector.load %arg18[%c0_29, %c0_30] : memref<64x16xf32, #tpu.memory_space<vmem>>, vector<64x16xf32>
    %c0_31 = arith.constant 0 : index
    %c0_32 = arith.constant 0 : index
    %26 = vector.load %arg4[%c0_31, %c0_32] : memref<16x384xf32, #tpu.memory_space<vmem>>, vector<16x384xf32>
    %cst_33 = arith.constant dense<0.000000e+00> : vector<64x384xf32>
    %27 = tpu.matmul %25, %26, %cst_33 {dimension_numbers = #tpu.dot_dimension_numbers<[1], [0], [0], [1], [0, 0, 1, 1], [], []>} : vector<64x16xf32>, vector<16x384xf32>, vector<64x384xf32> -> vector<64x384xf32>
    %c0_34 = arith.constant 0 : index
    %c0_35 = arith.constant 0 : index
    %28 = vector.load %arg6[%c0_34, %c0_35] : memref<1x384xf32, #tpu.memory_space<vmem>>, vector<1x384xf32>
    %29 = vector.broadcast %28 : vector<1x384xf32> to vector<64x384xf32>
    %30 = arith.addf %27, %29 : vector<64x384xf32>
    %c0_36 = arith.constant 0 : index
    %c0_37 = arith.constant 0 : index
    %31 = vector.load %arg19[%c0_36, %c0_37] : memref<64x384xf32, #tpu.memory_space<vmem>>, vector<64x384xf32>
    tpu.vector_store %arg19[%c0_36, %c0_37], %30 {strides = array<i32>} : memref<64x384xf32, #tpu.memory_space<vmem>>, vector<64x384xf32>,
    %c0_38 = arith.constant 0 : index
    %c0_39 = arith.constant 0 : index
    %32 = vector.load %arg7[%c0_38, %c0_39] : memref<1x384xf32, #tpu.memory_space<vmem>>, vector<1x384xf32>
    %cst_40 = arith.constant 0.000000e+00 : f32
    %33 = vector.broadcast %cst_40 : f32 to vector<8x128xf32>
    %c0_41 = arith.constant 0 : index
    %c0_42 = arith.constant 0 : index
    %34 = vector.load %arg19[%c0_41, %c0_42] : memref<64x384xf32, #tpu.memory_space<vmem>>, vector<8x384xf32>
    %c0_43 = arith.constant 0 : index
    %c0_44 = arith.constant 0 : index
    %35 = vector.load %arg5[%c0_43, %c0_44] : memref<128x384xf32, #tpu.memory_space<vmem>>, vector<128x384xf32>
    %cst_45 = arith.constant dense<0.000000e+00> : vector<8x384xf32>
    %36 = tpu.matmul %33, %35, %cst_45 {dimension_numbers = #tpu.dot_dimension_numbers<[1], [0], [0], [1], [0, 0, 1, 1], [], []>} : vector<8x128xf32>, vector<128x384xf32>, vector<8x384xf32> -> vector<8x384xf32>
    %37 = vector.broadcast %32 : vector<1x384xf32> to vector<8x384xf32>
    %38 = arith.addf %36, %37 : vector<8x384xf32>
    %39 = vector.extract_strided_slice %34 {offsets = [0, 0], sizes = [8, 128], strides = [1, 1]} : vector<8x384xf32> to vector<8x128xf32>
    %40 = vector.extract_strided_slice %38 {offsets = [0, 0], sizes = [8, 128], strides = [1, 1]} : vector<8x384xf32> to vector<8x128xf32>
    %41 = arith.addf %39, %40 : vector<8x128xf32>
    %42 = arith.negf %41 : vector<8x128xf32>
    %43 = math.exp %42 : vector<8x128xf32>
    %cst_46 = arith.constant 1.000000e+00 : f32
    %44 = vector.broadcast %cst_46 : f32 to vector<8x128xf32>
    %45 = arith.addf %44, %43 : vector<8x128xf32>
    %46 = arith.divf %44, %45 : vector<8x128xf32>
    %47 = vector.extract_strided_slice %34 {offsets = [0, 128], sizes = [8, 128], strides = [1, 1]} : vector<8x384xf32> to vector<8x128xf32>
    %48 = vector.extract_strided_slice %38 {offsets = [0, 128], sizes = [8, 128], strides = [1, 1]} : vector<8x384xf32> to vector<8x128xf32>
    %49 = arith.addf %47, %48 : vector<8x128xf32>
    %50 = arith.negf %49 : vector<8x128xf32>
    %51 = math.exp %50 : vector<8x128xf32>
    %cst_47 = arith.constant 1.000000e+00 : f32
    %52 = vector.broadcast %cst_47 : f32 to vector<8x128xf32>
    %53 = arith.addf %52, %51 : vector<8x128xf32>
    %54 = arith.divf %52, %53 : vector<8x128xf32>
    %55 = vector.extract_strided_slice %34 {offsets = [0, 256], sizes = [8, 128], strides = [1, 1]} : vector<8x384xf32> to vector<8x128xf32>
    %56 = vector.extract_strided_slice %38 {offsets = [0, 256], sizes = [8, 128], strides = [1, 1]} : vector<8x384xf32> to vector<8x128xf32>
    %57 = arith.mulf %46, %56 : vector<8x128xf32>
    %58 = arith.addf %55, %57 : vector<8x128xf32>
    %59 = math.tanh %58 : vector<8x128xf32>
    %cst_48 = arith.constant 1.000000e+00 : f32
    %60 = vector.broadcast %cst_48 : f32 to vector<8x128xf32>
    %61 = arith.subf %60, %54 : vector<8x128xf32>
    %62 = arith.mulf %61, %59 : vector<8x128xf32>
    %63 = arith.mulf %54, %33 : vector<8x128xf32>
    %64 = arith.addf %62, %63 : vector<8x128xf32>
    %c0_49 = arith.constant 0 : index
    %c0_50 = arith.constant 0 : index
    %65 = vector.load %arg20[%c0_49, %c0_50] : memref<64x128xf32, #tpu.memory_space<vmem>>, vector<8x128xf32>
    tpu.vector_store %arg20[%c0_49, %c0_50], %64 {strides = array<i32>} : memref<64x128xf32, #tpu.memory_space<vmem>>, vector<8x128xf32>,
    %c8_51 = arith.constant 8 : index
    %c0_52 = arith.constant 0 : index
    %66 = vector.load %arg19[%c8_51, %c0_52] : memref<64x384xf32, #tpu.memory_space<vmem>>, vector<8x384xf32>
    %c0_53 = arith.constant 0 : index
    %c0_54 = arith.constant 0 : index
    %67 = vector.load %arg5[%c0_53, %c0_54] : memref<128x384xf32, #tpu.memory_space<vmem>>, vector<128x384xf32>
    %cst_55 = arith.constant dense<0.000000e+00> : vector<8x384xf32>
    %68 = tpu.matmul %64, %67, %cst_55 {dimension_numbers = #tpu.dot_dimension_numbers<[1], [0], [0], [1], [0, 0, 1, 1], [], []>} : vector<8x128xf32>, vector<128x384xf32>, vector<8x384xf32> -> vector<8x384xf32>
    %69 = vector.broadcast %32 : vector<1x384xf32> to vector<8x384xf32>
    %70 = arith.addf %68, %69 : vector<8x384xf32>
    %71 = vector.extract_strided_slice %66 {offsets = [0, 0], sizes = [8, 128], strides = [1, 1]} : vector<8x384xf32> to vector<8x128xf32>
    %72 = vector.extract_strided_slice %70 {offsets = [0, 0], sizes = [8, 128], strides = [1, 1]} : vector<8x384xf32> to vector<8x128xf32>
    %73 = arith.addf %71, %72 : vector<8x128xf32>
    %74 = arith.negf %73 : vector<8x128xf32>
    %75 = math.exp %74 : vector<8x128xf32>
    %cst_56 = arith.constant 1.000000e+00 : f32
    %76 = vector.broadcast %cst_56 : f32 to vector<8x128xf32>
    %77 = arith.addf %76, %75 : vector<8x128xf32>
    %78 = arith.divf %76, %77 : vector<8x128xf32>
    %79 = vector.extract_strided_slice %66 {offsets = [0, 128], sizes = [8, 128], strides = [1, 1]} : vector<8x384xf32> to vector<8x128xf32>
    %80 = vector.extract_strided_slice %70 {offsets = [0, 128], sizes = [8, 128], strides = [1, 1]} : vector<8x384xf32> to vector<8x128xf32>
    %81 = arith.addf %79, %80 : vector<8x128xf32>
    %82 = arith.negf %81 : vector<8x128xf32>
    %83 = math.exp %82 : vector<8x128xf32>
    %cst_57 = arith.constant 1.000000e+00 : f32
    %84 = vector.broadcast %cst_57 : f32 to vector<8x128xf32>
    %85 = arith.addf %84, %83 : vector<8x128xf32>
    %86 = arith.divf %84, %85 : vector<8x128xf32>
    %87 = vector.extract_strided_slice %66 {offsets = [0, 256], sizes = [8, 128], strides = [1, 1]} : vector<8x384xf32> to vector<8x128xf32>
    %88 = vector.extract_strided_slice %70 {offsets = [0, 256], sizes = [8, 128], strides = [1, 1]} : vector<8x384xf32> to vector<8x128xf32>
    %89 = arith.mulf %78, %88 : vector<8x128xf32>
    %90 = arith.addf %87, %89 : vector<8x128xf32>
    %91 = math.tanh %90 : vector<8x128xf32>
    %cst_58 = arith.constant 1.000000e+00 : f32
    %92 = vector.broadcast %cst_58 : f32 to vector<8x128xf32>
    %93 = arith.subf %92, %86 : vector<8x128xf32>
    %94 = arith.mulf %93, %91 : vector<8x128xf32>
    %95 = arith.mulf %86, %64 : vector<8x128xf32>
    %96 = arith.addf %94, %95 : vector<8x128xf32>
    %c8_59 = arith.constant 8 : index
    %c0_60 = arith.constant 0 : index
    %97 = vector.load %arg20[%c8_59, %c0_60] : memref<64x128xf32, #tpu.memory_space<vmem>>, vector<8x128xf32>
    tpu.vector_store %arg20[%c8_59, %c0_60], %96 {strides = array<i32>} : memref<64x128xf32, #tpu.memory_space<vmem>>, vector<8x128xf32>,
    %c16_61 = arith.constant 16 : index
    %c0_62 = arith.constant 0 : index
    %98 = vector.load %arg19[%c16_61, %c0_62] : memref<64x384xf32, #tpu.memory_space<vmem>>, vector<8x384xf32>
    %c0_63 = arith.constant 0 : index
    %c0_64 = arith.constant 0 : index
    %99 = vector.load %arg5[%c0_63, %c0_64] : memref<128x384xf32, #tpu.memory_space<vmem>>, vector<128x384xf32>
    %cst_65 = arith.constant dense<0.000000e+00> : vector<8x384xf32>
    %100 = tpu.matmul %96, %99, %cst_65 {dimension_numbers = #tpu.dot_dimension_numbers<[1], [0], [0], [1], [0, 0, 1, 1], [], []>} : vector<8x128xf32>, vector<128x384xf32>, vector<8x384xf32> -> vector<8x384xf32>
    %101 = vector.broadcast %32 : vector<1x384xf32> to vector<8x384xf32>
    %102 = arith.addf %100, %101 : vector<8x384xf32>
    %103 = vector.extract_strided_slice %98 {offsets = [0, 0], sizes = [8, 128], strides = [1, 1]} : vector<8x384xf32> to vector<8x128xf32>
    %104 = vector.extract_strided_slice %102 {offsets = [0, 0], sizes = [8, 128], strides = [1, 1]} : vector<8x384xf32> to vector<8x128xf32>
    %105 = arith.addf %103, %104 : vector<8x128xf32>
    %106 = arith.negf %105 : vector<8x128xf32>
    %107 = math.exp %106 : vector<8x128xf32>
    %cst_66 = arith.constant 1.000000e+00 : f32
    %108 = vector.broadcast %cst_66 : f32 to vector<8x128xf32>
    %109 = arith.addf %108, %107 : vector<8x128xf32>
    %110 = arith.divf %108, %109 : vector<8x128xf32>
    %111 = vector.extract_strided_slice %98 {offsets = [0, 128], sizes = [8, 128], strides = [1, 1]} : vector<8x384xf32> to vector<8x128xf32>
    %112 = vector.extract_strided_slice %102 {offsets = [0, 128], sizes = [8, 128], strides = [1, 1]} : vector<8x384xf32> to vector<8x128xf32>
    %113 = arith.addf %111, %112 : vector<8x128xf32>
    %114 = arith.negf %113 : vector<8x128xf32>
    %115 = math.exp %114 : vector<8x128xf32>
    %cst_67 = arith.constant 1.000000e+00 : f32
    %116 = vector.broadcast %cst_67 : f32 to vector<8x128xf32>
    %117 = arith.addf %116, %115 : vector<8x128xf32>
    %118 = arith.divf %116, %117 : vector<8x128xf32>
    %119 = vector.extract_strided_slice %98 {offsets = [0, 256], sizes = [8, 128], strides = [1, 1]} : vector<8x384xf32> to vector<8x128xf32>
    %120 = vector.extract_strided_slice %102 {offsets = [0, 256], sizes = [8, 128], strides = [1, 1]} : vector<8x384xf32> to vector<8x128xf32>
    %121 = arith.mulf %110, %120 : vector<8x128xf32>
    %122 = arith.addf %119, %121 : vector<8x128xf32>
    %123 = math.tanh %122 : vector<8x128xf32>
    %cst_68 = arith.constant 1.000000e+00 : f32
    %124 = vector.broadcast %cst_68 : f32 to vector<8x128xf32>
    %125 = arith.subf %124, %118 : vector<8x128xf32>
    %126 = arith.mulf %125, %123 : vector<8x128xf32>
    %127 = arith.mulf %118, %96 : vector<8x128xf32>
    %128 = arith.addf %126, %127 : vector<8x128xf32>
    %c16_69 = arith.constant 16 : index
    %c0_70 = arith.constant 0 : index
    %129 = vector.load %arg20[%c16_69, %c0_70] : memref<64x128xf32, #tpu.memory_space<vmem>>, vector<8x128xf32>
    tpu.vector_store %arg20[%c16_69, %c0_70], %128 {strides = array<i32>} : memref<64x128xf32, #tpu.memory_space<vmem>>, vector<8x128xf32>,
    %c24_71 = arith.constant 24 : index
    %c0_72 = arith.constant 0 : index
    %130 = vector.load %arg19[%c24_71, %c0_72] : memref<64x384xf32, #tpu.memory_space<vmem>>, vector<8x384xf32>
    %c0_73 = arith.constant 0 : index
    %c0_74 = arith.constant 0 : index
    %131 = vector.load %arg5[%c0_73, %c0_74] : memref<128x384xf32, #tpu.memory_space<vmem>>, vector<128x384xf32>
    %cst_75 = arith.constant dense<0.000000e+00> : vector<8x384xf32>
    %132 = tpu.matmul %128, %131, %cst_75 {dimension_numbers = #tpu.dot_dimension_numbers<[1], [0], [0], [1], [0, 0, 1, 1], [], []>} : vector<8x128xf32>, vector<128x384xf32>, vector<8x384xf32> -> vector<8x384xf32>
    %133 = vector.broadcast %32 : vector<1x384xf32> to vector<8x384xf32>
    %134 = arith.addf %132, %133 : vector<8x384xf32>
    %135 = vector.extract_strided_slice %130 {offsets = [0, 0], sizes = [8, 128], strides = [1, 1]} : vector<8x384xf32> to vector<8x128xf32>
    %136 = vector.extract_strided_slice %134 {offsets = [0, 0], sizes = [8, 128], strides = [1, 1]} : vector<8x384xf32> to vector<8x128xf32>
    %137 = arith.addf %135, %136 : vector<8x128xf32>
    %138 = arith.negf %137 : vector<8x128xf32>
    %139 = math.exp %138 : vector<8x128xf32>
    %cst_76 = arith.constant 1.000000e+00 : f32
    %140 = vector.broadcast %cst_76 : f32 to vector<8x128xf32>
    %141 = arith.addf %140, %139 : vector<8x128xf32>
    %142 = arith.divf %140, %141 : vector<8x128xf32>
    %143 = vector.extract_strided_slice %130 {offsets = [0, 128], sizes = [8, 128], strides = [1, 1]} : vector<8x384xf32> to vector<8x128xf32>
    %144 = vector.extract_strided_slice %134 {offsets = [0, 128], sizes = [8, 128], strides = [1, 1]} : vector<8x384xf32> to vector<8x128xf32>
    %145 = arith.addf %143, %144 : vector<8x128xf32>
    %146 = arith.negf %145 : vector<8x128xf32>
    %147 = math.exp %146 : vector<8x128xf32>
    %cst_77 = arith.constant 1.000000e+00 : f32
    %148 = vector.broadcast %cst_77 : f32 to vector<8x128xf32>
    %149 = arith.addf %148, %147 : vector<8x128xf32>
    %150 = arith.divf %148, %149 : vector<8x128xf32>
    %151 = vector.extract_strided_slice %130 {offsets = [0, 256], sizes = [8, 128], strides = [1, 1]} : vector<8x384xf32> to vector<8x128xf32>
    %152 = vector.extract_strided_slice %134 {offsets = [0, 256], sizes = [8, 128], strides = [1, 1]} : vector<8x384xf32> to vector<8x128xf32>
    %153 = arith.mulf %142, %152 : vector<8x128xf32>
    %154 = arith.addf %151, %153 : vector<8x128xf32>
    %155 = math.tanh %154 : vector<8x128xf32>
    %cst_78 = arith.constant 1.000000e+00 : f32
    %156 = vector.broadcast %cst_78 : f32 to vector<8x128xf32>
    %157 = arith.subf %156, %150 : vector<8x128xf32>
    %158 = arith.mulf %157, %155 : vector<8x128xf32>
    %159 = arith.mulf %150, %128 : vector<8x128xf32>
    %160 = arith.addf %158, %159 : vector<8x128xf32>
    %c24_79 = arith.constant 24 : index
    %c0_80 = arith.constant 0 : index
    %161 = vector.load %arg20[%c24_79, %c0_80] : memref<64x128xf32, #tpu.memory_space<vmem>>, vector<8x128xf32>
    tpu.vector_store %arg20[%c24_79, %c0_80], %160 {strides = array<i32>} : memref<64x128xf32, #tpu.memory_space<vmem>>, vector<8x128xf32>,
    %c32_81 = arith.constant 32 : index
    %c0_82 = arith.constant 0 : index
    %162 = vector.load %arg19[%c32_81, %c0_82] : memref<64x384xf32, #tpu.memory_space<vmem>>, vector<8x384xf32>
    %c0_83 = arith.constant 0 : index
    %c0_84 = arith.constant 0 : index
    %163 = vector.load %arg5[%c0_83, %c0_84] : memref<128x384xf32, #tpu.memory_space<vmem>>, vector<128x384xf32>
    %cst_85 = arith.constant dense<0.000000e+00> : vector<8x384xf32>
    %164 = tpu.matmul %160, %163, %cst_85 {dimension_numbers = #tpu.dot_dimension_numbers<[1], [0], [0], [1], [0, 0, 1, 1], [], []>} : vector<8x128xf32>, vector<128x384xf32>, vector<8x384xf32> -> vector<8x384xf32>
    %165 = vector.broadcast %32 : vector<1x384xf32> to vector<8x384xf32>
    %166 = arith.addf %164, %165 : vector<8x384xf32>
    %167 = vector.extract_strided_slice %162 {offsets = [0, 0], sizes = [8, 128], strides = [1, 1]} : vector<8x384xf32> to vector<8x128xf32>
    %168 = vector.extract_strided_slice %166 {offsets = [0, 0], sizes = [8, 128], strides = [1, 1]} : vector<8x384xf32> to vector<8x128xf32>
    %169 = arith.addf %167, %168 : vector<8x128xf32>
    %170 = arith.negf %169 : vector<8x128xf32>
    %171 = math.exp %170 : vector<8x128xf32>
    %cst_86 = arith.constant 1.000000e+00 : f32
    %172 = vector.broadcast %cst_86 : f32 to vector<8x128xf32>
    %173 = arith.addf %172, %171 : vector<8x128xf32>
    %174 = arith.divf %172, %173 : vector<8x128xf32>
    %175 = vector.extract_strided_slice %162 {offsets = [0, 128], sizes = [8, 128], strides = [1, 1]} : vector<8x384xf32> to vector<8x128xf32>
    %176 = vector.extract_strided_slice %166 {offsets = [0, 128], sizes = [8, 128], strides = [1, 1]} : vector<8x384xf32> to vector<8x128xf32>
    %177 = arith.addf %175, %176 : vector<8x128xf32>
    %178 = arith.negf %177 : vector<8x128xf32>
    %179 = math.exp %178 : vector<8x128xf32>
    %cst_87 = arith.constant 1.000000e+00 : f32
    %180 = vector.broadcast %cst_87 : f32 to vector<8x128xf32>
    %181 = arith.addf %180, %179 : vector<8x128xf32>
    %182 = arith.divf %180, %181 : vector<8x128xf32>
    %183 = vector.extract_strided_slice %162 {offsets = [0, 256], sizes = [8, 128], strides = [1, 1]} : vector<8x384xf32> to vector<8x128xf32>
    %184 = vector.extract_strided_slice %166 {offsets = [0, 256], sizes = [8, 128], strides = [1, 1]} : vector<8x384xf32> to vector<8x128xf32>
    %185 = arith.mulf %174, %184 : vector<8x128xf32>
    %186 = arith.addf %183, %185 : vector<8x128xf32>
    %187 = math.tanh %186 : vector<8x128xf32>
    %cst_88 = arith.constant 1.000000e+00 : f32
    %188 = vector.broadcast %cst_88 : f32 to vector<8x128xf32>
    %189 = arith.subf %188, %182 : vector<8x128xf32>
    %190 = arith.mulf %189, %187 : vector<8x128xf32>
    %191 = arith.mulf %182, %160 : vector<8x128xf32>
    %192 = arith.addf %190, %191 : vector<8x128xf32>
    %c32_89 = arith.constant 32 : index
    %c0_90 = arith.constant 0 : index
    %193 = vector.load %arg20[%c32_89, %c0_90] : memref<64x128xf32, #tpu.memory_space<vmem>>, vector<8x128xf32>
    tpu.vector_store %arg20[%c32_89, %c0_90], %192 {strides = array<i32>} : memref<64x128xf32, #tpu.memory_space<vmem>>, vector<8x128xf32>,
    %c40_91 = arith.constant 40 : index
    %c0_92 = arith.constant 0 : index
    %194 = vector.load %arg19[%c40_91, %c0_92] : memref<64x384xf32, #tpu.memory_space<vmem>>, vector<8x384xf32>
    %c0_93 = arith.constant 0 : index
    %c0_94 = arith.constant 0 : index
    %195 = vector.load %arg5[%c0_93, %c0_94] : memref<128x384xf32, #tpu.memory_space<vmem>>, vector<128x384xf32>
    %cst_95 = arith.constant dense<0.000000e+00> : vector<8x384xf32>
    %196 = tpu.matmul %192, %195, %cst_95 {dimension_numbers = #tpu.dot_dimension_numbers<[1], [0], [0], [1], [0, 0, 1, 1], [], []>} : vector<8x128xf32>, vector<128x384xf32>, vector<8x384xf32> -> vector<8x384xf32>
    %197 = vector.broadcast %32 : vector<1x384xf32> to vector<8x384xf32>
    %198 = arith.addf %196, %197 : vector<8x384xf32>
    %199 = vector.extract_strided_slice %194 {offsets = [0, 0], sizes = [8, 128], strides = [1, 1]} : vector<8x384xf32> to vector<8x128xf32>
    %200 = vector.extract_strided_slice %198 {offsets = [0, 0], sizes = [8, 128], strides = [1, 1]} : vector<8x384xf32> to vector<8x128xf32>
    %201 = arith.addf %199, %200 : vector<8x128xf32>
    %202 = arith.negf %201 : vector<8x128xf32>
    %203 = math.exp %202 : vector<8x128xf32>
    %cst_96 = arith.constant 1.000000e+00 : f32
    %204 = vector.broadcast %cst_96 : f32 to vector<8x128xf32>
    %205 = arith.addf %204, %203 : vector<8x128xf32>
    %206 = arith.divf %204, %205 : vector<8x128xf32>
    %207 = vector.extract_strided_slice %194 {offsets = [0, 128], sizes = [8, 128], strides = [1, 1]} : vector<8x384xf32> to vector<8x128xf32>
    %208 = vector.extract_strided_slice %198 {offsets = [0, 128], sizes = [8, 128], strides = [1, 1]} : vector<8x384xf32> to vector<8x128xf32>
    %209 = arith.addf %207, %208 : vector<8x128xf32>
    %210 = arith.negf %209 : vector<8x128xf32>
    %211 = math.exp %210 : vector<8x128xf32>
    %cst_97 = arith.constant 1.000000e+00 : f32
    %212 = vector.broadcast %cst_97 : f32 to vector<8x128xf32>
    %213 = arith.addf %212, %211 : vector<8x128xf32>
    %214 = arith.divf %212, %213 : vector<8x128xf32>
    %215 = vector.extract_strided_slice %194 {offsets = [0, 256], sizes = [8, 128], strides = [1, 1]} : vector<8x384xf32> to vector<8x128xf32>
    %216 = vector.extract_strided_slice %198 {offsets = [0, 256], sizes = [8, 128], strides = [1, 1]} : vector<8x384xf32> to vector<8x128xf32>
    %217 = arith.mulf %206, %216 : vector<8x128xf32>
    %218 = arith.addf %215, %217 : vector<8x128xf32>
    %219 = math.tanh %218 : vector<8x128xf32>
    %cst_98 = arith.constant 1.000000e+00 : f32
    %220 = vector.broadcast %cst_98 : f32 to vector<8x128xf32>
    %221 = arith.subf %220, %214 : vector<8x128xf32>
    %222 = arith.mulf %221, %219 : vector<8x128xf32>
    %223 = arith.mulf %214, %192 : vector<8x128xf32>
    %224 = arith.addf %222, %223 : vector<8x128xf32>
    %c40_99 = arith.constant 40 : index
    %c0_100 = arith.constant 0 : index
    %225 = vector.load %arg20[%c40_99, %c0_100] : memref<64x128xf32, #tpu.memory_space<vmem>>, vector<8x128xf32>
    tpu.vector_store %arg20[%c40_99, %c0_100], %224 {strides = array<i32>} : memref<64x128xf32, #tpu.memory_space<vmem>>, vector<8x128xf32>,
    %c48_101 = arith.constant 48 : index
    %c0_102 = arith.constant 0 : index
    %226 = vector.load %arg19[%c48_101, %c0_102] : memref<64x384xf32, #tpu.memory_space<vmem>>, vector<8x384xf32>
    %c0_103 = arith.constant 0 : index
    %c0_104 = arith.constant 0 : index
    %227 = vector.load %arg5[%c0_103, %c0_104] : memref<128x384xf32, #tpu.memory_space<vmem>>, vector<128x384xf32>
    %cst_105 = arith.constant dense<0.000000e+00> : vector<8x384xf32>
    %228 = tpu.matmul %224, %227, %cst_105 {dimension_numbers = #tpu.dot_dimension_numbers<[1], [0], [0], [1], [0, 0, 1, 1], [], []>} : vector<8x128xf32>, vector<128x384xf32>, vector<8x384xf32> -> vector<8x384xf32>
    %229 = vector.broadcast %32 : vector<1x384xf32> to vector<8x384xf32>
    %230 = arith.addf %228, %229 : vector<8x384xf32>
    %231 = vector.extract_strided_slice %226 {offsets = [0, 0], sizes = [8, 128], strides = [1, 1]} : vector<8x384xf32> to vector<8x128xf32>
    %232 = vector.extract_strided_slice %230 {offsets = [0, 0], sizes = [8, 128], strides = [1, 1]} : vector<8x384xf32> to vector<8x128xf32>
    %233 = arith.addf %231, %232 : vector<8x128xf32>
    %234 = arith.negf %233 : vector<8x128xf32>
    %235 = math.exp %234 : vector<8x128xf32>
    %cst_106 = arith.constant 1.000000e+00 : f32
    %236 = vector.broadcast %cst_106 : f32 to vector<8x128xf32>
    %237 = arith.addf %236, %235 : vector<8x128xf32>
    %238 = arith.divf %236, %237 : vector<8x128xf32>
    %239 = vector.extract_strided_slice %226 {offsets = [0, 128], sizes = [8, 128], strides = [1, 1]} : vector<8x384xf32> to vector<8x128xf32>
    %240 = vector.extract_strided_slice %230 {offsets = [0, 128], sizes = [8, 128], strides = [1, 1]} : vector<8x384xf32> to vector<8x128xf32>
    %241 = arith.addf %239, %240 : vector<8x128xf32>
    %242 = arith.negf %241 : vector<8x128xf32>
    %243 = math.exp %242 : vector<8x128xf32>
    %cst_107 = arith.constant 1.000000e+00 : f32
    %244 = vector.broadcast %cst_107 : f32 to vector<8x128xf32>
    %245 = arith.addf %244, %243 : vector<8x128xf32>
    %246 = arith.divf %244, %245 : vector<8x128xf32>
    %247 = vector.extract_strided_slice %226 {offsets = [0, 256], sizes = [8, 128], strides = [1, 1]} : vector<8x384xf32> to vector<8x128xf32>
    %248 = vector.extract_strided_slice %230 {offsets = [0, 256], sizes = [8, 128], strides = [1, 1]} : vector<8x384xf32> to vector<8x128xf32>
    %249 = arith.mulf %238, %248 : vector<8x128xf32>
    %250 = arith.addf %247, %249 : vector<8x128xf32>
    %251 = math.tanh %250 : vector<8x128xf32>
    %cst_108 = arith.constant 1.000000e+00 : f32
    %252 = vector.broadcast %cst_108 : f32 to vector<8x128xf32>
    %253 = arith.subf %252, %246 : vector<8x128xf32>
    %254 = arith.mulf %253, %251 : vector<8x128xf32>
    %255 = arith.mulf %246, %224 : vector<8x128xf32>
    %256 = arith.addf %254, %255 : vector<8x128xf32>
    %c48_109 = arith.constant 48 : index
    %c0_110 = arith.constant 0 : index
    %257 = vector.load %arg20[%c48_109, %c0_110] : memref<64x128xf32, #tpu.memory_space<vmem>>, vector<8x128xf32>
    tpu.vector_store %arg20[%c48_109, %c0_110], %256 {strides = array<i32>} : memref<64x128xf32, #tpu.memory_space<vmem>>, vector<8x128xf32>,
    %c56_111 = arith.constant 56 : index
    %c0_112 = arith.constant 0 : index
    %258 = vector.load %arg19[%c56_111, %c0_112] : memref<64x384xf32, #tpu.memory_space<vmem>>, vector<8x384xf32>
    %c0_113 = arith.constant 0 : index
    %c0_114 = arith.constant 0 : index
    %259 = vector.load %arg5[%c0_113, %c0_114] : memref<128x384xf32, #tpu.memory_space<vmem>>, vector<128x384xf32>
    %cst_115 = arith.constant dense<0.000000e+00> : vector<8x384xf32>
    %260 = tpu.matmul %256, %259, %cst_115 {dimension_numbers = #tpu.dot_dimension_numbers<[1], [0], [0], [1], [0, 0, 1, 1], [], []>} : vector<8x128xf32>, vector<128x384xf32>, vector<8x384xf32> -> vector<8x384xf32>
    %261 = vector.broadcast %32 : vector<1x384xf32> to vector<8x384xf32>
    %262 = arith.addf %260, %261 : vector<8x384xf32>
    %263 = vector.extract_strided_slice %258 {offsets = [0, 0], sizes = [8, 128], strides = [1, 1]} : vector<8x384xf32> to vector<8x128xf32>
    %264 = vector.extract_strided_slice %262 {offsets = [0, 0], sizes = [8, 128], strides = [1, 1]} : vector<8x384xf32> to vector<8x128xf32>
    %265 = arith.addf %263, %264 : vector<8x128xf32>
    %266 = arith.negf %265 : vector<8x128xf32>
    %267 = math.exp %266 : vector<8x128xf32>
    %cst_116 = arith.constant 1.000000e+00 : f32
    %268 = vector.broadcast %cst_116 : f32 to vector<8x128xf32>
    %269 = arith.addf %268, %267 : vector<8x128xf32>
    %270 = arith.divf %268, %269 : vector<8x128xf32>
    %271 = vector.extract_strided_slice %258 {offsets = [0, 128], sizes = [8, 128], strides = [1, 1]} : vector<8x384xf32> to vector<8x128xf32>
    %272 = vector.extract_strided_slice %262 {offsets = [0, 128], sizes = [8, 128], strides = [1, 1]} : vector<8x384xf32> to vector<8x128xf32>
    %273 = arith.addf %271, %272 : vector<8x128xf32>
    %274 = arith.negf %273 : vector<8x128xf32>
    %275 = math.exp %274 : vector<8x128xf32>
    %cst_117 = arith.constant 1.000000e+00 : f32
    %276 = vector.broadcast %cst_117 : f32 to vector<8x128xf32>
    %277 = arith.addf %276, %275 : vector<8x128xf32>
    %278 = arith.divf %276, %277 : vector<8x128xf32>
    %279 = vector.extract_strided_slice %258 {offsets = [0, 256], sizes = [8, 128], strides = [1, 1]} : vector<8x384xf32> to vector<8x128xf32>
    %280 = vector.extract_strided_slice %262 {offsets = [0, 256], sizes = [8, 128], strides = [1, 1]} : vector<8x384xf32> to vector<8x128xf32>
    %281 = arith.mulf %270, %280 : vector<8x128xf32>
    %282 = arith.addf %279, %281 : vector<8x128xf32>
    %283 = math.tanh %282 : vector<8x128xf32>
    %cst_118 = arith.constant 1.000000e+00 : f32
    %284 = vector.broadcast %cst_118 : f32 to vector<8x128xf32>
    %285 = arith.subf %284, %278 : vector<8x128xf32>
    %286 = arith.mulf %285, %283 : vector<8x128xf32>
    %287 = arith.mulf %278, %256 : vector<8x128xf32>
    %288 = arith.addf %286, %287 : vector<8x128xf32>
    %c56_119 = arith.constant 56 : index
    %c0_120 = arith.constant 0 : index
    %289 = vector.load %arg20[%c56_119, %c0_120] : memref<64x128xf32, #tpu.memory_space<vmem>>, vector<8x128xf32>
    tpu.vector_store %arg20[%c56_119, %c0_120], %288 {strides = array<i32>} : memref<64x128xf32, #tpu.memory_space<vmem>>, vector<8x128xf32>,
    %c0_121 = arith.constant 0 : index
    %c0_122 = arith.constant 0 : index
    %290 = vector.load %arg20[%c0_121, %c0_122] : memref<64x128xf32, #tpu.memory_space<vmem>>, vector<64x128xf32>
    %c0_123 = arith.constant 0 : index
    %c0_124 = arith.constant 0 : index
    %291 = vector.load %arg8[%c0_123, %c0_124] : memref<128x384xf32, #tpu.memory_space<vmem>>, vector<128x384xf32>
    %cst_125 = arith.constant dense<0.000000e+00> : vector<64x384xf32>
    %292 = tpu.matmul %290, %291, %cst_125 {dimension_numbers = #tpu.dot_dimension_numbers<[1], [0], [0], [1], [0, 0, 1, 1], [], []>} : vector<64x128xf32>, vector<128x384xf32>, vector<64x384xf32> -> vector<64x384xf32>
    %c0_126 = arith.constant 0 : index
    %c0_127 = arith.constant 0 : index
    %293 = vector.load %arg10[%c0_126, %c0_127] : memref<1x384xf32, #tpu.memory_space<vmem>>, vector<1x384xf32>
    %294 = vector.broadcast %293 : vector<1x384xf32> to vector<64x384xf32>
    %295 = arith.addf %292, %294 : vector<64x384xf32>
    %c0_128 = arith.constant 0 : index
    %c0_129 = arith.constant 0 : index
    %296 = vector.load %arg19[%c0_128, %c0_129] : memref<64x384xf32, #tpu.memory_space<vmem>>, vector<64x384xf32>
    tpu.vector_store %arg19[%c0_128, %c0_129], %295 {strides = array<i32>} : memref<64x384xf32, #tpu.memory_space<vmem>>, vector<64x384xf32>,
    %c0_130 = arith.constant 0 : index
    %c0_131 = arith.constant 0 : index
    %297 = vector.load %arg11[%c0_130, %c0_131] : memref<1x384xf32, #tpu.memory_space<vmem>>, vector<1x384xf32>
    %cst_132 = arith.constant 0.000000e+00 : f32
    %298 = vector.broadcast %cst_132 : f32 to vector<8x128xf32>
    %c0_133 = arith.constant 0 : index
    %c0_134 = arith.constant 0 : index
    %299 = vector.load %arg19[%c0_133, %c0_134] : memref<64x384xf32, #tpu.memory_space<vmem>>, vector<8x384xf32>
    %c0_135 = arith.constant 0 : index
    %c0_136 = arith.constant 0 : index
    %300 = vector.load %arg9[%c0_135, %c0_136] : memref<128x384xf32, #tpu.memory_space<vmem>>, vector<128x384xf32>
    %cst_137 = arith.constant dense<0.000000e+00> : vector<8x384xf32>
    %301 = tpu.matmul %298, %300, %cst_137 {dimension_numbers = #tpu.dot_dimension_numbers<[1], [0], [0], [1], [0, 0, 1, 1], [], []>} : vector<8x128xf32>, vector<128x384xf32>, vector<8x384xf32> -> vector<8x384xf32>
    %302 = vector.broadcast %297 : vector<1x384xf32> to vector<8x384xf32>
    %303 = arith.addf %301, %302 : vector<8x384xf32>
    %304 = vector.extract_strided_slice %299 {offsets = [0, 0], sizes = [8, 128], strides = [1, 1]} : vector<8x384xf32> to vector<8x128xf32>
    %305 = vector.extract_strided_slice %303 {offsets = [0, 0], sizes = [8, 128], strides = [1, 1]} : vector<8x384xf32> to vector<8x128xf32>
    %306 = arith.addf %304, %305 : vector<8x128xf32>
    %307 = arith.negf %306 : vector<8x128xf32>
    %308 = math.exp %307 : vector<8x128xf32>
    %cst_138 = arith.constant 1.000000e+00 : f32
    %309 = vector.broadcast %cst_138 : f32 to vector<8x128xf32>
    %310 = arith.addf %309, %308 : vector<8x128xf32>
    %311 = arith.divf %309, %310 : vector<8x128xf32>
    %312 = vector.extract_strided_slice %299 {offsets = [0, 128], sizes = [8, 128], strides = [1, 1]} : vector<8x384xf32> to vector<8x128xf32>
    %313 = vector.extract_strided_slice %303 {offsets = [0, 128], sizes = [8, 128], strides = [1, 1]} : vector<8x384xf32> to vector<8x128xf32>
    %314 = arith.addf %312, %313 : vector<8x128xf32>
    %315 = arith.negf %314 : vector<8x128xf32>
    %316 = math.exp %315 : vector<8x128xf32>
    %cst_139 = arith.constant 1.000000e+00 : f32
    %317 = vector.broadcast %cst_139 : f32 to vector<8x128xf32>
    %318 = arith.addf %317, %316 : vector<8x128xf32>
    %319 = arith.divf %317, %318 : vector<8x128xf32>
    %320 = vector.extract_strided_slice %299 {offsets = [0, 256], sizes = [8, 128], strides = [1, 1]} : vector<8x384xf32> to vector<8x128xf32>
    %321 = vector.extract_strided_slice %303 {offsets = [0, 256], sizes = [8, 128], strides = [1, 1]} : vector<8x384xf32> to vector<8x128xf32>
    %322 = arith.mulf %311, %321 : vector<8x128xf32>
    %323 = arith.addf %320, %322 : vector<8x128xf32>
    %324 = math.tanh %323 : vector<8x128xf32>
    %cst_140 = arith.constant 1.000000e+00 : f32
    %325 = vector.broadcast %cst_140 : f32 to vector<8x128xf32>
    %326 = arith.subf %325, %319 : vector<8x128xf32>
    %327 = arith.mulf %326, %324 : vector<8x128xf32>
    %328 = arith.mulf %319, %298 : vector<8x128xf32>
    %329 = arith.addf %327, %328 : vector<8x128xf32>
    %c0_141 = arith.constant 0 : index
    %c0_142 = arith.constant 0 : index
    %330 = vector.load %arg20[%c0_141, %c0_142] : memref<64x128xf32, #tpu.memory_space<vmem>>, vector<8x128xf32>
    tpu.vector_store %arg20[%c0_141, %c0_142], %329 {strides = array<i32>} : memref<64x128xf32, #tpu.memory_space<vmem>>, vector<8x128xf32>,
    %c8_143 = arith.constant 8 : index
    %c0_144 = arith.constant 0 : index
    %331 = vector.load %arg19[%c8_143, %c0_144] : memref<64x384xf32, #tpu.memory_space<vmem>>, vector<8x384xf32>
    %c0_145 = arith.constant 0 : index
    %c0_146 = arith.constant 0 : index
    %332 = vector.load %arg9[%c0_145, %c0_146] : memref<128x384xf32, #tpu.memory_space<vmem>>, vector<128x384xf32>
    %cst_147 = arith.constant dense<0.000000e+00> : vector<8x384xf32>
    %333 = tpu.matmul %329, %332, %cst_147 {dimension_numbers = #tpu.dot_dimension_numbers<[1], [0], [0], [1], [0, 0, 1, 1], [], []>} : vector<8x128xf32>, vector<128x384xf32>, vector<8x384xf32> -> vector<8x384xf32>
    %334 = vector.broadcast %297 : vector<1x384xf32> to vector<8x384xf32>
    %335 = arith.addf %333, %334 : vector<8x384xf32>
    %336 = vector.extract_strided_slice %331 {offsets = [0, 0], sizes = [8, 128], strides = [1, 1]} : vector<8x384xf32> to vector<8x128xf32>
    %337 = vector.extract_strided_slice %335 {offsets = [0, 0], sizes = [8, 128], strides = [1, 1]} : vector<8x384xf32> to vector<8x128xf32>
    %338 = arith.addf %336, %337 : vector<8x128xf32>
    %339 = arith.negf %338 : vector<8x128xf32>
    %340 = math.exp %339 : vector<8x128xf32>
    %cst_148 = arith.constant 1.000000e+00 : f32
    %341 = vector.broadcast %cst_148 : f32 to vector<8x128xf32>
    %342 = arith.addf %341, %340 : vector<8x128xf32>
    %343 = arith.divf %341, %342 : vector<8x128xf32>
    %344 = vector.extract_strided_slice %331 {offsets = [0, 128], sizes = [8, 128], strides = [1, 1]} : vector<8x384xf32> to vector<8x128xf32>
    %345 = vector.extract_strided_slice %335 {offsets = [0, 128], sizes = [8, 128], strides = [1, 1]} : vector<8x384xf32> to vector<8x128xf32>
    %346 = arith.addf %344, %345 : vector<8x128xf32>
    %347 = arith.negf %346 : vector<8x128xf32>
    %348 = math.exp %347 : vector<8x128xf32>
    %cst_149 = arith.constant 1.000000e+00 : f32
    %349 = vector.broadcast %cst_149 : f32 to vector<8x128xf32>
    %350 = arith.addf %349, %348 : vector<8x128xf32>
    %351 = arith.divf %349, %350 : vector<8x128xf32>
    %352 = vector.extract_strided_slice %331 {offsets = [0, 256], sizes = [8, 128], strides = [1, 1]} : vector<8x384xf32> to vector<8x128xf32>
    %353 = vector.extract_strided_slice %335 {offsets = [0, 256], sizes = [8, 128], strides = [1, 1]} : vector<8x384xf32> to vector<8x128xf32>
    %354 = arith.mulf %343, %353 : vector<8x128xf32>
    %355 = arith.addf %352, %354 : vector<8x128xf32>
    %356 = math.tanh %355 : vector<8x128xf32>
    %cst_150 = arith.constant 1.000000e+00 : f32
    %357 = vector.broadcast %cst_150 : f32 to vector<8x128xf32>
    %358 = arith.subf %357, %351 : vector<8x128xf32>
    %359 = arith.mulf %358, %356 : vector<8x128xf32>
    %360 = arith.mulf %351, %329 : vector<8x128xf32>
    %361 = arith.addf %359, %360 : vector<8x128xf32>
    %c8_151 = arith.constant 8 : index
    %c0_152 = arith.constant 0 : index
    %362 = vector.load %arg20[%c8_151, %c0_152] : memref<64x128xf32, #tpu.memory_space<vmem>>, vector<8x128xf32>
    tpu.vector_store %arg20[%c8_151, %c0_152], %361 {strides = array<i32>} : memref<64x128xf32, #tpu.memory_space<vmem>>, vector<8x128xf32>,
    %c16_153 = arith.constant 16 : index
    %c0_154 = arith.constant 0 : index
    %363 = vector.load %arg19[%c16_153, %c0_154] : memref<64x384xf32, #tpu.memory_space<vmem>>, vector<8x384xf32>
    %c0_155 = arith.constant 0 : index
    %c0_156 = arith.constant 0 : index
    %364 = vector.load %arg9[%c0_155, %c0_156] : memref<128x384xf32, #tpu.memory_space<vmem>>, vector<128x384xf32>
    %cst_157 = arith.constant dense<0.000000e+00> : vector<8x384xf32>
    %365 = tpu.matmul %361, %364, %cst_157 {dimension_numbers = #tpu.dot_dimension_numbers<[1], [0], [0], [1], [0, 0, 1, 1], [], []>} : vector<8x128xf32>, vector<128x384xf32>, vector<8x384xf32> -> vector<8x384xf32>
    %366 = vector.broadcast %297 : vector<1x384xf32> to vector<8x384xf32>
    %367 = arith.addf %365, %366 : vector<8x384xf32>
    %368 = vector.extract_strided_slice %363 {offsets = [0, 0], sizes = [8, 128], strides = [1, 1]} : vector<8x384xf32> to vector<8x128xf32>
    %369 = vector.extract_strided_slice %367 {offsets = [0, 0], sizes = [8, 128], strides = [1, 1]} : vector<8x384xf32> to vector<8x128xf32>
    %370 = arith.addf %368, %369 : vector<8x128xf32>
    %371 = arith.negf %370 : vector<8x128xf32>
    %372 = math.exp %371 : vector<8x128xf32>
    %cst_158 = arith.constant 1.000000e+00 : f32
    %373 = vector.broadcast %cst_158 : f32 to vector<8x128xf32>
    %374 = arith.addf %373, %372 : vector<8x128xf32>
    %375 = arith.divf %373, %374 : vector<8x128xf32>
    %376 = vector.extract_strided_slice %363 {offsets = [0, 128], sizes = [8, 128], strides = [1, 1]} : vector<8x384xf32> to vector<8x128xf32>
    %377 = vector.extract_strided_slice %367 {offsets = [0, 128], sizes = [8, 128], strides = [1, 1]} : vector<8x384xf32> to vector<8x128xf32>
    %378 = arith.addf %376, %377 : vector<8x128xf32>
    %379 = arith.negf %378 : vector<8x128xf32>
    %380 = math.exp %379 : vector<8x128xf32>
    %cst_159 = arith.constant 1.000000e+00 : f32
    %381 = vector.broadcast %cst_159 : f32 to vector<8x128xf32>
    %382 = arith.addf %381, %380 : vector<8x128xf32>
    %383 = arith.divf %381, %382 : vector<8x128xf32>
    %384 = vector.extract_strided_slice %363 {offsets = [0, 256], sizes = [8, 128], strides = [1, 1]} : vector<8x384xf32> to vector<8x128xf32>
    %385 = vector.extract_strided_slice %367 {offsets = [0, 256], sizes = [8, 128], strides = [1, 1]} : vector<8x384xf32> to vector<8x128xf32>
    %386 = arith.mulf %375, %385 : vector<8x128xf32>
    %387 = arith.addf %384, %386 : vector<8x128xf32>
    %388 = math.tanh %387 : vector<8x128xf32>
    %cst_160 = arith.constant 1.000000e+00 : f32
    %389 = vector.broadcast %cst_160 : f32 to vector<8x128xf32>
    %390 = arith.subf %389, %383 : vector<8x128xf32>
    %391 = arith.mulf %390, %388 : vector<8x128xf32>
    %392 = arith.mulf %383, %361 : vector<8x128xf32>
    %393 = arith.addf %391, %392 : vector<8x128xf32>
    %c16_161 = arith.constant 16 : index
    %c0_162 = arith.constant 0 : index
    %394 = vector.load %arg20[%c16_161, %c0_162] : memref<64x128xf32, #tpu.memory_space<vmem>>, vector<8x128xf32>
    tpu.vector_store %arg20[%c16_161, %c0_162], %393 {strides = array<i32>} : memref<64x128xf32, #tpu.memory_space<vmem>>, vector<8x128xf32>,
    %c24_163 = arith.constant 24 : index
    %c0_164 = arith.constant 0 : index
    %395 = vector.load %arg19[%c24_163, %c0_164] : memref<64x384xf32, #tpu.memory_space<vmem>>, vector<8x384xf32>
    %c0_165 = arith.constant 0 : index
    %c0_166 = arith.constant 0 : index
    %396 = vector.load %arg9[%c0_165, %c0_166] : memref<128x384xf32, #tpu.memory_space<vmem>>, vector<128x384xf32>
    %cst_167 = arith.constant dense<0.000000e+00> : vector<8x384xf32>
    %397 = tpu.matmul %393, %396, %cst_167 {dimension_numbers = #tpu.dot_dimension_numbers<[1], [0], [0], [1], [0, 0, 1, 1], [], []>} : vector<8x128xf32>, vector<128x384xf32>, vector<8x384xf32> -> vector<8x384xf32>
    %398 = vector.broadcast %297 : vector<1x384xf32> to vector<8x384xf32>
    %399 = arith.addf %397, %398 : vector<8x384xf32>
    %400 = vector.extract_strided_slice %395 {offsets = [0, 0], sizes = [8, 128], strides = [1, 1]} : vector<8x384xf32> to vector<8x128xf32>
    %401 = vector.extract_strided_slice %399 {offsets = [0, 0], sizes = [8, 128], strides = [1, 1]} : vector<8x384xf32> to vector<8x128xf32>
    %402 = arith.addf %400, %401 : vector<8x128xf32>
    %403 = arith.negf %402 : vector<8x128xf32>
    %404 = math.exp %403 : vector<8x128xf32>
    %cst_168 = arith.constant 1.000000e+00 : f32
    %405 = vector.broadcast %cst_168 : f32 to vector<8x128xf32>
    %406 = arith.addf %405, %404 : vector<8x128xf32>
    %407 = arith.divf %405, %406 : vector<8x128xf32>
    %408 = vector.extract_strided_slice %395 {offsets = [0, 128], sizes = [8, 128], strides = [1, 1]} : vector<8x384xf32> to vector<8x128xf32>
    %409 = vector.extract_strided_slice %399 {offsets = [0, 128], sizes = [8, 128], strides = [1, 1]} : vector<8x384xf32> to vector<8x128xf32>
    %410 = arith.addf %408, %409 : vector<8x128xf32>
    %411 = arith.negf %410 : vector<8x128xf32>
    %412 = math.exp %411 : vector<8x128xf32>
    %cst_169 = arith.constant 1.000000e+00 : f32
    %413 = vector.broadcast %cst_169 : f32 to vector<8x128xf32>
    %414 = arith.addf %413, %412 : vector<8x128xf32>
    %415 = arith.divf %413, %414 : vector<8x128xf32>
    %416 = vector.extract_strided_slice %395 {offsets = [0, 256], sizes = [8, 128], strides = [1, 1]} : vector<8x384xf32> to vector<8x128xf32>
    %417 = vector.extract_strided_slice %399 {offsets = [0, 256], sizes = [8, 128], strides = [1, 1]} : vector<8x384xf32> to vector<8x128xf32>
    %418 = arith.mulf %407, %417 : vector<8x128xf32>
    %419 = arith.addf %416, %418 : vector<8x128xf32>
    %420 = math.tanh %419 : vector<8x128xf32>
    %cst_170 = arith.constant 1.000000e+00 : f32
    %421 = vector.broadcast %cst_170 : f32 to vector<8x128xf32>
    %422 = arith.subf %421, %415 : vector<8x128xf32>
    %423 = arith.mulf %422, %420 : vector<8x128xf32>
    %424 = arith.mulf %415, %393 : vector<8x128xf32>
    %425 = arith.addf %423, %424 : vector<8x128xf32>
    %c24_171 = arith.constant 24 : index
    %c0_172 = arith.constant 0 : index
    %426 = vector.load %arg20[%c24_171, %c0_172] : memref<64x128xf32, #tpu.memory_space<vmem>>, vector<8x128xf32>
    tpu.vector_store %arg20[%c24_171, %c0_172], %425 {strides = array<i32>} : memref<64x128xf32, #tpu.memory_space<vmem>>, vector<8x128xf32>,
    %c32_173 = arith.constant 32 : index
    %c0_174 = arith.constant 0 : index
    %427 = vector.load %arg19[%c32_173, %c0_174] : memref<64x384xf32, #tpu.memory_space<vmem>>, vector<8x384xf32>
    %c0_175 = arith.constant 0 : index
    %c0_176 = arith.constant 0 : index
    %428 = vector.load %arg9[%c0_175, %c0_176] : memref<128x384xf32, #tpu.memory_space<vmem>>, vector<128x384xf32>
    %cst_177 = arith.constant dense<0.000000e+00> : vector<8x384xf32>
    %429 = tpu.matmul %425, %428, %cst_177 {dimension_numbers = #tpu.dot_dimension_numbers<[1], [0], [0], [1], [0, 0, 1, 1], [], []>} : vector<8x128xf32>, vector<128x384xf32>, vector<8x384xf32> -> vector<8x384xf32>
    %430 = vector.broadcast %297 : vector<1x384xf32> to vector<8x384xf32>
    %431 = arith.addf %429, %430 : vector<8x384xf32>
    %432 = vector.extract_strided_slice %427 {offsets = [0, 0], sizes = [8, 128], strides = [1, 1]} : vector<8x384xf32> to vector<8x128xf32>
    %433 = vector.extract_strided_slice %431 {offsets = [0, 0], sizes = [8, 128], strides = [1, 1]} : vector<8x384xf32> to vector<8x128xf32>
    %434 = arith.addf %432, %433 : vector<8x128xf32>
    %435 = arith.negf %434 : vector<8x128xf32>
    %436 = math.exp %435 : vector<8x128xf32>
    %cst_178 = arith.constant 1.000000e+00 : f32
    %437 = vector.broadcast %cst_178 : f32 to vector<8x128xf32>
    %438 = arith.addf %437, %436 : vector<8x128xf32>
    %439 = arith.divf %437, %438 : vector<8x128xf32>
    %440 = vector.extract_strided_slice %427 {offsets = [0, 128], sizes = [8, 128], strides = [1, 1]} : vector<8x384xf32> to vector<8x128xf32>
    %441 = vector.extract_strided_slice %431 {offsets = [0, 128], sizes = [8, 128], strides = [1, 1]} : vector<8x384xf32> to vector<8x128xf32>
    %442 = arith.addf %440, %441 : vector<8x128xf32>
    %443 = arith.negf %442 : vector<8x128xf32>
    %444 = math.exp %443 : vector<8x128xf32>
    %cst_179 = arith.constant 1.000000e+00 : f32
    %445 = vector.broadcast %cst_179 : f32 to vector<8x128xf32>
    %446 = arith.addf %445, %444 : vector<8x128xf32>
    %447 = arith.divf %445, %446 : vector<8x128xf32>
    %448 = vector.extract_strided_slice %427 {offsets = [0, 256], sizes = [8, 128], strides = [1, 1]} : vector<8x384xf32> to vector<8x128xf32>
    %449 = vector.extract_strided_slice %431 {offsets = [0, 256], sizes = [8, 128], strides = [1, 1]} : vector<8x384xf32> to vector<8x128xf32>
    %450 = arith.mulf %439, %449 : vector<8x128xf32>
    %451 = arith.addf %448, %450 : vector<8x128xf32>
    %452 = math.tanh %451 : vector<8x128xf32>
    %cst_180 = arith.constant 1.000000e+00 : f32
    %453 = vector.broadcast %cst_180 : f32 to vector<8x128xf32>
    %454 = arith.subf %453, %447 : vector<8x128xf32>
    %455 = arith.mulf %454, %452 : vector<8x128xf32>
    %456 = arith.mulf %447, %425 : vector<8x128xf32>
    %457 = arith.addf %455, %456 : vector<8x128xf32>
    %c32_181 = arith.constant 32 : index
    %c0_182 = arith.constant 0 : index
    %458 = vector.load %arg20[%c32_181, %c0_182] : memref<64x128xf32, #tpu.memory_space<vmem>>, vector<8x128xf32>
    tpu.vector_store %arg20[%c32_181, %c0_182], %457 {strides = array<i32>} : memref<64x128xf32, #tpu.memory_space<vmem>>, vector<8x128xf32>,
    %c40_183 = arith.constant 40 : index
    %c0_184 = arith.constant 0 : index
    %459 = vector.load %arg19[%c40_183, %c0_184] : memref<64x384xf32, #tpu.memory_space<vmem>>, vector<8x384xf32>
    %c0_185 = arith.constant 0 : index
    %c0_186 = arith.constant 0 : index
    %460 = vector.load %arg9[%c0_185, %c0_186] : memref<128x384xf32, #tpu.memory_space<vmem>>, vector<128x384xf32>
    %cst_187 = arith.constant dense<0.000000e+00> : vector<8x384xf32>
    %461 = tpu.matmul %457, %460, %cst_187 {dimension_numbers = #tpu.dot_dimension_numbers<[1], [0], [0], [1], [0, 0, 1, 1], [], []>} : vector<8x128xf32>, vector<128x384xf32>, vector<8x384xf32> -> vector<8x384xf32>
    %462 = vector.broadcast %297 : vector<1x384xf32> to vector<8x384xf32>
    %463 = arith.addf %461, %462 : vector<8x384xf32>
    %464 = vector.extract_strided_slice %459 {offsets = [0, 0], sizes = [8, 128], strides = [1, 1]} : vector<8x384xf32> to vector<8x128xf32>
    %465 = vector.extract_strided_slice %463 {offsets = [0, 0], sizes = [8, 128], strides = [1, 1]} : vector<8x384xf32> to vector<8x128xf32>
    %466 = arith.addf %464, %465 : vector<8x128xf32>
    %467 = arith.negf %466 : vector<8x128xf32>
    %468 = math.exp %467 : vector<8x128xf32>
    %cst_188 = arith.constant 1.000000e+00 : f32
    %469 = vector.broadcast %cst_188 : f32 to vector<8x128xf32>
    %470 = arith.addf %469, %468 : vector<8x128xf32>
    %471 = arith.divf %469, %470 : vector<8x128xf32>
    %472 = vector.extract_strided_slice %459 {offsets = [0, 128], sizes = [8, 128], strides = [1, 1]} : vector<8x384xf32> to vector<8x128xf32>
    %473 = vector.extract_strided_slice %463 {offsets = [0, 128], sizes = [8, 128], strides = [1, 1]} : vector<8x384xf32> to vector<8x128xf32>
    %474 = arith.addf %472, %473 : vector<8x128xf32>
    %475 = arith.negf %474 : vector<8x128xf32>
    %476 = math.exp %475 : vector<8x128xf32>
    %cst_189 = arith.constant 1.000000e+00 : f32
    %477 = vector.broadcast %cst_189 : f32 to vector<8x128xf32>
    %478 = arith.addf %477, %476 : vector<8x128xf32>
    %479 = arith.divf %477, %478 : vector<8x128xf32>
    %480 = vector.extract_strided_slice %459 {offsets = [0, 256], sizes = [8, 128], strides = [1, 1]} : vector<8x384xf32> to vector<8x128xf32>
    %481 = vector.extract_strided_slice %463 {offsets = [0, 256], sizes = [8, 128], strides = [1, 1]} : vector<8x384xf32> to vector<8x128xf32>
    %482 = arith.mulf %471, %481 : vector<8x128xf32>
    %483 = arith.addf %480, %482 : vector<8x128xf32>
    %484 = math.tanh %483 : vector<8x128xf32>
    %cst_190 = arith.constant 1.000000e+00 : f32
    %485 = vector.broadcast %cst_190 : f32 to vector<8x128xf32>
    %486 = arith.subf %485, %479 : vector<8x128xf32>
    %487 = arith.mulf %486, %484 : vector<8x128xf32>
    %488 = arith.mulf %479, %457 : vector<8x128xf32>
    %489 = arith.addf %487, %488 : vector<8x128xf32>
    %c40_191 = arith.constant 40 : index
    %c0_192 = arith.constant 0 : index
    %490 = vector.load %arg20[%c40_191, %c0_192] : memref<64x128xf32, #tpu.memory_space<vmem>>, vector<8x128xf32>
    tpu.vector_store %arg20[%c40_191, %c0_192], %489 {strides = array<i32>} : memref<64x128xf32, #tpu.memory_space<vmem>>, vector<8x128xf32>,
    %c48_193 = arith.constant 48 : index
    %c0_194 = arith.constant 0 : index
    %491 = vector.load %arg19[%c48_193, %c0_194] : memref<64x384xf32, #tpu.memory_space<vmem>>, vector<8x384xf32>
    %c0_195 = arith.constant 0 : index
    %c0_196 = arith.constant 0 : index
    %492 = vector.load %arg9[%c0_195, %c0_196] : memref<128x384xf32, #tpu.memory_space<vmem>>, vector<128x384xf32>
    %cst_197 = arith.constant dense<0.000000e+00> : vector<8x384xf32>
    %493 = tpu.matmul %489, %492, %cst_197 {dimension_numbers = #tpu.dot_dimension_numbers<[1], [0], [0], [1], [0, 0, 1, 1], [], []>} : vector<8x128xf32>, vector<128x384xf32>, vector<8x384xf32> -> vector<8x384xf32>
    %494 = vector.broadcast %297 : vector<1x384xf32> to vector<8x384xf32>
    %495 = arith.addf %493, %494 : vector<8x384xf32>
    %496 = vector.extract_strided_slice %491 {offsets = [0, 0], sizes = [8, 128], strides = [1, 1]} : vector<8x384xf32> to vector<8x128xf32>
    %497 = vector.extract_strided_slice %495 {offsets = [0, 0], sizes = [8, 128], strides = [1, 1]} : vector<8x384xf32> to vector<8x128xf32>
    %498 = arith.addf %496, %497 : vector<8x128xf32>
    %499 = arith.negf %498 : vector<8x128xf32>
    %500 = math.exp %499 : vector<8x128xf32>
    %cst_198 = arith.constant 1.000000e+00 : f32
    %501 = vector.broadcast %cst_198 : f32 to vector<8x128xf32>
    %502 = arith.addf %501, %500 : vector<8x128xf32>
    %503 = arith.divf %501, %502 : vector<8x128xf32>
    %504 = vector.extract_strided_slice %491 {offsets = [0, 128], sizes = [8, 128], strides = [1, 1]} : vector<8x384xf32> to vector<8x128xf32>
    %505 = vector.extract_strided_slice %495 {offsets = [0, 128], sizes = [8, 128], strides = [1, 1]} : vector<8x384xf32> to vector<8x128xf32>
    %506 = arith.addf %504, %505 : vector<8x128xf32>
    %507 = arith.negf %506 : vector<8x128xf32>
    %508 = math.exp %507 : vector<8x128xf32>
    %cst_199 = arith.constant 1.000000e+00 : f32
    %509 = vector.broadcast %cst_199 : f32 to vector<8x128xf32>
    %510 = arith.addf %509, %508 : vector<8x128xf32>
    %511 = arith.divf %509, %510 : vector<8x128xf32>
    %512 = vector.extract_strided_slice %491 {offsets = [0, 256], sizes = [8, 128], strides = [1, 1]} : vector<8x384xf32> to vector<8x128xf32>
    %513 = vector.extract_strided_slice %495 {offsets = [0, 256], sizes = [8, 128], strides = [1, 1]} : vector<8x384xf32> to vector<8x128xf32>
    %514 = arith.mulf %503, %513 : vector<8x128xf32>
    %515 = arith.addf %512, %514 : vector<8x128xf32>
    %516 = math.tanh %515 : vector<8x128xf32>
    %cst_200 = arith.constant 1.000000e+00 : f32
    %517 = vector.broadcast %cst_200 : f32 to vector<8x128xf32>
    %518 = arith.subf %517, %511 : vector<8x128xf32>
    %519 = arith.mulf %518, %516 : vector<8x128xf32>
    %520 = arith.mulf %511, %489 : vector<8x128xf32>
    %521 = arith.addf %519, %520 : vector<8x128xf32>
    %c48_201 = arith.constant 48 : index
    %c0_202 = arith.constant 0 : index
    %522 = vector.load %arg20[%c48_201, %c0_202] : memref<64x128xf32, #tpu.memory_space<vmem>>, vector<8x128xf32>
    tpu.vector_store %arg20[%c48_201, %c0_202], %521 {strides = array<i32>} : memref<64x128xf32, #tpu.memory_space<vmem>>, vector<8x128xf32>,
    %c56_203 = arith.constant 56 : index
    %c0_204 = arith.constant 0 : index
    %523 = vector.load %arg19[%c56_203, %c0_204] : memref<64x384xf32, #tpu.memory_space<vmem>>, vector<8x384xf32>
    %c0_205 = arith.constant 0 : index
    %c0_206 = arith.constant 0 : index
    %524 = vector.load %arg9[%c0_205, %c0_206] : memref<128x384xf32, #tpu.memory_space<vmem>>, vector<128x384xf32>
    %cst_207 = arith.constant dense<0.000000e+00> : vector<8x384xf32>
    %525 = tpu.matmul %521, %524, %cst_207 {dimension_numbers = #tpu.dot_dimension_numbers<[1], [0], [0], [1], [0, 0, 1, 1], [], []>} : vector<8x128xf32>, vector<128x384xf32>, vector<8x384xf32> -> vector<8x384xf32>
    %526 = vector.broadcast %297 : vector<1x384xf32> to vector<8x384xf32>
    %527 = arith.addf %525, %526 : vector<8x384xf32>
    %528 = vector.extract_strided_slice %523 {offsets = [0, 0], sizes = [8, 128], strides = [1, 1]} : vector<8x384xf32> to vector<8x128xf32>
    %529 = vector.extract_strided_slice %527 {offsets = [0, 0], sizes = [8, 128], strides = [1, 1]} : vector<8x384xf32> to vector<8x128xf32>
    %530 = arith.addf %528, %529 : vector<8x128xf32>
    %531 = arith.negf %530 : vector<8x128xf32>
    %532 = math.exp %531 : vector<8x128xf32>
    %cst_208 = arith.constant 1.000000e+00 : f32
    %533 = vector.broadcast %cst_208 : f32 to vector<8x128xf32>
    %534 = arith.addf %533, %532 : vector<8x128xf32>
    %535 = arith.divf %533, %534 : vector<8x128xf32>
    %536 = vector.extract_strided_slice %523 {offsets = [0, 128], sizes = [8, 128], strides = [1, 1]} : vector<8x384xf32> to vector<8x128xf32>
    %537 = vector.extract_strided_slice %527 {offsets = [0, 128], sizes = [8, 128], strides = [1, 1]} : vector<8x384xf32> to vector<8x128xf32>
    %538 = arith.addf %536, %537 : vector<8x128xf32>
    %539 = arith.negf %538 : vector<8x128xf32>
    %540 = math.exp %539 : vector<8x128xf32>
    %cst_209 = arith.constant 1.000000e+00 : f32
    %541 = vector.broadcast %cst_209 : f32 to vector<8x128xf32>
    %542 = arith.addf %541, %540 : vector<8x128xf32>
    %543 = arith.divf %541, %542 : vector<8x128xf32>
    %544 = vector.extract_strided_slice %523 {offsets = [0, 256], sizes = [8, 128], strides = [1, 1]} : vector<8x384xf32> to vector<8x128xf32>
    %545 = vector.extract_strided_slice %527 {offsets = [0, 256], sizes = [8, 128], strides = [1, 1]} : vector<8x384xf32> to vector<8x128xf32>
    %546 = arith.mulf %535, %545 : vector<8x128xf32>
    %547 = arith.addf %544, %546 : vector<8x128xf32>
    %548 = math.tanh %547 : vector<8x128xf32>
    %cst_210 = arith.constant 1.000000e+00 : f32
    %549 = vector.broadcast %cst_210 : f32 to vector<8x128xf32>
    %550 = arith.subf %549, %543 : vector<8x128xf32>
    %551 = arith.mulf %550, %548 : vector<8x128xf32>
    %552 = arith.mulf %543, %521 : vector<8x128xf32>
    %553 = arith.addf %551, %552 : vector<8x128xf32>
    %c56_211 = arith.constant 56 : index
    %c0_212 = arith.constant 0 : index
    %554 = vector.load %arg20[%c56_211, %c0_212] : memref<64x128xf32, #tpu.memory_space<vmem>>, vector<8x128xf32>
    tpu.vector_store %arg20[%c56_211, %c0_212], %553 {strides = array<i32>} : memref<64x128xf32, #tpu.memory_space<vmem>>, vector<8x128xf32>,
    %c0_213 = arith.constant 0 : index
    %c0_214 = arith.constant 0 : index
    %555 = vector.load %arg20[%c0_213, %c0_214] : memref<64x128xf32, #tpu.memory_space<vmem>>, vector<64x128xf32>
    %c0_215 = arith.constant 0 : index
    %c0_216 = arith.constant 0 : index
    %556 = vector.load %arg12[%c0_215, %c0_216] : memref<128x128xf32, #tpu.memory_space<vmem>>, vector<128x128xf32>
    %cst_217 = arith.constant dense<0.000000e+00> : vector<64x128xf32>
    %557 = tpu.matmul %555, %556, %cst_217 {dimension_numbers = #tpu.dot_dimension_numbers<[1], [0], [0], [1], [0, 0, 1, 1], [], []>} : vector<64x128xf32>, vector<128x128xf32>, vector<64x128xf32> -> vector<64x128xf32>
    %c0_218 = arith.constant 0 : index
    %c0_219 = arith.constant 0 : index
    %558 = vector.load %arg13[%c0_218, %c0_219] : memref<1x128xf32, #tpu.memory_space<vmem>>, vector<1x128xf32>
    %559 = vector.broadcast %558 : vector<1x128xf32> to vector<64x128xf32>
    %560 = arith.addf %557, %559 : vector<64x128xf32>
    %561 = tpu.iota {dimensions = array<i32: 0>} : vector<64x128xi32>
    %c8_i32 = arith.constant 8 : i32
    %c0_i32 = arith.constant 0 : i32
    %562 = arith.cmpi eq, %c8_i32, %c0_i32 : i32
    %c1_i32 = arith.constant 1 : i32
    %563 = arith.select %562, %c1_i32, %c8_i32 : i32
    %564 = vector.broadcast %563 : i32 to vector<64x128xi32>
    %565 = arith.remsi %561, %564 : vector<64x128xi32>
    %c0_i32_220 = arith.constant 0 : i32
    %566 = vector.broadcast %c0_i32_220 : i32 to vector<64x128xi32>
    %567 = arith.cmpi ne, %565, %566 : vector<64x128xi32>
    %c0_i32_221 = arith.constant 0 : i32
    %568 = vector.broadcast %c0_i32_221 : i32 to vector<64x128xi32>
    %569 = arith.cmpi slt, %565, %568 : vector<64x128xi32>
    %c0_i32_222 = arith.constant 0 : i32
    %570 = arith.cmpi slt, %563, %c0_i32_222 : i32
    %571 = vector.broadcast %570 : i1 to vector<64x128xi1>
    %572 = vector.broadcast %571 : vector<64x128xi1> to vector<64x128xi1>
    %573 = arith.xori %569, %572 : vector<64x128xi1>
    %574 = arith.andi %573, %567 : vector<64x128xi1>
    %575 = vector.broadcast %563 : i32 to vector<64x128xi32>
    %576 = arith.addi %565, %575 : vector<64x128xi32>
    %577 = arith.select %574, %576, %565 : vector<64x128xi1>, vector<64x128xi32>
    %c2_i32 = arith.constant 2 : i32
    %578 = vector.broadcast %c2_i32 : i32 to vector<64x128xi32>
    %579 = arith.cmpi slt, %577, %578 : vector<64x128xi32>
    %580 = arith.extui %579 : vector<64x128xi1> to vector<64x128xi32>
    %581 = arith.sitofp %580 : vector<64x128xi32> to vector<64x128xf32>
    %582 = arith.mulf %560, %581 : vector<64x128xf32>
    %cst_223 = arith.constant dense<0.000000e+00> : vector<128xf32>
    %583 = vector.multi_reduction <add>, %582, %cst_223 [0] : vector<64x128xf32> to vector<128xf32>
    %584 = vector.shape_cast %583 : vector<128xf32> to vector<1x128xf32>
    %cst_224 = arith.constant 6.250000e-02 : f32
    %585 = vector.broadcast %cst_224 : f32 to vector<1x128xf32>
    %586 = arith.mulf %584, %585 : vector<1x128xf32>
    %587 = vector.broadcast %586 : vector<1x128xf32> to vector<64x128xf32>
    %588 = arith.subf %560, %587 : vector<64x128xf32>
    %589 = arith.mulf %588, %581 : vector<64x128xf32>
    %590 = arith.mulf %589, %589 : vector<64x128xf32>
    %cst_225 = arith.constant dense<0.000000e+00> : vector<128xf32>
    %591 = vector.multi_reduction <add>, %590, %cst_225 [0] : vector<64x128xf32> to vector<128xf32>
    %592 = vector.shape_cast %591 : vector<128xf32> to vector<1x128xf32>
    %cst_226 = arith.constant 6.250000e-02 : f32
    %593 = vector.broadcast %cst_226 : f32 to vector<1x128xf32>
    %594 = arith.mulf %592, %593 : vector<1x128xf32>
    %595 = vector.broadcast %586 : vector<1x128xf32> to vector<64x128xf32>
    %596 = arith.subf %560, %595 : vector<64x128xf32>
    %cst_227 = arith.constant 9.99999974E-6 : f32
    %597 = vector.broadcast %cst_227 : f32 to vector<1x128xf32>
    %598 = arith.addf %594, %597 : vector<1x128xf32>
    %599 = math.rsqrt %598 : vector<1x128xf32>
    %600 = vector.broadcast %599 : vector<1x128xf32> to vector<64x128xf32>
    %601 = arith.mulf %596, %600 : vector<64x128xf32>
    %c0_228 = arith.constant 0 : index
    %c0_229 = arith.constant 0 : index
    %602 = vector.load %arg14[%c0_228, %c0_229] : memref<1x128xf32, #tpu.memory_space<vmem>>, vector<1x128xf32>
    %603 = vector.broadcast %602 : vector<1x128xf32> to vector<64x128xf32>
    %604 = arith.mulf %601, %603 : vector<64x128xf32>
    %c0_230 = arith.constant 0 : index
    %c0_231 = arith.constant 0 : index
    %605 = vector.load %arg15[%c0_230, %c0_231] : memref<1x128xf32, #tpu.memory_space<vmem>>, vector<1x128xf32>
    %606 = vector.broadcast %605 : vector<1x128xf32> to vector<64x128xf32>
    %607 = arith.addf %604, %606 : vector<64x128xf32>
    %c0_232 = arith.constant 0 : index
    %c0_233 = arith.constant 0 : index
    %608 = vector.load %arg16[%c0_232, %c0_233] : memref<64x128xf32, #tpu.memory_space<vmem>>, vector<64x128xf32>
    tpu.vector_store %arg16[%c0_232, %c0_233], %607 {strides = array<i32>} : memref<64x128xf32, #tpu.memory_space<vmem>>, vector<64x128xf32>,
    return
  }
  func.func @transform_0(%arg0: i32) -> (i32, i32) {
    %c0_i32 = arith.constant 0 : i32
    %c0_i32_0 = arith.constant 0 : i32
    %c0_i32_1 = arith.constant 0 : i32
    return %c0_i32, %c0_i32_0 : i32, i32
  }
  func.func @transform_1(%arg0: i32) -> (i32, i32) {
    %c0_i32 = arith.constant 0 : i32
    %c0_i32_0 = arith.constant 0 : i32
    %c0_i32_1 = arith.constant 0 : i32
    return %c0_i32, %c0_i32_0 : i32, i32
  }
  func.func @transform_2(%arg0: i32) -> (i32, i32) {
    %c0_i32 = arith.constant 0 : i32
    %c0_i32_0 = arith.constant 0 : i32
    %c0_i32_1 = arith.constant 0 : i32
    return %c0_i32, %c0_i32_0 : i32, i32
  }
  func.func @transform_3(%arg0: i32) -> (i32, i32) {
    %c0_i32 = arith.constant 0 : i32
    %c0_i32_0 = arith.constant 0 : i32
    %c0_i32_1 = arith.constant 0 : i32
    return %c0_i32, %c0_i32_0 : i32, i32
  }
  func.func @transform_4(%arg0: i32) -> (i32, i32) {
    %c0_i32 = arith.constant 0 : i32
    %c0_i32_0 = arith.constant 0 : i32
    %c0_i32_1 = arith.constant 0 : i32
    return %c0_i32, %c0_i32_0 : i32, i32
  }
  func.func @transform_5(%arg0: i32) -> (i32, i32) {
    %c0_i32 = arith.constant 0 : i32
    %c0_i32_0 = arith.constant 0 : i32
    %c0_i32_1 = arith.constant 0 : i32
    return %c0_i32, %c0_i32_0 : i32, i32
  }
  func.func @transform_6(%arg0: i32) -> (i32, i32) {
    %c0_i32 = arith.constant 0 : i32
    %c0_i32_0 = arith.constant 0 : i32
    %c0_i32_1 = arith.constant 0 : i32
    return %c0_i32, %c0_i32_0 : i32, i32
  }
  func.func @transform_7(%arg0: i32) -> (i32, i32) {
    %c0_i32 = arith.constant 0 : i32
    %c0_i32_0 = arith.constant 0 : i32
    %c0_i32_1 = arith.constant 0 : i32
    return %c0_i32, %c0_i32_0 : i32, i32
  }
  func.func @transform_8(%arg0: i32) -> (i32, i32) {
    %c0_i32 = arith.constant 0 : i32
    %c0_i32_0 = arith.constant 0 : i32
    %c0_i32_1 = arith.constant 0 : i32
    return %c0_i32, %c0_i32_0 : i32, i32
  }
  func.func @transform_9(%arg0: i32) -> (i32, i32) {
    %c0_i32 = arith.constant 0 : i32
    %c0_i32_0 = arith.constant 0 : i32
    %c0_i32_1 = arith.constant 0 : i32
    return %c0_i32, %c0_i32_0 : i32, i32
  }
  func.func @transform_10(%arg0: i32) -> (i32, i32) {
    %c0_i32 = arith.constant 0 : i32
    %c0_i32_0 = arith.constant 0 : i32
    %c0_i32_1 = arith.constant 0 : i32
    return %c0_i32, %c0_i32_0 : i32, i32
  }
  func.func @transform_11(%arg0: i32) -> (i32, i32) {
    %c0_i32 = arith.constant 0 : i32
    %c0_i32_0 = arith.constant 0 : i32
    %c0_i32_1 = arith.constant 0 : i32
    return %c0_i32, %c0_i32_0 : i32, i32
  }
  func.func @transform_12(%arg0: i32) -> (i32, i32) {
    %c0_i32 = arith.constant 0 : i32
    %c0_i32_0 = arith.constant 0 : i32
    %c0_i32_1 = arith.constant 0 : i32
    return %c0_i32, %c0_i32_0 : i32, i32
  }
  func.func @transform_13(%arg0: i32) -> (i32, i32) {
    %c0_i32 = arith.constant 0 : i32
    %c0_i32_0 = arith.constant 0 : i32
    %c0_i32_1 = arith.constant 0 : i32
    return %c0_i32, %c0_i32_0 : i32, i32
  }
  func.func @transform_14(%arg0: i32) -> (i32, i32) {
    %c0_i32 = arith.constant 0 : i32
    %c0_i32_0 = arith.constant 0 : i32
    %c0_i32_1 = arith.constant 0 : i32
    return %c0_i32, %c0_i32_0 : i32, i32
  }
  func.func @transform_15(%arg0: i32) -> (i32, i32) {
    %c0_i32 = arith.constant 0 : i32
    %c0_i32_0 = arith.constant 0 : i32
    %c0_i32_1 = arith.constant 0 : i32
    return %c0_i32, %c0_i32_0 : i32, i32
  }
}

</mosaic_0001>

<llo_original>
// kernel: _lambda_.1
$region0: #{_lambda_.1}
  #allocation0 [shape = 'u32[]', space=smem, size = 0x4, offset = 0x4, fixed_abs, tag = 'smem constant byte address 0x4 - core index']
  #allocation1 [shape = 'u32[144,128]{1,0:T(1,128)}', space=vmem, size = 0x12000, scoped, tag = 'internal scratch']
  #allocation2 [shape = 'f32[8,128]{1,0:T(8,128)}', space=vmem, size = 0x1000, scoped, tag = 'scratch operand']
  #allocation3 [shape = 'f32[64,16]{1,0:T(8,128)}', space=vmem, size = 0x8000, scoped, tag = 'scratch operand']
  #allocation4 [shape = 'f32[64,384]{1,0:T(8,128)}', space=vmem, size = 0x18000, scoped, tag = 'scratch operand']
  #allocation5 [shape = 'f32[64,128]{1,0:T(8,128)}', space=vmem, size = 0x8000, scoped, tag = 'scratch operand']
  %s0 = inlined_call_operand.vmem [shape: f32[8,16], index: 0, kind: input, shape index: {}]
  %s1 = inlined_call_operand.hbm [shape: f32[16,128], index: 1, kind: input, shape index: {}]
  %s2 = inlined_call_operand.vmem [shape: f32[1,128], index: 2, kind: input, shape index: {}]
  %s3 = inlined_call_operand.hbm [shape: f32[16,384], index: 3, kind: input, shape index: {}]
  %s4 = inlined_call_operand.hbm [shape: f32[128,384], index: 4, kind: input, shape index: {}]
  %s5 = inlined_call_operand.vmem [shape: f32[1,384], index: 5, kind: input, shape index: {}]
  %s6 = inlined_call_operand.vmem [shape: f32[1,384], index: 6, kind: input, shape index: {}]
  %s7 = inlined_call_operand.hbm [shape: f32[128,384], index: 7, kind: input, shape index: {}]
  %s8 = inlined_call_operand.hbm [shape: f32[128,384], index: 8, kind: input, shape index: {}]
  %s9 = inlined_call_operand.vmem [shape: f32[1,384], index: 9, kind: input, shape index: {}]
  %s10 = inlined_call_operand.vmem [shape: f32[1,384], index: 10, kind: input, shape index: {}]
  %s11 = inlined_call_operand.hbm [shape: f32[128,128], index: 11, kind: input, shape index: {}]
  %s12 = inlined_call_operand.vmem [shape: f32[1,128], index: 12, kind: input, shape index: {}]
  %s13 = inlined_call_operand.vmem [shape: f32[1,128], index: 13, kind: input, shape index: {}]
  %s14 = inlined_call_operand.vmem [shape: f32[1,128], index: 14, kind: input, shape index: {}]
  %s15 = inlined_call_operand.vmem [shape: f32[64,128], index: 15, kind: output, shape index: {}]
  %s16 = sld [smem:[#allocation0]]
  $region94: #{_lambda_.1} parent=0
    _
  %s18 = ssub.s32 1, %s16
  %s19 = scalar_select 0, %s18, %s16
  $region1: #{_lambda_.1} parent=0
    #allocation6 [shape = 'u8[8192]{0}', space=vmem, size = 0x2000, scoped, tag = 'input window, operand 1, single buffered']
    #allocation7 [shape = 's32[1]{0}', space=sflag, size = 0x4, scoped, tag = 'scoped memory for _lambda_.1']
    #allocation8 [shape = 'u8[24576]{0}', space=vmem, size = 0x6000, scoped, tag = 'input window, operand 3, single buffered']
    #allocation9 [shape = 's32[1]{0}', space=sflag, size = 0x4, scoped, tag = 'scoped memory for _lambda_.1']
    #allocation10 [shape = 'u8[196608]{0}', space=vmem, size = 0x30000, scoped, tag = 'input window, operand 4, single buffered']
    #allocation11 [shape = 'u8[196608]{0}', space=vmem, size = 0x30000, scoped, tag = 'input window, operand 7, single buffered']
    #allocation12 [shape = 's32[1]{0}', space=sflag, size = 0x4, scoped, tag = 'scoped memory for _lambda_.1']
    #allocation13 [shape = 'u8[196608]{0}', space=vmem, size = 0x30000, scoped, tag = 'input window, operand 8, single buffered']
    #allocation14 [shape = 'u8[65536]{0}', space=vmem, size = 0x10000, scoped, tag = 'input window, operand 11, single buffered']
    #allocation15 [shape = 's32[1]{0}', space=sflag, size = 0x4, scoped, tag = 'scoped memory for _lambda_.1']
    %20 = vsyncpa [#allocation7], 0
    %21 = vsyncpa [#allocation9], 0
    %22 = vsyncpa [#allocation12], 0
    %23 = vsyncpa [#allocation15], 0
    // Predicated region
    $region2: #{_lambda_.1} parent=1 // pred_check
      _
    $region3: #{_lambda_.1} parent=1 // pred_check_branch
      %25 = sbr.rel (0) target = $region5
    $region4: #{_lambda_.1} parent=1 // pred_region
      _
    $region5: #{_lambda_.1} parent=1 // pred_fallthru
      _
    // Predicated region
    $region6: #{_lambda_.1} parent=1 // pred_check
      _
    $region7: #{_lambda_.1} parent=1 // pred_check_branch
      %27 = sbr.rel (0) target = $region9
    $region8: #{_lambda_.1} parent=1 // pred_region
      %s29 = ssub.s32 256, 256
      %30 = vsyncadd [#allocation7], %s29
      %s31 = sshll.u32 [#allocation6], 4
      %s32 = int_to_ptr.vmem [resolvable:$true] %s31
      %37 = dma.hbm_to_vmem [thread:$0]  %s1, 256, %s32, [#allocation7], 128, 128, 8
    $region9: #{_lambda_.1} parent=1 // pred_fallthru
      _
    // Predicated region
    $region10: #{_lambda_.1} parent=1 // pred_check
      _
    $region11: #{_lambda_.1} parent=1 // pred_check_branch
      %39 = sbr.rel (0) target = $region13
    $region12: #{_lambda_.1} parent=1 // pred_region
      _
    $region13: #{_lambda_.1} parent=1 // pred_fallthru
      _
    // Predicated region
    $region14: #{_lambda_.1} parent=1 // pred_check
      _
    $region15: #{_lambda_.1} parent=1 // pred_check_branch
      %41 = sbr.rel (0) target = $region17
    $region16: #{_lambda_.1} parent=1 // pred_region
      %s43 = ssub.s32 768, 768
      %44 = vsyncadd [#allocation9], %s43
      %s45 = sshll.u32 [#allocation8], 4
      %s46 = int_to_ptr.vmem [resolvable:$true] %s45
      %51 = dma.hbm_to_vmem [thread:$0]  %s3, 768, %s46, [#allocation9], 384, 384, 24
    $region17: #{_lambda_.1} parent=1 // pred_fallthru
      _
    // Predicated region
    $region18: #{_lambda_.1} parent=1 // pred_check
      _
    $region19: #{_lambda_.1} parent=1 // pred_check_branch
      %53 = sbr.rel (0) target = $region21
    $region20: #{_lambda_.1} parent=1 // pred_region
      %s55 = ssub.s32 6144, 6144
      %56 = vsyncadd [#allocation9], %s55
      %s57 = sshll.u32 [#allocation10], 4
      %s58 = int_to_ptr.vmem [resolvable:$true] %s57
      %63 = dma.hbm_to_vmem [thread:$0]  %s4, 6144, %s58, [#allocation9], 384, 384, 24
    $region21: #{_lambda_.1} parent=1 // pred_fallthru
      _
    // Predicated region
    $region22: #{_lambda_.1} parent=1 // pred_check
      _
    $region23: #{_lambda_.1} parent=1 // pred_check_branch
      %65 = sbr.rel (0) target = $region25
    $region24: #{_lambda_.1} parent=1 // pred_region
      _
    $region25: #{_lambda_.1} parent=1 // pred_fallthru
      _
    // Predicated region
    $region26: #{_lambda_.1} parent=1 // pred_check
      _
    $region27: #{_lambda_.1} parent=1 // pred_check_branch
      %67 = sbr.rel (0) target = $region29
    $region28: #{_lambda_.1} parent=1 // pred_region
      _
    $region29: #{_lambda_.1} parent=1 // pred_fallthru
      _
    // Predicated region
    $region30: #{_lambda_.1} parent=1 // pred_check
      _
    $region31: #{_lambda_.1} parent=1 // pred_check_branch
      %69 = sbr.rel (0) target = $region33
    $region32: #{_lambda_.1} parent=1 // pred_region
      %s71 = ssub.s32 6144, 6144
      %72 = vsyncadd [#allocation12], %s71
      %s73 = sshll.u32 [#allocation11], 4
      %s74 = int_to_ptr.vmem [resolvable:$true] %s73
      %79 = dma.hbm_to_vmem [thread:$0]  %s7, 6144, %s74, [#allocation12], 384, 384, 24
    $region33: #{_lambda_.1} parent=1 // pred_fallthru
      _
    // Predicated region
    $region34: #{_lambda_.1} parent=1 // pred_check
      _
    $region35: #{_lambda_.1} parent=1 // pred_check_branch
      %81 = sbr.rel (0) target = $region37
    $region36: #{_lambda_.1} parent=1 // pred_region
      %s83 = ssub.s32 6144, 6144
      %84 = vsyncadd [#allocation12], %s83
      %s85 = sshll.u32 [#allocation13], 4
      %s86 = int_to_ptr.vmem [resolvable:$true] %s85
      %91 = dma.hbm_to_vmem [thread:$0]  %s8, 6144, %s86, [#allocation12], 384, 384, 24
    $region37: #{_lambda_.1} parent=1 // pred_fallthru
      _
    // Predicated region
    $region38: #{_lambda_.1} parent=1 // pred_check
      _
    $region39: #{_lambda_.1} parent=1 // pred_check_branch
      %93 = sbr.rel (0) target = $region41
    $region40: #{_lambda_.1} parent=1 // pred_region
      _
    $region41: #{_lambda_.1} parent=1 // pred_fallthru
      _
    // Predicated region
    $region42: #{_lambda_.1} parent=1 // pred_check
      _
    $region43: #{_lambda_.1} parent=1 // pred_check_branch
      %95 = sbr.rel (0) target = $region45
    $region44: #{_lambda_.1} parent=1 // pred_region
      _
    $region45: #{_lambda_.1} parent=1 // pred_fallthru
      _
    // Predicated region
    $region46: #{_lambda_.1} parent=1 // pred_check
      _
    $region47: #{_lambda_.1} parent=1 // pred_check_branch
      %97 = sbr.rel (0) target = $region49
    $region48: #{_lambda_.1} parent=1 // pred_region
      %s99 = ssub.s32 2048, 2048
      %100 = vsyncadd [#allocation15], %s99
      %s101 = sshll.u32 [#allocation14], 4
      %s102 = int_to_ptr.vmem [resolvable:$true] %s101
      %107 = dma.hbm_to_vmem [thread:$0]  %s11, 2048, %s102, [#allocation15], 128, 128, 8
    $region49: #{_lambda_.1} parent=1 // pred_fallthru
      _
    // Predicated region
    $region50: #{_lambda_.1} parent=1 // pred_check
      _
    $region51: #{_lambda_.1} parent=1 // pred_check_branch
      %109 = sbr.rel (0) target = $region53
    $region52: #{_lambda_.1} parent=1 // pred_region
      _
    $region53: #{_lambda_.1} parent=1 // pred_fallthru
      _
    // Predicated region
    $region54: #{_lambda_.1} parent=1 // pred_check
      _
    $region55: #{_lambda_.1} parent=1 // pred_check_branch
      %111 = sbr.rel (0) target = $region57
    $region56: #{_lambda_.1} parent=1 // pred_region
      _
    $region57: #{_lambda_.1} parent=1 // pred_fallthru
      _
    // Predicated region
    $region58: #{_lambda_.1} parent=1 // pred_check
      _
    $region59: #{_lambda_.1} parent=1 // pred_check_branch
      %113 = sbr.rel (0) target = $region61
    $region60: #{_lambda_.1} parent=1 // pred_region
      _
    $region61: #{_lambda_.1} parent=1 // pred_fallthru
      _
    // Predicated region
    $region62: #{_lambda_.1} parent=1 // pred_check
      _
    $region63: #{_lambda_.1} parent=1 // pred_check_branch
      %115 = sbr.rel (0) target = $region65
    $region64: #{_lambda_.1} parent=1 // pred_region
      %116 = dma.done [#allocation7], 256
    $region65: #{_lambda_.1} parent=1 // pred_fallthru
      _
    // Predicated region
    $region66: #{_lambda_.1} parent=1 // pred_check
      _
    $region67: #{_lambda_.1} parent=1 // pred_check_branch
      %118 = sbr.rel (0) target = $region69
    $region68: #{_lambda_.1} parent=1 // pred_region
      %119 = dma.done [#allocation9], 768
    $region69: #{_lambda_.1} parent=1 // pred_fallthru
      _
    // Predicated region
    $region70: #{_lambda_.1} parent=1 // pred_check
      _
    $region71: #{_lambda_.1} parent=1 // pred_check_branch
      %121 = sbr.rel (0) target = $region73
    $region72: #{_lambda_.1} parent=1 // pred_region
      %122 = dma.done [#allocation9], 6144
    $region73: #{_lambda_.1} parent=1 // pred_fallthru
      _
    // Predicated region
    $region74: #{_lambda_.1} parent=1 // pred_check
      _
    $region75: #{_lambda_.1} parent=1 // pred_check_branch
      %124 = sbr.rel (0) target = $region77
    $region76: #{_lambda_.1} parent=1 // pred_region
      %125 = dma.done [#allocation12], 6144
    $region77: #{_lambda_.1} parent=1 // pred_fallthru
      _
    // Predicated region
    $region78: #{_lambda_.1} parent=1 // pred_check
      _
    $region79: #{_lambda_.1} parent=1 // pred_check_branch
      %127 = sbr.rel (0) target = $region81
    $region80: #{_lambda_.1} parent=1 // pred_region
      %128 = dma.done [#allocation12], 6144
    $region81: #{_lambda_.1} parent=1 // pred_fallthru
      _
    // Predicated region
    $region82: #{_lambda_.1} parent=1 // pred_check
      _
    $region83: #{_lambda_.1} parent=1 // pred_check_branch
      %130 = sbr.rel (0) target = $region85
    $region84: #{_lambda_.1} parent=1 // pred_region
      %131 = dma.done [#allocation15], 2048
    $region85: #{_lambda_.1} parent=1 // pred_fallthru
      _
    %v132 = vld [vmem:[%s0] sm:$0xff]
    %v133 = vld [vmem:[#allocation6] sm:$0xff]
    %v134 = vld [vmem:[#allocation6 + $0x8] sm:$0xff]
    %v135 = vld [vmem:[%s2] sm:$0x1]
    %v137 = vlaneseq
    %v138 = vshrl.u32 %v137, 7
    %v139 = vsub.s32 0, %v138
    %v140 = vrot.slane %v135, %v139
    %vm142 = vcmask 130048
    %v144 = vsel %vm142, %v132, 0
    %146 = vmatprep.subr.mxu0 0.0
    %147 = vmatpush1.msra.mxu0 %v133
    %148 = vmatprep.subr.mxu0 0.0
    %149 = vmatpush1.msra.mxu0 %v134
    %150 = vmatprep.subr.mxu0 0.0
    %151 = vmatpush1.msra.mxu0 0.0
    %152 = vmatprep.subr.mxu0 0.0
    %153 = vmatpush1.msra.mxu0 0.0
    %154 = vmatprep.subr.mxu0 0.0
    %155 = vmatpush1.msra.mxu0 0.0
    %156 = vmatprep.subr.mxu0 0.0
    %157 = vmatpush1.msra.mxu0 0.0
    %158 = vmatprep.subr.mxu0 0.0
    %159 = vmatpush1.msra.mxu0 0.0
    %160 = vmatprep.subr.mxu0 0.0
    %161 = vmatpush1.msra.mxu0 0.0
    %162 = vmatprep.subr.mxu0 0.0
    %163 = vmatpush1.msra.mxu0 0.0
    %164 = vmatprep.subr.mxu0 0.0
    %165 = vmatpush1.msra.mxu0 0.0
    %166 = vmatprep.subr.mxu0 0.0
    %167 = vmatpush1.msra.mxu0 0.0
    %168 = vmatprep.subr.mxu0 0.0
    %169 = vmatpush1.msra.mxu0 0.0
    %170 = vmatprep.subr.mxu0 0.0
    %171 = vmatpush1.msra.mxu0 0.0
    %172 = vmatprep.subr.mxu0 0.0
    %173 = vmatpush1.msra.mxu0 0.0
    %174 = vmatprep.subr.mxu0 0.0
    %175 = vmatpush1.msra.mxu0 0.0
    %176 = vmatprep.subr.mxu0 0.0
    %177 = vmatpush1.msra.mxu0 0.0
    %178 = vmatprep.subr.mxu0 0.0
    %179 = vmatpush1.msra.mxu0 0.0
    %180 = vmatprep.subr.mxu0 0.0
    %181 = vmatpush1.msra.mxu0 0.0
    %182 = vmatprep.subr.mxu0 0.0
    %183 = vmatpush1.msra.mxu0 0.0
    %184 = vmatprep.subr.mxu0 0.0
    %185 = vmatpush1.msra.mxu0 0.0
    %186 = vmatprep.subr.mxu0 0.0
    %187 = vmatpush1.msra.mxu0 0.0
    %188 = vmatprep.subr.mxu0 0.0
    %189 = vmatpush1.msra.mxu0 0.0
    %190 = vmatprep.subr.mxu0 0.0
    %191 = vmatpush1.msra.mxu0 0.0
    %192 = vmatprep.subr.mxu0 0.0
    %193 = vmatpush1.msra.mxu0 0.0
    %194 = vmatprep.subr.mxu0 0.0
    %195 = vmatpush1.msra.mxu0 0.0
    %196 = vmatprep.subr.mxu0 0.0
    %197 = vmatpush1.msra.mxu0 0.0
    %198 = vmatprep.subr.mxu0 0.0
    %199 = vmatpush1.msra.mxu0 0.0
    %200 = vmatprep.subr.mxu0 0.0
    %201 = vmatpush1.msra.mxu0 0.0
    %202 = vmatprep.subr.mxu0 0.0
    %203 = vmatpush1.msra.mxu0 0.0
    %204 = vmatprep.subr.mxu0 0.0
    %205 = vmatpush1.msra.mxu0 0.0
    %206 = vmatprep.subr.mxu0 0.0
    %207 = vmatpush1.msra.mxu0 0.0
    %208 = vmatprep.subr.mxu0 0.0
    %209 = vmatpush1.msra.mxu0 0.0
    %210 = vmatprep.mubr.f32.mxu0 0.0
    %211 = vmatmul.mubr.f32.gmra.mrb[0].mxu0 %v144
    %v212 = vpop.f32.mrb[0].mxu0
    %v213 = vadd.f32 %v140, %v212
    %v214 = vpop.f32.mrb[0].mxu0
    %215 = vdwg.mxu0
    %v216 = vmax.f32 %v213, 0.0
    %217 = vst [vmem:[#allocation2] sm:$0xff] %v216
    %v218 = vld [vmem:[#allocation2] sm:$0xff]
    %219 = vst.msk [vmem:[#allocation3] sm:$0xff] %vm142, %v218
    %v220 = vld [vmem:[#allocation2] sm:$0xff]
    %222 = vrot.lane.b32.xlu0 %v220, 112
    %v223 = vpop.permute.xlu0 %222
    %225 = vst.msk [vmem:[#allocation3 + $0x8] sm:$0xff] %vm142, %v223
    %v226 = vld [vmem:[#allocation2] sm:$0xff]
    %228 = vrot.lane.b32.xlu0 %v226, 96
    %v229 = vpop.permute.xlu0 %228
    %231 = vst.msk [vmem:[#allocation3 + $0x10] sm:$0xff] %vm142, %v229
    %v232 = vld [vmem:[#allocation2] sm:$0xff]
    %234 = vrot.lane.b32.xlu0 %v232, 80
    %v235 = vpop.permute.xlu0 %234
    %237 = vst.msk [vmem:[#allocation3 + $0x18] sm:$0xff] %vm142, %v235
    %v238 = vld [vmem:[#allocation2] sm:$0xff]
    %240 = vrot.lane.b32.xlu0 %v238, 64
    %v241 = vpop.permute.xlu0 %240
    %243 = vst.msk [vmem:[#allocation3 + $0x20] sm:$0xff] %vm142, %v241
    %v244 = vld [vmem:[#allocation2] sm:$0xff]
    %246 = vrot.lane.b32.xlu0 %v244, 48
    %v247 = vpop.permute.xlu0 %246
    %249 = vst.msk [vmem:[#allocation3 + $0x28] sm:$0xff] %vm142, %v247
    %v250 = vld [vmem:[#allocation2] sm:$0xff]
    %252 = vrot.lane.b32.xlu0 %v250, 32
    %v253 = vpop.permute.xlu0 %252
    %255 = vst.msk [vmem:[#allocation3 + $0x30] sm:$0xff] %vm142, %v253
    %v256 = vld [vmem:[#allocation2] sm:$0xff]
    %258 = vrot.lane.b32.xlu0 %v256, 16
    %v259 = vpop.permute.xlu0 %258
    %261 = vst.msk [vmem:[#allocation3 + $0x38] sm:$0xff] %vm142, %v259
    %v262 = vld [vmem:[#allocation3] sm:$0xff]
    %v263 = vld [vmem:[#allocation3 + $0x8] sm:$0xff]
    %v264 = vld [vmem:[#allocation3 + $0x10] sm:$0xff]
    %v265 = vld [vmem:[#allocation3 + $0x18] sm:$0xff]
    %v266 = vld [vmem:[#allocation3 + $0x20] sm:$0xff]
    %v267 = vld [vmem:[#allocation3 + $0x28] sm:$0xff]
    %v268 = vld [vmem:[#allocation3 + $0x30] sm:$0xff]
    %v269 = vld [vmem:[#allocation3 + $0x38] sm:$0xff]
    %v270 = vld [vmem:[#allocation8] sm:$0xff]
    %v271 = vld [vmem:[#allocation8 + $0x8] sm:$0xff]
    %v272 = vld [vmem:[#allocation8 + $0x10] sm:$0xff]
    %v273 = vld [vmem:[#allocation8 + $0x18] sm:$0xff]
    %v274 = vld [vmem:[#allocation8 + $0x20] sm:$0xff]
    %v275 = vld [vmem:[#allocation8 + $0x28] sm:$0xff]
    %v276 = vld [vmem:[%s5] sm:$0x7]
    %v278 = vlaneseq
    %v279 = vshrl.u32 %v278, 7
    %v280 = vsub.s32 0, %v279
    %v281 = vrot.slane %v276, %v280
    %v282 = vlaneseq
    %v283 = vshrl.u32 %v282, 7
    %v284 = vsub.s32 1, %v283
    %v285 = vrot.slane %v276, %v284
    %v286 = vlaneseq
    %v287 = vshrl.u32 %v286, 7
    %v288 = vsub.s32 2, %v287
    %v289 = vrot.slane %v276, %v288
    %v294 = vsel %vm142, %v262, 0
    %v297 = vsel %vm142, %v263, 0
    %v300 = vsel %vm142, %v264, 0
    %v303 = vsel %vm142, %v265, 0
    %v306 = vsel %vm142, %v266, 0
    %v309 = vsel %vm142, %v267, 0
    %v312 = vsel %vm142, %v268, 0
    %v315 = vsel %vm142, %v269, 0
    %317 = vmatprep.subr.mxu0 %v271
    %318 = vmatpush1.msra.mxu0 %v270
    %319 = vmatprep.subr.mxu0 %v274
    %320 = vmatpush1.msra.mxu0 %v273
    %321 = vmatprep.subr.mxu0 0.0
    %322 = vmatpush1.msra.mxu0 0.0
    %323 = vmatprep.subr.mxu0 0.0
    %324 = vmatpush1.msra.mxu0 0.0
    %325 = vmatprep.subr.mxu0 0.0
    %326 = vmatpush1.msra.mxu0 0.0
    %327 = vmatprep.subr.mxu0 0.0
    %328 = vmatpush1.msra.mxu0 0.0
    %329 = vmatprep.subr.mxu0 0.0
    %330 = vmatpush1.msra.mxu0 0.0
    %331 = vmatprep.subr.mxu0 0.0
    %332 = vmatpush1.msra.mxu0 0.0
    %333 = vmatprep.subr.mxu0 0.0
    %334 = vmatpush1.msra.mxu0 0.0
    %335 = vmatprep.subr.mxu0 0.0
    %336 = vmatpush1.msra.mxu0 0.0
    %337 = vmatprep.subr.mxu0 0.0
    %338 = vmatpush1.msra.mxu0 0.0
    %339 = vmatprep.subr.mxu0 0.0
    %340 = vmatpush1.msra.mxu0 0.0
    %341 = vmatprep.subr.mxu0 0.0
    %342 = vmatpush1.msra.mxu0 0.0
    %343 = vmatprep.subr.mxu0 0.0
    %344 = vmatpush1.msra.mxu0 0.0
    %345 = vmatprep.subr.mxu0 0.0
    %346 = vmatpush1.msra.mxu0 0.0
    %347 = vmatprep.subr.mxu0 0.0
    %348 = vmatpush1.msra.mxu0 0.0
    %349 = vmatprep.subr.mxu0 0.0
    %350 = vmatpush1.msra.mxu0 0.0
    %351 = vmatprep.subr.mxu0 0.0
    %352 = vmatpush1.msra.mxu0 0.0
    %353 = vmatprep.subr.mxu0 0.0
    %354 = vmatpush1.msra.mxu0 0.0
    %355 = vmatprep.subr.mxu0 0.0
    %356 = vmatpush1.msra.mxu0 0.0
    %357 = vmatprep.subr.mxu0 0.0
    %358 = vmatpush1.msra.mxu0 0.0
    %359 = vmatprep.subr.mxu0 0.0
    %360 = vmatpush1.msra.mxu0 0.0
    %361 = vmatprep.subr.mxu0 0.0
    %362 = vmatpush1.msra.mxu0 0.0
    %363 = vmatprep.subr.mxu0 0.0
    %364 = vmatpush1.msra.mxu0 0.0
    %365 = vmatprep.subr.mxu0 0.0
    %366 = vmatpush1.msra.mxu0 0.0
    %367 = vmatprep.subr.mxu0 0.0
    %368 = vmatpush1.msra.mxu0 0.0
    %369 = vmatprep.subr.mxu0 0.0
    %370 = vmatpush1.msra.mxu0 0.0
    %371 = vmatprep.subr.mxu0 0.0
    %372 = vmatpush1.msra.mxu0 0.0
    %373 = vmatprep.subr.mxu0 0.0
    %374 = vmatpush1.msra.mxu0 0.0
    %375 = vmatprep.subr.mxu0 0.0
    %376 = vmatpush1.msra.mxu0 0.0
    %377 = vmatprep.subr.mxu0 0.0
    %378 = vmatpush1.msra.mxu0 0.0
    %379 = vmatprep.subr.mxu0 0.0
    %380 = vmatpush1.msra.mxu0 0.0
    %381 = vmatprep.mubr.f32.mxu0 0.0
    %382 = vmatmul.mubr.f32.gmra.mrb[0].mxu0 %v294
    %v383 = vpop.f32.mrb[0].mxu0
    %v384 = vadd.f32 %v281, %v383
    %v385 = vpop.f32.mrb[0].mxu0
    %v386 = vadd.f32 %v285, %v385
    %387 = vmatprep.mubr.f32.mxu0 0.0
    %388 = vmatmul.mubr.f32.gmra.mrb[0].mxu0 %v297
    %v389 = vpop.f32.mrb[0].mxu0
    %v390 = vadd.f32 %v281, %v389
    %v391 = vpop.f32.mrb[0].mxu0
    %v392 = vadd.f32 %v285, %v391
    %393 = vmatprep.mubr.f32.mxu0 0.0
    %394 = vmatmul.mubr.f32.gmra.mrb[0].mxu0 %v300
    %v395 = vpop.f32.mrb[0].mxu0
    %v396 = vadd.f32 %v281, %v395
    %v397 = vpop.f32.mrb[0].mxu0
    %v398 = vadd.f32 %v285, %v397
    %399 = vmatprep.mubr.f32.mxu0 0.0
    %400 = vmatmul.mubr.f32.gmra.mrb[0].mxu0 %v303
    %v401 = vpop.f32.mrb[0].mxu0
    %v402 = vadd.f32 %v281, %v401
    %v403 = vpop.f32.mrb[0].mxu0
    %v404 = vadd.f32 %v285, %v403
    %405 = vmatprep.mubr.f32.mxu0 0.0
    %406 = vmatmul.mubr.f32.gmra.mrb[0].mxu0 %v306
    %v407 = vpop.f32.mrb[0].mxu0
    %v408 = vadd.f32 %v281, %v407
    %v409 = vpop.f32.mrb[0].mxu0
    %v410 = vadd.f32 %v285, %v409
    %411 = vmatprep.mubr.f32.mxu0 0.0
    %412 = vmatmul.mubr.f32.gmra.mrb[0].mxu0 %v309
    %v413 = vpop.f32.mrb[0].mxu0
    %v414 = vadd.f32 %v281, %v413
    %v415 = vpop.f32.mrb[0].mxu0
    %v416 = vadd.f32 %v285, %v415
    %417 = vmatprep.mubr.f32.mxu0 0.0
    %418 = vmatmul.mubr.f32.gmra.mrb[0].mxu0 %v312
    %v419 = vpop.f32.mrb[0].mxu0
    %v420 = vadd.f32 %v281, %v419
    %v421 = vpop.f32.mrb[0].mxu0
    %v422 = vadd.f32 %v285, %v421
    %423 = vmatprep.mubr.f32.mxu0 0.0
    %424 = vmatmul.mubr.f32.gmra.mrb[0].mxu0 %v315
    %v425 = vpop.f32.mrb[0].mxu0
    %v426 = vadd.f32 %v281, %v425
    %v427 = vpop.f32.mrb[0].mxu0
    %v428 = vadd.f32 %v285, %v427
    %429 = vdwg.mxu0
    %430 = vmatprep.subr.mxu0 0.0
    %431 = vmatpush1.msra.mxu0 %v272
    %432 = vmatprep.subr.mxu0 0.0
    %433 = vmatpush1.msra.mxu0 %v275
    %434 = vmatprep.subr.mxu0 0.0
    %435 = vmatpush1.msra.mxu0 0.0
    %436 = vmatprep.subr.mxu0 0.0
    %437 = vmatpush1.msra.mxu0 0.0
    %438 = vmatprep.subr.mxu0 0.0
    %439 = vmatpush1.msra.mxu0 0.0
    %440 = vmatprep.subr.mxu0 0.0
    %441 = vmatpush1.msra.mxu0 0.0
    %442 = vmatprep.subr.mxu0 0.0
    %443 = vmatpush1.msra.mxu0 0.0
    %444 = vmatprep.subr.mxu0 0.0
    %445 = vmatpush1.msra.mxu0 0.0
    %446 = vmatprep.subr.mxu0 0.0
    %447 = vmatpush1.msra.mxu0 0.0
    %448 = vmatprep.subr.mxu0 0.0
    %449 = vmatpush1.msra.mxu0 0.0
    %450 = vmatprep.subr.mxu0 0.0
    %451 = vmatpush1.msra.mxu0 0.0
    %452 = vmatprep.subr.mxu0 0.0
    %453 = vmatpush1.msra.mxu0 0.0
    %454 = vmatprep.subr.mxu0 0.0
    %455 = vmatpush1.msra.mxu0 0.0
    %456 = vmatprep.subr.mxu0 0.0
    %457 = vmatpush1.msra.mxu0 0.0
    %458 = vmatprep.subr.mxu0 0.0
    %459 = vmatpush1.msra.mxu0 0.0
    %460 = vmatprep.subr.mxu0 0.0
    %461 = vmatpush1.msra.mxu0 0.0
    %462 = vmatprep.subr.mxu0 0.0
    %463 = vmatpush1.msra.mxu0 0.0
    %464 = vmatprep.subr.mxu0 0.0
    %465 = vmatpush1.msra.mxu0 0.0
    %466 = vmatprep.subr.mxu0 0.0
    %467 = vmatpush1.msra.mxu0 0.0
    %468 = vmatprep.subr.mxu0 0.0
    %469 = vmatpush1.msra.mxu0 0.0
    %470 = vmatprep.subr.mxu0 0.0
    %471 = vmatpush1.msra.mxu0 0.0
    %472 = vmatprep.subr.mxu0 0.0
    %473 = vmatpush1.msra.mxu0 0.0
    %474 = vmatprep.subr.mxu0 0.0
    %475 = vmatpush1.msra.mxu0 0.0
    %476 = vmatprep.subr.mxu0 0.0
    %477 = vmatpush1.msra.mxu0 0.0
    %478 = vmatprep.subr.mxu0 0.0
    %479 = vmatpush1.msra.mxu0 0.0
    %480 = vmatprep.subr.mxu0 0.0
    %481 = vmatpush1.msra.mxu0 0.0
    %482 = vmatprep.subr.mxu0 0.0
    %483 = vmatpush1.msra.mxu0 0.0
    %484 = vmatprep.subr.mxu0 0.0
    %485 = vmatpush1.msra.mxu0 0.0
    %486 = vmatprep.subr.mxu0 0.0
    %487 = vmatpush1.msra.mxu0 0.0
    %488 = vmatprep.subr.mxu0 0.0
    %489 = vmatpush1.msra.mxu0 0.0
    %490 = vmatprep.subr.mxu0 0.0
    %491 = vmatpush1.msra.mxu0 0.0
    %492 = vmatprep.subr.mxu0 0.0
    %493 = vmatpush1.msra.mxu0 0.0
    %494 = vmatprep.mubr.f32.mxu0 0.0
    %495 = vmatmul.mubr.f32.gmra.mrb[0].mxu0 %v294
    %v496 = vpop.f32.mrb[0].mxu0
    %v497 = vadd.f32 %v289, %v496
    %v498 = vpop.f32.mrb[0].mxu0
    %499 = vmatprep.mubr.f32.mxu0 0.0
    %500 = vmatmul.mubr.f32.gmra.mrb[0].mxu0 %v297
    %v501 = vpop.f32.mrb[0].mxu0
    %v502 = vadd.f32 %v289, %v501
    %v503 = vpop.f32.mrb[0].mxu0
    %504 = vmatprep.mubr.f32.mxu0 0.0
    %505 = vmatmul.mubr.f32.gmra.mrb[0].mxu0 %v300
    %v506 = vpop.f32.mrb[0].mxu0
    %v507 = vadd.f32 %v289, %v506
    %v508 = vpop.f32.mrb[0].mxu0
    %509 = vmatprep.mubr.f32.mxu0 0.0
    %510 = vmatmul.mubr.f32.gmra.mrb[0].mxu0 %v303
    %v511 = vpop.f32.mrb[0].mxu0
    %v512 = vadd.f32 %v289, %v511
    %v513 = vpop.f32.mrb[0].mxu0
    %514 = vmatprep.mubr.f32.mxu0 0.0
    %515 = vmatmul.mubr.f32.gmra.mrb[0].mxu0 %v306
    %v516 = vpop.f32.mrb[0].mxu0
    %v517 = vadd.f32 %v289, %v516
    %v518 = vpop.f32.mrb[0].mxu0
    %519 = vmatprep.mubr.f32.mxu0 0.0
    %520 = vmatmul.mubr.f32.gmra.mrb[0].mxu0 %v309
    %v521 = vpop.f32.mrb[0].mxu0
    %v522 = vadd.f32 %v289, %v521
    %v523 = vpop.f32.mrb[0].mxu0
    %524 = vmatprep.mubr.f32.mxu0 0.0
    %525 = vmatmul.mubr.f32.gmra.mrb[0].mxu0 %v312
    %v526 = vpop.f32.mrb[0].mxu0
    %v527 = vadd.f32 %v289, %v526
    %v528 = vpop.f32.mrb[0].mxu0
    %529 = vmatprep.mubr.f32.mxu0 0.0
    %530 = vmatmul.mubr.f32.gmra.mrb[0].mxu0 %v315
    %v531 = vpop.f32.mrb[0].mxu0
    %v532 = vadd.f32 %v289, %v531
    %v533 = vpop.f32.mrb[0].mxu0
    %534 = vdwg.mxu0
    %535 = vst [vmem:[#allocation4] sm:$0xff] %v384
    %536 = vst [vmem:[#allocation4 + $0x8] sm:$0xff] %v386
    %537 = vst [vmem:[#allocation4 + $0x10] sm:$0xff] %v497
    %538 = vst [vmem:[#allocation4 + $0x18] sm:$0xff] %v390
    %539 = vst [vmem:[#allocation4 + $0x20] sm:$0xff] %v392
    %540 = vst [vmem:[#allocation4 + $0x28] sm:$0xff] %v502
    %541 = vst [vmem:[#allocation4 + $0x30] sm:$0xff] %v396
    %542 = vst [vmem:[#allocation4 + $0x38] sm:$0xff] %v398
    %543 = vst [vmem:[#allocation4 + $0x40] sm:$0xff] %v507
    %544 = vst [vmem:[#allocation4 + $0x48] sm:$0xff] %v402
    %545 = vst [vmem:[#allocation4 + $0x50] sm:$0xff] %v404
    %546 = vst [vmem:[#allocation4 + $0x58] sm:$0xff] %v512
    %547 = vst [vmem:[#allocation4 + $0x60] sm:$0xff] %v408
    %548 = vst [vmem:[#allocation4 + $0x68] sm:$0xff] %v410
    %549 = vst [vmem:[#allocation4 + $0x70] sm:$0xff] %v517
    %550 = vst [vmem:[#allocation4 + $0x78] sm:$0xff] %v414
    %551 = vst [vmem:[#allocation4 + $0x80] sm:$0xff] %v416
    %552 = vst [vmem:[#allocation4 + $0x88] sm:$0xff] %v522
    %553 = vst [vmem:[#allocation4 + $0x90] sm:$0xff] %v420
    %554 = vst [vmem:[#allocation4 + $0x98] sm:$0xff] %v422
    %555 = vst [vmem:[#allocation4 + $0xa0] sm:$0xff] %v527
    %556 = vst [vmem:[#allocation4 + $0xa8] sm:$0xff] %v426
    %557 = vst [vmem:[#allocation4 + $0xb0] sm:$0xff] %v428
    %558 = vst [vmem:[#allocation4 + $0xb8] sm:$0xff] %v532
    %v559 = vld [vmem:[%s6] sm:$0x7]
    %v560 = vld [vmem:[#allocation4] sm:$0xff]
    %v561 = vld [vmem:[#allocation4 + $0x8] sm:$0xff]
    %v562 = vld [vmem:[#allocation4 + $0x10] sm:$0xff]
    %v563 = vld [vmem:[#allocation10] sm:$0xff]
    %v564 = vld [vmem:[#allocation10 + $0x8] sm:$0xff]
    %v565 = vld [vmem:[#allocation10 + $0x10] sm:$0xff]
    %v566 = vld [vmem:[#allocation10 + $0x18] sm:$0xff]
    %v567 = vld [vmem:[#allocation10 + $0x20] sm:$0xff]
    %v568 = vld [vmem:[#allocation10 + $0x28] sm:$0xff]
    %v569 = vld [vmem:[#allocation10 + $0x30] sm:$0xff]
    %v570 = vld [vmem:[#allocation10 + $0x38] sm:$0xff]
    %v571 = vld [vmem:[#allocation10 + $0x40] sm:$0xff]
    %v572 = vld [vmem:[#allocation10 + $0x48] sm:$0xff]
    %v573 = vld [vmem:[#allocation10 + $0x50] sm:$0xff]
    %v574 = vld [vmem:[#allocation10 + $0x58] sm:$0xff]
    %v575 = vld [vmem:[#allocation10 + $0x60] sm:$0xff]
    %v576 = vld [vmem:[#allocation10 + $0x68] sm:$0xff]
    %v577 = vld [vmem:[#allocation10 + $0x70] sm:$0xff]
    %v578 = vld [vmem:[#allocation10 + $0x78] sm:$0xff]
    %v579 = vld [vmem:[#allocation10 + $0x80] sm:$0xff]
    %v580 = vld [vmem:[#allocation10 + $0x88] sm:$0xff]
    %v581 = vld [vmem:[#allocation10 + $0x90] sm:$0xff]
    %v582 = vld [vmem:[#allocation10 + $0x98] sm:$0xff]
    %v583 = vld [vmem:[#allocation10 + $0xa0] sm:$0xff]
    %v584 = vld [vmem:[#allocation10 + $0xa8] sm:$0xff]
    %v585 = vld [vmem:[#allocation10 + $0xb0] sm:$0xff]
    %v586 = vld [vmem:[#allocation10 + $0xb8] sm:$0xff]
    %v587 = vld [vmem:[#allocation10 + $0xc0] sm:$0xff]
    %v588 = vld [vmem:[#allocation10 + $0xc8] sm:$0xff]
    %v589 = vld [vmem:[#allocation10 + $0xd0] sm:$0xff]
    %v590 = vld [vmem:[#allocation10 + $0xd8] sm:$0xff]
    %v591 = vld [vmem:[#allocation10 + $0xe0] sm:$0xff]
    %v592 = vld [vmem:[#allocation10 + $0xe8] sm:$0xff]
    %v593 = vld [vmem:[#allocation10 + $0xf0] sm:$0xff]
    %v594 = vld [vmem:[#allocation10 + $0xf8] sm:$0xff]
    %v595 = vld [vmem:[#allocation10 + $0x100] sm:$0xff]
    %v596 = vld [vmem:[#allocation10 + $0x108] sm:$0xff]
    %v597 = vld [vmem:[#allocation10 + $0x110] sm:$0xff]
    %v598 = vld [vmem:[#allocation10 + $0x118] sm:$0xff]
    %v599 = vld [vmem:[#allocation10 + $0x120] sm:$0xff]
    %v600 = vld [vmem:[#allocation10 + $0x128] sm:$0xff]
    %v601 = vld [vmem:[#allocation10 + $0x130] sm:$0xff]
    %v602 = vld [vmem:[#allocation10 + $0x138] sm:$0xff]
    %v603 = vld [vmem:[#allocation10 + $0x140] sm:$0xff]
    %v604 = vld [vmem:[#allocation10 + $0x148] sm:$0xff]
    %v605 = vld [vmem:[#allocation10 + $0x150] sm:$0xff]
    %v606 = vld [vmem:[#allocation10 + $0x158] sm:$0xff]
    %v607 = vld [vmem:[#allocation10 + $0x160] sm:$0xff]
    %v608 = vld [vmem:[#allocation10 + $0x168] sm:$0xff]
    %v609 = vld [vmem:[#allocation10 + $0x170] sm:$0xff]
    %v610 = vld [vmem:[#allocation10 + $0x178] sm:$0xff]
    %v612 = vlaneseq
    %v613 = vshrl.u32 %v612, 7
    %v614 = vsub.s32 0, %v613
    %v615 = vrot.slane %v559, %v614
    %v616 = vlaneseq
    %v617 = vshrl.u32 %v616, 7
    %v618 = vsub.s32 1, %v617
    %v619 = vrot.slane %v559, %v618
    %v620 = vlaneseq
    %v621 = vshrl.u32 %v620, 7
    %v622 = vsub.s32 2, %v621
    %v623 = vrot.slane %v559, %v622
    %627 = vmatprep.subr.mxu0 %v564
    %628 = vmatpush1.msra.mxu0 %v563
    %629 = vmatprep.subr.mxu0 %v567
    %630 = vmatpush1.msra.mxu0 %v566
    %631 = vmatprep.subr.mxu0 %v570
    %632 = vmatpush1.msra.mxu0 %v569
    %633 = vmatprep.subr.mxu0 %v573
    %634 = vmatpush1.msra.mxu0 %v572
    %635 = vmatprep.subr.mxu0 %v576
    %636 = vmatpush1.msra.mxu0 %v575
    %637 = vmatprep.subr.mxu0 %v579
    %638 = vmatpush1.msra.mxu0 %v578
    %639 = vmatprep.subr.mxu0 %v582
    %640 = vmatpush1.msra.mxu0 %v581
    %641 = vmatprep.subr.mxu0 %v585
    %642 = vmatpush1.msra.mxu0 %v584
    %643 = vmatprep.subr.mxu0 %v588
    %644 = vmatpush1.msra.mxu0 %v587
    %645 = vmatprep.subr.mxu0 %v591
    %646 = vmatpush1.msra.mxu0 %v590
    %647 = vmatprep.subr.mxu0 %v594
    %648 = vmatpush1.msra.mxu0 %v593
    %649 = vmatprep.subr.mxu0 %v597
    %650 = vmatpush1.msra.mxu0 %v596
    %651 = vmatprep.subr.mxu0 %v600
    %652 = vmatpush1.msra.mxu0 %v599
    %653 = vmatprep.subr.mxu0 %v603
    %654 = vmatpush1.msra.mxu0 %v602
    %655 = vmatprep.subr.mxu0 %v606
    %656 = vmatpush1.msra.mxu0 %v605
    %657 = vmatprep.subr.mxu0 %v609
    %658 = vmatpush1.msra.mxu0 %v608
    %659 = vmatprep.subr.mxu0 0.0
    %660 = vmatpush1.msra.mxu0 0.0
    %661 = vmatprep.subr.mxu0 0.0
    %662 = vmatpush1.msra.mxu0 0.0
    %663 = vmatprep.subr.mxu0 0.0
    %664 = vmatpush1.msra.mxu0 0.0
    %665 = vmatprep.subr.mxu0 0.0
    %666 = vmatpush1.msra.mxu0 0.0
    %667 = vmatprep.subr.mxu0 0.0
    %668 = vmatpush1.msra.mxu0 0.0
    %669 = vmatprep.subr.mxu0 0.0
    %670 = vmatpush1.msra.mxu0 0.0
    %671 = vmatprep.subr.mxu0 0.0
    %672 = vmatpush1.msra.mxu0 0.0
    %673 = vmatprep.subr.mxu0 0.0
    %674 = vmatpush1.msra.mxu0 0.0
    %675 = vmatprep.subr.mxu0 0.0
    %676 = vmatpush1.msra.mxu0 0.0
    %677 = vmatprep.subr.mxu0 0.0
    %678 = vmatpush1.msra.mxu0 0.0
    %679 = vmatprep.subr.mxu0 0.0
    %680 = vmatpush1.msra.mxu0 0.0
    %681 = vmatprep.subr.mxu0 0.0
    %682 = vmatpush1.msra.mxu0 0.0
    %683 = vmatprep.subr.mxu0 0.0
    %684 = vmatpush1.msra.mxu0 0.0
    %685 = vmatprep.subr.mxu0 0.0
    %686 = vmatpush1.msra.mxu0 0.0
    %687 = vmatprep.subr.mxu0 0.0
    %688 = vmatpush1.msra.mxu0 0.0
    %689 = vmatprep.subr.mxu0 0.0
    %690 = vmatpush1.msra.mxu0 0.0
    %691 = vmatprep.mubr.f32.mxu0 0.0
    %692 = vmatmul.mubr.f32.gmra.mrb[0].mxu0 0.0
    %v693 = vpop.f32.mrb[0].mxu0
    %v694 = vadd.f32 %v615, %v693
    %v695 = vpop.f32.mrb[0].mxu0
    %v696 = vadd.f32 %v619, %v695
    %697 = vdwg.mxu0
    %698 = vmatprep.subr.mxu0 0.0
    %699 = vmatpush1.msra.mxu0 %v565
    %700 = vmatprep.subr.mxu0 0.0
    %701 = vmatpush1.msra.mxu0 %v568
    %702 = vmatprep.subr.mxu0 0.0
    %703 = vmatpush1.msra.mxu0 %v571
    %704 = vmatprep.subr.mxu0 0.0
    %705 = vmatpush1.msra.mxu0 %v574
    %706 = vmatprep.subr.mxu0 0.0
    %707 = vmatpush1.msra.mxu0 %v577
    %708 = vmatprep.subr.mxu0 0.0
    %709 = vmatpush1.msra.mxu0 %v580
    %710 = vmatprep.subr.mxu0 0.0
    %711 = vmatpush1.msra.mxu0 %v583
    %712 = vmatprep.subr.mxu0 0.0
    %713 = vmatpush1.msra.mxu0 %v586
    %714 = vmatprep.subr.mxu0 0.0
    %715 = vmatpush1.msra.mxu0 %v589
    %716 = vmatprep.subr.mxu0 0.0
    %717 = vmatpush1.msra.mxu0 %v592
    %718 = vmatprep.subr.mxu0 0.0
    %719 = vmatpush1.msra.mxu0 %v595
    %720 = vmatprep.subr.mxu0 0.0
    %721 = vmatpush1.msra.mxu0 %v598
    %722 = vmatprep.subr.mxu0 0.0
    %723 = vmatpush1.msra.mxu0 %v601
    %724 = vmatprep.subr.mxu0 0.0
    %725 = vmatpush1.msra.mxu0 %v604
    %726 = vmatprep.subr.mxu0 0.0
    %727 = vmatpush1.msra.mxu0 %v607
    %728 = vmatprep.subr.mxu0 0.0
    %729 = vmatpush1.msra.mxu0 %v610
    %730 = vmatprep.subr.mxu0 0.0
    %731 = vmatpush1.msra.mxu0 0.0
    %732 = vmatprep.subr.mxu0 0.0
    %733 = vmatpush1.msra.mxu0 0.0
    %734 = vmatprep.subr.mxu0 0.0
    %735 = vmatpush1.msra.mxu0 0.0
    %736 = vmatprep.subr.mxu0 0.0
    %737 = vmatpush1.msra.mxu0 0.0
    %738 = vmatprep.subr.mxu0 0.0
    %739 = vmatpush1.msra.mxu0 0.0
    %740 = vmatprep.subr.mxu0 0.0
    %741 = vmatpush1.msra.mxu0 0.0
    %742 = vmatprep.subr.mxu0 0.0
    %743 = vmatpush1.msra.mxu0 0.0
    %744 = vmatprep.subr.mxu0 0.0
    %745 = vmatpush1.msra.mxu0 0.0
    %746 = vmatprep.subr.mxu0 0.0
    %747 = vmatpush1.msra.mxu0 0.0
    %748 = vmatprep.subr.mxu0 0.0
    %749 = vmatpush1.msra.mxu0 0.0
    %750 = vmatprep.subr.mxu0 0.0
    %751 = vmatpush1.msra.mxu0 0.0
    %752 = vmatprep.subr.mxu0 0.0
    %753 = vmatpush1.msra.mxu0 0.0
    %754 = vmatprep.subr.mxu0 0.0
    %755 = vmatpush1.msra.mxu0 0.0
    %756 = vmatprep.subr.mxu0 0.0
    %757 = vmatpush1.msra.mxu0 0.0
    %758 = vmatprep.subr.mxu0 0.0
    %759 = vmatpush1.msra.mxu0 0.0
    %760 = vmatprep.subr.mxu0 0.0
    %761 = vmatpush1.msra.mxu0 0.0
    %762 = vmatprep.mubr.f32.mxu0 0.0
    %763 = vmatmul.mubr.f32.gmra.mrb[0].mxu0 0.0
    %v764 = vpop.f32.mrb[0].mxu0
    %v765 = vadd.f32 %v623, %v764
    %v766 = vpop.f32.mrb[0].mxu0
    %767 = vdwg.mxu0
    %v768 = vadd.f32 %v560, %v694
    %v769 = vxor.u32 %v768, 2147483648
    %v770 = vmul.f32 %v769, 1.442695
    %v771 = vpow.pop %v770
    %v772 = vadd.f32 %v771, 1.0
    %v773 = vrcp.pop %v772
    %v774 = vmul.f32 1.0, %v773
    %v775 = vadd.f32 %v561, %v696
    %v776 = vxor.u32 %v775, 2147483648
    %v777 = vmul.f32 %v776, 1.442695
    %v778 = vpow.pop %v777
    %v779 = vadd.f32 %v778, 1.0
    %v780 = vrcp.pop %v779
    %v781 = vmul.f32 1.0, %v780
    %v782 = vmul.f32 %v774, %v765
    %v783 = vadd.f32 %v562, %v782
    %v784 = vtanh.pop %v783
    %v785 = vsub.f32 1.0, %v781
    %v786 = vmul.f32 %v785, %v784
    %v787 = vmul.f32 %v781, 0.0
    %v788 = vadd.f32 %v786, %v787
    %789 = vst [vmem:[#allocation5] sm:$0xff] %v788
    %v790 = vld [vmem:[#allocation4 + $0x18] sm:$0xff]
    %v791 = vld [vmem:[#allocation4 + $0x20] sm:$0xff]
    %v792 = vld [vmem:[#allocation4 + $0x28] sm:$0xff]
    %v793 = vld [vmem:[#allocation10] sm:$0xff]
    %v794 = vld [vmem:[#allocation10 + $0x8] sm:$0xff]
    %v795 = vld [vmem:[#allocation10 + $0x10] sm:$0xff]
    %v796 = vld [vmem:[#allocation10 + $0x18] sm:$0xff]
    %v797 = vld [vmem:[#allocation10 + $0x20] sm:$0xff]
    %v798 = vld [vmem:[#allocation10 + $0x28] sm:$0xff]
    %v799 = vld [vmem:[#allocation10 + $0x30] sm:$0xff]
    %v800 = vld [vmem:[#allocation10 + $0x38] sm:$0xff]
    %v801 = vld [vmem:[#allocation10 + $0x40] sm:$0xff]
    %v802 = vld [vmem:[#allocation10 + $0x48] sm:$0xff]
    %v803 = vld [vmem:[#allocation10 + $0x50] sm:$0xff]
    %v804 = vld [vmem:[#allocation10 + $0x58] sm:$0xff]
    %v805 = vld [vmem:[#allocation10 + $0x60] sm:$0xff]
    %v806 = vld [vmem:[#allocation10 + $0x68] sm:$0xff]
    %v807 = vld [vmem:[#allocation10 + $0x70] sm:$0xff]
    %v808 = vld [vmem:[#allocation10 + $0x78] sm:$0xff]
    %v809 = vld [vmem:[#allocation10 + $0x80] sm:$0xff]
    %v810 = vld [vmem:[#allocation10 + $0x88] sm:$0xff]
    %v811 = vld [vmem:[#allocation10 + $0x90] sm:$0xff]
    %v812 = vld [vmem:[#allocation10 + $0x98] sm:$0xff]
    %v813 = vld [vmem:[#allocation10 + $0xa0] sm:$0xff]
    %v814 = vld [vmem:[#allocation10 + $0xa8] sm:$0xff]
    %v815 = vld [vmem:[#allocation10 + $0xb0] sm:$0xff]
    %v816 = vld [vmem:[#allocation10 + $0xb8] sm:$0xff]
    %v817 = vld [vmem:[#allocation10 + $0xc0] sm:$0xff]
    %v818 = vld [vmem:[#allocation10 + $0xc8] sm:$0xff]
    %v819 = vld [vmem:[#allocation10 + $0xd0] sm:$0xff]
    %v820 = vld [vmem:[#allocation10 + $0xd8] sm:$0xff]
    %v821 = vld [vmem:[#allocation10 + $0xe0] sm:$0xff]
    %v822 = vld [vmem:[#allocation10 + $0xe8] sm:$0xff]
    %v823 = vld [vmem:[#allocation10 + $0xf0] sm:$0xff]
    %v824 = vld [vmem:[#allocation10 + $0xf8] sm:$0xff]
    %v825 = vld [vmem:[#allocation10 + $0x100] sm:$0xff]
    %v826 = vld [vmem:[#allocation10 + $0x108] sm:$0xff]
    %v827 = vld [vmem:[#allocation10 + $0x110] sm:$0xff]
    %v828 = vld [vmem:[#allocation10 + $0x118] sm:$0xff]
    %v829 = vld [vmem:[#allocation10 + $0x120] sm:$0xff]
    %v830 = vld [vmem:[#allocation10 + $0x128] sm:$0xff]
    %v831 = vld [vmem:[#allocation10 + $0x130] sm:$0xff]
    %v832 = vld [vmem:[#allocation10 + $0x138] sm:$0xff]
    %v833 = vld [vmem:[#allocation10 + $0x140] sm:$0xff]
    %v834 = vld [vmem:[#allocation10 + $0x148] sm:$0xff]
    %v835 = vld [vmem:[#allocation10 + $0x150] sm:$0xff]
    %v836 = vld [vmem:[#allocation10 + $0x158] sm:$0xff]
    %v837 = vld [vmem:[#allocation10 + $0x160] sm:$0xff]
    %v838 = vld [vmem:[#allocation10 + $0x168] sm:$0xff]
    %v839 = vld [vmem:[#allocation10 + $0x170] sm:$0xff]
    %v840 = vld [vmem:[#allocation10 + $0x178] sm:$0xff]
    %841 = vmatprep.subr.mxu0 %v794
    %842 = vmatpush1.msra.mxu0 %v793
    %843 = vmatprep.subr.mxu0 %v797
    %844 = vmatpush1.msra.mxu0 %v796
    %845 = vmatprep.subr.mxu0 %v800
    %846 = vmatpush1.msra.mxu0 %v799
    %847 = vmatprep.subr.mxu0 %v803
    %848 = vmatpush1.msra.mxu0 %v802
    %849 = vmatprep.subr.mxu0 %v806
    %850 = vmatpush1.msra.mxu0 %v805
    %851 = vmatprep.subr.mxu0 %v809
    %852 = vmatpush1.msra.mxu0 %v808
    %853 = vmatprep.subr.mxu0 %v812
    %854 = vmatpush1.msra.mxu0 %v811
    %855 = vmatprep.subr.mxu0 %v815
    %856 = vmatpush1.msra.mxu0 %v814
    %857 = vmatprep.subr.mxu0 %v818
    %858 = vmatpush1.msra.mxu0 %v817
    %859 = vmatprep.subr.mxu0 %v821
    %860 = vmatpush1.msra.mxu0 %v820
    %861 = vmatprep.subr.mxu0 %v824
    %862 = vmatpush1.msra.mxu0 %v823
    %863 = vmatprep.subr.mxu0 %v827
    %864 = vmatpush1.msra.mxu0 %v826
    %865 = vmatprep.subr.mxu0 %v830
    %866 = vmatpush1.msra.mxu0 %v829
    %867 = vmatprep.subr.mxu0 %v833
    %868 = vmatpush1.msra.mxu0 %v832
    %869 = vmatprep.subr.mxu0 %v836
    %870 = vmatpush1.msra.mxu0 %v835
    %871 = vmatprep.subr.mxu0 %v839
    %872 = vmatpush1.msra.mxu0 %v838
    %873 = vmatprep.subr.mxu0 0.0
    %874 = vmatpush1.msra.mxu0 0.0
    %875 = vmatprep.subr.mxu0 0.0
    %876 = vmatpush1.msra.mxu0 0.0
    %877 = vmatprep.subr.mxu0 0.0
    %878 = vmatpush1.msra.mxu0 0.0
    %879 = vmatprep.subr.mxu0 0.0
    %880 = vmatpush1.msra.mxu0 0.0
    %881 = vmatprep.subr.mxu0 0.0
    %882 = vmatpush1.msra.mxu0 0.0
    %883 = vmatprep.subr.mxu0 0.0
    %884 = vmatpush1.msra.mxu0 0.0
    %885 = vmatprep.subr.mxu0 0.0
    %886 = vmatpush1.msra.mxu0 0.0
    %887 = vmatprep.subr.mxu0 0.0
    %888 = vmatpush1.msra.mxu0 0.0
    %889 = vmatprep.subr.mxu0 0.0
    %890 = vmatpush1.msra.mxu0 0.0
    %891 = vmatprep.subr.mxu0 0.0
    %892 = vmatpush1.msra.mxu0 0.0
    %893 = vmatprep.subr.mxu0 0.0
    %894 = vmatpush1.msra.mxu0 0.0
    %895 = vmatprep.subr.mxu0 0.0
    %896 = vmatpush1.msra.mxu0 0.0
    %897 = vmatprep.subr.mxu0 0.0
    %898 = vmatpush1.msra.mxu0 0.0
    %899 = vmatprep.subr.mxu0 0.0
    %900 = vmatpush1.msra.mxu0 0.0
    %901 = vmatprep.subr.mxu0 0.0
    %902 = vmatpush1.msra.mxu0 0.0
    %903 = vmatprep.subr.mxu0 0.0
    %904 = vmatpush1.msra.mxu0 0.0
    %905 = vmatprep.mubr.f32.mxu0 0.0
    %906 = vmatmul.mubr.f32.gmra.mrb[0].mxu0 %v788
    %v907 = vpop.f32.mrb[0].mxu0
    %v908 = vadd.f32 %v615, %v907
    %v909 = vpop.f32.mrb[0].mxu0
    %v910 = vadd.f32 %v619, %v909
    %911 = vdwg.mxu0
    %912 = vmatprep.subr.mxu0 0.0
    %913 = vmatpush1.msra.mxu0 %v795
    %914 = vmatprep.subr.mxu0 0.0
    %915 = vmatpush1.msra.mxu0 %v798
    %916 = vmatprep.subr.mxu0 0.0
    %917 = vmatpush1.msra.mxu0 %v801
    %918 = vmatprep.subr.mxu0 0.0
    %919 = vmatpush1.msra.mxu0 %v804
    %920 = vmatprep.subr.mxu0 0.0
    %921 = vmatpush1.msra.mxu0 %v807
    %922 = vmatprep.subr.mxu0 0.0
    %923 = vmatpush1.msra.mxu0 %v810
    %924 = vmatprep.subr.mxu0 0.0
    %925 = vmatpush1.msra.mxu0 %v813
    %926 = vmatprep.subr.mxu0 0.0
    %927 = vmatpush1.msra.mxu0 %v816
    %928 = vmatprep.subr.mxu0 0.0
    %929 = vmatpush1.msra.mxu0 %v819
    %930 = vmatprep.subr.mxu0 0.0
    %931 = vmatpush1.msra.mxu0 %v822
    %932 = vmatprep.subr.mxu0 0.0
    %933 = vmatpush1.msra.mxu0 %v825
    %934 = vmatprep.subr.mxu0 0.0
    %935 = vmatpush1.msra.mxu0 %v828
    %936 = vmatprep.subr.mxu0 0.0
    %937 = vmatpush1.msra.mxu0 %v831
    %938 = vmatprep.subr.mxu0 0.0
    %939 = vmatpush1.msra.mxu0 %v834
    %940 = vmatprep.subr.mxu0 0.0
    %941 = vmatpush1.msra.mxu0 %v837
    %942 = vmatprep.subr.mxu0 0.0
    %943 = vmatpush1.msra.mxu0 %v840
    %944 = vmatprep.subr.mxu0 0.0
    %945 = vmatpush1.msra.mxu0 0.0
    %946 = vmatprep.subr.mxu0 0.0
    %947 = vmatpush1.msra.mxu0 0.0
    %948 = vmatprep.subr.mxu0 0.0
    %949 = vmatpush1.msra.mxu0 0.0
    %950 = vmatprep.subr.mxu0 0.0
    %951 = vmatpush1.msra.mxu0 0.0
    %952 = vmatprep.subr.mxu0 0.0
    %953 = vmatpush1.msra.mxu0 0.0
    %954 = vmatprep.subr.mxu0 0.0
    %955 = vmatpush1.msra.mxu0 0.0
    %956 = vmatprep.subr.mxu0 0.0
    %957 = vmatpush1.msra.mxu0 0.0
    %958 = vmatprep.subr.mxu0 0.0
    %959 = vmatpush1.msra.mxu0 0.0
    %960 = vmatprep.subr.mxu0 0.0
    %961 = vmatpush1.msra.mxu0 0.0
    %962 = vmatprep.subr.mxu0 0.0
    %963 = vmatpush1.msra.mxu0 0.0
    %964 = vmatprep.subr.mxu0 0.0
    %965 = vmatpush1.msra.mxu0 0.0
    %966 = vmatprep.subr.mxu0 0.0
    %967 = vmatpush1.msra.mxu0 0.0
    %968 = vmatprep.subr.mxu0 0.0
    %969 = vmatpush1.msra.mxu0 0.0
    %970 = vmatprep.subr.mxu0 0.0
    %971 = vmatpush1.msra.mxu0 0.0
    %972 = vmatprep.subr.mxu0 0.0
    %973 = vmatpush1.msra.mxu0 0.0
    %974 = vmatprep.subr.mxu0 0.0
    %975 = vmatpush1.msra.mxu0 0.0
    %976 = vmatprep.mubr.f32.mxu0 0.0
    %977 = vmatmul.mubr.f32.gmra.mrb[0].mxu0 %v788
    %v978 = vpop.f32.mrb[0].mxu0
    %v979 = vadd.f32 %v623, %v978
    %v980 = vpop.f32.mrb[0].mxu0
    %981 = vdwg.mxu0
    %v982 = vadd.f32 %v790, %v908
    %v983 = vxor.u32 %v982, 2147483648
    %v984 = vmul.f32 %v983, 1.442695
    %v985 = vpow.pop %v984
    %v986 = vadd.f32 %v985, 1.0
    %v987 = vrcp.pop %v986
    %v988 = vmul.f32 1.0, %v987
    %v989 = vadd.f32 %v791, %v910
    %v990 = vxor.u32 %v989, 2147483648
    %v991 = vmul.f32 %v990, 1.442695
    %v992 = vpow.pop %v991
    %v993 = vadd.f32 %v992, 1.0
    %v994 = vrcp.pop %v993
    %v995 = vmul.f32 1.0, %v994
    %v996 = vmul.f32 %v988, %v979
    %v997 = vadd.f32 %v792, %v996
    %v998 = vtanh.pop %v997
    %v999 = vsub.f32 1.0, %v995
    %v1000 = vmul.f32 %v999, %v998
    %v1001 = vmul.f32 %v995, %v788
    %v1002 = vadd.f32 %v1000, %v1001
    %1003 = vst [vmem:[#allocation5 + $0x8] sm:$0xff] %v1002
    %v1004 = vld [vmem:[#allocation4 + $0x30] sm:$0xff]
    %v1005 = vld [vmem:[#allocation4 + $0x38] sm:$0xff]
    %v1006 = vld [vmem:[#allocation4 + $0x40] sm:$0xff]
    %v1007 = vld [vmem:[#allocation10] sm:$0xff]
    %v1008 = vld [vmem:[#allocation10 + $0x8] sm:$0xff]
    %v1009 = vld [vmem:[#allocation10 + $0x10] sm:$0xff]
    %v1010 = vld [vmem:[#allocation10 + $0x18] sm:$0xff]
    %v1011 = vld [vmem:[#allocation10 + $0x20] sm:$0xff]
    %v1012 = vld [vmem:[#allocation10 + $0x28] sm:$0xff]
    %v1013 = vld [vmem:[#allocation10 + $0x30] sm:$0xff]
    %v1014 = vld [vmem:[#allocation10 + $0x38] sm:$0xff]
    %v1015 = vld [vmem:[#allocation10 + $0x40] sm:$0xff]
    %v1016 = vld [vmem:[#allocation10 + $0x48] sm:$0xff]
    %v1017 = vld [vmem:[#allocation10 + $0x50] sm:$0xff]
    %v1018 = vld [vmem:[#allocation10 + $0x58] sm:$0xff]
    %v1019 = vld [vmem:[#allocation10 + $0x60] sm:$0xff]
    %v1020 = vld [vmem:[#allocation10 + $0x68] sm:$0xff]
    %v1021 = vld [vmem:[#allocation10 + $0x70] sm:$0xff]
    %v1022 = vld [vmem:[#allocation10 + $0x78] sm:$0xff]
    %v1023 = vld [vmem:[#allocation10 + $0x80] sm:$0xff]
    %v1024 = vld [vmem:[#allocation10 + $0x88] sm:$0xff]
    %v1025 = vld [vmem:[#allocation10 + $0x90] sm:$0xff]
    %v1026 = vld [vmem:[#allocation10 + $0x98] sm:$0xff]
    %v1027 = vld [vmem:[#allocation10 + $0xa0] sm:$0xff]
    %v1028 = vld [vmem:[#allocation10 + $0xa8] sm:$0xff]
    %v1029 = vld [vmem:[#allocation10 + $0xb0] sm:$0xff]
    %v1030 = vld [vmem:[#allocation10 + $0xb8] sm:$0xff]
    %v1031 = vld [vmem:[#allocation10 + $0xc0] sm:$0xff]
    %v1032 = vld [vmem:[#allocation10 + $0xc8] sm:$0xff]
    %v1033 = vld [vmem:[#allocation10 + $0xd0] sm:$0xff]
    %v1034 = vld [vmem:[#allocation10 + $0xd8] sm:$0xff]
    %v1035 = vld [vmem:[#allocation10 + $0xe0] sm:$0xff]
    %v1036 = vld [vmem:[#allocation10 + $0xe8] sm:$0xff]
    %v1037 = vld [vmem:[#allocation10 + $0xf0] sm:$0xff]
    %v1038 = vld [vmem:[#allocation10 + $0xf8] sm:$0xff]
    %v1039 = vld [vmem:[#allocation10 + $0x100] sm:$0xff]
    %v1040 = vld [vmem:[#allocation10 + $0x108] sm:$0xff]
    %v1041 = vld [vmem:[#allocation10 + $0x110] sm:$0xff]
    %v1042 = vld [vmem:[#allocation10 + $0x118] sm:$0xff]
    %v1043 = vld [vmem:[#allocation10 + $0x120] sm:$0xff]
    %v1044 = vld [vmem:[#allocation10 + $0x128] sm:$0xff]
    %v1045 = vld [vmem:[#allocation10 + $0x130] sm:$0xff]
    %v1046 = vld [vmem:[#allocation10 + $0x138] sm:$0xff]
    %v1047 = vld [vmem:[#allocation10 + $0x140] sm:$0xff]
    %v1048 = vld [vmem:[#allocation10 + $0x148] sm:$0xff]
    %v1049 = vld [vmem:[#allocation10 + $0x150] sm:$0xff]
    %v1050 = vld [vmem:[#allocation10 + $0x158] sm:$0xff]
    %v1051 = vld [vmem:[#allocation10 + $0x160] sm:$0xff]
    %v1052 = vld [vmem:[#allocation10 + $0x168] sm:$0xff]
    %v1053 = vld [vmem:[#allocation10 + $0x170] sm:$0xff]
    %v1054 = vld [vmem:[#allocation10 + $0x178] sm:$0xff]
    %1055 = vmatprep.subr.mxu0 %v1008
    %1056 = vmatpush1.msra.mxu0 %v1007
    %1057 = vmatprep.subr.mxu0 %v1011
    %1058 = vmatpush1.msra.mxu0 %v1010
    %1059 = vmatprep.subr.mxu0 %v1014
    %1060 = vmatpush1.msra.mxu0 %v1013
    %1061 = vmatprep.subr.mxu0 %v1017
    %1062 = vmatpush1.msra.mxu0 %v1016
    %1063 = vmatprep.subr.mxu0 %v1020
    %1064 = vmatpush1.msra.mxu0 %v1019
    %1065 = vmatprep.subr.mxu0 %v1023
    %1066 = vmatpush1.msra.mxu0 %v1022
    %1067 = vmatprep.subr.mxu0 %v1026
    %1068 = vmatpush1.msra.mxu0 %v1025
    %1069 = vmatprep.subr.mxu0 %v1029
    %1070 = vmatpush1.msra.mxu0 %v1028
    %1071 = vmatprep.subr.mxu0 %v1032
    %1072 = vmatpush1.msra.mxu0 %v1031
    %1073 = vmatprep.subr.mxu0 %v1035
    %1074 = vmatpush1.msra.mxu0 %v1034
    %1075 = vmatprep.subr.mxu0 %v1038
    %1076 = vmatpush1.msra.mxu0 %v1037
    %1077 = vmatprep.subr.mxu0 %v1041
    %1078 = vmatpush1.msra.mxu0 %v1040
    %1079 = vmatprep.subr.mxu0 %v1044
    %1080 = vmatpush1.msra.mxu0 %v1043
    %1081 = vmatprep.subr.mxu0 %v1047
    %1082 = vmatpush1.msra.mxu0 %v1046
    %1083 = vmatprep.subr.mxu0 %v1050
    %1084 = vmatpush1.msra.mxu0 %v1049
    %1085 = vmatprep.subr.mxu0 %v1053
    %1086 = vmatpush1.msra.mxu0 %v1052
    %1087 = vmatprep.subr.mxu0 0.0
    %1088 = vmatpush1.msra.mxu0 0.0
    %1089 = vmatprep.subr.mxu0 0.0
    %1090 = vmatpush1.msra.mxu0 0.0
    %1091 = vmatprep.subr.mxu0 0.0
    %1092 = vmatpush1.msra.mxu0 0.0
    %1093 = vmatprep.subr.mxu0 0.0
    %1094 = vmatpush1.msra.mxu0 0.0
    %1095 = vmatprep.subr.mxu0 0.0
    %1096 = vmatpush1.msra.mxu0 0.0
    %1097 = vmatprep.subr.mxu0 0.0
    %1098 = vmatpush1.msra.mxu0 0.0
    %1099 = vmatprep.subr.mxu0 0.0
    %1100 = vmatpush1.msra.mxu0 0.0
    %1101 = vmatprep.subr.mxu0 0.0
    %1102 = vmatpush1.msra.mxu0 0.0
    %1103 = vmatprep.subr.mxu0 0.0
    %1104 = vmatpush1.msra.mxu0 0.0
    %1105 = vmatprep.subr.mxu0 0.0
    %1106 = vmatpush1.msra.mxu0 0.0
    %1107 = vmatprep.subr.mxu0 0.0
    %1108 = vmatpush1.msra.mxu0 0.0
    %1109 = vmatprep.subr.mxu0 0.0
    %1110 = vmatpush1.msra.mxu0 0.0
    %1111 = vmatprep.subr.mxu0 0.0
    %1112 = vmatpush1.msra.mxu0 0.0
    %1113 = vmatprep.subr.mxu0 0.0
    %1114 = vmatpush1.msra.mxu0 0.0
    %1115 = vmatprep.subr.mxu0 0.0
    %1116 = vmatpush1.msra.mxu0 0.0
    %1117 = vmatprep.subr.mxu0 0.0
    %1118 = vmatpush1.msra.mxu0 0.0
    %1119 = vmatprep.mubr.f32.mxu0 0.0
    %1120 = vmatmul.mubr.f32.gmra.mrb[0].mxu0 %v1002
    %v1121 = vpop.f32.mrb[0].mxu0
    %v1122 = vadd.f32 %v615, %v1121
    %v1123 = vpop.f32.mrb[0].mxu0
    %v1124 = vadd.f32 %v619, %v1123
    %1125 = vdwg.mxu0
    %1126 = vmatprep.subr.mxu0 0.0
    %1127 = vmatpush1.msra.mxu0 %v1009
    %1128 = vmatprep.subr.mxu0 0.0
    %1129 = vmatpush1.msra.mxu0 %v1012
    %1130 = vmatprep.subr.mxu0 0.0
    %1131 = vmatpush1.msra.mxu0 %v1015
    %1132 = vmatprep.subr.mxu0 0.0
    %1133 = vmatpush1.msra.mxu0 %v1018
    %1134 = vmatprep.subr.mxu0 0.0
    %1135 = vmatpush1.msra.mxu0 %v1021
    %1136 = vmatprep.subr.mxu0 0.0
    %1137 = vmatpush1.msra.mxu0 %v1024
    %1138 = vmatprep.subr.mxu0 0.0
    %1139 = vmatpush1.msra.mxu0 %v1027
    %1140 = vmatprep.subr.mxu0 0.0
    %1141 = vmatpush1.msra.mxu0 %v1030
    %1142 = vmatprep.subr.mxu0 0.0
    %1143 = vmatpush1.msra.mxu0 %v1033
    %1144 = vmatprep.subr.mxu0 0.0
    %1145 = vmatpush1.msra.mxu0 %v1036
    %1146 = vmatprep.subr.mxu0 0.0
    %1147 = vmatpush1.msra.mxu0 %v1039
    %1148 = vmatprep.subr.mxu0 0.0
    %1149 = vmatpush1.msra.mxu0 %v1042
    %1150 = vmatprep.subr.mxu0 0.0
    %1151 = vmatpush1.msra.mxu0 %v1045
    %1152 = vmatprep.subr.mxu0 0.0
    %1153 = vmatpush1.msra.mxu0 %v1048
    %1154 = vmatprep.subr.mxu0 0.0
    %1155 = vmatpush1.msra.mxu0 %v1051
    %1156 = vmatprep.subr.mxu0 0.0
    %1157 = vmatpush1.msra.mxu0 %v1054
    %1158 = vmatprep.subr.mxu0 0.0
    %1159 = vmatpush1.msra.mxu0 0.0
    %1160 = vmatprep.subr.mxu0 0.0
    %1161 = vmatpush1.msra.mxu0 0.0
    %1162 = vmatprep.subr.mxu0 0.0
    %1163 = vmatpush1.msra.mxu0 0.0
    %1164 = vmatprep.subr.mxu0 0.0
    %1165 = vmatpush1.msra.mxu0 0.0
    %1166 = vmatprep.subr.mxu0 0.0
    %1167 = vmatpush1.msra.mxu0 0.0
    %1168 = vmatprep.subr.mxu0 0.0
    %1169 = vmatpush1.msra.mxu0 0.0
    %1170 = vmatprep.subr.mxu0 0.0
    %1171 = vmatpush1.msra.mxu0 0.0
    %1172 = vmatprep.subr.mxu0 0.0
    %1173 = vmatpush1.msra.mxu0 0.0
    %1174 = vmatprep.subr.mxu0 0.0
    %1175 = vmatpush1.msra.mxu0 0.0
    %1176 = vmatprep.subr.mxu0 0.0
    %1177 = vmatpush1.msra.mxu0 0.0
    %1178 = vmatprep.subr.mxu0 0.0
    %1179 = vmatpush1.msra.mxu0 0.0
    %1180 = vmatprep.subr.mxu0 0.0
    %1181 = vmatpush1.msra.mxu0 0.0
    %1182 = vmatprep.subr.mxu0 0.0
    %1183 = vmatpush1.msra.mxu0 0.0
    %1184 = vmatprep.subr.mxu0 0.0
    %1185 = vmatpush1.msra.mxu0 0.0
    %1186 = vmatprep.subr.mxu0 0.0
    %1187 = vmatpush1.msra.mxu0 0.0
    %1188 = vmatprep.subr.mxu0 0.0
    %1189 = vmatpush1.msra.mxu0 0.0
    %1190 = vmatprep.mubr.f32.mxu0 0.0
    %1191 = vmatmul.mubr.f32.gmra.mrb[0].mxu0 %v1002
    %v1192 = vpop.f32.mrb[0].mxu0
    %v1193 = vadd.f32 %v623, %v1192
    %v1194 = vpop.f32.mrb[0].mxu0
    %1195 = vdwg.mxu0
    %v1196 = vadd.f32 %v1004, %v1122
    %v1197 = vxor.u32 %v1196, 2147483648
    %v1198 = vmul.f32 %v1197, 1.442695
    %v1199 = vpow.pop %v1198
    %v1200 = vadd.f32 %v1199, 1.0
    %v1201 = vrcp.pop %v1200
    %v1202 = vmul.f32 1.0, %v1201
    %v1203 = vadd.f32 %v1005, %v1124
    %v1204 = vxor.u32 %v1203, 2147483648
    %v1205 = vmul.f32 %v1204, 1.442695
    %v1206 = vpow.pop %v1205
    %v1207 = vadd.f32 %v1206, 1.0
    %v1208 = vrcp.pop %v1207
    %v1209 = vmul.f32 1.0, %v1208
    %v1210 = vmul.f32 %v1202, %v1193
    %v1211 = vadd.f32 %v1006, %v1210
    %v1212 = vtanh.pop %v1211
    %v1213 = vsub.f32 1.0, %v1209
    %v1214 = vmul.f32 %v1213, %v1212
    %v1215 = vmul.f32 %v1209, %v1002
    %v1216 = vadd.f32 %v1214, %v1215
    %1217 = vst [vmem:[#allocation5 + $0x10] sm:$0xff] %v1216
    %v1218 = vld [vmem:[#allocation4 + $0x48] sm:$0xff]
    %v1219 = vld [vmem:[#allocation4 + $0x50] sm:$0xff]
    %v1220 = vld [vmem:[#allocation4 + $0x58] sm:$0xff]
    %v1221 = vld [vmem:[#allocation10] sm:$0xff]
    %v1222 = vld [vmem:[#allocation10 + $0x8] sm:$0xff]
    %v1223 = vld [vmem:[#allocation10 + $0x10] sm:$0xff]
    %v1224 = vld [vmem:[#allocation10 + $0x18] sm:$0xff]
    %v1225 = vld [vmem:[#allocation10 + $0x20] sm:$0xff]
    %v1226 = vld [vmem:[#allocation10 + $0x28] sm:$0xff]
    %v1227 = vld [vmem:[#allocation10 + $0x30] sm:$0xff]
    %v1228 = vld [vmem:[#allocation10 + $0x38] sm:$0xff]
    %v1229 = vld [vmem:[#allocation10 + $0x40] sm:$0xff]
    %v1230 = vld [vmem:[#allocation10 + $0x48] sm:$0xff]
    %v1231 = vld [vmem:[#allocation10 + $0x50] sm:$0xff]
    %v1232 = vld [vmem:[#allocation10 + $0x58] sm:$0xff]
    %v1233 = vld [vmem:[#allocation10 + $0x60] sm:$0xff]
    %v1234 = vld [vmem:[#allocation10 + $0x68] sm:$0xff]
    %v1235 = vld [vmem:[#allocation10 + $0x70] sm:$0xff]
    %v1236 = vld [vmem:[#allocation10 + $0x78] sm:$0xff]
    %v1237 = vld [vmem:[#allocation10 + $0x80] sm:$0xff]
    %v1238 = vld [vmem:[#allocation10 + $0x88] sm:$0xff]
    %v1239 = vld [vmem:[#allocation10 + $0x90] sm:$0xff]
    %v1240 = vld [vmem:[#allocation10 + $0x98] sm:$0xff]
    %v1241 = vld [vmem:[#allocation10 + $0xa0] sm:$0xff]
    %v1242 = vld [vmem:[#allocation10 + $0xa8] sm:$0xff]
    %v1243 = vld [vmem:[#allocation10 + $0xb0] sm:$0xff]
    %v1244 = vld [vmem:[#allocation10 + $0xb8] sm:$0xff]
    %v1245 = vld [vmem:[#allocation10 + $0xc0] sm:$0xff]
    %v1246 = vld [vmem:[#allocation10 + $0xc8] sm:$0xff]
    %v1247 = vld [vmem:[#allocation10 + $0xd0] sm:$0xff]
    %v1248 = vld [vmem:[#allocation10 + $0xd8] sm:$0xff]
    %v1249 = vld [vmem:[#allocation10 + $0xe0] sm:$0xff]
    %v1250 = vld [vmem:[#allocation10 + $0xe8] sm:$0xff]
    %v1251 = vld [vmem:[#allocation10 + $0xf0] sm:$0xff]
    %v1252 = vld [vmem:[#allocation10 + $0xf8] sm:$0xff]
    %v1253 = vld [vmem:[#allocation10 + $0x100] sm:$0xff]
    %v1254 = vld [vmem:[#allocation10 + $0x108] sm:$0xff]
    %v1255 = vld [vmem:[#allocation10 + $0x110] sm:$0xff]
    %v1256 = vld [vmem:[#allocation10 + $0x118] sm:$0xff]
    %v1257 = vld [vmem:[#allocation10 + $0x120] sm:$0xff]
    %v1258 = vld [vmem:[#allocation10 + $0x128] sm:$0xff]
    %v1259 = vld [vmem:[#allocation10 + $0x130] sm:$0xff]
    %v1260 = vld [vmem:[#allocation10 + $0x138] sm:$0xff]
    %v1261 = vld [vmem:[#allocation10 + $0x140] sm:$0xff]
    %v1262 = vld [vmem:[#allocation10 + $0x148] sm:$0xff]
    %v1263 = vld [vmem:[#allocation10 + $0x150] sm:$0xff]
    %v1264 = vld [vmem:[#allocation10 + $0x158] sm:$0xff]
    %v1265 = vld [vmem:[#allocation10 + $0x160] sm:$0xff]
    %v1266 = vld [vmem:[#allocation10 + $0x168] sm:$0xff]
    %v1267 = vld [vmem:[#allocation10 + $0x170] sm:$0xff]
    %v1268 = vld [vmem:[#allocation10 + $0x178] sm:$0xff]
    %1269 = vmatprep.subr.mxu0 %v1222
    %1270 = vmatpush1.msra.mxu0 %v1221
    %1271 = vmatprep.subr.mxu0 %v1225
    %1272 = vmatpush1.msra.mxu0 %v1224
    %1273 = vmatprep.subr.mxu0 %v1228
    %1274 = vmatpush1.msra.mxu0 %v1227
    %1275 = vmatprep.subr.mxu0 %v1231
    %1276 = vmatpush1.msra.mxu0 %v1230
    %1277 = vmatprep.subr.mxu0 %v1234
    %1278 = vmatpush1.msra.mxu0 %v1233
    %1279 = vmatprep.subr.mxu0 %v1237
    %1280 = vmatpush1.msra.mxu0 %v1236
    %1281 = vmatprep.subr.mxu0 %v1240
    %1282 = vmatpush1.msra.mxu0 %v1239
    %1283 = vmatprep.subr.mxu0 %v1243
    %1284 = vmatpush1.msra.mxu0 %v1242
    %1285 = vmatprep.subr.mxu0 %v1246
    %1286 = vmatpush1.msra.mxu0 %v1245
    %1287 = vmatprep.subr.mxu0 %v1249
    %1288 = vmatpush1.msra.mxu0 %v1248
    %1289 = vmatprep.subr.mxu0 %v1252
    %1290 = vmatpush1.msra.mxu0 %v1251
    %1291 = vmatprep.subr.mxu0 %v1255
    %1292 = vmatpush1.msra.mxu0 %v1254
    %1293 = vmatprep.subr.mxu0 %v1258
    %1294 = vmatpush1.msra.mxu0 %v1257
    %1295 = vmatprep.subr.mxu0 %v1261
    %1296 = vmatpush1.msra.mxu0 %v1260
    %1297 = vmatprep.subr.mxu0 %v1264
    %1298 = vmatpush1.msra.mxu0 %v1263
    %1299 = vmatprep.subr.mxu0 %v1267
    %1300 = vmatpush1.msra.mxu0 %v1266
    %1301 = vmatprep.subr.mxu0 0.0
    %1302 = vmatpush1.msra.mxu0 0.0
    %1303 = vmatprep.subr.mxu0 0.0
    %1304 = vmatpush1.msra.mxu0 0.0
    %1305 = vmatprep.subr.mxu0 0.0
    %1306 = vmatpush1.msra.mxu0 0.0
    %1307 = vmatprep.subr.mxu0 0.0
    %1308 = vmatpush1.msra.mxu0 0.0
    %1309 = vmatprep.subr.mxu0 0.0
    %1310 = vmatpush1.msra.mxu0 0.0
    %1311 = vmatprep.subr.mxu0 0.0
    %1312 = vmatpush1.msra.mxu0 0.0
    %1313 = vmatprep.subr.mxu0 0.0
    %1314 = vmatpush1.msra.mxu0 0.0
    %1315 = vmatprep.subr.mxu0 0.0
    %1316 = vmatpush1.msra.mxu0 0.0
    %1317 = vmatprep.subr.mxu0 0.0
    %1318 = vmatpush1.msra.mxu0 0.0
    %1319 = vmatprep.subr.mxu0 0.0
    %1320 = vmatpush1.msra.mxu0 0.0
    %1321 = vmatprep.subr.mxu0 0.0
    %1322 = vmatpush1.msra.mxu0 0.0
    %1323 = vmatprep.subr.mxu0 0.0
    %1324 = vmatpush1.msra.mxu0 0.0
    %1325 = vmatprep.subr.mxu0 0.0
    %1326 = vmatpush1.msra.mxu0 0.0
    %1327 = vmatprep.subr.mxu0 0.0
    %1328 = vmatpush1.msra.mxu0 0.0
    %1329 = vmatprep.subr.mxu0 0.0
    %1330 = vmatpush1.msra.mxu0 0.0
    %1331 = vmatprep.subr.mxu0 0.0
    %1332 = vmatpush1.msra.mxu0 0.0
    %1333 = vmatprep.mubr.f32.mxu0 0.0
    %1334 = vmatmul.mubr.f32.gmra.mrb[0].mxu0 %v1216
    %v1335 = vpop.f32.mrb[0].mxu0
    %v1336 = vadd.f32 %v615, %v1335
    %v1337 = vpop.f32.mrb[0].mxu0
    %v1338 = vadd.f32 %v619, %v1337
    %1339 = vdwg.mxu0
    %1340 = vmatprep.subr.mxu0 0.0
    %1341 = vmatpush1.msra.mxu0 %v1223
    %1342 = vmatprep.subr.mxu0 0.0
    %1343 = vmatpush1.msra.mxu0 %v1226
    %1344 = vmatprep.subr.mxu0 0.0
    %1345 = vmatpush1.msra.mxu0 %v1229
    %1346 = vmatprep.subr.mxu0 0.0
    %1347 = vmatpush1.msra.mxu0 %v1232
    %1348 = vmatprep.subr.mxu0 0.0
    %1349 = vmatpush1.msra.mxu0 %v1235
    %1350 = vmatprep.subr.mxu0 0.0
    %1351 = vmatpush1.msra.mxu0 %v1238
    %1352 = vmatprep.subr.mxu0 0.0
    %1353 = vmatpush1.msra.mxu0 %v1241
    %1354 = vmatprep.subr.mxu0 0.0
    %1355 = vmatpush1.msra.mxu0 %v1244
    %1356 = vmatprep.subr.mxu0 0.0
    %1357 = vmatpush1.msra.mxu0 %v1247
    %1358 = vmatprep.subr.mxu0 0.0
    %1359 = vmatpush1.msra.mxu0 %v1250
    %1360 = vmatprep.subr.mxu0 0.0
    %1361 = vmatpush1.msra.mxu0 %v1253
    %1362 = vmatprep.subr.mxu0 0.0
    %1363 = vmatpush1.msra.mxu0 %v1256
    %1364 = vmatprep.subr.mxu0 0.0
    %1365 = vmatpush1.msra.mxu0 %v1259
    %1366 = vmatprep.subr.mxu0 0.0
    %1367 = vmatpush1.msra.mxu0 %v1262
    %1368 = vmatprep.subr.mxu0 0.0
    %1369 = vmatpush1.msra.mxu0 %v1265
    %1370 = vmatprep.subr.mxu0 0.0
    %1371 = vmatpush1.msra.mxu0 %v1268
    %1372 = vmatprep.subr.mxu0 0.0
    %1373 = vmatpush1.msra.mxu0 0.0
    %1374 = vmatprep.subr.mxu0 0.0
    %1375 = vmatpush1.msra.mxu0 0.0
    %1376 = vmatprep.subr.mxu0 0.0
    %1377 = vmatpush1.msra.mxu0 0.0
    %1378 = vmatprep.subr.mxu0 0.0
    %1379 = vmatpush1.msra.mxu0 0.0
    %1380 = vmatprep.subr.mxu0 0.0
    %1381 = vmatpush1.msra.mxu0 0.0
    %1382 = vmatprep.subr.mxu0 0.0
    %1383 = vmatpush1.msra.mxu0 0.0
    %1384 = vmatprep.subr.mxu0 0.0
    %1385 = vmatpush1.msra.mxu0 0.0
    %1386 = vmatprep.subr.mxu0 0.0
    %1387 = vmatpush1.msra.mxu0 0.0
    %1388 = vmatprep.subr.mxu0 0.0
    %1389 = vmatpush1.msra.mxu0 0.0
    %1390 = vmatprep.subr.mxu0 0.0
    %1391 = vmatpush1.msra.mxu0 0.0
    %1392 = vmatprep.subr.mxu0 0.0
    %1393 = vmatpush1.msra.mxu0 0.0
    %1394 = vmatprep.subr.mxu0 0.0
    %1395 = vmatpush1.msra.mxu0 0.0
    %1396 = vmatprep.subr.mxu0 0.0
    %1397 = vmatpush1.msra.mxu0 0.0
    %1398 = vmatprep.subr.mxu0 0.0
    %1399 = vmatpush1.msra.mxu0 0.0
    %1400 = vmatprep.subr.mxu0 0.0
    %1401 = vmatpush1.msra.mxu0 0.0
    %1402 = vmatprep.subr.mxu0 0.0
    %1403 = vmatpush1.msra.mxu0 0.0
    %1404 = vmatprep.mubr.f32.mxu0 0.0
    %1405 = vmatmul.mubr.f32.gmra.mrb[0].mxu0 %v1216
    %v1406 = vpop.f32.mrb[0].mxu0
    %v1407 = vadd.f32 %v623, %v1406
    %v1408 = vpop.f32.mrb[0].mxu0
    %1409 = vdwg.mxu0
    %v1410 = vadd.f32 %v1218, %v1336
    %v1411 = vxor.u32 %v1410, 2147483648
    %v1412 = vmul.f32 %v1411, 1.442695
    %v1413 = vpow.pop %v1412
    %v1414 = vadd.f32 %v1413, 1.0
    %v1415 = vrcp.pop %v1414
    %v1416 = vmul.f32 1.0, %v1415
    %v1417 = vadd.f32 %v1219, %v1338
    %v1418 = vxor.u32 %v1417, 2147483648
    %v1419 = vmul.f32 %v1418, 1.442695
    %v1420 = vpow.pop %v1419
    %v1421 = vadd.f32 %v1420, 1.0
    %v1422 = vrcp.pop %v1421
    %v1423 = vmul.f32 1.0, %v1422
    %v1424 = vmul.f32 %v1416, %v1407
    %v1425 = vadd.f32 %v1220, %v1424
    %v1426 = vtanh.pop %v1425
    %v1427 = vsub.f32 1.0, %v1423
    %v1428 = vmul.f32 %v1427, %v1426
    %v1429 = vmul.f32 %v1423, %v1216
    %v1430 = vadd.f32 %v1428, %v1429
    %1431 = vst [vmem:[#allocation5 + $0x18] sm:$0xff] %v1430
    %v1432 = vld [vmem:[#allocation4 + $0x60] sm:$0xff]
    %v1433 = vld [vmem:[#allocation4 + $0x68] sm:$0xff]
    %v1434 = vld [vmem:[#allocation4 + $0x70] sm:$0xff]
    %v1435 = vld [vmem:[#allocation10] sm:$0xff]
    %v1436 = vld [vmem:[#allocation10 + $0x8] sm:$0xff]
    %v1437 = vld [vmem:[#allocation10 + $0x10] sm:$0xff]
    %v1438 = vld [vmem:[#allocation10 + $0x18] sm:$0xff]
    %v1439 = vld [vmem:[#allocation10 + $0x20] sm:$0xff]
    %v1440 = vld [vmem:[#allocation10 + $0x28] sm:$0xff]
    %v1441 = vld [vmem:[#allocation10 + $0x30] sm:$0xff]
    %v1442 = vld [vmem:[#allocation10 + $0x38] sm:$0xff]
    %v1443 = vld [vmem:[#allocation10 + $0x40] sm:$0xff]
    %v1444 = vld [vmem:[#allocation10 + $0x48] sm:$0xff]
    %v1445 = vld [vmem:[#allocation10 + $0x50] sm:$0xff]
    %v1446 = vld [vmem:[#allocation10 + $0x58] sm:$0xff]
    %v1447 = vld [vmem:[#allocation10 + $0x60] sm:$0xff]
    %v1448 = vld [vmem:[#allocation10 + $0x68] sm:$0xff]
    %v1449 = vld [vmem:[#allocation10 + $0x70] sm:$0xff]
    %v1450 = vld [vmem:[#allocation10 + $0x78] sm:$0xff]
    %v1451 = vld [vmem:[#allocation10 + $0x80] sm:$0xff]
    %v1452 = vld [vmem:[#allocation10 + $0x88] sm:$0xff]
    %v1453 = vld [vmem:[#allocation10 + $0x90] sm:$0xff]
    %v1454 = vld [vmem:[#allocation10 + $0x98] sm:$0xff]
    %v1455 = vld [vmem:[#allocation10 + $0xa0] sm:$0xff]
    %v1456 = vld [vmem:[#allocation10 + $0xa8] sm:$0xff]
    %v1457 = vld [vmem:[#allocation10 + $0xb0] sm:$0xff]
    %v1458 = vld [vmem:[#allocation10 + $0xb8] sm:$0xff]
    %v1459 = vld [vmem:[#allocation10 + $0xc0] sm:$0xff]
    %v1460 = vld [vmem:[#allocation10 + $0xc8] sm:$0xff]
    %v1461 = vld [vmem:[#allocation10 + $0xd0] sm:$0xff]
    %v1462 = vld [vmem:[#allocation10 + $0xd8] sm:$0xff]
    %v1463 = vld [vmem:[#allocation10 + $0xe0] sm:$0xff]
    %v1464 = vld [vmem:[#allocation10 + $0xe8] sm:$0xff]
    %v1465 = vld [vmem:[#allocation10 + $0xf0] sm:$0xff]
    %v1466 = vld [vmem:[#allocation10 + $0xf8] sm:$0xff]
    %v1467 = vld [vmem:[#allocation10 + $0x100] sm:$0xff]
    %v1468 = vld [vmem:[#allocation10 + $0x108] sm:$0xff]
    %v1469 = vld [vmem:[#allocation10 + $0x110] sm:$0xff]
    %v1470 = vld [vmem:[#allocation10 + $0x118] sm:$0xff]
    %v1471 = vld [vmem:[#allocation10 + $0x120] sm:$0xff]
    %v1472 = vld [vmem:[#allocation10 + $0x128] sm:$0xff]
    %v1473 = vld [vmem:[#allocation10 + $0x130] sm:$0xff]
    %v1474 = vld [vmem:[#allocation10 + $0x138] sm:$0xff]
    %v1475 = vld [vmem:[#allocation10 + $0x140] sm:$0xff]
    %v1476 = vld [vmem:[#allocation10 + $0x148] sm:$0xff]
    %v1477 = vld [vmem:[#allocation10 + $0x150] sm:$0xff]
    %v1478 = vld [vmem:[#allocation10 + $0x158] sm:$0xff]
    %v1479 = vld [vmem:[#allocation10 + $0x160] sm:$0xff]
    %v1480 = vld [vmem:[#allocation10 + $0x168] sm:$0xff]
    %v1481 = vld [vmem:[#allocation10 + $0x170] sm:$0xff]
    %v1482 = vld [vmem:[#allocation10 + $0x178] sm:$0xff]
    %1483 = vmatprep.subr.mxu0 %v1436
    %1484 = vmatpush1.msra.mxu0 %v1435
    %1485 = vmatprep.subr.mxu0 %v1439
    %1486 = vmatpush1.msra.mxu0 %v1438
    %1487 = vmatprep.subr.mxu0 %v1442
    %1488 = vmatpush1.msra.mxu0 %v1441
    %1489 = vmatprep.subr.mxu0 %v1445
    %1490 = vmatpush1.msra.mxu0 %v1444
    %1491 = vmatprep.subr.mxu0 %v1448
    %1492 = vmatpush1.msra.mxu0 %v1447
    %1493 = vmatprep.subr.mxu0 %v1451
    %1494 = vmatpush1.msra.mxu0 %v1450
    %1495 = vmatprep.subr.mxu0 %v1454
    %1496 = vmatpush1.msra.mxu0 %v1453
    %1497 = vmatprep.subr.mxu0 %v1457
    %1498 = vmatpush1.msra.mxu0 %v1456
    %1499 = vmatprep.subr.mxu0 %v1460
    %1500 = vmatpush1.msra.mxu0 %v1459
    %1501 = vmatprep.subr.mxu0 %v1463
    %1502 = vmatpush1.msra.mxu0 %v1462
    %1503 = vmatprep.subr.mxu0 %v1466
    %1504 = vmatpush1.msra.mxu0 %v1465
    %1505 = vmatprep.subr.mxu0 %v1469
    %1506 = vmatpush1.msra.mxu0 %v1468
    %1507 = vmatprep.subr.mxu0 %v1472
    %1508 = vmatpush1.msra.mxu0 %v1471
    %1509 = vmatprep.subr.mxu0 %v1475
    %1510 = vmatpush1.msra.mxu0 %v1474
    %1511 = vmatprep.subr.mxu0 %v1478
    %1512 = vmatpush1.msra.mxu0 %v1477
    %1513 = vmatprep.subr.mxu0 %v1481
    %1514 = vmatpush1.msra.mxu0 %v1480
    %1515 = vmatprep.subr.mxu0 0.0
    %1516 = vmatpush1.msra.mxu0 0.0
    %1517 = vmatprep.subr.mxu0 0.0
    %1518 = vmatpush1.msra.mxu0 0.0
    %1519 = vmatprep.subr.mxu0 0.0
    %1520 = vmatpush1.msra.mxu0 0.0
    %1521 = vmatprep.subr.mxu0 0.0
    %1522 = vmatpush1.msra.mxu0 0.0
    %1523 = vmatprep.subr.mxu0 0.0
    %1524 = vmatpush1.msra.mxu0 0.0
    %1525 = vmatprep.subr.mxu0 0.0
    %1526 = vmatpush1.msra.mxu0 0.0
    %1527 = vmatprep.subr.mxu0 0.0
    %1528 = vmatpush1.msra.mxu0 0.0
    %1529 = vmatprep.subr.mxu0 0.0
    %1530 = vmatpush1.msra.mxu0 0.0
    %1531 = vmatprep.subr.mxu0 0.0
    %1532 = vmatpush1.msra.mxu0 0.0
    %1533 = vmatprep.subr.mxu0 0.0
    %1534 = vmatpush1.msra.mxu0 0.0
    %1535 = vmatprep.subr.mxu0 0.0
    %1536 = vmatpush1.msra.mxu0 0.0
    %1537 = vmatprep.subr.mxu0 0.0
    %1538 = vmatpush1.msra.mxu0 0.0
    %1539 = vmatprep.subr.mxu0 0.0
    %1540 = vmatpush1.msra.mxu0 0.0
    %1541 = vmatprep.subr.mxu0 0.0
    %1542 = vmatpush1.msra.mxu0 0.0
    %1543 = vmatprep.subr.mxu0 0.0
    %1544 = vmatpush1.msra.mxu0 0.0
    %1545 = vmatprep.subr.mxu0 0.0
    %1546 = vmatpush1.msra.mxu0 0.0
    %1547 = vmatprep.mubr.f32.mxu0 0.0
    %1548 = vmatmul.mubr.f32.gmra.mrb[0].mxu0 %v1430
    %v1549 = vpop.f32.mrb[0].mxu0
    %v1550 = vadd.f32 %v615, %v1549
    %v1551 = vpop.f32.mrb[0].mxu0
    %v1552 = vadd.f32 %v619, %v1551
    %1553 = vdwg.mxu0
    %1554 = vmatprep.subr.mxu0 0.0
    %1555 = vmatpush1.msra.mxu0 %v1437
    %1556 = vmatprep.subr.mxu0 0.0
    %1557 = vmatpush1.msra.mxu0 %v1440
    %1558 = vmatprep.subr.mxu0 0.0
    %1559 = vmatpush1.msra.mxu0 %v1443
    %1560 = vmatprep.subr.mxu0 0.0
    %1561 = vmatpush1.msra.mxu0 %v1446
    %1562 = vmatprep.subr.mxu0 0.0
    %1563 = vmatpush1.msra.mxu0 %v1449
    %1564 = vmatprep.subr.mxu0 0.0
    %1565 = vmatpush1.msra.mxu0 %v1452
    %1566 = vmatprep.subr.mxu0 0.0
    %1567 = vmatpush1.msra.mxu0 %v1455
    %1568 = vmatprep.subr.mxu0 0.0
    %1569 = vmatpush1.msra.mxu0 %v1458
    %1570 = vmatprep.subr.mxu0 0.0
    %1571 = vmatpush1.msra.mxu0 %v1461
    %1572 = vmatprep.subr.mxu0 0.0
    %1573 = vmatpush1.msra.mxu0 %v1464
    %1574 = vmatprep.subr.mxu0 0.0
    %1575 = vmatpush1.msra.mxu0 %v1467
    %1576 = vmatprep.subr.mxu0 0.0
    %1577 = vmatpush1.msra.mxu0 %v1470
    %1578 = vmatprep.subr.mxu0 0.0
    %1579 = vmatpush1.msra.mxu0 %v1473
    %1580 = vmatprep.subr.mxu0 0.0
    %1581 = vmatpush1.msra.mxu0 %v1476
    %1582 = vmatprep.subr.mxu0 0.0
    %1583 = vmatpush1.msra.mxu0 %v1479
    %1584 = vmatprep.subr.mxu0 0.0
    %1585 = vmatpush1.msra.mxu0 %v1482
    %1586 = vmatprep.subr.mxu0 0.0
    %1587 = vmatpush1.msra.mxu0 0.0
    %1588 = vmatprep.subr.mxu0 0.0
    %1589 = vmatpush1.msra.mxu0 0.0
    %1590 = vmatprep.subr.mxu0 0.0
    %1591 = vmatpush1.msra.mxu0 0.0
    %1592 = vmatprep.subr.mxu0 0.0
    %1593 = vmatpush1.msra.mxu0 0.0
    %1594 = vmatprep.subr.mxu0 0.0
    %1595 = vmatpush1.msra.mxu0 0.0
    %1596 = vmatprep.subr.mxu0 0.0
    %1597 = vmatpush1.msra.mxu0 0.0
    %1598 = vmatprep.subr.mxu0 0.0
    %1599 = vmatpush1.msra.mxu0 0.0
    %1600 = vmatprep.subr.mxu0 0.0
    %1601 = vmatpush1.msra.mxu0 0.0
    %1602 = vmatprep.subr.mxu0 0.0
    %1603 = vmatpush1.msra.mxu0 0.0
    %1604 = vmatprep.subr.mxu0 0.0
    %1605 = vmatpush1.msra.mxu0 0.0
    %1606 = vmatprep.subr.mxu0 0.0
    %1607 = vmatpush1.msra.mxu0 0.0
    %1608 = vmatprep.subr.mxu0 0.0
    %1609 = vmatpush1.msra.mxu0 0.0
    %1610 = vmatprep.subr.mxu0 0.0
    %1611 = vmatpush1.msra.mxu0 0.0
    %1612 = vmatprep.subr.mxu0 0.0
    %1613 = vmatpush1.msra.mxu0 0.0
    %1614 = vmatprep.subr.mxu0 0.0
    %1615 = vmatpush1.msra.mxu0 0.0
    %1616 = vmatprep.subr.mxu0 0.0
    %1617 = vmatpush1.msra.mxu0 0.0
    %1618 = vmatprep.mubr.f32.mxu0 0.0
    %1619 = vmatmul.mubr.f32.gmra.mrb[0].mxu0 %v1430
    %v1620 = vpop.f32.mrb[0].mxu0
    %v1621 = vadd.f32 %v623, %v1620
    %v1622 = vpop.f32.mrb[0].mxu0
    %1623 = vdwg.mxu0
    %v1624 = vadd.f32 %v1432, %v1550
    %v1625 = vxor.u32 %v1624, 2147483648
    %v1626 = vmul.f32 %v1625, 1.442695
    %v1627 = vpow.pop %v1626
    %v1628 = vadd.f32 %v1627, 1.0
    %v1629 = vrcp.pop %v1628
    %v1630 = vmul.f32 1.0, %v1629
    %v1631 = vadd.f32 %v1433, %v1552
    %v1632 = vxor.u32 %v1631, 2147483648
    %v1633 = vmul.f32 %v1632, 1.442695
    %v1634 = vpow.pop %v1633
    %v1635 = vadd.f32 %v1634, 1.0
    %v1636 = vrcp.pop %v1635
    %v1637 = vmul.f32 1.0, %v1636
    %v1638 = vmul.f32 %v1630, %v1621
    %v1639 = vadd.f32 %v1434, %v1638
    %v1640 = vtanh.pop %v1639
    %v1641 = vsub.f32 1.0, %v1637
    %v1642 = vmul.f32 %v1641, %v1640
    %v1643 = vmul.f32 %v1637, %v1430
    %v1644 = vadd.f32 %v1642, %v1643
    %1645 = vst [vmem:[#allocation5 + $0x20] sm:$0xff] %v1644
    %v1646 = vld [vmem:[#allocation4 + $0x78] sm:$0xff]
    %v1647 = vld [vmem:[#allocation4 + $0x80] sm:$0xff]
    %v1648 = vld [vmem:[#allocation4 + $0x88] sm:$0xff]
    %v1649 = vld [vmem:[#allocation10] sm:$0xff]
    %v1650 = vld [vmem:[#allocation10 + $0x8] sm:$0xff]
    %v1651 = vld [vmem:[#allocation10 + $0x10] sm:$0xff]
    %v1652 = vld [vmem:[#allocation10 + $0x18] sm:$0xff]
    %v1653 = vld [vmem:[#allocation10 + $0x20] sm:$0xff]
    %v1654 = vld [vmem:[#allocation10 + $0x28] sm:$0xff]
    %v1655 = vld [vmem:[#allocation10 + $0x30] sm:$0xff]
    %v1656 = vld [vmem:[#allocation10 + $0x38] sm:$0xff]
    %v1657 = vld [vmem:[#allocation10 + $0x40] sm:$0xff]
    %v1658 = vld [vmem:[#allocation10 + $0x48] sm:$0xff]
    %v1659 = vld [vmem:[#allocation10 + $0x50] sm:$0xff]
    %v1660 = vld [vmem:[#allocation10 + $0x58] sm:$0xff]
    %v1661 = vld [vmem:[#allocation10 + $0x60] sm:$0xff]
    %v1662 = vld [vmem:[#allocation10 + $0x68] sm:$0xff]
    %v1663 = vld [vmem:[#allocation10 + $0x70] sm:$0xff]
    %v1664 = vld [vmem:[#allocation10 + $0x78] sm:$0xff]
    %v1665 = vld [vmem:[#allocation10 + $0x80] sm:$0xff]
    %v1666 = vld [vmem:[#allocation10 + $0x88] sm:$0xff]
    %v1667 = vld [vmem:[#allocation10 + $0x90] sm:$0xff]
    %v1668 = vld [vmem:[#allocation10 + $0x98] sm:$0xff]
    %v1669 = vld [vmem:[#allocation10 + $0xa0] sm:$0xff]
    %v1670 = vld [vmem:[#allocation10 + $0xa8] sm:$0xff]
    %v1671 = vld [vmem:[#allocation10 + $0xb0] sm:$0xff]
    %v1672 = vld [vmem:[#allocation10 + $0xb8] sm:$0xff]
    %v1673 = vld [vmem:[#allocation10 + $0xc0] sm:$0xff]
    %v1674 = vld [vmem:[#allocation10 + $0xc8] sm:$0xff]
    %v1675 = vld [vmem:[#allocation10 + $0xd0] sm:$0xff]
    %v1676 = vld [vmem:[#allocation10 + $0xd8] sm:$0xff]
    %v1677 = vld [vmem:[#allocation10 + $0xe0] sm:$0xff]
    %v1678 = vld [vmem:[#allocation10 + $0xe8] sm:$0xff]
    %v1679 = vld [vmem:[#allocation10 + $0xf0] sm:$0xff]
    %v1680 = vld [vmem:[#allocation10 + $0xf8] sm:$0xff]
    %v1681 = vld [vmem:[#allocation10 + $0x100] sm:$0xff]
    %v1682 = vld [vmem:[#allocation10 + $0x108] sm:$0xff]
    %v1683 = vld [vmem:[#allocation10 + $0x110] sm:$0xff]
    %v1684 = vld [vmem:[#allocation10 + $0x118] sm:$0xff]
    %v1685 = vld [vmem:[#allocation10 + $0x120] sm:$0xff]
    %v1686 = vld [vmem:[#allocation10 + $0x128] sm:$0xff]
    %v1687 = vld [vmem:[#allocation10 + $0x130] sm:$0xff]
    %v1688 = vld [vmem:[#allocation10 + $0x138] sm:$0xff]
    %v1689 = vld [vmem:[#allocation10 + $0x140] sm:$0xff]
    %v1690 = vld [vmem:[#allocation10 + $0x148] sm:$0xff]
    %v1691 = vld [vmem:[#allocation10 + $0x150] sm:$0xff]
    %v1692 = vld [vmem:[#allocation10 + $0x158] sm:$0xff]
    %v1693 = vld [vmem:[#allocation10 + $0x160] sm:$0xff]
    %v1694 = vld [vmem:[#allocation10 + $0x168] sm:$0xff]
    %v1695 = vld [vmem:[#allocation10 + $0x170] sm:$0xff]
    %v1696 = vld [vmem:[#allocation10 + $0x178] sm:$0xff]
    %1697 = vmatprep.subr.mxu0 %v1650
    %1698 = vmatpush1.msra.mxu0 %v1649
    %1699 = vmatprep.subr.mxu0 %v1653
    %1700 = vmatpush1.msra.mxu0 %v1652
    %1701 = vmatprep.subr.mxu0 %v1656
    %1702 = vmatpush1.msra.mxu0 %v1655
    %1703 = vmatprep.subr.mxu0 %v1659
    %1704 = vmatpush1.msra.mxu0 %v1658
    %1705 = vmatprep.subr.mxu0 %v1662
    %1706 = vmatpush1.msra.mxu0 %v1661
    %1707 = vmatprep.subr.mxu0 %v1665
    %1708 = vmatpush1.msra.mxu0 %v1664
    %1709 = vmatprep.subr.mxu0 %v1668
    %1710 = vmatpush1.msra.mxu0 %v1667
    %1711 = vmatprep.subr.mxu0 %v1671
    %1712 = vmatpush1.msra.mxu0 %v1670
    %1713 = vmatprep.subr.mxu0 %v1674
    %1714 = vmatpush1.msra.mxu0 %v1673
    %1715 = vmatprep.subr.mxu0 %v1677
    %1716 = vmatpush1.msra.mxu0 %v1676
    %1717 = vmatprep.subr.mxu0 %v1680
    %1718 = vmatpush1.msra.mxu0 %v1679
    %1719 = vmatprep.subr.mxu0 %v1683
    %1720 = vmatpush1.msra.mxu0 %v1682
    %1721 = vmatprep.subr.mxu0 %v1686
    %1722 = vmatpush1.msra.mxu0 %v1685
    %1723 = vmatprep.subr.mxu0 %v1689
    %1724 = vmatpush1.msra.mxu0 %v1688
    %1725 = vmatprep.subr.mxu0 %v1692
    %1726 = vmatpush1.msra.mxu0 %v1691
    %1727 = vmatprep.subr.mxu0 %v1695
    %1728 = vmatpush1.msra.mxu0 %v1694
    %1729 = vmatprep.subr.mxu0 0.0
    %1730 = vmatpush1.msra.mxu0 0.0
    %1731 = vmatprep.subr.mxu0 0.0
    %1732 = vmatpush1.msra.mxu0 0.0
    %1733 = vmatprep.subr.mxu0 0.0
    %1734 = vmatpush1.msra.mxu0 0.0
    %1735 = vmatprep.subr.mxu0 0.0
    %1736 = vmatpush1.msra.mxu0 0.0
    %1737 = vmatprep.subr.mxu0 0.0
    %1738 = vmatpush1.msra.mxu0 0.0
    %1739 = vmatprep.subr.mxu0 0.0
    %1740 = vmatpush1.msra.mxu0 0.0
    %1741 = vmatprep.subr.mxu0 0.0
    %1742 = vmatpush1.msra.mxu0 0.0
    %1743 = vmatprep.subr.mxu0 0.0
    %1744 = vmatpush1.msra.mxu0 0.0
    %1745 = vmatprep.subr.mxu0 0.0
    %1746 = vmatpush1.msra.mxu0 0.0
    %1747 = vmatprep.subr.mxu0 0.0
    %1748 = vmatpush1.msra.mxu0 0.0
    %1749 = vmatprep.subr.mxu0 0.0
    %1750 = vmatpush1.msra.mxu0 0.0
    %1751 = vmatprep.subr.mxu0 0.0
    %1752 = vmatpush1.msra.mxu0 0.0
    %1753 = vmatprep.subr.mxu0 0.0
    %1754 = vmatpush1.msra.mxu0 0.0
    %1755 = vmatprep.subr.mxu0 0.0
    %1756 = vmatpush1.msra.mxu0 0.0
    %1757 = vmatprep.subr.mxu0 0.0
    %1758 = vmatpush1.msra.mxu0 0.0
    %1759 = vmatprep.subr.mxu0 0.0
    %1760 = vmatpush1.msra.mxu0 0.0
    %1761 = vmatprep.mubr.f32.mxu0 0.0
    %1762 = vmatmul.mubr.f32.gmra.mrb[0].mxu0 %v1644
    %v1763 = vpop.f32.mrb[0].mxu0
    %v1764 = vadd.f32 %v615, %v1763
    %v1765 = vpop.f32.mrb[0].mxu0
    %v1766 = vadd.f32 %v619, %v1765
    %1767 = vdwg.mxu0
    %1768 = vmatprep.subr.mxu0 0.0
    %1769 = vmatpush1.msra.mxu0 %v1651
    %1770 = vmatprep.subr.mxu0 0.0
    %1771 = vmatpush1.msra.mxu0 %v1654
    %1772 = vmatprep.subr.mxu0 0.0
    %1773 = vmatpush1.msra.mxu0 %v1657
    %1774 = vmatprep.subr.mxu0 0.0
    %1775 = vmatpush1.msra.mxu0 %v1660
    %1776 = vmatprep.subr.mxu0 0.0
    %1777 = vmatpush1.msra.mxu0 %v1663
    %1778 = vmatprep.subr.mxu0 0.0
    %1779 = vmatpush1.msra.mxu0 %v1666
    %1780 = vmatprep.subr.mxu0 0.0
    %1781 = vmatpush1.msra.mxu0 %v1669
    %1782 = vmatprep.subr.mxu0 0.0
    %1783 = vmatpush1.msra.mxu0 %v1672
    %1784 = vmatprep.subr.mxu0 0.0
    %1785 = vmatpush1.msra.mxu0 %v1675
    %1786 = vmatprep.subr.mxu0 0.0
    %1787 = vmatpush1.msra.mxu0 %v1678
    %1788 = vmatprep.subr.mxu0 0.0
    %1789 = vmatpush1.msra.mxu0 %v1681
    %1790 = vmatprep.subr.mxu0 0.0
    %1791 = vmatpush1.msra.mxu0 %v1684
    %1792 = vmatprep.subr.mxu0 0.0
    %1793 = vmatpush1.msra.mxu0 %v1687
    %1794 = vmatprep.subr.mxu0 0.0
    %1795 = vmatpush1.msra.mxu0 %v1690
    %1796 = vmatprep.subr.mxu0 0.0
    %1797 = vmatpush1.msra.mxu0 %v1693
    %1798 = vmatprep.subr.mxu0 0.0
    %1799 = vmatpush1.msra.mxu0 %v1696
    %1800 = vmatprep.subr.mxu0 0.0
    %1801 = vmatpush1.msra.mxu0 0.0
    %1802 = vmatprep.subr.mxu0 0.0
    %1803 = vmatpush1.msra.mxu0 0.0
    %1804 = vmatprep.subr.mxu0 0.0
    %1805 = vmatpush1.msra.mxu0 0.0
    %1806 = vmatprep.subr.mxu0 0.0
    %1807 = vmatpush1.msra.mxu0 0.0
    %1808 = vmatprep.subr.mxu0 0.0
    %1809 = vmatpush1.msra.mxu0 0.0
    %1810 = vmatprep.subr.mxu0 0.0
    %1811 = vmatpush1.msra.mxu0 0.0
    %1812 = vmatprep.subr.mxu0 0.0
    %1813 = vmatpush1.msra.mxu0 0.0
    %1814 = vmatprep.subr.mxu0 0.0
    %1815 = vmatpush1.msra.mxu0 0.0
    %1816 = vmatprep.subr.mxu0 0.0
    %1817 = vmatpush1.msra.mxu0 0.0
    %1818 = vmatprep.subr.mxu0 0.0
    %1819 = vmatpush1.msra.mxu0 0.0
    %1820 = vmatprep.subr.mxu0 0.0
    %1821 = vmatpush1.msra.mxu0 0.0
    %1822 = vmatprep.subr.mxu0 0.0
    %1823 = vmatpush1.msra.mxu0 0.0
    %1824 = vmatprep.subr.mxu0 0.0
    %1825 = vmatpush1.msra.mxu0 0.0
    %1826 = vmatprep.subr.mxu0 0.0
    %1827 = vmatpush1.msra.mxu0 0.0
    %1828 = vmatprep.subr.mxu0 0.0
    %1829 = vmatpush1.msra.mxu0 0.0
    %1830 = vmatprep.subr.mxu0 0.0
    %1831 = vmatpush1.msra.mxu0 0.0
    %1832 = vmatprep.mubr.f32.mxu0 0.0
    %1833 = vmatmul.mubr.f32.gmra.mrb[0].mxu0 %v1644
    %v1834 = vpop.f32.mrb[0].mxu0
    %v1835 = vadd.f32 %v623, %v1834
    %v1836 = vpop.f32.mrb[0].mxu0
    %1837 = vdwg.mxu0
    %v1838 = vadd.f32 %v1646, %v1764
    %v1839 = vxor.u32 %v1838, 2147483648
    %v1840 = vmul.f32 %v1839, 1.442695
    %v1841 = vpow.pop %v1840
    %v1842 = vadd.f32 %v1841, 1.0
    %v1843 = vrcp.pop %v1842
    %v1844 = vmul.f32 1.0, %v1843
    %v1845 = vadd.f32 %v1647, %v1766
    %v1846 = vxor.u32 %v1845, 2147483648
    %v1847 = vmul.f32 %v1846, 1.442695
    %v1848 = vpow.pop %v1847
    %v1849 = vadd.f32 %v1848, 1.0
    %v1850 = vrcp.pop %v1849
    %v1851 = vmul.f32 1.0, %v1850
    %v1852 = vmul.f32 %v1844, %v1835
    %v1853 = vadd.f32 %v1648, %v1852
    %v1854 = vtanh.pop %v1853
    %v1855 = vsub.f32 1.0, %v1851
    %v1856 = vmul.f32 %v1855, %v1854
    %v1857 = vmul.f32 %v1851, %v1644
    %v1858 = vadd.f32 %v1856, %v1857
    %1859 = vst [vmem:[#allocation5 + $0x28] sm:$0xff] %v1858
    %v1860 = vld [vmem:[#allocation4 + $0x90] sm:$0xff]
    %v1861 = vld [vmem:[#allocation4 + $0x98] sm:$0xff]
    %v1862 = vld [vmem:[#allocation4 + $0xa0] sm:$0xff]
    %v1863 = vld [vmem:[#allocation10] sm:$0xff]
    %v1864 = vld [vmem:[#allocation10 + $0x8] sm:$0xff]
    %v1865 = vld [vmem:[#allocation10 + $0x10] sm:$0xff]
    %v1866 = vld [vmem:[#allocation10 + $0x18] sm:$0xff]
    %v1867 = vld [vmem:[#allocation10 + $0x20] sm:$0xff]
    %v1868 = vld [vmem:[#allocation10 + $0x28] sm:$0xff]
    %v1869 = vld [vmem:[#allocation10 + $0x30] sm:$0xff]
    %v1870 = vld [vmem:[#allocation10 + $0x38] sm:$0xff]
    %v1871 = vld [vmem:[#allocation10 + $0x40] sm:$0xff]
    %v1872 = vld [vmem:[#allocation10 + $0x48] sm:$0xff]
    %v1873 = vld [vmem:[#allocation10 + $0x50] sm:$0xff]
    %v1874 = vld [vmem:[#allocation10 + $0x58] sm:$0xff]
    %v1875 = vld [vmem:[#allocation10 + $0x60] sm:$0xff]
    %v1876 = vld [vmem:[#allocation10 + $0x68] sm:$0xff]
    %v1877 = vld [vmem:[#allocation10 + $0x70] sm:$0xff]
    %v1878 = vld [vmem:[#allocation10 + $0x78] sm:$0xff]
    %v1879 = vld [vmem:[#allocation10 + $0x80] sm:$0xff]
    %v1880 = vld [vmem:[#allocation10 + $0x88] sm:$0xff]
    %v1881 = vld [vmem:[#allocation10 + $0x90] sm:$0xff]
    %v1882 = vld [vmem:[#allocation10 + $0x98] sm:$0xff]
    %v1883 = vld [vmem:[#allocation10 + $0xa0] sm:$0xff]
    %v1884 = vld [vmem:[#allocation10 + $0xa8] sm:$0xff]
    %v1885 = vld [vmem:[#allocation10 + $0xb0] sm:$0xff]
    %v1886 = vld [vmem:[#allocation10 + $0xb8] sm:$0xff]
    %v1887 = vld [vmem:[#allocation10 + $0xc0] sm:$0xff]
    %v1888 = vld [vmem:[#allocation10 + $0xc8] sm:$0xff]
    %v1889 = vld [vmem:[#allocation10 + $0xd0] sm:$0xff]
    %v1890 = vld [vmem:[#allocation10 + $0xd8] sm:$0xff]
    %v1891 = vld [vmem:[#allocation10 + $0xe0] sm:$0xff]
    %v1892 = vld [vmem:[#allocation10 + $0xe8] sm:$0xff]
    %v1893 = vld [vmem:[#allocation10 + $0xf0] sm:$0xff]
    %v1894 = vld [vmem:[#allocation10 + $0xf8] sm:$0xff]
    %v1895 = vld [vmem:[#allocation10 + $0x100] sm:$0xff]
    %v1896 = vld [vmem:[#allocation10 + $0x108] sm:$0xff]
    %v1897 = vld [vmem:[#allocation10 + $0x110] sm:$0xff]
    %v1898 = vld [vmem:[#allocation10 + $0x118] sm:$0xff]
    %v1899 = vld [vmem:[#allocation10 + $0x120] sm:$0xff]
    %v1900 = vld [vmem:[#allocation10 + $0x128] sm:$0xff]
    %v1901 = vld [vmem:[#allocation10 + $0x130] sm:$0xff]
    %v1902 = vld [vmem:[#allocation10 + $0x138] sm:$0xff]
    %v1903 = vld [vmem:[#allocation10 + $0x140] sm:$0xff]
    %v1904 = vld [vmem:[#allocation10 + $0x148] sm:$0xff]
    %v1905 = vld [vmem:[#allocation10 + $0x150] sm:$0xff]
    %v1906 = vld [vmem:[#allocation10 + $0x158] sm:$0xff]
    %v1907 = vld [vmem:[#allocation10 + $0x160] sm:$0xff]
    %v1908 = vld [vmem:[#allocation10 + $0x168] sm:$0xff]
    %v1909 = vld [vmem:[#allocation10 + $0x170] sm:$0xff]
    %v1910 = vld [vmem:[#allocation10 + $0x178] sm:$0xff]
    %1911 = vmatprep.subr.mxu0 %v1864
    %1912 = vmatpush1.msra.mxu0 %v1863
    %1913 = vmatprep.subr.mxu0 %v1867
    %1914 = vmatpush1.msra.mxu0 %v1866
    %1915 = vmatprep.subr.mxu0 %v1870
    %1916 = vmatpush1.msra.mxu0 %v1869
    %1917 = vmatprep.subr.mxu0 %v1873
    %1918 = vmatpush1.msra.mxu0 %v1872
    %1919 = vmatprep.subr.mxu0 %v1876
    %1920 = vmatpush1.msra.mxu0 %v1875
    %1921 = vmatprep.subr.mxu0 %v1879
    %1922 = vmatpush1.msra.mxu0 %v1878
    %1923 = vmatprep.subr.mxu0 %v1882
    %1924 = vmatpush1.msra.mxu0 %v1881
    %1925 = vmatprep.subr.mxu0 %v1885
    %1926 = vmatpush1.msra.mxu0 %v1884
    %1927 = vmatprep.subr.mxu0 %v1888
    %1928 = vmatpush1.msra.mxu0 %v1887
    %1929 = vmatprep.subr.mxu0 %v1891
    %1930 = vmatpush1.msra.mxu0 %v1890
    %1931 = vmatprep.subr.mxu0 %v1894
    %1932 = vmatpush1.msra.mxu0 %v1893
    %1933 = vmatprep.subr.mxu0 %v1897
    %1934 = vmatpush1.msra.mxu0 %v1896
    %1935 = vmatprep.subr.mxu0 %v1900
    %1936 = vmatpush1.msra.mxu0 %v1899
    %1937 = vmatprep.subr.mxu0 %v1903
    %1938 = vmatpush1.msra.mxu0 %v1902
    %1939 = vmatprep.subr.mxu0 %v1906
    %1940 = vmatpush1.msra.mxu0 %v1905
    %1941 = vmatprep.subr.mxu0 %v1909
    %1942 = vmatpush1.msra.mxu0 %v1908
    %1943 = vmatprep.subr.mxu0 0.0
    %1944 = vmatpush1.msra.mxu0 0.0
    %1945 = vmatprep.subr.mxu0 0.0
    %1946 = vmatpush1.msra.mxu0 0.0
    %1947 = vmatprep.subr.mxu0 0.0
    %1948 = vmatpush1.msra.mxu0 0.0
    %1949 = vmatprep.subr.mxu0 0.0
    %1950 = vmatpush1.msra.mxu0 0.0
    %1951 = vmatprep.subr.mxu0 0.0
    %1952 = vmatpush1.msra.mxu0 0.0
    %1953 = vmatprep.subr.mxu0 0.0
    %1954 = vmatpush1.msra.mxu0 0.0
    %1955 = vmatprep.subr.mxu0 0.0
    %1956 = vmatpush1.msra.mxu0 0.0
    %1957 = vmatprep.subr.mxu0 0.0
    %1958 = vmatpush1.msra.mxu0 0.0
    %1959 = vmatprep.subr.mxu0 0.0
    %1960 = vmatpush1.msra.mxu0 0.0
    %1961 = vmatprep.subr.mxu0 0.0
    %1962 = vmatpush1.msra.mxu0 0.0
    %1963 = vmatprep.subr.mxu0 0.0
    %1964 = vmatpush1.msra.mxu0 0.0
    %1965 = vmatprep.subr.mxu0 0.0
    %1966 = vmatpush1.msra.mxu0 0.0
    %1967 = vmatprep.subr.mxu0 0.0
    %1968 = vmatpush1.msra.mxu0 0.0
    %1969 = vmatprep.subr.mxu0 0.0
    %1970 = vmatpush1.msra.mxu0 0.0
    %1971 = vmatprep.subr.mxu0 0.0
    %1972 = vmatpush1.msra.mxu0 0.0
    %1973 = vmatprep.subr.mxu0 0.0
    %1974 = vmatpush1.msra.mxu0 0.0
    %1975 = vmatprep.mubr.f32.mxu0 0.0
    %1976 = vmatmul.mubr.f32.gmra.mrb[0].mxu0 %v1858
    %v1977 = vpop.f32.mrb[0].mxu0
    %v1978 = vadd.f32 %v615, %v1977
    %v1979 = vpop.f32.mrb[0].mxu0
    %v1980 = vadd.f32 %v619, %v1979
    %1981 = vdwg.mxu0
    %1982 = vmatprep.subr.mxu0 0.0
    %1983 = vmatpush1.msra.mxu0 %v1865
    %1984 = vmatprep.subr.mxu0 0.0
    %1985 = vmatpush1.msra.mxu0 %v1868
    %1986 = vmatprep.subr.mxu0 0.0
    %1987 = vmatpush1.msra.mxu0 %v1871
    %1988 = vmatprep.subr.mxu0 0.0
    %1989 = vmatpush1.msra.mxu0 %v1874
    %1990 = vmatprep.subr.mxu0 0.0
    %1991 = vmatpush1.msra.mxu0 %v1877
    %1992 = vmatprep.subr.mxu0 0.0
    %1993 = vmatpush1.msra.mxu0 %v1880
    %1994 = vmatprep.subr.mxu0 0.0
    %1995 = vmatpush1.msra.mxu0 %v1883
    %1996 = vmatprep.subr.mxu0 0.0
    %1997 = vmatpush1.msra.mxu0 %v1886
    %1998 = vmatprep.subr.mxu0 0.0
    %1999 = vmatpush1.msra.mxu0 %v1889
    %2000 = vmatprep.subr.mxu0 0.0
    %2001 = vmatpush1.msra.mxu0 %v1892
    %2002 = vmatprep.subr.mxu0 0.0
    %2003 = vmatpush1.msra.mxu0 %v1895
    %2004 = vmatprep.subr.mxu0 0.0
    %2005 = vmatpush1.msra.mxu0 %v1898
    %2006 = vmatprep.subr.mxu0 0.0
    %2007 = vmatpush1.msra.mxu0 %v1901
    %2008 = vmatprep.subr.mxu0 0.0
    %2009 = vmatpush1.msra.mxu0 %v1904
    %2010 = vmatprep.subr.mxu0 0.0
    %2011 = vmatpush1.msra.mxu0 %v1907
    %2012 = vmatprep.subr.mxu0 0.0
    %2013 = vmatpush1.msra.mxu0 %v1910
    %2014 = vmatprep.subr.mxu0 0.0
    %2015 = vmatpush1.msra.mxu0 0.0
    %2016 = vmatprep.subr.mxu0 0.0
    %2017 = vmatpush1.msra.mxu0 0.0
    %2018 = vmatprep.subr.mxu0 0.0
    %2019 = vmatpush1.msra.mxu0 0.0
    %2020 = vmatprep.subr.mxu0 0.0
    %2021 = vmatpush1.msra.mxu0 0.0
    %2022 = vmatprep.subr.mxu0 0.0
    %2023 = vmatpush1.msra.mxu0 0.0
    %2024 = vmatprep.subr.mxu0 0.0
    %2025 = vmatpush1.msra.mxu0 0.0
    %2026 = vmatprep.subr.mxu0 0.0
    %2027 = vmatpush1.msra.mxu0 0.0
    %2028 = vmatprep.subr.mxu0 0.0
    %2029 = vmatpush1.msra.mxu0 0.0
    %2030 = vmatprep.subr.mxu0 0.0
    %2031 = vmatpush1.msra.mxu0 0.0
    %2032 = vmatprep.subr.mxu0 0.0
    %2033 = vmatpush1.msra.mxu0 0.0
    %2034 = vmatprep.subr.mxu0 0.0
    %2035 = vmatpush1.msra.mxu0 0.0
    %2036 = vmatprep.subr.mxu0 0.0
    %2037 = vmatpush1.msra.mxu0 0.0
    %2038 = vmatprep.subr.mxu0 0.0
    %2039 = vmatpush1.msra.mxu0 0.0
    %2040 = vmatprep.subr.mxu0 0.0
    %2041 = vmatpush1.msra.mxu0 0.0
    %2042 = vmatprep.subr.mxu0 0.0
    %2043 = vmatpush1.msra.mxu0 0.0
    %2044 = vmatprep.subr.mxu0 0.0
    %2045 = vmatpush1.msra.mxu0 0.0
    %2046 = vmatprep.mubr.f32.mxu0 0.0
    %2047 = vmatmul.mubr.f32.gmra.mrb[0].mxu0 %v1858
    %v2048 = vpop.f32.mrb[0].mxu0
    %v2049 = vadd.f32 %v623, %v2048
    %v2050 = vpop.f32.mrb[0].mxu0
    %2051 = vdwg.mxu0
    %v2052 = vadd.f32 %v1860, %v1978
    %v2053 = vxor.u32 %v2052, 2147483648
    %v2054 = vmul.f32 %v2053, 1.442695
    %v2055 = vpow.pop %v2054
    %v2056 = vadd.f32 %v2055, 1.0
    %v2057 = vrcp.pop %v2056
    %v2058 = vmul.f32 1.0, %v2057
    %v2059 = vadd.f32 %v1861, %v1980
    %v2060 = vxor.u32 %v2059, 2147483648
    %v2061 = vmul.f32 %v2060, 1.442695
    %v2062 = vpow.pop %v2061
    %v2063 = vadd.f32 %v2062, 1.0
    %v2064 = vrcp.pop %v2063
    %v2065 = vmul.f32 1.0, %v2064
    %v2066 = vmul.f32 %v2058, %v2049
    %v2067 = vadd.f32 %v1862, %v2066
    %v2068 = vtanh.pop %v2067
    %v2069 = vsub.f32 1.0, %v2065
    %v2070 = vmul.f32 %v2069, %v2068
    %v2071 = vmul.f32 %v2065, %v1858
    %v2072 = vadd.f32 %v2070, %v2071
    %2073 = vst [vmem:[#allocation5 + $0x30] sm:$0xff] %v2072
    %v2074 = vld [vmem:[#allocation4 + $0xa8] sm:$0xff]
    %v2075 = vld [vmem:[#allocation4 + $0xb0] sm:$0xff]
    %v2076 = vld [vmem:[#allocation4 + $0xb8] sm:$0xff]
    %v2077 = vld [vmem:[#allocation10] sm:$0xff]
    %v2078 = vld [vmem:[#allocation10 + $0x8] sm:$0xff]
    %v2079 = vld [vmem:[#allocation10 + $0x10] sm:$0xff]
    %v2080 = vld [vmem:[#allocation10 + $0x18] sm:$0xff]
    %v2081 = vld [vmem:[#allocation10 + $0x20] sm:$0xff]
    %v2082 = vld [vmem:[#allocation10 + $0x28] sm:$0xff]
    %v2083 = vld [vmem:[#allocation10 + $0x30] sm:$0xff]
    %v2084 = vld [vmem:[#allocation10 + $0x38] sm:$0xff]
    %v2085 = vld [vmem:[#allocation10 + $0x40] sm:$0xff]
    %v2086 = vld [vmem:[#allocation10 + $0x48] sm:$0xff]
    %v2087 = vld [vmem:[#allocation10 + $0x50] sm:$0xff]
    %v2088 = vld [vmem:[#allocation10 + $0x58] sm:$0xff]
    %v2089 = vld [vmem:[#allocation10 + $0x60] sm:$0xff]
    %v2090 = vld [vmem:[#allocation10 + $0x68] sm:$0xff]
    %v2091 = vld [vmem:[#allocation10 + $0x70] sm:$0xff]
    %v2092 = vld [vmem:[#allocation10 + $0x78] sm:$0xff]
    %v2093 = vld [vmem:[#allocation10 + $0x80] sm:$0xff]
    %v2094 = vld [vmem:[#allocation10 + $0x88] sm:$0xff]
    %v2095 = vld [vmem:[#allocation10 + $0x90] sm:$0xff]
    %v2096 = vld [vmem:[#allocation10 + $0x98] sm:$0xff]
    %v2097 = vld [vmem:[#allocation10 + $0xa0] sm:$0xff]
    %v2098 = vld [vmem:[#allocation10 + $0xa8] sm:$0xff]
    %v2099 = vld [vmem:[#allocation10 + $0xb0] sm:$0xff]
    %v2100 = vld [vmem:[#allocation10 + $0xb8] sm:$0xff]
    %v2101 = vld [vmem:[#allocation10 + $0xc0] sm:$0xff]
    %v2102 = vld [vmem:[#allocation10 + $0xc8] sm:$0xff]
    %v2103 = vld [vmem:[#allocation10 + $0xd0] sm:$0xff]
    %v2104 = vld [vmem:[#allocation10 + $0xd8] sm:$0xff]
    %v2105 = vld [vmem:[#allocation10 + $0xe0] sm:$0xff]
    %v2106 = vld [vmem:[#allocation10 + $0xe8] sm:$0xff]
    %v2107 = vld [vmem:[#allocation10 + $0xf0] sm:$0xff]
    %v2108 = vld [vmem:[#allocation10 + $0xf8] sm:$0xff]
    %v2109 = vld [vmem:[#allocation10 + $0x100] sm:$0xff]
    %v2110 = vld [vmem:[#allocation10 + $0x108] sm:$0xff]
    %v2111 = vld [vmem:[#allocation10 + $0x110] sm:$0xff]
    %v2112 = vld [vmem:[#allocation10 + $0x118] sm:$0xff]
    %v2113 = vld [vmem:[#allocation10 + $0x120] sm:$0xff]
    %v2114 = vld [vmem:[#allocation10 + $0x128] sm:$0xff]
    %v2115 = vld [vmem:[#allocation10 + $0x130] sm:$0xff]
    %v2116 = vld [vmem:[#allocation10 + $0x138] sm:$0xff]
    %v2117 = vld [vmem:[#allocation10 + $0x140] sm:$0xff]
    %v2118 = vld [vmem:[#allocation10 + $0x148] sm:$0xff]
    %v2119 = vld [vmem:[#allocation10 + $0x150] sm:$0xff]
    %v2120 = vld [vmem:[#allocation10 + $0x158] sm:$0xff]
    %v2121 = vld [vmem:[#allocation10 + $0x160] sm:$0xff]
    %v2122 = vld [vmem:[#allocation10 + $0x168] sm:$0xff]
    %v2123 = vld [vmem:[#allocation10 + $0x170] sm:$0xff]
    %v2124 = vld [vmem:[#allocation10 + $0x178] sm:$0xff]
    %2125 = vmatprep.subr.mxu0 %v2078
    %2126 = vmatpush1.msra.mxu0 %v2077
    %2127 = vmatprep.subr.mxu0 %v2081
    %2128 = vmatpush1.msra.mxu0 %v2080
    %2129 = vmatprep.subr.mxu0 %v2084
    %2130 = vmatpush1.msra.mxu0 %v2083
    %2131 = vmatprep.subr.mxu0 %v2087
    %2132 = vmatpush1.msra.mxu0 %v2086
    %2133 = vmatprep.subr.mxu0 %v2090
    %2134 = vmatpush1.msra.mxu0 %v2089
    %2135 = vmatprep.subr.mxu0 %v2093
    %2136 = vmatpush1.msra.mxu0 %v2092
    %2137 = vmatprep.subr.mxu0 %v2096
    %2138 = vmatpush1.msra.mxu0 %v2095
    %2139 = vmatprep.subr.mxu0 %v2099
    %2140 = vmatpush1.msra.mxu0 %v2098
    %2141 = vmatprep.subr.mxu0 %v2102
    %2142 = vmatpush1.msra.mxu0 %v2101
    %2143 = vmatprep.subr.mxu0 %v2105
    %2144 = vmatpush1.msra.mxu0 %v2104
    %2145 = vmatprep.subr.mxu0 %v2108
    %2146 = vmatpush1.msra.mxu0 %v2107
    %2147 = vmatprep.subr.mxu0 %v2111
    %2148 = vmatpush1.msra.mxu0 %v2110
    %2149 = vmatprep.subr.mxu0 %v2114
    %2150 = vmatpush1.msra.mxu0 %v2113
    %2151 = vmatprep.subr.mxu0 %v2117
    %2152 = vmatpush1.msra.mxu0 %v2116
    %2153 = vmatprep.subr.mxu0 %v2120
    %2154 = vmatpush1.msra.mxu0 %v2119
    %2155 = vmatprep.subr.mxu0 %v2123
    %2156 = vmatpush1.msra.mxu0 %v2122
    %2157 = vmatprep.subr.mxu0 0.0
    %2158 = vmatpush1.msra.mxu0 0.0
    %2159 = vmatprep.subr.mxu0 0.0
    %2160 = vmatpush1.msra.mxu0 0.0
    %2161 = vmatprep.subr.mxu0 0.0
    %2162 = vmatpush1.msra.mxu0 0.0
    %2163 = vmatprep.subr.mxu0 0.0
    %2164 = vmatpush1.msra.mxu0 0.0
    %2165 = vmatprep.subr.mxu0 0.0
    %2166 = vmatpush1.msra.mxu0 0.0
    %2167 = vmatprep.subr.mxu0 0.0
    %2168 = vmatpush1.msra.mxu0 0.0
    %2169 = vmatprep.subr.mxu0 0.0
    %2170 = vmatpush1.msra.mxu0 0.0
    %2171 = vmatprep.subr.mxu0 0.0
    %2172 = vmatpush1.msra.mxu0 0.0
    %2173 = vmatprep.subr.mxu0 0.0
    %2174 = vmatpush1.msra.mxu0 0.0
    %2175 = vmatprep.subr.mxu0 0.0
    %2176 = vmatpush1.msra.mxu0 0.0
    %2177 = vmatprep.subr.mxu0 0.0
    %2178 = vmatpush1.msra.mxu0 0.0
    %2179 = vmatprep.subr.mxu0 0.0
    %2180 = vmatpush1.msra.mxu0 0.0
    %2181 = vmatprep.subr.mxu0 0.0
    %2182 = vmatpush1.msra.mxu0 0.0
    %2183 = vmatprep.subr.mxu0 0.0
    %2184 = vmatpush1.msra.mxu0 0.0
    %2185 = vmatprep.subr.mxu0 0.0
    %2186 = vmatpush1.msra.mxu0 0.0
    %2187 = vmatprep.subr.mxu0 0.0
    %2188 = vmatpush1.msra.mxu0 0.0
    %2189 = vmatprep.mubr.f32.mxu0 0.0
    %2190 = vmatmul.mubr.f32.gmra.mrb[0].mxu0 %v2072
    %v2191 = vpop.f32.mrb[0].mxu0
    %v2192 = vadd.f32 %v615, %v2191
    %v2193 = vpop.f32.mrb[0].mxu0
    %v2194 = vadd.f32 %v619, %v2193
    %2195 = vdwg.mxu0
    %2196 = vmatprep.subr.mxu0 0.0
    %2197 = vmatpush1.msra.mxu0 %v2079
    %2198 = vmatprep.subr.mxu0 0.0
    %2199 = vmatpush1.msra.mxu0 %v2082
    %2200 = vmatprep.subr.mxu0 0.0
    %2201 = vmatpush1.msra.mxu0 %v2085
    %2202 = vmatprep.subr.mxu0 0.0
    %2203 = vmatpush1.msra.mxu0 %v2088
    %2204 = vmatprep.subr.mxu0 0.0
    %2205 = vmatpush1.msra.mxu0 %v2091
    %2206 = vmatprep.subr.mxu0 0.0
    %2207 = vmatpush1.msra.mxu0 %v2094
    %2208 = vmatprep.subr.mxu0 0.0
    %2209 = vmatpush1.msra.mxu0 %v2097
    %2210 = vmatprep.subr.mxu0 0.0
    %2211 = vmatpush1.msra.mxu0 %v2100
    %2212 = vmatprep.subr.mxu0 0.0
    %2213 = vmatpush1.msra.mxu0 %v2103
    %2214 = vmatprep.subr.mxu0 0.0
    %2215 = vmatpush1.msra.mxu0 %v2106
    %2216 = vmatprep.subr.mxu0 0.0
    %2217 = vmatpush1.msra.mxu0 %v2109
    %2218 = vmatprep.subr.mxu0 0.0
    %2219 = vmatpush1.msra.mxu0 %v2112
    %2220 = vmatprep.subr.mxu0 0.0
    %2221 = vmatpush1.msra.mxu0 %v2115
    %2222 = vmatprep.subr.mxu0 0.0
    %2223 = vmatpush1.msra.mxu0 %v2118
    %2224 = vmatprep.subr.mxu0 0.0
    %2225 = vmatpush1.msra.mxu0 %v2121
    %2226 = vmatprep.subr.mxu0 0.0
    %2227 = vmatpush1.msra.mxu0 %v2124
    %2228 = vmatprep.subr.mxu0 0.0
    %2229 = vmatpush1.msra.mxu0 0.0
    %2230 = vmatprep.subr.mxu0 0.0
    %2231 = vmatpush1.msra.mxu0 0.0
    %2232 = vmatprep.subr.mxu0 0.0
    %2233 = vmatpush1.msra.mxu0 0.0
    %2234 = vmatprep.subr.mxu0 0.0
    %2235 = vmatpush1.msra.mxu0 0.0
    %2236 = vmatprep.subr.mxu0 0.0
    %2237 = vmatpush1.msra.mxu0 0.0
    %2238 = vmatprep.subr.mxu0 0.0
    %2239 = vmatpush1.msra.mxu0 0.0
    %2240 = vmatprep.subr.mxu0 0.0
    %2241 = vmatpush1.msra.mxu0 0.0
    %2242 = vmatprep.subr.mxu0 0.0
    %2243 = vmatpush1.msra.mxu0 0.0
    %2244 = vmatprep.subr.mxu0 0.0
    %2245 = vmatpush1.msra.mxu0 0.0
    %2246 = vmatprep.subr.mxu0 0.0
    %2247 = vmatpush1.msra.mxu0 0.0
    %2248 = vmatprep.subr.mxu0 0.0
    %2249 = vmatpush1.msra.mxu0 0.0
    %2250 = vmatprep.subr.mxu0 0.0
    %2251 = vmatpush1.msra.mxu0 0.0
    %2252 = vmatprep.subr.mxu0 0.0
    %2253 = vmatpush1.msra.mxu0 0.0
    %2254 = vmatprep.subr.mxu0 0.0
    %2255 = vmatpush1.msra.mxu0 0.0
    %2256 = vmatprep.subr.mxu0 0.0
    %2257 = vmatpush1.msra.mxu0 0.0
    %2258 = vmatprep.subr.mxu0 0.0
    %2259 = vmatpush1.msra.mxu0 0.0
    %2260 = vmatprep.mubr.f32.mxu0 0.0
    %2261 = vmatmul.mubr.f32.gmra.mrb[0].mxu0 %v2072
    %v2262 = vpop.f32.mrb[0].mxu0
    %v2263 = vadd.f32 %v623, %v2262
    %v2264 = vpop.f32.mrb[0].mxu0
    %2265 = vdwg.mxu0
    %v2266 = vadd.f32 %v2074, %v2192
    %v2267 = vxor.u32 %v2266, 2147483648
    %v2268 = vmul.f32 %v2267, 1.442695
    %v2269 = vpow.pop %v2268
    %v2270 = vadd.f32 %v2269, 1.0
    %v2271 = vrcp.pop %v2270
    %v2272 = vmul.f32 1.0, %v2271
    %v2273 = vadd.f32 %v2075, %v2194
    %v2274 = vxor.u32 %v2273, 2147483648
    %v2275 = vmul.f32 %v2274, 1.442695
    %v2276 = vpow.pop %v2275
    %v2277 = vadd.f32 %v2276, 1.0
    %v2278 = vrcp.pop %v2277
    %v2279 = vmul.f32 1.0, %v2278
    %v2280 = vmul.f32 %v2272, %v2263
    %v2281 = vadd.f32 %v2076, %v2280
    %v2282 = vtanh.pop %v2281
    %v2283 = vsub.f32 1.0, %v2279
    %v2284 = vmul.f32 %v2283, %v2282
    %v2285 = vmul.f32 %v2279, %v2072
    %v2286 = vadd.f32 %v2284, %v2285
    %2287 = vst [vmem:[#allocation5 + $0x38] sm:$0xff] %v2286
    %v2288 = vld [vmem:[#allocation5] sm:$0xff]
    %v2289 = vld [vmem:[#allocation5 + $0x8] sm:$0xff]
    %v2290 = vld [vmem:[#allocation5 + $0x10] sm:$0xff]
    %v2291 = vld [vmem:[#allocation5 + $0x18] sm:$0xff]
    %v2292 = vld [vmem:[#allocation5 + $0x20] sm:$0xff]
    %v2293 = vld [vmem:[#allocation5 + $0x28] sm:$0xff]
    %v2294 = vld [vmem:[#allocation5 + $0x30] sm:$0xff]
    %v2295 = vld [vmem:[#allocation5 + $0x38] sm:$0xff]
    %v2296 = vld [vmem:[#allocation11] sm:$0xff]
    %v2297 = vld [vmem:[#allocation11 + $0x8] sm:$0xff]
    %v2298 = vld [vmem:[#allocation11 + $0x10] sm:$0xff]
    %v2299 = vld [vmem:[#allocation11 + $0x18] sm:$0xff]
    %v2300 = vld [vmem:[#allocation11 + $0x20] sm:$0xff]
    %v2301 = vld [vmem:[#allocation11 + $0x28] sm:$0xff]
    %v2302 = vld [vmem:[#allocation11 + $0x30] sm:$0xff]
    %v2303 = vld [vmem:[#allocation11 + $0x38] sm:$0xff]
    %v2304 = vld [vmem:[#allocation11 + $0x40] sm:$0xff]
    %v2305 = vld [vmem:[#allocation11 + $0x48] sm:$0xff]
    %v2306 = vld [vmem:[#allocation11 + $0x50] sm:$0xff]
    %v2307 = vld [vmem:[#allocation11 + $0x58] sm:$0xff]
    %v2308 = vld [vmem:[#allocation11 + $0x60] sm:$0xff]
    %v2309 = vld [vmem:[#allocation11 + $0x68] sm:$0xff]
    %v2310 = vld [vmem:[#allocation11 + $0x70] sm:$0xff]
    %v2311 = vld [vmem:[#allocation11 + $0x78] sm:$0xff]
    %v2312 = vld [vmem:[#allocation11 + $0x80] sm:$0xff]
    %v2313 = vld [vmem:[#allocation11 + $0x88] sm:$0xff]
    %v2314 = vld [vmem:[#allocation11 + $0x90] sm:$0xff]
    %v2315 = vld [vmem:[#allocation11 + $0x98] sm:$0xff]
    %v2316 = vld [vmem:[#allocation11 + $0xa0] sm:$0xff]
    %v2317 = vld [vmem:[#allocation11 + $0xa8] sm:$0xff]
    %v2318 = vld [vmem:[#allocation11 + $0xb0] sm:$0xff]
    %v2319 = vld [vmem:[#allocation11 + $0xb8] sm:$0xff]
    %v2320 = vld [vmem:[#allocation11 + $0xc0] sm:$0xff]
    %v2321 = vld [vmem:[#allocation11 + $0xc8] sm:$0xff]
    %v2322 = vld [vmem:[#allocation11 + $0xd0] sm:$0xff]
    %v2323 = vld [vmem:[#allocation11 + $0xd8] sm:$0xff]
    %v2324 = vld [vmem:[#allocation11 + $0xe0] sm:$0xff]
    %v2325 = vld [vmem:[#allocation11 + $0xe8] sm:$0xff]
    %v2326 = vld [vmem:[#allocation11 + $0xf0] sm:$0xff]
    %v2327 = vld [vmem:[#allocation11 + $0xf8] sm:$0xff]
    %v2328 = vld [vmem:[#allocation11 + $0x100] sm:$0xff]
    %v2329 = vld [vmem:[#allocation11 + $0x108] sm:$0xff]
    %v2330 = vld [vmem:[#allocation11 + $0x110] sm:$0xff]
    %v2331 = vld [vmem:[#allocation11 + $0x118] sm:$0xff]
    %v2332 = vld [vmem:[#allocation11 + $0x120] sm:$0xff]
    %v2333 = vld [vmem:[#allocation11 + $0x128] sm:$0xff]
    %v2334 = vld [vmem:[#allocation11 + $0x130] sm:$0xff]
    %v2335 = vld [vmem:[#allocation11 + $0x138] sm:$0xff]
    %v2336 = vld [vmem:[#allocation11 + $0x140] sm:$0xff]
    %v2337 = vld [vmem:[#allocation11 + $0x148] sm:$0xff]
    %v2338 = vld [vmem:[#allocation11 + $0x150] sm:$0xff]
    %v2339 = vld [vmem:[#allocation11 + $0x158] sm:$0xff]
    %v2340 = vld [vmem:[#allocation11 + $0x160] sm:$0xff]
    %v2341 = vld [vmem:[#allocation11 + $0x168] sm:$0xff]
    %v2342 = vld [vmem:[#allocation11 + $0x170] sm:$0xff]
    %v2343 = vld [vmem:[#allocation11 + $0x178] sm:$0xff]
    %v2344 = vld [vmem:[%s9] sm:$0x7]
    %v2346 = vlaneseq
    %v2347 = vshrl.u32 %v2346, 7
    %v2348 = vsub.s32 0, %v2347
    %v2349 = vrot.slane %v2344, %v2348
    %v2350 = vlaneseq
    %v2351 = vshrl.u32 %v2350, 7
    %v2352 = vsub.s32 1, %v2351
    %v2353 = vrot.slane %v2344, %v2352
    %v2354 = vlaneseq
    %v2355 = vshrl.u32 %v2354, 7
    %v2356 = vsub.s32 2, %v2355
    %v2357 = vrot.slane %v2344, %v2356
    %2361 = vmatprep.subr.mxu0 %v2297
    %2362 = vmatpush1.msra.mxu0 %v2296
    %2363 = vmatprep.subr.mxu0 %v2300
    %2364 = vmatpush1.msra.mxu0 %v2299
    %2365 = vmatprep.subr.mxu0 %v2303
    %2366 = vmatpush1.msra.mxu0 %v2302
    %2367 = vmatprep.subr.mxu0 %v2306
    %2368 = vmatpush1.msra.mxu0 %v2305
    %2369 = vmatprep.subr.mxu0 %v2309
    %2370 = vmatpush1.msra.mxu0 %v2308
    %2371 = vmatprep.subr.mxu0 %v2312
    %2372 = vmatpush1.msra.mxu0 %v2311
    %2373 = vmatprep.subr.mxu0 %v2315
    %2374 = vmatpush1.msra.mxu0 %v2314
    %2375 = vmatprep.subr.mxu0 %v2318
    %2376 = vmatpush1.msra.mxu0 %v2317
    %2377 = vmatprep.subr.mxu0 %v2321
    %2378 = vmatpush1.msra.mxu0 %v2320
    %2379 = vmatprep.subr.mxu0 %v2324
    %2380 = vmatpush1.msra.mxu0 %v2323
    %2381 = vmatprep.subr.mxu0 %v2327
    %2382 = vmatpush1.msra.mxu0 %v2326
    %2383 = vmatprep.subr.mxu0 %v2330
    %2384 = vmatpush1.msra.mxu0 %v2329
    %2385 = vmatprep.subr.mxu0 %v2333
    %2386 = vmatpush1.msra.mxu0 %v2332
    %2387 = vmatprep.subr.mxu0 %v2336
    %2388 = vmatpush1.msra.mxu0 %v2335
    %2389 = vmatprep.subr.mxu0 %v2339
    %2390 = vmatpush1.msra.mxu0 %v2338
    %2391 = vmatprep.subr.mxu0 %v2342
    %2392 = vmatpush1.msra.mxu0 %v2341
    %2393 = vmatprep.subr.mxu0 0.0
    %2394 = vmatpush1.msra.mxu0 0.0
    %2395 = vmatprep.subr.mxu0 0.0
    %2396 = vmatpush1.msra.mxu0 0.0
    %2397 = vmatprep.subr.mxu0 0.0
    %2398 = vmatpush1.msra.mxu0 0.0
    %2399 = vmatprep.subr.mxu0 0.0
    %2400 = vmatpush1.msra.mxu0 0.0
    %2401 = vmatprep.subr.mxu0 0.0
    %2402 = vmatpush1.msra.mxu0 0.0
    %2403 = vmatprep.subr.mxu0 0.0
    %2404 = vmatpush1.msra.mxu0 0.0
    %2405 = vmatprep.subr.mxu0 0.0
    %2406 = vmatpush1.msra.mxu0 0.0
    %2407 = vmatprep.subr.mxu0 0.0
    %2408 = vmatpush1.msra.mxu0 0.0
    %2409 = vmatprep.subr.mxu0 0.0
    %2410 = vmatpush1.msra.mxu0 0.0
    %2411 = vmatprep.subr.mxu0 0.0
    %2412 = vmatpush1.msra.mxu0 0.0
    %2413 = vmatprep.subr.mxu0 0.0
    %2414 = vmatpush1.msra.mxu0 0.0
    %2415 = vmatprep.subr.mxu0 0.0
    %2416 = vmatpush1.msra.mxu0 0.0
    %2417 = vmatprep.subr.mxu0 0.0
    %2418 = vmatpush1.msra.mxu0 0.0
    %2419 = vmatprep.subr.mxu0 0.0
    %2420 = vmatpush1.msra.mxu0 0.0
    %2421 = vmatprep.subr.mxu0 0.0
    %2422 = vmatpush1.msra.mxu0 0.0
    %2423 = vmatprep.subr.mxu0 0.0
    %2424 = vmatpush1.msra.mxu0 0.0
    %2425 = vmatprep.mubr.f32.mxu0 0.0
    %2426 = vmatmul.mubr.f32.gmra.mrb[0].mxu0 %v2288
    %v2427 = vpop.f32.mrb[0].mxu0
    %v2428 = vadd.f32 %v2349, %v2427
    %v2429 = vpop.f32.mrb[0].mxu0
    %v2430 = vadd.f32 %v2353, %v2429
    %2431 = vmatprep.mubr.f32.mxu0 0.0
    %2432 = vmatmul.mubr.f32.gmra.mrb[0].mxu0 %v2289
    %v2433 = vpop.f32.mrb[0].mxu0
    %v2434 = vadd.f32 %v2349, %v2433
    %v2435 = vpop.f32.mrb[0].mxu0
    %v2436 = vadd.f32 %v2353, %v2435
    %2437 = vmatprep.mubr.f32.mxu0 0.0
    %2438 = vmatmul.mubr.f32.gmra.mrb[0].mxu0 %v2290
    %v2439 = vpop.f32.mrb[0].mxu0
    %v2440 = vadd.f32 %v2349, %v2439
    %v2441 = vpop.f32.mrb[0].mxu0
    %v2442 = vadd.f32 %v2353, %v2441
    %2443 = vmatprep.mubr.f32.mxu0 0.0
    %2444 = vmatmul.mubr.f32.gmra.mrb[0].mxu0 %v2291
    %v2445 = vpop.f32.mrb[0].mxu0
    %v2446 = vadd.f32 %v2349, %v2445
    %v2447 = vpop.f32.mrb[0].mxu0
    %v2448 = vadd.f32 %v2353, %v2447
    %2449 = vmatprep.mubr.f32.mxu0 0.0
    %2450 = vmatmul.mubr.f32.gmra.mrb[0].mxu0 %v2292
    %v2451 = vpop.f32.mrb[0].mxu0
    %v2452 = vadd.f32 %v2349, %v2451
    %v2453 = vpop.f32.mrb[0].mxu0
    %v2454 = vadd.f32 %v2353, %v2453
    %2455 = vmatprep.mubr.f32.mxu0 0.0
    %2456 = vmatmul.mubr.f32.gmra.mrb[0].mxu0 %v2293
    %v2457 = vpop.f32.mrb[0].mxu0
    %v2458 = vadd.f32 %v2349, %v2457
    %v2459 = vpop.f32.mrb[0].mxu0
    %v2460 = vadd.f32 %v2353, %v2459
    %2461 = vmatprep.mubr.f32.mxu0 0.0
    %2462 = vmatmul.mubr.f32.gmra.mrb[0].mxu0 %v2294
    %v2463 = vpop.f32.mrb[0].mxu0
    %v2464 = vadd.f32 %v2349, %v2463
    %v2465 = vpop.f32.mrb[0].mxu0
    %v2466 = vadd.f32 %v2353, %v2465
    %2467 = vmatprep.mubr.f32.mxu0 0.0
    %2468 = vmatmul.mubr.f32.gmra.mrb[0].mxu0 %v2295
    %v2469 = vpop.f32.mrb[0].mxu0
    %v2470 = vadd.f32 %v2349, %v2469
    %v2471 = vpop.f32.mrb[0].mxu0
    %v2472 = vadd.f32 %v2353, %v2471
    %2473 = vdwg.mxu0
    %2474 = vmatprep.subr.mxu0 0.0
    %2475 = vmatpush1.msra.mxu0 %v2298
    %2476 = vmatprep.subr.mxu0 0.0
    %2477 = vmatpush1.msra.mxu0 %v2301
    %2478 = vmatprep.subr.mxu0 0.0
    %2479 = vmatpush1.msra.mxu0 %v2304
    %2480 = vmatprep.subr.mxu0 0.0
    %2481 = vmatpush1.msra.mxu0 %v2307
    %2482 = vmatprep.subr.mxu0 0.0
    %2483 = vmatpush1.msra.mxu0 %v2310
    %2484 = vmatprep.subr.mxu0 0.0
    %2485 = vmatpush1.msra.mxu0 %v2313
    %2486 = vmatprep.subr.mxu0 0.0
    %2487 = vmatpush1.msra.mxu0 %v2316
    %2488 = vmatprep.subr.mxu0 0.0
    %2489 = vmatpush1.msra.mxu0 %v2319
    %2490 = vmatprep.subr.mxu0 0.0
    %2491 = vmatpush1.msra.mxu0 %v2322
    %2492 = vmatprep.subr.mxu0 0.0
    %2493 = vmatpush1.msra.mxu0 %v2325
    %2494 = vmatprep.subr.mxu0 0.0
    %2495 = vmatpush1.msra.mxu0 %v2328
    %2496 = vmatprep.subr.mxu0 0.0
    %2497 = vmatpush1.msra.mxu0 %v2331
    %2498 = vmatprep.subr.mxu0 0.0
    %2499 = vmatpush1.msra.mxu0 %v2334
    %2500 = vmatprep.subr.mxu0 0.0
    %2501 = vmatpush1.msra.mxu0 %v2337
    %2502 = vmatprep.subr.mxu0 0.0
    %2503 = vmatpush1.msra.mxu0 %v2340
    %2504 = vmatprep.subr.mxu0 0.0
    %2505 = vmatpush1.msra.mxu0 %v2343
    %2506 = vmatprep.subr.mxu0 0.0
    %2507 = vmatpush1.msra.mxu0 0.0
    %2508 = vmatprep.subr.mxu0 0.0
    %2509 = vmatpush1.msra.mxu0 0.0
    %2510 = vmatprep.subr.mxu0 0.0
    %2511 = vmatpush1.msra.mxu0 0.0
    %2512 = vmatprep.subr.mxu0 0.0
    %2513 = vmatpush1.msra.mxu0 0.0
    %2514 = vmatprep.subr.mxu0 0.0
    %2515 = vmatpush1.msra.mxu0 0.0
    %2516 = vmatprep.subr.mxu0 0.0
    %2517 = vmatpush1.msra.mxu0 0.0
    %2518 = vmatprep.subr.mxu0 0.0
    %2519 = vmatpush1.msra.mxu0 0.0
    %2520 = vmatprep.subr.mxu0 0.0
    %2521 = vmatpush1.msra.mxu0 0.0
    %2522 = vmatprep.subr.mxu0 0.0
    %2523 = vmatpush1.msra.mxu0 0.0
    %2524 = vmatprep.subr.mxu0 0.0
    %2525 = vmatpush1.msra.mxu0 0.0
    %2526 = vmatprep.subr.mxu0 0.0
    %2527 = vmatpush1.msra.mxu0 0.0
    %2528 = vmatprep.subr.mxu0 0.0
    %2529 = vmatpush1.msra.mxu0 0.0
    %2530 = vmatprep.subr.mxu0 0.0
    %2531 = vmatpush1.msra.mxu0 0.0
    %2532 = vmatprep.subr.mxu0 0.0
    %2533 = vmatpush1.msra.mxu0 0.0
    %2534 = vmatprep.subr.mxu0 0.0
    %2535 = vmatpush1.msra.mxu0 0.0
    %2536 = vmatprep.subr.mxu0 0.0
    %2537 = vmatpush1.msra.mxu0 0.0
    %2538 = vmatprep.mubr.f32.mxu0 0.0
    %2539 = vmatmul.mubr.f32.gmra.mrb[0].mxu0 %v2288
    %v2540 = vpop.f32.mrb[0].mxu0
    %v2541 = vadd.f32 %v2357, %v2540
    %v2542 = vpop.f32.mrb[0].mxu0
    %2543 = vmatprep.mubr.f32.mxu0 0.0
    %2544 = vmatmul.mubr.f32.gmra.mrb[0].mxu0 %v2289
    %v2545 = vpop.f32.mrb[0].mxu0
    %v2546 = vadd.f32 %v2357, %v2545
    %v2547 = vpop.f32.mrb[0].mxu0
    %2548 = vmatprep.mubr.f32.mxu0 0.0
    %2549 = vmatmul.mubr.f32.gmra.mrb[0].mxu0 %v2290
    %v2550 = vpop.f32.mrb[0].mxu0
    %v2551 = vadd.f32 %v2357, %v2550
    %v2552 = vpop.f32.mrb[0].mxu0
    %2553 = vmatprep.mubr.f32.mxu0 0.0
    %2554 = vmatmul.mubr.f32.gmra.mrb[0].mxu0 %v2291
    %v2555 = vpop.f32.mrb[0].mxu0
    %v2556 = vadd.f32 %v2357, %v2555
    %v2557 = vpop.f32.mrb[0].mxu0
    %2558 = vmatprep.mubr.f32.mxu0 0.0
    %2559 = vmatmul.mubr.f32.gmra.mrb[0].mxu0 %v2292
    %v2560 = vpop.f32.mrb[0].mxu0
    %v2561 = vadd.f32 %v2357, %v2560
    %v2562 = vpop.f32.mrb[0].mxu0
    %2563 = vmatprep.mubr.f32.mxu0 0.0
    %2564 = vmatmul.mubr.f32.gmra.mrb[0].mxu0 %v2293
    %v2565 = vpop.f32.mrb[0].mxu0
    %v2566 = vadd.f32 %v2357, %v2565
    %v2567 = vpop.f32.mrb[0].mxu0
    %2568 = vmatprep.mubr.f32.mxu0 0.0
    %2569 = vmatmul.mubr.f32.gmra.mrb[0].mxu0 %v2294
    %v2570 = vpop.f32.mrb[0].mxu0
    %v2571 = vadd.f32 %v2357, %v2570
    %v2572 = vpop.f32.mrb[0].mxu0
    %2573 = vmatprep.mubr.f32.mxu0 0.0
    %2574 = vmatmul.mubr.f32.gmra.mrb[0].mxu0 %v2295
    %v2575 = vpop.f32.mrb[0].mxu0
    %v2576 = vadd.f32 %v2357, %v2575
    %v2577 = vpop.f32.mrb[0].mxu0
    %2578 = vdwg.mxu0
    %2579 = vst [vmem:[#allocation4] sm:$0xff] %v2428
    %2580 = vst [vmem:[#allocation4 + $0x8] sm:$0xff] %v2430
    %2581 = vst [vmem:[#allocation4 + $0x10] sm:$0xff] %v2541
    %2582 = vst [vmem:[#allocation4 + $0x18] sm:$0xff] %v2434
    %2583 = vst [vmem:[#allocation4 + $0x20] sm:$0xff] %v2436
    %2584 = vst [vmem:[#allocation4 + $0x28] sm:$0xff] %v2546
    %2585 = vst [vmem:[#allocation4 + $0x30] sm:$0xff] %v2440
    %2586 = vst [vmem:[#allocation4 + $0x38] sm:$0xff] %v2442
    %2587 = vst [vmem:[#allocation4 + $0x40] sm:$0xff] %v2551
    %2588 = vst [vmem:[#allocation4 + $0x48] sm:$0xff] %v2446
    %2589 = vst [vmem:[#allocation4 + $0x50] sm:$0xff] %v2448
    %2590 = vst [vmem:[#allocation4 + $0x58] sm:$0xff] %v2556
    %2591 = vst [vmem:[#allocation4 + $0x60] sm:$0xff] %v2452
    %2592 = vst [vmem:[#allocation4 + $0x68] sm:$0xff] %v2454
    %2593 = vst [vmem:[#allocation4 + $0x70] sm:$0xff] %v2561
    %2594 = vst [vmem:[#allocation4 + $0x78] sm:$0xff] %v2458
    %2595 = vst [vmem:[#allocation4 + $0x80] sm:$0xff] %v2460
    %2596 = vst [vmem:[#allocation4 + $0x88] sm:$0xff] %v2566
    %2597 = vst [vmem:[#allocation4 + $0x90] sm:$0xff] %v2464
    %2598 = vst [vmem:[#allocation4 + $0x98] sm:$0xff] %v2466
    %2599 = vst [vmem:[#allocation4 + $0xa0] sm:$0xff] %v2571
    %2600 = vst [vmem:[#allocation4 + $0xa8] sm:$0xff] %v2470
    %2601 = vst [vmem:[#allocation4 + $0xb0] sm:$0xff] %v2472
    %2602 = vst [vmem:[#allocation4 + $0xb8] sm:$0xff] %v2576
    %v2603 = vld [vmem:[%s10] sm:$0x7]
    %v2604 = vld [vmem:[#allocation4] sm:$0xff]
    %v2605 = vld [vmem:[#allocation4 + $0x8] sm:$0xff]
    %v2606 = vld [vmem:[#allocation4 + $0x10] sm:$0xff]
    %v2607 = vld [vmem:[#allocation13] sm:$0xff]
    %v2608 = vld [vmem:[#allocation13 + $0x8] sm:$0xff]
    %v2609 = vld [vmem:[#allocation13 + $0x10] sm:$0xff]
    %v2610 = vld [vmem:[#allocation13 + $0x18] sm:$0xff]
    %v2611 = vld [vmem:[#allocation13 + $0x20] sm:$0xff]
    %v2612 = vld [vmem:[#allocation13 + $0x28] sm:$0xff]
    %v2613 = vld [vmem:[#allocation13 + $0x30] sm:$0xff]
    %v2614 = vld [vmem:[#allocation13 + $0x38] sm:$0xff]
    %v2615 = vld [vmem:[#allocation13 + $0x40] sm:$0xff]
    %v2616 = vld [vmem:[#allocation13 + $0x48] sm:$0xff]
    %v2617 = vld [vmem:[#allocation13 + $0x50] sm:$0xff]
    %v2618 = vld [vmem:[#allocation13 + $0x58] sm:$0xff]
    %v2619 = vld [vmem:[#allocation13 + $0x60] sm:$0xff]
    %v2620 = vld [vmem:[#allocation13 + $0x68] sm:$0xff]
    %v2621 = vld [vmem:[#allocation13 + $0x70] sm:$0xff]
    %v2622 = vld [vmem:[#allocation13 + $0x78] sm:$0xff]
    %v2623 = vld [vmem:[#allocation13 + $0x80] sm:$0xff]
    %v2624 = vld [vmem:[#allocation13 + $0x88] sm:$0xff]
    %v2625 = vld [vmem:[#allocation13 + $0x90] sm:$0xff]
    %v2626 = vld [vmem:[#allocation13 + $0x98] sm:$0xff]
    %v2627 = vld [vmem:[#allocation13 + $0xa0] sm:$0xff]
    %v2628 = vld [vmem:[#allocation13 + $0xa8] sm:$0xff]
    %v2629 = vld [vmem:[#allocation13 + $0xb0] sm:$0xff]
    %v2630 = vld [vmem:[#allocation13 + $0xb8] sm:$0xff]
    %v2631 = vld [vmem:[#allocation13 + $0xc0] sm:$0xff]
    %v2632 = vld [vmem:[#allocation13 + $0xc8] sm:$0xff]
    %v2633 = vld [vmem:[#allocation13 + $0xd0] sm:$0xff]
    %v2634 = vld [vmem:[#allocation13 + $0xd8] sm:$0xff]
    %v2635 = vld [vmem:[#allocation13 + $0xe0] sm:$0xff]
    %v2636 = vld [vmem:[#allocation13 + $0xe8] sm:$0xff]
    %v2637 = vld [vmem:[#allocation13 + $0xf0] sm:$0xff]
    %v2638 = vld [vmem:[#allocation13 + $0xf8] sm:$0xff]
    %v2639 = vld [vmem:[#allocation13 + $0x100] sm:$0xff]
    %v2640 = vld [vmem:[#allocation13 + $0x108] sm:$0xff]
    %v2641 = vld [vmem:[#allocation13 + $0x110] sm:$0xff]
    %v2642 = vld [vmem:[#allocation13 + $0x118] sm:$0xff]
    %v2643 = vld [vmem:[#allocation13 + $0x120] sm:$0xff]
    %v2644 = vld [vmem:[#allocation13 + $0x128] sm:$0xff]
    %v2645 = vld [vmem:[#allocation13 + $0x130] sm:$0xff]
    %v2646 = vld [vmem:[#allocation13 + $0x138] sm:$0xff]
    %v2647 = vld [vmem:[#allocation13 + $0x140] sm:$0xff]
    %v2648 = vld [vmem:[#allocation13 + $0x148] sm:$0xff]
    %v2649 = vld [vmem:[#allocation13 + $0x150] sm:$0xff]
    %v2650 = vld [vmem:[#allocation13 + $0x158] sm:$0xff]
    %v2651 = vld [vmem:[#allocation13 + $0x160] sm:$0xff]
    %v2652 = vld [vmem:[#allocation13 + $0x168] sm:$0xff]
    %v2653 = vld [vmem:[#allocation13 + $0x170] sm:$0xff]
    %v2654 = vld [vmem:[#allocation13 + $0x178] sm:$0xff]
    %v2656 = vlaneseq
    %v2657 = vshrl.u32 %v2656, 7
    %v2658 = vsub.s32 0, %v2657
    %v2659 = vrot.slane %v2603, %v2658
    %v2660 = vlaneseq
    %v2661 = vshrl.u32 %v2660, 7
    %v2662 = vsub.s32 1, %v2661
    %v2663 = vrot.slane %v2603, %v2662
    %v2664 = vlaneseq
    %v2665 = vshrl.u32 %v2664, 7
    %v2666 = vsub.s32 2, %v2665
    %v2667 = vrot.slane %v2603, %v2666
    %2671 = vmatprep.subr.mxu0 %v2608
    %2672 = vmatpush1.msra.mxu0 %v2607
    %2673 = vmatprep.subr.mxu0 %v2611
    %2674 = vmatpush1.msra.mxu0 %v2610
    %2675 = vmatprep.subr.mxu0 %v2614
    %2676 = vmatpush1.msra.mxu0 %v2613
    %2677 = vmatprep.subr.mxu0 %v2617
    %2678 = vmatpush1.msra.mxu0 %v2616
    %2679 = vmatprep.subr.mxu0 %v2620
    %2680 = vmatpush1.msra.mxu0 %v2619
    %2681 = vmatprep.subr.mxu0 %v2623
    %2682 = vmatpush1.msra.mxu0 %v2622
    %2683 = vmatprep.subr.mxu0 %v2626
    %2684 = vmatpush1.msra.mxu0 %v2625
    %2685 = vmatprep.subr.mxu0 %v2629
    %2686 = vmatpush1.msra.mxu0 %v2628
    %2687 = vmatprep.subr.mxu0 %v2632
    %2688 = vmatpush1.msra.mxu0 %v2631
    %2689 = vmatprep.subr.mxu0 %v2635
    %2690 = vmatpush1.msra.mxu0 %v2634
    %2691 = vmatprep.subr.mxu0 %v2638
    %2692 = vmatpush1.msra.mxu0 %v2637
    %2693 = vmatprep.subr.mxu0 %v2641
    %2694 = vmatpush1.msra.mxu0 %v2640
    %2695 = vmatprep.subr.mxu0 %v2644
    %2696 = vmatpush1.msra.mxu0 %v2643
    %2697 = vmatprep.subr.mxu0 %v2647
    %2698 = vmatpush1.msra.mxu0 %v2646
    %2699 = vmatprep.subr.mxu0 %v2650
    %2700 = vmatpush1.msra.mxu0 %v2649
    %2701 = vmatprep.subr.mxu0 %v2653
    %2702 = vmatpush1.msra.mxu0 %v2652
    %2703 = vmatprep.subr.mxu0 0.0
    %2704 = vmatpush1.msra.mxu0 0.0
    %2705 = vmatprep.subr.mxu0 0.0
    %2706 = vmatpush1.msra.mxu0 0.0
    %2707 = vmatprep.subr.mxu0 0.0
    %2708 = vmatpush1.msra.mxu0 0.0
    %2709 = vmatprep.subr.mxu0 0.0
    %2710 = vmatpush1.msra.mxu0 0.0
    %2711 = vmatprep.subr.mxu0 0.0
    %2712 = vmatpush1.msra.mxu0 0.0
    %2713 = vmatprep.subr.mxu0 0.0
    %2714 = vmatpush1.msra.mxu0 0.0
    %2715 = vmatprep.subr.mxu0 0.0
    %2716 = vmatpush1.msra.mxu0 0.0
    %2717 = vmatprep.subr.mxu0 0.0
    %2718 = vmatpush1.msra.mxu0 0.0
    %2719 = vmatprep.subr.mxu0 0.0
    %2720 = vmatpush1.msra.mxu0 0.0
    %2721 = vmatprep.subr.mxu0 0.0
    %2722 = vmatpush1.msra.mxu0 0.0
    %2723 = vmatprep.subr.mxu0 0.0
    %2724 = vmatpush1.msra.mxu0 0.0
    %2725 = vmatprep.subr.mxu0 0.0
    %2726 = vmatpush1.msra.mxu0 0.0
    %2727 = vmatprep.subr.mxu0 0.0
    %2728 = vmatpush1.msra.mxu0 0.0
    %2729 = vmatprep.subr.mxu0 0.0
    %2730 = vmatpush1.msra.mxu0 0.0
    %2731 = vmatprep.subr.mxu0 0.0
    %2732 = vmatpush1.msra.mxu0 0.0
    %2733 = vmatprep.subr.mxu0 0.0
    %2734 = vmatpush1.msra.mxu0 0.0
    %2735 = vmatprep.mubr.f32.mxu0 0.0
    %2736 = vmatmul.mubr.f32.gmra.mrb[0].mxu0 0.0
    %v2737 = vpop.f32.mrb[0].mxu0
    %v2738 = vadd.f32 %v2659, %v2737
    %v2739 = vpop.f32.mrb[0].mxu0
    %v2740 = vadd.f32 %v2663, %v2739
    %2741 = vdwg.mxu0
    %2742 = vmatprep.subr.mxu0 0.0
    %2743 = vmatpush1.msra.mxu0 %v2609
    %2744 = vmatprep.subr.mxu0 0.0
    %2745 = vmatpush1.msra.mxu0 %v2612
    %2746 = vmatprep.subr.mxu0 0.0
    %2747 = vmatpush1.msra.mxu0 %v2615
    %2748 = vmatprep.subr.mxu0 0.0
    %2749 = vmatpush1.msra.mxu0 %v2618
    %2750 = vmatprep.subr.mxu0 0.0
    %2751 = vmatpush1.msra.mxu0 %v2621
    %2752 = vmatprep.subr.mxu0 0.0
    %2753 = vmatpush1.msra.mxu0 %v2624
    %2754 = vmatprep.subr.mxu0 0.0
    %2755 = vmatpush1.msra.mxu0 %v2627
    %2756 = vmatprep.subr.mxu0 0.0
    %2757 = vmatpush1.msra.mxu0 %v2630
    %2758 = vmatprep.subr.mxu0 0.0
    %2759 = vmatpush1.msra.mxu0 %v2633
    %2760 = vmatprep.subr.mxu0 0.0
    %2761 = vmatpush1.msra.mxu0 %v2636
    %2762 = vmatprep.subr.mxu0 0.0
    %2763 = vmatpush1.msra.mxu0 %v2639
    %2764 = vmatprep.subr.mxu0 0.0
    %2765 = vmatpush1.msra.mxu0 %v2642
    %2766 = vmatprep.subr.mxu0 0.0
    %2767 = vmatpush1.msra.mxu0 %v2645
    %2768 = vmatprep.subr.mxu0 0.0
    %2769 = vmatpush1.msra.mxu0 %v2648
    %2770 = vmatprep.subr.mxu0 0.0
    %2771 = vmatpush1.msra.mxu0 %v2651
    %2772 = vmatprep.subr.mxu0 0.0
    %2773 = vmatpush1.msra.mxu0 %v2654
    %2774 = vmatprep.subr.mxu0 0.0
    %2775 = vmatpush1.msra.mxu0 0.0
    %2776 = vmatprep.subr.mxu0 0.0
    %2777 = vmatpush1.msra.mxu0 0.0
    %2778 = vmatprep.subr.mxu0 0.0
    %2779 = vmatpush1.msra.mxu0 0.0
    %2780 = vmatprep.subr.mxu0 0.0
    %2781 = vmatpush1.msra.mxu0 0.0
    %2782 = vmatprep.subr.mxu0 0.0
    %2783 = vmatpush1.msra.mxu0 0.0
    %2784 = vmatprep.subr.mxu0 0.0
    %2785 = vmatpush1.msra.mxu0 0.0
    %2786 = vmatprep.subr.mxu0 0.0
    %2787 = vmatpush1.msra.mxu0 0.0
    %2788 = vmatprep.subr.mxu0 0.0
    %2789 = vmatpush1.msra.mxu0 0.0
    %2790 = vmatprep.subr.mxu0 0.0
    %2791 = vmatpush1.msra.mxu0 0.0
    %2792 = vmatprep.subr.mxu0 0.0
    %2793 = vmatpush1.msra.mxu0 0.0
    %2794 = vmatprep.subr.mxu0 0.0
    %2795 = vmatpush1.msra.mxu0 0.0
    %2796 = vmatprep.subr.mxu0 0.0
    %2797 = vmatpush1.msra.mxu0 0.0
    %2798 = vmatprep.subr.mxu0 0.0
    %2799 = vmatpush1.msra.mxu0 0.0
    %2800 = vmatprep.subr.mxu0 0.0
    %2801 = vmatpush1.msra.mxu0 0.0
    %2802 = vmatprep.subr.mxu0 0.0
    %2803 = vmatpush1.msra.mxu0 0.0
    %2804 = vmatprep.subr.mxu0 0.0
    %2805 = vmatpush1.msra.mxu0 0.0
    %2806 = vmatprep.mubr.f32.mxu0 0.0
    %2807 = vmatmul.mubr.f32.gmra.mrb[0].mxu0 0.0
    %v2808 = vpop.f32.mrb[0].mxu0
    %v2809 = vadd.f32 %v2667, %v2808
    %v2810 = vpop.f32.mrb[0].mxu0
    %2811 = vdwg.mxu0
    %v2812 = vadd.f32 %v2604, %v2738
    %v2813 = vxor.u32 %v2812, 2147483648
    %v2814 = vmul.f32 %v2813, 1.442695
    %v2815 = vpow.pop %v2814
    %v2816 = vadd.f32 %v2815, 1.0
    %v2817 = vrcp.pop %v2816
    %v2818 = vmul.f32 1.0, %v2817
    %v2819 = vadd.f32 %v2605, %v2740
    %v2820 = vxor.u32 %v2819, 2147483648
    %v2821 = vmul.f32 %v2820, 1.442695
    %v2822 = vpow.pop %v2821
    %v2823 = vadd.f32 %v2822, 1.0
    %v2824 = vrcp.pop %v2823
    %v2825 = vmul.f32 1.0, %v2824
    %v2826 = vmul.f32 %v2818, %v2809
    %v2827 = vadd.f32 %v2606, %v2826
    %v2828 = vtanh.pop %v2827
    %v2829 = vsub.f32 1.0, %v2825
    %v2830 = vmul.f32 %v2829, %v2828
    %v2831 = vmul.f32 %v2825, 0.0
    %v2832 = vadd.f32 %v2830, %v2831
    %2833 = vst [vmem:[#allocation5] sm:$0xff] %v2832
    %v2834 = vld [vmem:[#allocation4 + $0x18] sm:$0xff]
    %v2835 = vld [vmem:[#allocation4 + $0x20] sm:$0xff]
    %v2836 = vld [vmem:[#allocation4 + $0x28] sm:$0xff]
    %v2837 = vld [vmem:[#allocation13] sm:$0xff]
    %v2838 = vld [vmem:[#allocation13 + $0x8] sm:$0xff]
    %v2839 = vld [vmem:[#allocation13 + $0x10] sm:$0xff]
    %v2840 = vld [vmem:[#allocation13 + $0x18] sm:$0xff]
    %v2841 = vld [vmem:[#allocation13 + $0x20] sm:$0xff]
    %v2842 = vld [vmem:[#allocation13 + $0x28] sm:$0xff]
    %v2843 = vld [vmem:[#allocation13 + $0x30] sm:$0xff]
    %v2844 = vld [vmem:[#allocation13 + $0x38] sm:$0xff]
    %v2845 = vld [vmem:[#allocation13 + $0x40] sm:$0xff]
    %v2846 = vld [vmem:[#allocation13 + $0x48] sm:$0xff]
    %v2847 = vld [vmem:[#allocation13 + $0x50] sm:$0xff]
    %v2848 = vld [vmem:[#allocation13 + $0x58] sm:$0xff]
    %v2849 = vld [vmem:[#allocation13 + $0x60] sm:$0xff]
    %v2850 = vld [vmem:[#allocation13 + $0x68] sm:$0xff]
    %v2851 = vld [vmem:[#allocation13 + $0x70] sm:$0xff]
    %v2852 = vld [vmem:[#allocation13 + $0x78] sm:$0xff]
    %v2853 = vld [vmem:[#allocation13 + $0x80] sm:$0xff]
    %v2854 = vld [vmem:[#allocation13 + $0x88] sm:$0xff]
    %v2855 = vld [vmem:[#allocation13 + $0x90] sm:$0xff]
    %v2856 = vld [vmem:[#allocation13 + $0x98] sm:$0xff]
    %v2857 = vld [vmem:[#allocation13 + $0xa0] sm:$0xff]
    %v2858 = vld [vmem:[#allocation13 + $0xa8] sm:$0xff]
    %v2859 = vld [vmem:[#allocation13 + $0xb0] sm:$0xff]
    %v2860 = vld [vmem:[#allocation13 + $0xb8] sm:$0xff]
    %v2861 = vld [vmem:[#allocation13 + $0xc0] sm:$0xff]
    %v2862 = vld [vmem:[#allocation13 + $0xc8] sm:$0xff]
    %v2863 = vld [vmem:[#allocation13 + $0xd0] sm:$0xff]
    %v2864 = vld [vmem:[#allocation13 + $0xd8] sm:$0xff]
    %v2865 = vld [vmem:[#allocation13 + $0xe0] sm:$0xff]
    %v2866 = vld [vmem:[#allocation13 + $0xe8] sm:$0xff]
    %v2867 = vld [vmem:[#allocation13 + $0xf0] sm:$0xff]
    %v2868 = vld [vmem:[#allocation13 + $0xf8] sm:$0xff]
    %v2869 = vld [vmem:[#allocation13 + $0x100] sm:$0xff]
    %v2870 = vld [vmem:[#allocation13 + $0x108] sm:$0xff]
    %v2871 = vld [vmem:[#allocation13 + $0x110] sm:$0xff]
    %v2872 = vld [vmem:[#allocation13 + $0x118] sm:$0xff]
    %v2873 = vld [vmem:[#allocation13 + $0x120] sm:$0xff]
    %v2874 = vld [vmem:[#allocation13 + $0x128] sm:$0xff]
    %v2875 = vld [vmem:[#allocation13 + $0x130] sm:$0xff]
    %v2876 = vld [vmem:[#allocation13 + $0x138] sm:$0xff]
    %v2877 = vld [vmem:[#allocation13 + $0x140] sm:$0xff]
    %v2878 = vld [vmem:[#allocation13 + $0x148] sm:$0xff]
    %v2879 = vld [vmem:[#allocation13 + $0x150] sm:$0xff]
    %v2880 = vld [vmem:[#allocation13 + $0x158] sm:$0xff]
    %v2881 = vld [vmem:[#allocation13 + $0x160] sm:$0xff]
    %v2882 = vld [vmem:[#allocation13 + $0x168] sm:$0xff]
    %v2883 = vld [vmem:[#allocation13 + $0x170] sm:$0xff]
    %v2884 = vld [vmem:[#allocation13 + $0x178] sm:$0xff]
    %2885 = vmatprep.subr.mxu0 %v2838
    %2886 = vmatpush1.msra.mxu0 %v2837
    %2887 = vmatprep.subr.mxu0 %v2841
    %2888 = vmatpush1.msra.mxu0 %v2840
    %2889 = vmatprep.subr.mxu0 %v2844
    %2890 = vmatpush1.msra.mxu0 %v2843
    %2891 = vmatprep.subr.mxu0 %v2847
    %2892 = vmatpush1.msra.mxu0 %v2846
    %2893 = vmatprep.subr.mxu0 %v2850
    %2894 = vmatpush1.msra.mxu0 %v2849
    %2895 = vmatprep.subr.mxu0 %v2853
    %2896 = vmatpush1.msra.mxu0 %v2852
    %2897 = vmatprep.subr.mxu0 %v2856
    %2898 = vmatpush1.msra.mxu0 %v2855
    %2899 = vmatprep.subr.mxu0 %v2859
    %2900 = vmatpush1.msra.mxu0 %v2858
    %2901 = vmatprep.subr.mxu0 %v2862
    %2902 = vmatpush1.msra.mxu0 %v2861
    %2903 = vmatprep.subr.mxu0 %v2865
    %2904 = vmatpush1.msra.mxu0 %v2864
    %2905 = vmatprep.subr.mxu0 %v2868
    %2906 = vmatpush1.msra.mxu0 %v2867
    %2907 = vmatprep.subr.mxu0 %v2871
    %2908 = vmatpush1.msra.mxu0 %v2870
    %2909 = vmatprep.subr.mxu0 %v2874
    %2910 = vmatpush1.msra.mxu0 %v2873
    %2911 = vmatprep.subr.mxu0 %v2877
    %2912 = vmatpush1.msra.mxu0 %v2876
    %2913 = vmatprep.subr.mxu0 %v2880
    %2914 = vmatpush1.msra.mxu0 %v2879
    %2915 = vmatprep.subr.mxu0 %v2883
    %2916 = vmatpush1.msra.mxu0 %v2882
    %2917 = vmatprep.subr.mxu0 0.0
    %2918 = vmatpush1.msra.mxu0 0.0
    %2919 = vmatprep.subr.mxu0 0.0
    %2920 = vmatpush1.msra.mxu0 0.0
    %2921 = vmatprep.subr.mxu0 0.0
    %2922 = vmatpush1.msra.mxu0 0.0
    %2923 = vmatprep.subr.mxu0 0.0
    %2924 = vmatpush1.msra.mxu0 0.0
    %2925 = vmatprep.subr.mxu0 0.0
    %2926 = vmatpush1.msra.mxu0 0.0
    %2927 = vmatprep.subr.mxu0 0.0
    %2928 = vmatpush1.msra.mxu0 0.0
    %2929 = vmatprep.subr.mxu0 0.0
    %2930 = vmatpush1.msra.mxu0 0.0
    %2931 = vmatprep.subr.mxu0 0.0
    %2932 = vmatpush1.msra.mxu0 0.0
    %2933 = vmatprep.subr.mxu0 0.0
    %2934 = vmatpush1.msra.mxu0 0.0
    %2935 = vmatprep.subr.mxu0 0.0
    %2936 = vmatpush1.msra.mxu0 0.0
    %2937 = vmatprep.subr.mxu0 0.0
    %2938 = vmatpush1.msra.mxu0 0.0
    %2939 = vmatprep.subr.mxu0 0.0
    %2940 = vmatpush1.msra.mxu0 0.0
    %2941 = vmatprep.subr.mxu0 0.0
    %2942 = vmatpush1.msra.mxu0 0.0
    %2943 = vmatprep.subr.mxu0 0.0
    %2944 = vmatpush1.msra.mxu0 0.0
    %2945 = vmatprep.subr.mxu0 0.0
    %2946 = vmatpush1.msra.mxu0 0.0
    %2947 = vmatprep.subr.mxu0 0.0
    %2948 = vmatpush1.msra.mxu0 0.0
    %2949 = vmatprep.mubr.f32.mxu0 0.0
    %2950 = vmatmul.mubr.f32.gmra.mrb[0].mxu0 %v2832
    %v2951 = vpop.f32.mrb[0].mxu0
    %v2952 = vadd.f32 %v2659, %v2951
    %v2953 = vpop.f32.mrb[0].mxu0
    %v2954 = vadd.f32 %v2663, %v2953
    %2955 = vdwg.mxu0
    %2956 = vmatprep.subr.mxu0 0.0
    %2957 = vmatpush1.msra.mxu0 %v2839
    %2958 = vmatprep.subr.mxu0 0.0
    %2959 = vmatpush1.msra.mxu0 %v2842
    %2960 = vmatprep.subr.mxu0 0.0
    %2961 = vmatpush1.msra.mxu0 %v2845
    %2962 = vmatprep.subr.mxu0 0.0
    %2963 = vmatpush1.msra.mxu0 %v2848
    %2964 = vmatprep.subr.mxu0 0.0
    %2965 = vmatpush1.msra.mxu0 %v2851
    %2966 = vmatprep.subr.mxu0 0.0
    %2967 = vmatpush1.msra.mxu0 %v2854
    %2968 = vmatprep.subr.mxu0 0.0
    %2969 = vmatpush1.msra.mxu0 %v2857
    %2970 = vmatprep.subr.mxu0 0.0
    %2971 = vmatpush1.msra.mxu0 %v2860
    %2972 = vmatprep.subr.mxu0 0.0
    %2973 = vmatpush1.msra.mxu0 %v2863
    %2974 = vmatprep.subr.mxu0 0.0
    %2975 = vmatpush1.msra.mxu0 %v2866
    %2976 = vmatprep.subr.mxu0 0.0
    %2977 = vmatpush1.msra.mxu0 %v2869
    %2978 = vmatprep.subr.mxu0 0.0
    %2979 = vmatpush1.msra.mxu0 %v2872
    %2980 = vmatprep.subr.mxu0 0.0
    %2981 = vmatpush1.msra.mxu0 %v2875
    %2982 = vmatprep.subr.mxu0 0.0
    %2983 = vmatpush1.msra.mxu0 %v2878
    %2984 = vmatprep.subr.mxu0 0.0
    %2985 = vmatpush1.msra.mxu0 %v2881
    %2986 = vmatprep.subr.mxu0 0.0
    %2987 = vmatpush1.msra.mxu0 %v2884
    %2988 = vmatprep.subr.mxu0 0.0
    %2989 = vmatpush1.msra.mxu0 0.0
    %2990 = vmatprep.subr.mxu0 0.0
    %2991 = vmatpush1.msra.mxu0 0.0
    %2992 = vmatprep.subr.mxu0 0.0
    %2993 = vmatpush1.msra.mxu0 0.0
    %2994 = vmatprep.subr.mxu0 0.0
    %2995 = vmatpush1.msra.mxu0 0.0
    %2996 = vmatprep.subr.mxu0 0.0
    %2997 = vmatpush1.msra.mxu0 0.0
    %2998 = vmatprep.subr.mxu0 0.0
    %2999 = vmatpush1.msra.mxu0 0.0
    %3000 = vmatprep.subr.mxu0 0.0
    %3001 = vmatpush1.msra.mxu0 0.0
    %3002 = vmatprep.subr.mxu0 0.0
    %3003 = vmatpush1.msra.mxu0 0.0
    %3004 = vmatprep.subr.mxu0 0.0
    %3005 = vmatpush1.msra.mxu0 0.0
    %3006 = vmatprep.subr.mxu0 0.0
    %3007 = vmatpush1.msra.mxu0 0.0
    %3008 = vmatprep.subr.mxu0 0.0
    %3009 = vmatpush1.msra.mxu0 0.0
    %3010 = vmatprep.subr.mxu0 0.0
    %3011 = vmatpush1.msra.mxu0 0.0
    %3012 = vmatprep.subr.mxu0 0.0
    %3013 = vmatpush1.msra.mxu0 0.0
    %3014 = vmatprep.subr.mxu0 0.0
    %3015 = vmatpush1.msra.mxu0 0.0
    %3016 = vmatprep.subr.mxu0 0.0
    %3017 = vmatpush1.msra.mxu0 0.0
    %3018 = vmatprep.subr.mxu0 0.0
    %3019 = vmatpush1.msra.mxu0 0.0
    %3020 = vmatprep.mubr.f32.mxu0 0.0
    %3021 = vmatmul.mubr.f32.gmra.mrb[0].mxu0 %v2832
    %v3022 = vpop.f32.mrb[0].mxu0
    %v3023 = vadd.f32 %v2667, %v3022
    %v3024 = vpop.f32.mrb[0].mxu0
    %3025 = vdwg.mxu0
    %v3026 = vadd.f32 %v2834, %v2952
    %v3027 = vxor.u32 %v3026, 2147483648
    %v3028 = vmul.f32 %v3027, 1.442695
    %v3029 = vpow.pop %v3028
    %v3030 = vadd.f32 %v3029, 1.0
    %v3031 = vrcp.pop %v3030
    %v3032 = vmul.f32 1.0, %v3031
    %v3033 = vadd.f32 %v2835, %v2954
    %v3034 = vxor.u32 %v3033, 2147483648
    %v3035 = vmul.f32 %v3034, 1.442695
    %v3036 = vpow.pop %v3035
    %v3037 = vadd.f32 %v3036, 1.0
    %v3038 = vrcp.pop %v3037
    %v3039 = vmul.f32 1.0, %v3038
    %v3040 = vmul.f32 %v3032, %v3023
    %v3041 = vadd.f32 %v2836, %v3040
    %v3042 = vtanh.pop %v3041
    %v3043 = vsub.f32 1.0, %v3039
    %v3044 = vmul.f32 %v3043, %v3042
    %v3045 = vmul.f32 %v3039, %v2832
    %v3046 = vadd.f32 %v3044, %v3045
    %3047 = vst [vmem:[#allocation5 + $0x8] sm:$0xff] %v3046
    %v3048 = vld [vmem:[#allocation4 + $0x30] sm:$0xff]
    %v3049 = vld [vmem:[#allocation4 + $0x38] sm:$0xff]
    %v3050 = vld [vmem:[#allocation4 + $0x40] sm:$0xff]
    %v3051 = vld [vmem:[#allocation13] sm:$0xff]
    %v3052 = vld [vmem:[#allocation13 + $0x8] sm:$0xff]
    %v3053 = vld [vmem:[#allocation13 + $0x10] sm:$0xff]
    %v3054 = vld [vmem:[#allocation13 + $0x18] sm:$0xff]
    %v3055 = vld [vmem:[#allocation13 + $0x20] sm:$0xff]
    %v3056 = vld [vmem:[#allocation13 + $0x28] sm:$0xff]
    %v3057 = vld [vmem:[#allocation13 + $0x30] sm:$0xff]
    %v3058 = vld [vmem:[#allocation13 + $0x38] sm:$0xff]
    %v3059 = vld [vmem:[#allocation13 + $0x40] sm:$0xff]
    %v3060 = vld [vmem:[#allocation13 + $0x48] sm:$0xff]
    %v3061 = vld [vmem:[#allocation13 + $0x50] sm:$0xff]
    %v3062 = vld [vmem:[#allocation13 + $0x58] sm:$0xff]
    %v3063 = vld [vmem:[#allocation13 + $0x60] sm:$0xff]
    %v3064 = vld [vmem:[#allocation13 + $0x68] sm:$0xff]
    %v3065 = vld [vmem:[#allocation13 + $0x70] sm:$0xff]
    %v3066 = vld [vmem:[#allocation13 + $0x78] sm:$0xff]
    %v3067 = vld [vmem:[#allocation13 + $0x80] sm:$0xff]
    %v3068 = vld [vmem:[#allocation13 + $0x88] sm:$0xff]
    %v3069 = vld [vmem:[#allocation13 + $0x90] sm:$0xff]
    %v3070 = vld [vmem:[#allocation13 + $0x98] sm:$0xff]
    %v3071 = vld [vmem:[#allocation13 + $0xa0] sm:$0xff]
    %v3072 = vld [vmem:[#allocation13 + $0xa8] sm:$0xff]
    %v3073 = vld [vmem:[#allocation13 + $0xb0] sm:$0xff]
    %v3074 = vld [vmem:[#allocation13 + $0xb8] sm:$0xff]
    %v3075 = vld [vmem:[#allocation13 + $0xc0] sm:$0xff]
    %v3076 = vld [vmem:[#allocation13 + $0xc8] sm:$0xff]
    %v3077 = vld [vmem:[#allocation13 + $0xd0] sm:$0xff]
    %v3078 = vld [vmem:[#allocation13 + $0xd8] sm:$0xff]
    %v3079 = vld [vmem:[#allocation13 + $0xe0] sm:$0xff]
    %v3080 = vld [vmem:[#allocation13 + $0xe8] sm:$0xff]
    %v3081 = vld [vmem:[#allocation13 + $0xf0] sm:$0xff]
    %v3082 = vld [vmem:[#allocation13 + $0xf8] sm:$0xff]
    %v3083 = vld [vmem:[#allocation13 + $0x100] sm:$0xff]
    %v3084 = vld [vmem:[#allocation13 + $0x108] sm:$0xff]
    %v3085 = vld [vmem:[#allocation13 + $0x110] sm:$0xff]
    %v3086 = vld [vmem:[#allocation13 + $0x118] sm:$0xff]
    %v3087 = vld [vmem:[#allocation13 + $0x120] sm:$0xff]
    %v3088 = vld [vmem:[#allocation13 + $0x128] sm:$0xff]
    %v3089 = vld [vmem:[#allocation13 + $0x130] sm:$0xff]
    %v3090 = vld [vmem:[#allocation13 + $0x138] sm:$0xff]
    %v3091 = vld [vmem:[#allocation13 + $0x140] sm:$0xff]
    %v3092 = vld [vmem:[#allocation13 + $0x148] sm:$0xff]
    %v3093 = vld [vmem:[#allocation13 + $0x150] sm:$0xff]
    %v3094 = vld [vmem:[#allocation13 + $0x158] sm:$0xff]
    %v3095 = vld [vmem:[#allocation13 + $0x160] sm:$0xff]
    %v3096 = vld [vmem:[#allocation13 + $0x168] sm:$0xff]
    %v3097 = vld [vmem:[#allocation13 + $0x170] sm:$0xff]
    %v3098 = vld [vmem:[#allocation13 + $0x178] sm:$0xff]
    %3099 = vmatprep.subr.mxu0 %v3052
    %3100 = vmatpush1.msra.mxu0 %v3051
    %3101 = vmatprep.subr.mxu0 %v3055
    %3102 = vmatpush1.msra.mxu0 %v3054
    %3103 = vmatprep.subr.mxu0 %v3058
    %3104 = vmatpush1.msra.mxu0 %v3057
    %3105 = vmatprep.subr.mxu0 %v3061
    %3106 = vmatpush1.msra.mxu0 %v3060
    %3107 = vmatprep.subr.mxu0 %v3064
    %3108 = vmatpush1.msra.mxu0 %v3063
    %3109 = vmatprep.subr.mxu0 %v3067
    %3110 = vmatpush1.msra.mxu0 %v3066
    %3111 = vmatprep.subr.mxu0 %v3070
    %3112 = vmatpush1.msra.mxu0 %v3069
    %3113 = vmatprep.subr.mxu0 %v3073
    %3114 = vmatpush1.msra.mxu0 %v3072
    %3115 = vmatprep.subr.mxu0 %v3076
    %3116 = vmatpush1.msra.mxu0 %v3075
    %3117 = vmatprep.subr.mxu0 %v3079
    %3118 = vmatpush1.msra.mxu0 %v3078
    %3119 = vmatprep.subr.mxu0 %v3082
    %3120 = vmatpush1.msra.mxu0 %v3081
    %3121 = vmatprep.subr.mxu0 %v3085
    %3122 = vmatpush1.msra.mxu0 %v3084
    %3123 = vmatprep.subr.mxu0 %v3088
    %3124 = vmatpush1.msra.mxu0 %v3087
    %3125 = vmatprep.subr.mxu0 %v3091
    %3126 = vmatpush1.msra.mxu0 %v3090
    %3127 = vmatprep.subr.mxu0 %v3094
    %3128 = vmatpush1.msra.mxu0 %v3093
    %3129 = vmatprep.subr.mxu0 %v3097
    %3130 = vmatpush1.msra.mxu0 %v3096
    %3131 = vmatprep.subr.mxu0 0.0
    %3132 = vmatpush1.msra.mxu0 0.0
    %3133 = vmatprep.subr.mxu0 0.0
    %3134 = vmatpush1.msra.mxu0 0.0
    %3135 = vmatprep.subr.mxu0 0.0
    %3136 = vmatpush1.msra.mxu0 0.0
    %3137 = vmatprep.subr.mxu0 0.0
    %3138 = vmatpush1.msra.mxu0 0.0
    %3139 = vmatprep.subr.mxu0 0.0
    %3140 = vmatpush1.msra.mxu0 0.0
    %3141 = vmatprep.subr.mxu0 0.0
    %3142 = vmatpush1.msra.mxu0 0.0
    %3143 = vmatprep.subr.mxu0 0.0
    %3144 = vmatpush1.msra.mxu0 0.0
    %3145 = vmatprep.subr.mxu0 0.0
    %3146 = vmatpush1.msra.mxu0 0.0
    %3147 = vmatprep.subr.mxu0 0.0
    %3148 = vmatpush1.msra.mxu0 0.0
    %3149 = vmatprep.subr.mxu0 0.0
    %3150 = vmatpush1.msra.mxu0 0.0
    %3151 = vmatprep.subr.mxu0 0.0
    %3152 = vmatpush1.msra.mxu0 0.0
    %3153 = vmatprep.subr.mxu0 0.0
    %3154 = vmatpush1.msra.mxu0 0.0
    %3155 = vmatprep.subr.mxu0 0.0
    %3156 = vmatpush1.msra.mxu0 0.0
    %3157 = vmatprep.subr.mxu0 0.0
    %3158 = vmatpush1.msra.mxu0 0.0
    %3159 = vmatprep.subr.mxu0 0.0
    %3160 = vmatpush1.msra.mxu0 0.0
    %3161 = vmatprep.subr.mxu0 0.0
    %3162 = vmatpush1.msra.mxu0 0.0
    %3163 = vmatprep.mubr.f32.mxu0 0.0
    %3164 = vmatmul.mubr.f32.gmra.mrb[0].mxu0 %v3046
    %v3165 = vpop.f32.mrb[0].mxu0
    %v3166 = vadd.f32 %v2659, %v3165
    %v3167 = vpop.f32.mrb[0].mxu0
    %v3168 = vadd.f32 %v2663, %v3167
    %3169 = vdwg.mxu0
    %3170 = vmatprep.subr.mxu0 0.0
    %3171 = vmatpush1.msra.mxu0 %v3053
    %3172 = vmatprep.subr.mxu0 0.0
    %3173 = vmatpush1.msra.mxu0 %v3056
    %3174 = vmatprep.subr.mxu0 0.0
    %3175 = vmatpush1.msra.mxu0 %v3059
    %3176 = vmatprep.subr.mxu0 0.0
    %3177 = vmatpush1.msra.mxu0 %v3062
    %3178 = vmatprep.subr.mxu0 0.0
    %3179 = vmatpush1.msra.mxu0 %v3065
    %3180 = vmatprep.subr.mxu0 0.0
    %3181 = vmatpush1.msra.mxu0 %v3068
    %3182 = vmatprep.subr.mxu0 0.0
    %3183 = vmatpush1.msra.mxu0 %v3071
    %3184 = vmatprep.subr.mxu0 0.0
    %3185 = vmatpush1.msra.mxu0 %v3074
    %3186 = vmatprep.subr.mxu0 0.0
    %3187 = vmatpush1.msra.mxu0 %v3077
    %3188 = vmatprep.subr.mxu0 0.0
    %3189 = vmatpush1.msra.mxu0 %v3080
    %3190 = vmatprep.subr.mxu0 0.0
    %3191 = vmatpush1.msra.mxu0 %v3083
    %3192 = vmatprep.subr.mxu0 0.0
    %3193 = vmatpush1.msra.mxu0 %v3086
    %3194 = vmatprep.subr.mxu0 0.0
    %3195 = vmatpush1.msra.mxu0 %v3089
    %3196 = vmatprep.subr.mxu0 0.0
    %3197 = vmatpush1.msra.mxu0 %v3092
    %3198 = vmatprep.subr.mxu0 0.0
    %3199 = vmatpush1.msra.mxu0 %v3095
    %3200 = vmatprep.subr.mxu0 0.0
    %3201 = vmatpush1.msra.mxu0 %v3098
    %3202 = vmatprep.subr.mxu0 0.0
    %3203 = vmatpush1.msra.mxu0 0.0
    %3204 = vmatprep.subr.mxu0 0.0
    %3205 = vmatpush1.msra.mxu0 0.0
    %3206 = vmatprep.subr.mxu0 0.0
    %3207 = vmatpush1.msra.mxu0 0.0
    %3208 = vmatprep.subr.mxu0 0.0
    %3209 = vmatpush1.msra.mxu0 0.0
    %3210 = vmatprep.subr.mxu0 0.0
    %3211 = vmatpush1.msra.mxu0 0.0
    %3212 = vmatprep.subr.mxu0 0.0
    %3213 = vmatpush1.msra.mxu0 0.0
    %3214 = vmatprep.subr.mxu0 0.0
    %3215 = vmatpush1.msra.mxu0 0.0
    %3216 = vmatprep.subr.mxu0 0.0
    %3217 = vmatpush1.msra.mxu0 0.0
    %3218 = vmatprep.subr.mxu0 0.0
    %3219 = vmatpush1.msra.mxu0 0.0
    %3220 = vmatprep.subr.mxu0 0.0
    %3221 = vmatpush1.msra.mxu0 0.0
    %3222 = vmatprep.subr.mxu0 0.0
    %3223 = vmatpush1.msra.mxu0 0.0
    %3224 = vmatprep.subr.mxu0 0.0
    %3225 = vmatpush1.msra.mxu0 0.0
    %3226 = vmatprep.subr.mxu0 0.0
    %3227 = vmatpush1.msra.mxu0 0.0
    %3228 = vmatprep.subr.mxu0 0.0
    %3229 = vmatpush1.msra.mxu0 0.0
    %3230 = vmatprep.subr.mxu0 0.0
    %3231 = vmatpush1.msra.mxu0 0.0
    %3232 = vmatprep.subr.mxu0 0.0
    %3233 = vmatpush1.msra.mxu0 0.0
    %3234 = vmatprep.mubr.f32.mxu0 0.0
    %3235 = vmatmul.mubr.f32.gmra.mrb[0].mxu0 %v3046
    %v3236 = vpop.f32.mrb[0].mxu0
    %v3237 = vadd.f32 %v2667, %v3236
    %v3238 = vpop.f32.mrb[0].mxu0
    %3239 = vdwg.mxu0
    %v3240 = vadd.f32 %v3048, %v3166
    %v3241 = vxor.u32 %v3240, 2147483648
    %v3242 = vmul.f32 %v3241, 1.442695
    %v3243 = vpow.pop %v3242
    %v3244 = vadd.f32 %v3243, 1.0
    %v3245 = vrcp.pop %v3244
    %v3246 = vmul.f32 1.0, %v3245
    %v3247 = vadd.f32 %v3049, %v3168
    %v3248 = vxor.u32 %v3247, 2147483648
    %v3249 = vmul.f32 %v3248, 1.442695
    %v3250 = vpow.pop %v3249
    %v3251 = vadd.f32 %v3250, 1.0
    %v3252 = vrcp.pop %v3251
    %v3253 = vmul.f32 1.0, %v3252
    %v3254 = vmul.f32 %v3246, %v3237
    %v3255 = vadd.f32 %v3050, %v3254
    %v3256 = vtanh.pop %v3255
    %v3257 = vsub.f32 1.0, %v3253
    %v3258 = vmul.f32 %v3257, %v3256
    %v3259 = vmul.f32 %v3253, %v3046
    %v3260 = vadd.f32 %v3258, %v3259
    %3261 = vst [vmem:[#allocation5 + $0x10] sm:$0xff] %v3260
    %v3262 = vld [vmem:[#allocation4 + $0x48] sm:$0xff]
    %v3263 = vld [vmem:[#allocation4 + $0x50] sm:$0xff]
    %v3264 = vld [vmem:[#allocation4 + $0x58] sm:$0xff]
    %v3265 = vld [vmem:[#allocation13] sm:$0xff]
    %v3266 = vld [vmem:[#allocation13 + $0x8] sm:$0xff]
    %v3267 = vld [vmem:[#allocation13 + $0x10] sm:$0xff]
    %v3268 = vld [vmem:[#allocation13 + $0x18] sm:$0xff]
    %v3269 = vld [vmem:[#allocation13 + $0x20] sm:$0xff]
    %v3270 = vld [vmem:[#allocation13 + $0x28] sm:$0xff]
    %v3271 = vld [vmem:[#allocation13 + $0x30] sm:$0xff]
    %v3272 = vld [vmem:[#allocation13 + $0x38] sm:$0xff]
    %v3273 = vld [vmem:[#allocation13 + $0x40] sm:$0xff]
    %v3274 = vld [vmem:[#allocation13 + $0x48] sm:$0xff]
    %v3275 = vld [vmem:[#allocation13 + $0x50] sm:$0xff]
    %v3276 = vld [vmem:[#allocation13 + $0x58] sm:$0xff]
    %v3277 = vld [vmem:[#allocation13 + $0x60] sm:$0xff]
    %v3278 = vld [vmem:[#allocation13 + $0x68] sm:$0xff]
    %v3279 = vld [vmem:[#allocation13 + $0x70] sm:$0xff]
    %v3280 = vld [vmem:[#allocation13 + $0x78] sm:$0xff]
    %v3281 = vld [vmem:[#allocation13 + $0x80] sm:$0xff]
    %v3282 = vld [vmem:[#allocation13 + $0x88] sm:$0xff]
    %v3283 = vld [vmem:[#allocation13 + $0x90] sm:$0xff]
    %v3284 = vld [vmem:[#allocation13 + $0x98] sm:$0xff]
    %v3285 = vld [vmem:[#allocation13 + $0xa0] sm:$0xff]
    %v3286 = vld [vmem:[#allocation13 + $0xa8] sm:$0xff]
    %v3287 = vld [vmem:[#allocation13 + $0xb0] sm:$0xff]
    %v3288 = vld [vmem:[#allocation13 + $0xb8] sm:$0xff]
    %v3289 = vld [vmem:[#allocation13 + $0xc0] sm:$0xff]
    %v3290 = vld [vmem:[#allocation13 + $0xc8] sm:$0xff]
    %v3291 = vld [vmem:[#allocation13 + $0xd0] sm:$0xff]
    %v3292 = vld [vmem:[#allocation13 + $0xd8] sm:$0xff]
    %v3293 = vld [vmem:[#allocation13 + $0xe0] sm:$0xff]
    %v3294 = vld [vmem:[#allocation13 + $0xe8] sm:$0xff]
    %v3295 = vld [vmem:[#allocation13 + $0xf0] sm:$0xff]
    %v3296 = vld [vmem:[#allocation13 + $0xf8] sm:$0xff]
    %v3297 = vld [vmem:[#allocation13 + $0x100] sm:$0xff]
    %v3298 = vld [vmem:[#allocation13 + $0x108] sm:$0xff]
    %v3299 = vld [vmem:[#allocation13 + $0x110] sm:$0xff]
    %v3300 = vld [vmem:[#allocation13 + $0x118] sm:$0xff]
    %v3301 = vld [vmem:[#allocation13 + $0x120] sm:$0xff]
    %v3302 = vld [vmem:[#allocation13 + $0x128] sm:$0xff]
    %v3303 = vld [vmem:[#allocation13 + $0x130] sm:$0xff]
    %v3304 = vld [vmem:[#allocation13 + $0x138] sm:$0xff]
    %v3305 = vld [vmem:[#allocation13 + $0x140] sm:$0xff]
    %v3306 = vld [vmem:[#allocation13 + $0x148] sm:$0xff]
    %v3307 = vld [vmem:[#allocation13 + $0x150] sm:$0xff]
    %v3308 = vld [vmem:[#allocation13 + $0x158] sm:$0xff]
    %v3309 = vld [vmem:[#allocation13 + $0x160] sm:$0xff]
    %v3310 = vld [vmem:[#allocation13 + $0x168] sm:$0xff]
    %v3311 = vld [vmem:[#allocation13 + $0x170] sm:$0xff]
    %v3312 = vld [vmem:[#allocation13 + $0x178] sm:$0xff]
    %3313 = vmatprep.subr.mxu0 %v3266
    %3314 = vmatpush1.msra.mxu0 %v3265
    %3315 = vmatprep.subr.mxu0 %v3269
    %3316 = vmatpush1.msra.mxu0 %v3268
    %3317 = vmatprep.subr.mxu0 %v3272
    %3318 = vmatpush1.msra.mxu0 %v3271
    %3319 = vmatprep.subr.mxu0 %v3275
    %3320 = vmatpush1.msra.mxu0 %v3274
    %3321 = vmatprep.subr.mxu0 %v3278
    %3322 = vmatpush1.msra.mxu0 %v3277
    %3323 = vmatprep.subr.mxu0 %v3281
    %3324 = vmatpush1.msra.mxu0 %v3280
    %3325 = vmatprep.subr.mxu0 %v3284
    %3326 = vmatpush1.msra.mxu0 %v3283
    %3327 = vmatprep.subr.mxu0 %v3287
    %3328 = vmatpush1.msra.mxu0 %v3286
    %3329 = vmatprep.subr.mxu0 %v3290
    %3330 = vmatpush1.msra.mxu0 %v3289
    %3331 = vmatprep.subr.mxu0 %v3293
    %3332 = vmatpush1.msra.mxu0 %v3292
    %3333 = vmatprep.subr.mxu0 %v3296
    %3334 = vmatpush1.msra.mxu0 %v3295
    %3335 = vmatprep.subr.mxu0 %v3299
    %3336 = vmatpush1.msra.mxu0 %v3298
    %3337 = vmatprep.subr.mxu0 %v3302
    %3338 = vmatpush1.msra.mxu0 %v3301
    %3339 = vmatprep.subr.mxu0 %v3305
    %3340 = vmatpush1.msra.mxu0 %v3304
    %3341 = vmatprep.subr.mxu0 %v3308
    %3342 = vmatpush1.msra.mxu0 %v3307
    %3343 = vmatprep.subr.mxu0 %v3311
    %3344 = vmatpush1.msra.mxu0 %v3310
    %3345 = vmatprep.subr.mxu0 0.0
    %3346 = vmatpush1.msra.mxu0 0.0
    %3347 = vmatprep.subr.mxu0 0.0
    %3348 = vmatpush1.msra.mxu0 0.0
    %3349 = vmatprep.subr.mxu0 0.0
    %3350 = vmatpush1.msra.mxu0 0.0
    %3351 = vmatprep.subr.mxu0 0.0
    %3352 = vmatpush1.msra.mxu0 0.0
    %3353 = vmatprep.subr.mxu0 0.0
    %3354 = vmatpush1.msra.mxu0 0.0
    %3355 = vmatprep.subr.mxu0 0.0
    %3356 = vmatpush1.msra.mxu0 0.0
    %3357 = vmatprep.subr.mxu0 0.0
    %3358 = vmatpush1.msra.mxu0 0.0
    %3359 = vmatprep.subr.mxu0 0.0
    %3360 = vmatpush1.msra.mxu0 0.0
    %3361 = vmatprep.subr.mxu0 0.0
    %3362 = vmatpush1.msra.mxu0 0.0
    %3363 = vmatprep.subr.mxu0 0.0
    %3364 = vmatpush1.msra.mxu0 0.0
    %3365 = vmatprep.subr.mxu0 0.0
    %3366 = vmatpush1.msra.mxu0 0.0
    %3367 = vmatprep.subr.mxu0 0.0
    %3368 = vmatpush1.msra.mxu0 0.0
    %3369 = vmatprep.subr.mxu0 0.0
    %3370 = vmatpush1.msra.mxu0 0.0
    %3371 = vmatprep.subr.mxu0 0.0
    %3372 = vmatpush1.msra.mxu0 0.0
    %3373 = vmatprep.subr.mxu0 0.0
    %3374 = vmatpush1.msra.mxu0 0.0
    %3375 = vmatprep.subr.mxu0 0.0
    %3376 = vmatpush1.msra.mxu0 0.0
    %3377 = vmatprep.mubr.f32.mxu0 0.0
    %3378 = vmatmul.mubr.f32.gmra.mrb[0].mxu0 %v3260
    %v3379 = vpop.f32.mrb[0].mxu0
    %v3380 = vadd.f32 %v2659, %v3379
    %v3381 = vpop.f32.mrb[0].mxu0
    %v3382 = vadd.f32 %v2663, %v3381
    %3383 = vdwg.mxu0
    %3384 = vmatprep.subr.mxu0 0.0
    %3385 = vmatpush1.msra.mxu0 %v3267
    %3386 = vmatprep.subr.mxu0 0.0
    %3387 = vmatpush1.msra.mxu0 %v3270
    %3388 = vmatprep.subr.mxu0 0.0
    %3389 = vmatpush1.msra.mxu0 %v3273
    %3390 = vmatprep.subr.mxu0 0.0
    %3391 = vmatpush1.msra.mxu0 %v3276
    %3392 = vmatprep.subr.mxu0 0.0
    %3393 = vmatpush1.msra.mxu0 %v3279
    %3394 = vmatprep.subr.mxu0 0.0
    %3395 = vmatpush1.msra.mxu0 %v3282
    %3396 = vmatprep.subr.mxu0 0.0
    %3397 = vmatpush1.msra.mxu0 %v3285
    %3398 = vmatprep.subr.mxu0 0.0
    %3399 = vmatpush1.msra.mxu0 %v3288
    %3400 = vmatprep.subr.mxu0 0.0
    %3401 = vmatpush1.msra.mxu0 %v3291
    %3402 = vmatprep.subr.mxu0 0.0
    %3403 = vmatpush1.msra.mxu0 %v3294
    %3404 = vmatprep.subr.mxu0 0.0
    %3405 = vmatpush1.msra.mxu0 %v3297
    %3406 = vmatprep.subr.mxu0 0.0
    %3407 = vmatpush1.msra.mxu0 %v3300
    %3408 = vmatprep.subr.mxu0 0.0
    %3409 = vmatpush1.msra.mxu0 %v3303
    %3410 = vmatprep.subr.mxu0 0.0
    %3411 = vmatpush1.msra.mxu0 %v3306
    %3412 = vmatprep.subr.mxu0 0.0
    %3413 = vmatpush1.msra.mxu0 %v3309
    %3414 = vmatprep.subr.mxu0 0.0
    %3415 = vmatpush1.msra.mxu0 %v3312
    %3416 = vmatprep.subr.mxu0 0.0
    %3417 = vmatpush1.msra.mxu0 0.0
    %3418 = vmatprep.subr.mxu0 0.0
    %3419 = vmatpush1.msra.mxu0 0.0
    %3420 = vmatprep.subr.mxu0 0.0
    %3421 = vmatpush1.msra.mxu0 0.0
    %3422 = vmatprep.subr.mxu0 0.0
    %3423 = vmatpush1.msra.mxu0 0.0
    %3424 = vmatprep.subr.mxu0 0.0
    %3425 = vmatpush1.msra.mxu0 0.0
    %3426 = vmatprep.subr.mxu0 0.0
    %3427 = vmatpush1.msra.mxu0 0.0
    %3428 = vmatprep.subr.mxu0 0.0
    %3429 = vmatpush1.msra.mxu0 0.0
    %3430 = vmatprep.subr.mxu0 0.0
    %3431 = vmatpush1.msra.mxu0 0.0
    %3432 = vmatprep.subr.mxu0 0.0
    %3433 = vmatpush1.msra.mxu0 0.0
    %3434 = vmatprep.subr.mxu0 0.0
    %3435 = vmatpush1.msra.mxu0 0.0
    %3436 = vmatprep.subr.mxu0 0.0
    %3437 = vmatpush1.msra.mxu0 0.0
    %3438 = vmatprep.subr.mxu0 0.0
    %3439 = vmatpush1.msra.mxu0 0.0
    %3440 = vmatprep.subr.mxu0 0.0
    %3441 = vmatpush1.msra.mxu0 0.0
    %3442 = vmatprep.subr.mxu0 0.0
    %3443 = vmatpush1.msra.mxu0 0.0
    %3444 = vmatprep.subr.mxu0 0.0
    %3445 = vmatpush1.msra.mxu0 0.0
    %3446 = vmatprep.subr.mxu0 0.0
    %3447 = vmatpush1.msra.mxu0 0.0
    %3448 = vmatprep.mubr.f32.mxu0 0.0
    %3449 = vmatmul.mubr.f32.gmra.mrb[0].mxu0 %v3260
    %v3450 = vpop.f32.mrb[0].mxu0
    %v3451 = vadd.f32 %v2667, %v3450
    %v3452 = vpop.f32.mrb[0].mxu0
    %3453 = vdwg.mxu0
    %v3454 = vadd.f32 %v3262, %v3380
    %v3455 = vxor.u32 %v3454, 2147483648
    %v3456 = vmul.f32 %v3455, 1.442695
    %v3457 = vpow.pop %v3456
    %v3458 = vadd.f32 %v3457, 1.0
    %v3459 = vrcp.pop %v3458
    %v3460 = vmul.f32 1.0, %v3459
    %v3461 = vadd.f32 %v3263, %v3382
    %v3462 = vxor.u32 %v3461, 2147483648
    %v3463 = vmul.f32 %v3462, 1.442695
    %v3464 = vpow.pop %v3463
    %v3465 = vadd.f32 %v3464, 1.0
    %v3466 = vrcp.pop %v3465
    %v3467 = vmul.f32 1.0, %v3466
    %v3468 = vmul.f32 %v3460, %v3451
    %v3469 = vadd.f32 %v3264, %v3468
    %v3470 = vtanh.pop %v3469
    %v3471 = vsub.f32 1.0, %v3467
    %v3472 = vmul.f32 %v3471, %v3470
    %v3473 = vmul.f32 %v3467, %v3260
    %v3474 = vadd.f32 %v3472, %v3473
    %3475 = vst [vmem:[#allocation5 + $0x18] sm:$0xff] %v3474
    %v3476 = vld [vmem:[#allocation4 + $0x60] sm:$0xff]
    %v3477 = vld [vmem:[#allocation4 + $0x68] sm:$0xff]
    %v3478 = vld [vmem:[#allocation4 + $0x70] sm:$0xff]
    %v3479 = vld [vmem:[#allocation13] sm:$0xff]
    %v3480 = vld [vmem:[#allocation13 + $0x8] sm:$0xff]
    %v3481 = vld [vmem:[#allocation13 + $0x10] sm:$0xff]
    %v3482 = vld [vmem:[#allocation13 + $0x18] sm:$0xff]
    %v3483 = vld [vmem:[#allocation13 + $0x20] sm:$0xff]
    %v3484 = vld [vmem:[#allocation13 + $0x28] sm:$0xff]
    %v3485 = vld [vmem:[#allocation13 + $0x30] sm:$0xff]
    %v3486 = vld [vmem:[#allocation13 + $0x38] sm:$0xff]
    %v3487 = vld [vmem:[#allocation13 + $0x40] sm:$0xff]
    %v3488 = vld [vmem:[#allocation13 + $0x48] sm:$0xff]
    %v3489 = vld [vmem:[#allocation13 + $0x50] sm:$0xff]
    %v3490 = vld [vmem:[#allocation13 + $0x58] sm:$0xff]
    %v3491 = vld [vmem:[#allocation13 + $0x60] sm:$0xff]
    %v3492 = vld [vmem:[#allocation13 + $0x68] sm:$0xff]
    %v3493 = vld [vmem:[#allocation13 + $0x70] sm:$0xff]
    %v3494 = vld [vmem:[#allocation13 + $0x78] sm:$0xff]
    %v3495 = vld [vmem:[#allocation13 + $0x80] sm:$0xff]
    %v3496 = vld [vmem:[#allocation13 + $0x88] sm:$0xff]
    %v3497 = vld [vmem:[#allocation13 + $0x90] sm:$0xff]
    %v3498 = vld [vmem:[#allocation13 + $0x98] sm:$0xff]
    %v3499 = vld [vmem:[#allocation13 + $0xa0] sm:$0xff]
    %v3500 = vld [vmem:[#allocation13 + $0xa8] sm:$0xff]
    %v3501 = vld [vmem:[#allocation13 + $0xb0] sm:$0xff]
    %v3502 = vld [vmem:[#allocation13 + $0xb8] sm:$0xff]
    %v3503 = vld [vmem:[#allocation13 + $0xc0] sm:$0xff]
    %v3504 = vld [vmem:[#allocation13 + $0xc8] sm:$0xff]
    %v3505 = vld [vmem:[#allocation13 + $0xd0] sm:$0xff]
    %v3506 = vld [vmem:[#allocation13 + $0xd8] sm:$0xff]
    %v3507 = vld [vmem:[#allocation13 + $0xe0] sm:$0xff]
    %v3508 = vld [vmem:[#allocation13 + $0xe8] sm:$0xff]
    %v3509 = vld [vmem:[#allocation13 + $0xf0] sm:$0xff]
    %v3510 = vld [vmem:[#allocation13 + $0xf8] sm:$0xff]
    %v3511 = vld [vmem:[#allocation13 + $0x100] sm:$0xff]
    %v3512 = vld [vmem:[#allocation13 + $0x108] sm:$0xff]
    %v3513 = vld [vmem:[#allocation13 + $0x110] sm:$0xff]
    %v3514 = vld [vmem:[#allocation13 + $0x118] sm:$0xff]
    %v3515 = vld [vmem:[#allocation13 + $0x120] sm:$0xff]
    %v3516 = vld [vmem:[#allocation13 + $0x128] sm:$0xff]
    %v3517 = vld [vmem:[#allocation13 + $0x130] sm:$0xff]
    %v3518 = vld [vmem:[#allocation13 + $0x138] sm:$0xff]
    %v3519 = vld [vmem:[#allocation13 + $0x140] sm:$0xff]
    %v3520 = vld [vmem:[#allocation13 + $0x148] sm:$0xff]
    %v3521 = vld [vmem:[#allocation13 + $0x150] sm:$0xff]
    %v3522 = vld [vmem:[#allocation13 + $0x158] sm:$0xff]
    %v3523 = vld [vmem:[#allocation13 + $0x160] sm:$0xff]
    %v3524 = vld [vmem:[#allocation13 + $0x168] sm:$0xff]
    %v3525 = vld [vmem:[#allocation13 + $0x170] sm:$0xff]
    %v3526 = vld [vmem:[#allocation13 + $0x178] sm:$0xff]
    %3527 = vmatprep.subr.mxu0 %v3480
    %3528 = vmatpush1.msra.mxu0 %v3479
    %3529 = vmatprep.subr.mxu0 %v3483
    %3530 = vmatpush1.msra.mxu0 %v3482
    %3531 = vmatprep.subr.mxu0 %v3486
    %3532 = vmatpush1.msra.mxu0 %v3485
    %3533 = vmatprep.subr.mxu0 %v3489
    %3534 = vmatpush1.msra.mxu0 %v3488
    %3535 = vmatprep.subr.mxu0 %v3492
    %3536 = vmatpush1.msra.mxu0 %v3491
    %3537 = vmatprep.subr.mxu0 %v3495
    %3538 = vmatpush1.msra.mxu0 %v3494
    %3539 = vmatprep.subr.mxu0 %v3498
    %3540 = vmatpush1.msra.mxu0 %v3497
    %3541 = vmatprep.subr.mxu0 %v3501
    %3542 = vmatpush1.msra.mxu0 %v3500
    %3543 = vmatprep.subr.mxu0 %v3504
    %3544 = vmatpush1.msra.mxu0 %v3503
    %3545 = vmatprep.subr.mxu0 %v3507
    %3546 = vmatpush1.msra.mxu0 %v3506
    %3547 = vmatprep.subr.mxu0 %v3510
    %3548 = vmatpush1.msra.mxu0 %v3509
    %3549 = vmatprep.subr.mxu0 %v3513
    %3550 = vmatpush1.msra.mxu0 %v3512
    %3551 = vmatprep.subr.mxu0 %v3516
    %3552 = vmatpush1.msra.mxu0 %v3515
    %3553 = vmatprep.subr.mxu0 %v3519
    %3554 = vmatpush1.msra.mxu0 %v3518
    %3555 = vmatprep.subr.mxu0 %v3522
    %3556 = vmatpush1.msra.mxu0 %v3521
    %3557 = vmatprep.subr.mxu0 %v3525
    %3558 = vmatpush1.msra.mxu0 %v3524
    %3559 = vmatprep.subr.mxu0 0.0
    %3560 = vmatpush1.msra.mxu0 0.0
    %3561 = vmatprep.subr.mxu0 0.0
    %3562 = vmatpush1.msra.mxu0 0.0
    %3563 = vmatprep.subr.mxu0 0.0
    %3564 = vmatpush1.msra.mxu0 0.0
    %3565 = vmatprep.subr.mxu0 0.0
    %3566 = vmatpush1.msra.mxu0 0.0
    %3567 = vmatprep.subr.mxu0 0.0
    %3568 = vmatpush1.msra.mxu0 0.0
    %3569 = vmatprep.subr.mxu0 0.0
    %3570 = vmatpush1.msra.mxu0 0.0
    %3571 = vmatprep.subr.mxu0 0.0
    %3572 = vmatpush1.msra.mxu0 0.0
    %3573 = vmatprep.subr.mxu0 0.0
    %3574 = vmatpush1.msra.mxu0 0.0
    %3575 = vmatprep.subr.mxu0 0.0
    %3576 = vmatpush1.msra.mxu0 0.0
    %3577 = vmatprep.subr.mxu0 0.0
    %3578 = vmatpush1.msra.mxu0 0.0
    %3579 = vmatprep.subr.mxu0 0.0
    %3580 = vmatpush1.msra.mxu0 0.0
    %3581 = vmatprep.subr.mxu0 0.0
    %3582 = vmatpush1.msra.mxu0 0.0
    %3583 = vmatprep.subr.mxu0 0.0
    %3584 = vmatpush1.msra.mxu0 0.0
    %3585 = vmatprep.subr.mxu0 0.0
    %3586 = vmatpush1.msra.mxu0 0.0
    %3587 = vmatprep.subr.mxu0 0.0
    %3588 = vmatpush1.msra.mxu0 0.0
    %3589 = vmatprep.subr.mxu0 0.0
    %3590 = vmatpush1.msra.mxu0 0.0
    %3591 = vmatprep.mubr.f32.mxu0 0.0
    %3592 = vmatmul.mubr.f32.gmra.mrb[0].mxu0 %v3474
    %v3593 = vpop.f32.mrb[0].mxu0
    %v3594 = vadd.f32 %v2659, %v3593
    %v3595 = vpop.f32.mrb[0].mxu0
    %v3596 = vadd.f32 %v2663, %v3595
    %3597 = vdwg.mxu0
    %3598 = vmatprep.subr.mxu0 0.0
    %3599 = vmatpush1.msra.mxu0 %v3481
    %3600 = vmatprep.subr.mxu0 0.0
    %3601 = vmatpush1.msra.mxu0 %v3484
    %3602 = vmatprep.subr.mxu0 0.0
    %3603 = vmatpush1.msra.mxu0 %v3487
    %3604 = vmatprep.subr.mxu0 0.0
    %3605 = vmatpush1.msra.mxu0 %v3490
    %3606 = vmatprep.subr.mxu0 0.0
    %3607 = vmatpush1.msra.mxu0 %v3493
    %3608 = vmatprep.subr.mxu0 0.0
    %3609 = vmatpush1.msra.mxu0 %v3496
    %3610 = vmatprep.subr.mxu0 0.0
    %3611 = vmatpush1.msra.mxu0 %v3499
    %3612 = vmatprep.subr.mxu0 0.0
    %3613 = vmatpush1.msra.mxu0 %v3502
    %3614 = vmatprep.subr.mxu0 0.0
    %3615 = vmatpush1.msra.mxu0 %v3505
    %3616 = vmatprep.subr.mxu0 0.0
    %3617 = vmatpush1.msra.mxu0 %v3508
    %3618 = vmatprep.subr.mxu0 0.0
    %3619 = vmatpush1.msra.mxu0 %v3511
    %3620 = vmatprep.subr.mxu0 0.0
    %3621 = vmatpush1.msra.mxu0 %v3514
    %3622 = vmatprep.subr.mxu0 0.0
    %3623 = vmatpush1.msra.mxu0 %v3517
    %3624 = vmatprep.subr.mxu0 0.0
    %3625 = vmatpush1.msra.mxu0 %v3520
    %3626 = vmatprep.subr.mxu0 0.0
    %3627 = vmatpush1.msra.mxu0 %v3523
    %3628 = vmatprep.subr.mxu0 0.0
    %3629 = vmatpush1.msra.mxu0 %v3526
    %3630 = vmatprep.subr.mxu0 0.0
    %3631 = vmatpush1.msra.mxu0 0.0
    %3632 = vmatprep.subr.mxu0 0.0
    %3633 = vmatpush1.msra.mxu0 0.0
    %3634 = vmatprep.subr.mxu0 0.0
    %3635 = vmatpush1.msra.mxu0 0.0
    %3636 = vmatprep.subr.mxu0 0.0
    %3637 = vmatpush1.msra.mxu0 0.0
    %3638 = vmatprep.subr.mxu0 0.0
    %3639 = vmatpush1.msra.mxu0 0.0
    %3640 = vmatprep.subr.mxu0 0.0
    %3641 = vmatpush1.msra.mxu0 0.0
    %3642 = vmatprep.subr.mxu0 0.0
    %3643 = vmatpush1.msra.mxu0 0.0
    %3644 = vmatprep.subr.mxu0 0.0
    %3645 = vmatpush1.msra.mxu0 0.0
    %3646 = vmatprep.subr.mxu0 0.0
    %3647 = vmatpush1.msra.mxu0 0.0
    %3648 = vmatprep.subr.mxu0 0.0
    %3649 = vmatpush1.msra.mxu0 0.0
    %3650 = vmatprep.subr.mxu0 0.0
    %3651 = vmatpush1.msra.mxu0 0.0
    %3652 = vmatprep.subr.mxu0 0.0
    %3653 = vmatpush1.msra.mxu0 0.0
    %3654 = vmatprep.subr.mxu0 0.0
    %3655 = vmatpush1.msra.mxu0 0.0
    %3656 = vmatprep.subr.mxu0 0.0
    %3657 = vmatpush1.msra.mxu0 0.0
    %3658 = vmatprep.subr.mxu0 0.0
    %3659 = vmatpush1.msra.mxu0 0.0
    %3660 = vmatprep.subr.mxu0 0.0
    %3661 = vmatpush1.msra.mxu0 0.0
    %3662 = vmatprep.mubr.f32.mxu0 0.0
    %3663 = vmatmul.mubr.f32.gmra.mrb[0].mxu0 %v3474
    %v3664 = vpop.f32.mrb[0].mxu0
    %v3665 = vadd.f32 %v2667, %v3664
    %v3666 = vpop.f32.mrb[0].mxu0
    %3667 = vdwg.mxu0
    %v3668 = vadd.f32 %v3476, %v3594
    %v3669 = vxor.u32 %v3668, 2147483648
    %v3670 = vmul.f32 %v3669, 1.442695
    %v3671 = vpow.pop %v3670
    %v3672 = vadd.f32 %v3671, 1.0
    %v3673 = vrcp.pop %v3672
    %v3674 = vmul.f32 1.0, %v3673
    %v3675 = vadd.f32 %v3477, %v3596
    %v3676 = vxor.u32 %v3675, 2147483648
    %v3677 = vmul.f32 %v3676, 1.442695
    %v3678 = vpow.pop %v3677
    %v3679 = vadd.f32 %v3678, 1.0
    %v3680 = vrcp.pop %v3679
    %v3681 = vmul.f32 1.0, %v3680
    %v3682 = vmul.f32 %v3674, %v3665
    %v3683 = vadd.f32 %v3478, %v3682
    %v3684 = vtanh.pop %v3683
    %v3685 = vsub.f32 1.0, %v3681
    %v3686 = vmul.f32 %v3685, %v3684
    %v3687 = vmul.f32 %v3681, %v3474
    %v3688 = vadd.f32 %v3686, %v3687
    %3689 = vst [vmem:[#allocation5 + $0x20] sm:$0xff] %v3688
    %v3690 = vld [vmem:[#allocation4 + $0x78] sm:$0xff]
    %v3691 = vld [vmem:[#allocation4 + $0x80] sm:$0xff]
    %v3692 = vld [vmem:[#allocation4 + $0x88] sm:$0xff]
    %v3693 = vld [vmem:[#allocation13] sm:$0xff]
    %v3694 = vld [vmem:[#allocation13 + $0x8] sm:$0xff]
    %v3695 = vld [vmem:[#allocation13 + $0x10] sm:$0xff]
    %v3696 = vld [vmem:[#allocation13 + $0x18] sm:$0xff]
    %v3697 = vld [vmem:[#allocation13 + $0x20] sm:$0xff]
    %v3698 = vld [vmem:[#allocation13 + $0x28] sm:$0xff]
    %v3699 = vld [vmem:[#allocation13 + $0x30] sm:$0xff]
    %v3700 = vld [vmem:[#allocation13 + $0x38] sm:$0xff]
    %v3701 = vld [vmem:[#allocation13 + $0x40] sm:$0xff]
    %v3702 = vld [vmem:[#allocation13 + $0x48] sm:$0xff]
    %v3703 = vld [vmem:[#allocation13 + $0x50] sm:$0xff]
    %v3704 = vld [vmem:[#allocation13 + $0x58] sm:$0xff]
    %v3705 = vld [vmem:[#allocation13 + $0x60] sm:$0xff]
    %v3706 = vld [vmem:[#allocation13 + $0x68] sm:$0xff]
    %v3707 = vld [vmem:[#allocation13 + $0x70] sm:$0xff]
    %v3708 = vld [vmem:[#allocation13 + $0x78] sm:$0xff]
    %v3709 = vld [vmem:[#allocation13 + $0x80] sm:$0xff]
    %v3710 = vld [vmem:[#allocation13 + $0x88] sm:$0xff]
    %v3711 = vld [vmem:[#allocation13 + $0x90] sm:$0xff]
    %v3712 = vld [vmem:[#allocation13 + $0x98] sm:$0xff]
    %v3713 = vld [vmem:[#allocation13 + $0xa0] sm:$0xff]
    %v3714 = vld [vmem:[#allocation13 + $0xa8] sm:$0xff]
    %v3715 = vld [vmem:[#allocation13 + $0xb0] sm:$0xff]
    %v3716 = vld [vmem:[#allocation13 + $0xb8] sm:$0xff]
    %v3717 = vld [vmem:[#allocation13 + $0xc0] sm:$0xff]
    %v3718 = vld [vmem:[#allocation13 + $0xc8] sm:$0xff]
    %v3719 = vld [vmem:[#allocation13 + $0xd0] sm:$0xff]
    %v3720 = vld [vmem:[#allocation13 + $0xd8] sm:$0xff]
    %v3721 = vld [vmem:[#allocation13 + $0xe0] sm:$0xff]
    %v3722 = vld [vmem:[#allocation13 + $0xe8] sm:$0xff]
    %v3723 = vld [vmem:[#allocation13 + $0xf0] sm:$0xff]
    %v3724 = vld [vmem:[#allocation13 + $0xf8] sm:$0xff]
    %v3725 = vld [vmem:[#allocation13 + $0x100] sm:$0xff]
    %v3726 = vld [vmem:[#allocation13 + $0x108] sm:$0xff]
    %v3727 = vld [vmem:[#allocation13 + $0x110] sm:$0xff]
    %v3728 = vld [vmem:[#allocation13 + $0x118] sm:$0xff]
    %v3729 = vld [vmem:[#allocation13 + $0x120] sm:$0xff]
    %v3730 = vld [vmem:[#allocation13 + $0x128] sm:$0xff]
    %v3731 = vld [vmem:[#allocation13 + $0x130] sm:$0xff]
    %v3732 = vld [vmem:[#allocation13 + $0x138] sm:$0xff]
    %v3733 = vld [vmem:[#allocation13 + $0x140] sm:$0xff]
    %v3734 = vld [vmem:[#allocation13 + $0x148] sm:$0xff]
    %v3735 = vld [vmem:[#allocation13 + $0x150] sm:$0xff]
    %v3736 = vld [vmem:[#allocation13 + $0x158] sm:$0xff]
    %v3737 = vld [vmem:[#allocation13 + $0x160] sm:$0xff]
    %v3738 = vld [vmem:[#allocation13 + $0x168] sm:$0xff]
    %v3739 = vld [vmem:[#allocation13 + $0x170] sm:$0xff]
    %v3740 = vld [vmem:[#allocation13 + $0x178] sm:$0xff]
    %3741 = vmatprep.subr.mxu0 %v3694
    %3742 = vmatpush1.msra.mxu0 %v3693
    %3743 = vmatprep.subr.mxu0 %v3697
    %3744 = vmatpush1.msra.mxu0 %v3696
    %3745 = vmatprep.subr.mxu0 %v3700
    %3746 = vmatpush1.msra.mxu0 %v3699
    %3747 = vmatprep.subr.mxu0 %v3703
    %3748 = vmatpush1.msra.mxu0 %v3702
    %3749 = vmatprep.subr.mxu0 %v3706
    %3750 = vmatpush1.msra.mxu0 %v3705
    %3751 = vmatprep.subr.mxu0 %v3709
    %3752 = vmatpush1.msra.mxu0 %v3708
    %3753 = vmatprep.subr.mxu0 %v3712
    %3754 = vmatpush1.msra.mxu0 %v3711
    %3755 = vmatprep.subr.mxu0 %v3715
    %3756 = vmatpush1.msra.mxu0 %v3714
    %3757 = vmatprep.subr.mxu0 %v3718
    %3758 = vmatpush1.msra.mxu0 %v3717
    %3759 = vmatprep.subr.mxu0 %v3721
    %3760 = vmatpush1.msra.mxu0 %v3720
    %3761 = vmatprep.subr.mxu0 %v3724
    %3762 = vmatpush1.msra.mxu0 %v3723
    %3763 = vmatprep.subr.mxu0 %v3727
    %3764 = vmatpush1.msra.mxu0 %v3726
    %3765 = vmatprep.subr.mxu0 %v3730
    %3766 = vmatpush1.msra.mxu0 %v3729
    %3767 = vmatprep.subr.mxu0 %v3733
    %3768 = vmatpush1.msra.mxu0 %v3732
    %3769 = vmatprep.subr.mxu0 %v3736
    %3770 = vmatpush1.msra.mxu0 %v3735
    %3771 = vmatprep.subr.mxu0 %v3739
    %3772 = vmatpush1.msra.mxu0 %v3738
    %3773 = vmatprep.subr.mxu0 0.0
    %3774 = vmatpush1.msra.mxu0 0.0
    %3775 = vmatprep.subr.mxu0 0.0
    %3776 = vmatpush1.msra.mxu0 0.0
    %3777 = vmatprep.subr.mxu0 0.0
    %3778 = vmatpush1.msra.mxu0 0.0
    %3779 = vmatprep.subr.mxu0 0.0
    %3780 = vmatpush1.msra.mxu0 0.0
    %3781 = vmatprep.subr.mxu0 0.0
    %3782 = vmatpush1.msra.mxu0 0.0
    %3783 = vmatprep.subr.mxu0 0.0
    %3784 = vmatpush1.msra.mxu0 0.0
    %3785 = vmatprep.subr.mxu0 0.0
    %3786 = vmatpush1.msra.mxu0 0.0
    %3787 = vmatprep.subr.mxu0 0.0
    %3788 = vmatpush1.msra.mxu0 0.0
    %3789 = vmatprep.subr.mxu0 0.0
    %3790 = vmatpush1.msra.mxu0 0.0
    %3791 = vmatprep.subr.mxu0 0.0
    %3792 = vmatpush1.msra.mxu0 0.0
    %3793 = vmatprep.subr.mxu0 0.0
    %3794 = vmatpush1.msra.mxu0 0.0
    %3795 = vmatprep.subr.mxu0 0.0
    %3796 = vmatpush1.msra.mxu0 0.0
    %3797 = vmatprep.subr.mxu0 0.0
    %3798 = vmatpush1.msra.mxu0 0.0
    %3799 = vmatprep.subr.mxu0 0.0
    %3800 = vmatpush1.msra.mxu0 0.0
    %3801 = vmatprep.subr.mxu0 0.0
    %3802 = vmatpush1.msra.mxu0 0.0
    %3803 = vmatprep.subr.mxu0 0.0
    %3804 = vmatpush1.msra.mxu0 0.0
    %3805 = vmatprep.mubr.f32.mxu0 0.0
    %3806 = vmatmul.mubr.f32.gmra.mrb[0].mxu0 %v3688
    %v3807 = vpop.f32.mrb[0].mxu0
    %v3808 = vadd.f32 %v2659, %v3807
    %v3809 = vpop.f32.mrb[0].mxu0
    %v3810 = vadd.f32 %v2663, %v3809
    %3811 = vdwg.mxu0
    %3812 = vmatprep.subr.mxu0 0.0
    %3813 = vmatpush1.msra.mxu0 %v3695
    %3814 = vmatprep.subr.mxu0 0.0
    %3815 = vmatpush1.msra.mxu0 %v3698
    %3816 = vmatprep.subr.mxu0 0.0
    %3817 = vmatpush1.msra.mxu0 %v3701
    %3818 = vmatprep.subr.mxu0 0.0
    %3819 = vmatpush1.msra.mxu0 %v3704
    %3820 = vmatprep.subr.mxu0 0.0
    %3821 = vmatpush1.msra.mxu0 %v3707
    %3822 = vmatprep.subr.mxu0 0.0
    %3823 = vmatpush1.msra.mxu0 %v3710
    %3824 = vmatprep.subr.mxu0 0.0
    %3825 = vmatpush1.msra.mxu0 %v3713
    %3826 = vmatprep.subr.mxu0 0.0
    %3827 = vmatpush1.msra.mxu0 %v3716
    %3828 = vmatprep.subr.mxu0 0.0
    %3829 = vmatpush1.msra.mxu0 %v3719
    %3830 = vmatprep.subr.mxu0 0.0
    %3831 = vmatpush1.msra.mxu0 %v3722
    %3832 = vmatprep.subr.mxu0 0.0
    %3833 = vmatpush1.msra.mxu0 %v3725
    %3834 = vmatprep.subr.mxu0 0.0
    %3835 = vmatpush1.msra.mxu0 %v3728
    %3836 = vmatprep.subr.mxu0 0.0
    %3837 = vmatpush1.msra.mxu0 %v3731
    %3838 = vmatprep.subr.mxu0 0.0
    %3839 = vmatpush1.msra.mxu0 %v3734
    %3840 = vmatprep.subr.mxu0 0.0
    %3841 = vmatpush1.msra.mxu0 %v3737
    %3842 = vmatprep.subr.mxu0 0.0
    %3843 = vmatpush1.msra.mxu0 %v3740
    %3844 = vmatprep.subr.mxu0 0.0
    %3845 = vmatpush1.msra.mxu0 0.0
    %3846 = vmatprep.subr.mxu0 0.0
    %3847 = vmatpush1.msra.mxu0 0.0
    %3848 = vmatprep.subr.mxu0 0.0
    %3849 = vmatpush1.msra.mxu0 0.0
    %3850 = vmatprep.subr.mxu0 0.0
    %3851 = vmatpush1.msra.mxu0 0.0
    %3852 = vmatprep.subr.mxu0 0.0
    %3853 = vmatpush1.msra.mxu0 0.0
    %3854 = vmatprep.subr.mxu0 0.0
    %3855 = vmatpush1.msra.mxu0 0.0
    %3856 = vmatprep.subr.mxu0 0.0
    %3857 = vmatpush1.msra.mxu0 0.0
    %3858 = vmatprep.subr.mxu0 0.0
    %3859 = vmatpush1.msra.mxu0 0.0
    %3860 = vmatprep.subr.mxu0 0.0
    %3861 = vmatpush1.msra.mxu0 0.0
    %3862 = vmatprep.subr.mxu0 0.0
    %3863 = vmatpush1.msra.mxu0 0.0
    %3864 = vmatprep.subr.mxu0 0.0
    %3865 = vmatpush1.msra.mxu0 0.0
    %3866 = vmatprep.subr.mxu0 0.0
    %3867 = vmatpush1.msra.mxu0 0.0
    %3868 = vmatprep.subr.mxu0 0.0
    %3869 = vmatpush1.msra.mxu0 0.0
    %3870 = vmatprep.subr.mxu0 0.0
    %3871 = vmatpush1.msra.mxu0 0.0
    %3872 = vmatprep.subr.mxu0 0.0
    %3873 = vmatpush1.msra.mxu0 0.0
    %3874 = vmatprep.subr.mxu0 0.0
    %3875 = vmatpush1.msra.mxu0 0.0
    %3876 = vmatprep.mubr.f32.mxu0 0.0
    %3877 = vmatmul.mubr.f32.gmra.mrb[0].mxu0 %v3688
    %v3878 = vpop.f32.mrb[0].mxu0
    %v3879 = vadd.f32 %v2667, %v3878
    %v3880 = vpop.f32.mrb[0].mxu0
    %3881 = vdwg.mxu0
    %v3882 = vadd.f32 %v3690, %v3808
    %v3883 = vxor.u32 %v3882, 2147483648
    %v3884 = vmul.f32 %v3883, 1.442695
    %v3885 = vpow.pop %v3884
    %v3886 = vadd.f32 %v3885, 1.0
    %v3887 = vrcp.pop %v3886
    %v3888 = vmul.f32 1.0, %v3887
    %v3889 = vadd.f32 %v3691, %v3810
    %v3890 = vxor.u32 %v3889, 2147483648
    %v3891 = vmul.f32 %v3890, 1.442695
    %v3892 = vpow.pop %v3891
    %v3893 = vadd.f32 %v3892, 1.0
    %v3894 = vrcp.pop %v3893
    %v3895 = vmul.f32 1.0, %v3894
    %v3896 = vmul.f32 %v3888, %v3879
    %v3897 = vadd.f32 %v3692, %v3896
    %v3898 = vtanh.pop %v3897
    %v3899 = vsub.f32 1.0, %v3895
    %v3900 = vmul.f32 %v3899, %v3898
    %v3901 = vmul.f32 %v3895, %v3688
    %v3902 = vadd.f32 %v3900, %v3901
    %3903 = vst [vmem:[#allocation5 + $0x28] sm:$0xff] %v3902
    %v3904 = vld [vmem:[#allocation4 + $0x90] sm:$0xff]
    %v3905 = vld [vmem:[#allocation4 + $0x98] sm:$0xff]
    %v3906 = vld [vmem:[#allocation4 + $0xa0] sm:$0xff]
    %v3907 = vld [vmem:[#allocation13] sm:$0xff]
    %v3908 = vld [vmem:[#allocation13 + $0x8] sm:$0xff]
    %v3909 = vld [vmem:[#allocation13 + $0x10] sm:$0xff]
    %v3910 = vld [vmem:[#allocation13 + $0x18] sm:$0xff]
    %v3911 = vld [vmem:[#allocation13 + $0x20] sm:$0xff]
    %v3912 = vld [vmem:[#allocation13 + $0x28] sm:$0xff]
    %v3913 = vld [vmem:[#allocation13 + $0x30] sm:$0xff]
    %v3914 = vld [vmem:[#allocation13 + $0x38] sm:$0xff]
    %v3915 = vld [vmem:[#allocation13 + $0x40] sm:$0xff]
    %v3916 = vld [vmem:[#allocation13 + $0x48] sm:$0xff]
    %v3917 = vld [vmem:[#allocation13 + $0x50] sm:$0xff]
    %v3918 = vld [vmem:[#allocation13 + $0x58] sm:$0xff]
    %v3919 = vld [vmem:[#allocation13 + $0x60] sm:$0xff]
    %v3920 = vld [vmem:[#allocation13 + $0x68] sm:$0xff]
    %v3921 = vld [vmem:[#allocation13 + $0x70] sm:$0xff]
    %v3922 = vld [vmem:[#allocation13 + $0x78] sm:$0xff]
    %v3923 = vld [vmem:[#allocation13 + $0x80] sm:$0xff]
    %v3924 = vld [vmem:[#allocation13 + $0x88] sm:$0xff]
    %v3925 = vld [vmem:[#allocation13 + $0x90] sm:$0xff]
    %v3926 = vld [vmem:[#allocation13 + $0x98] sm:$0xff]
    %v3927 = vld [vmem:[#allocation13 + $0xa0] sm:$0xff]
    %v3928 = vld [vmem:[#allocation13 + $0xa8] sm:$0xff]
    %v3929 = vld [vmem:[#allocation13 + $0xb0] sm:$0xff]
    %v3930 = vld [vmem:[#allocation13 + $0xb8] sm:$0xff]
    %v3931 = vld [vmem:[#allocation13 + $0xc0] sm:$0xff]
    %v3932 = vld [vmem:[#allocation13 + $0xc8] sm:$0xff]
    %v3933 = vld [vmem:[#allocation13 + $0xd0] sm:$0xff]
    %v3934 = vld [vmem:[#allocation13 + $0xd8] sm:$0xff]
    %v3935 = vld [vmem:[#allocation13 + $0xe0] sm:$0xff]
    %v3936 = vld [vmem:[#allocation13 + $0xe8] sm:$0xff]
    %v3937 = vld [vmem:[#allocation13 + $0xf0] sm:$0xff]
    %v3938 = vld [vmem:[#allocation13 + $0xf8] sm:$0xff]
    %v3939 = vld [vmem:[#allocation13 + $0x100] sm:$0xff]
    %v3940 = vld [vmem:[#allocation13 + $0x108] sm:$0xff]
    %v3941 = vld [vmem:[#allocation13 + $0x110] sm:$0xff]
    %v3942 = vld [vmem:[#allocation13 + $0x118] sm:$0xff]
    %v3943 = vld [vmem:[#allocation13 + $0x120] sm:$0xff]
    %v3944 = vld [vmem:[#allocation13 + $0x128] sm:$0xff]
    %v3945 = vld [vmem:[#allocation13 + $0x130] sm:$0xff]
    %v3946 = vld [vmem:[#allocation13 + $0x138] sm:$0xff]
    %v3947 = vld [vmem:[#allocation13 + $0x140] sm:$0xff]
    %v3948 = vld [vmem:[#allocation13 + $0x148] sm:$0xff]
    %v3949 = vld [vmem:[#allocation13 + $0x150] sm:$0xff]
    %v3950 = vld [vmem:[#allocation13 + $0x158] sm:$0xff]
    %v3951 = vld [vmem:[#allocation13 + $0x160] sm:$0xff]
    %v3952 = vld [vmem:[#allocation13 + $0x168] sm:$0xff]
    %v3953 = vld [vmem:[#allocation13 + $0x170] sm:$0xff]
    %v3954 = vld [vmem:[#allocation13 + $0x178] sm:$0xff]
    %3955 = vmatprep.subr.mxu0 %v3908
    %3956 = vmatpush1.msra.mxu0 %v3907
    %3957 = vmatprep.subr.mxu0 %v3911
    %3958 = vmatpush1.msra.mxu0 %v3910
    %3959 = vmatprep.subr.mxu0 %v3914
    %3960 = vmatpush1.msra.mxu0 %v3913
    %3961 = vmatprep.subr.mxu0 %v3917
    %3962 = vmatpush1.msra.mxu0 %v3916
    %3963 = vmatprep.subr.mxu0 %v3920
    %3964 = vmatpush1.msra.mxu0 %v3919
    %3965 = vmatprep.subr.mxu0 %v3923
    %3966 = vmatpush1.msra.mxu0 %v3922
    %3967 = vmatprep.subr.mxu0 %v3926
    %3968 = vmatpush1.msra.mxu0 %v3925
    %3969 = vmatprep.subr.mxu0 %v3929
    %3970 = vmatpush1.msra.mxu0 %v3928
    %3971 = vmatprep.subr.mxu0 %v3932
    %3972 = vmatpush1.msra.mxu0 %v3931
    %3973 = vmatprep.subr.mxu0 %v3935
    %3974 = vmatpush1.msra.mxu0 %v3934
    %3975 = vmatprep.subr.mxu0 %v3938
    %3976 = vmatpush1.msra.mxu0 %v3937
    %3977 = vmatprep.subr.mxu0 %v3941
    %3978 = vmatpush1.msra.mxu0 %v3940
    %3979 = vmatprep.subr.mxu0 %v3944
    %3980 = vmatpush1.msra.mxu0 %v3943
    %3981 = vmatprep.subr.mxu0 %v3947
    %3982 = vmatpush1.msra.mxu0 %v3946
    %3983 = vmatprep.subr.mxu0 %v3950
    %3984 = vmatpush1.msra.mxu0 %v3949
    %3985 = vmatprep.subr.mxu0 %v3953
    %3986 = vmatpush1.msra.mxu0 %v3952
    %3987 = vmatprep.subr.mxu0 0.0
    %3988 = vmatpush1.msra.mxu0 0.0
    %3989 = vmatprep.subr.mxu0 0.0
    %3990 = vmatpush1.msra.mxu0 0.0
    %3991 = vmatprep.subr.mxu0 0.0
    %3992 = vmatpush1.msra.mxu0 0.0
    %3993 = vmatprep.subr.mxu0 0.0
    %3994 = vmatpush1.msra.mxu0 0.0
    %3995 = vmatprep.subr.mxu0 0.0
    %3996 = vmatpush1.msra.mxu0 0.0
    %3997 = vmatprep.subr.mxu0 0.0
    %3998 = vmatpush1.msra.mxu0 0.0
    %3999 = vmatprep.subr.mxu0 0.0
    %4000 = vmatpush1.msra.mxu0 0.0
    %4001 = vmatprep.subr.mxu0 0.0
    %4002 = vmatpush1.msra.mxu0 0.0
    %4003 = vmatprep.subr.mxu0 0.0
    %4004 = vmatpush1.msra.mxu0 0.0
    %4005 = vmatprep.subr.mxu0 0.0
    %4006 = vmatpush1.msra.mxu0 0.0
    %4007 = vmatprep.subr.mxu0 0.0
    %4008 = vmatpush1.msra.mxu0 0.0
    %4009 = vmatprep.subr.mxu0 0.0
    %4010 = vmatpush1.msra.mxu0 0.0
    %4011 = vmatprep.subr.mxu0 0.0
    %4012 = vmatpush1.msra.mxu0 0.0
    %4013 = vmatprep.subr.mxu0 0.0
    %4014 = vmatpush1.msra.mxu0 0.0
    %4015 = vmatprep.subr.mxu0 0.0
    %4016 = vmatpush1.msra.mxu0 0.0
    %4017 = vmatprep.subr.mxu0 0.0
    %4018 = vmatpush1.msra.mxu0 0.0
    %4019 = vmatprep.mubr.f32.mxu0 0.0
    %4020 = vmatmul.mubr.f32.gmra.mrb[0].mxu0 %v3902
    %v4021 = vpop.f32.mrb[0].mxu0
    %v4022 = vadd.f32 %v2659, %v4021
    %v4023 = vpop.f32.mrb[0].mxu0
    %v4024 = vadd.f32 %v2663, %v4023
    %4025 = vdwg.mxu0
    %4026 = vmatprep.subr.mxu0 0.0
    %4027 = vmatpush1.msra.mxu0 %v3909
    %4028 = vmatprep.subr.mxu0 0.0
    %4029 = vmatpush1.msra.mxu0 %v3912
    %4030 = vmatprep.subr.mxu0 0.0
    %4031 = vmatpush1.msra.mxu0 %v3915
    %4032 = vmatprep.subr.mxu0 0.0
    %4033 = vmatpush1.msra.mxu0 %v3918
    %4034 = vmatprep.subr.mxu0 0.0
    %4035 = vmatpush1.msra.mxu0 %v3921
    %4036 = vmatprep.subr.mxu0 0.0
    %4037 = vmatpush1.msra.mxu0 %v3924
    %4038 = vmatprep.subr.mxu0 0.0
    %4039 = vmatpush1.msra.mxu0 %v3927
    %4040 = vmatprep.subr.mxu0 0.0
    %4041 = vmatpush1.msra.mxu0 %v3930
    %4042 = vmatprep.subr.mxu0 0.0
    %4043 = vmatpush1.msra.mxu0 %v3933
    %4044 = vmatprep.subr.mxu0 0.0
    %4045 = vmatpush1.msra.mxu0 %v3936
    %4046 = vmatprep.subr.mxu0 0.0
    %4047 = vmatpush1.msra.mxu0 %v3939
    %4048 = vmatprep.subr.mxu0 0.0
    %4049 = vmatpush1.msra.mxu0 %v3942
    %4050 = vmatprep.subr.mxu0 0.0
    %4051 = vmatpush1.msra.mxu0 %v3945
    %4052 = vmatprep.subr.mxu0 0.0
    %4053 = vmatpush1.msra.mxu0 %v3948
    %4054 = vmatprep.subr.mxu0 0.0
    %4055 = vmatpush1.msra.mxu0 %v3951
    %4056 = vmatprep.subr.mxu0 0.0
    %4057 = vmatpush1.msra.mxu0 %v3954
    %4058 = vmatprep.subr.mxu0 0.0
    %4059 = vmatpush1.msra.mxu0 0.0
    %4060 = vmatprep.subr.mxu0 0.0
    %4061 = vmatpush1.msra.mxu0 0.0
    %4062 = vmatprep.subr.mxu0 0.0
    %4063 = vmatpush1.msra.mxu0 0.0
    %4064 = vmatprep.subr.mxu0 0.0
    %4065 = vmatpush1.msra.mxu0 0.0
    %4066 = vmatprep.subr.mxu0 0.0
    %4067 = vmatpush1.msra.mxu0 0.0
    %4068 = vmatprep.subr.mxu0 0.0
    %4069 = vmatpush1.msra.mxu0 0.0
    %4070 = vmatprep.subr.mxu0 0.0
    %4071 = vmatpush1.msra.mxu0 0.0
    %4072 = vmatprep.subr.mxu0 0.0
    %4073 = vmatpush1.msra.mxu0 0.0
    %4074 = vmatprep.subr.mxu0 0.0
    %4075 = vmatpush1.msra.mxu0 0.0
    %4076 = vmatprep.subr.mxu0 0.0
    %4077 = vmatpush1.msra.mxu0 0.0
    %4078 = vmatprep.subr.mxu0 0.0
    %4079 = vmatpush1.msra.mxu0 0.0
    %4080 = vmatprep.subr.mxu0 0.0
    %4081 = vmatpush1.msra.mxu0 0.0
    %4082 = vmatprep.subr.mxu0 0.0
    %4083 = vmatpush1.msra.mxu0 0.0
    %4084 = vmatprep.subr.mxu0 0.0
    %4085 = vmatpush1.msra.mxu0 0.0
    %4086 = vmatprep.subr.mxu0 0.0
    %4087 = vmatpush1.msra.mxu0 0.0
    %4088 = vmatprep.subr.mxu0 0.0
    %4089 = vmatpush1.msra.mxu0 0.0
    %4090 = vmatprep.mubr.f32.mxu0 0.0
    %4091 = vmatmul.mubr.f32.gmra.mrb[0].mxu0 %v3902
    %v4092 = vpop.f32.mrb[0].mxu0
    %v4093 = vadd.f32 %v2667, %v4092
    %v4094 = vpop.f32.mrb[0].mxu0
    %4095 = vdwg.mxu0
    %v4096 = vadd.f32 %v3904, %v4022
    %v4097 = vxor.u32 %v4096, 2147483648
    %v4098 = vmul.f32 %v4097, 1.442695
    %v4099 = vpow.pop %v4098
    %v4100 = vadd.f32 %v4099, 1.0
    %v4101 = vrcp.pop %v4100
    %v4102 = vmul.f32 1.0, %v4101
    %v4103 = vadd.f32 %v3905, %v4024
    %v4104 = vxor.u32 %v4103, 2147483648
    %v4105 = vmul.f32 %v4104, 1.442695
    %v4106 = vpow.pop %v4105
    %v4107 = vadd.f32 %v4106, 1.0
    %v4108 = vrcp.pop %v4107
    %v4109 = vmul.f32 1.0, %v4108
    %v4110 = vmul.f32 %v4102, %v4093
    %v4111 = vadd.f32 %v3906, %v4110
    %v4112 = vtanh.pop %v4111
    %v4113 = vsub.f32 1.0, %v4109
    %v4114 = vmul.f32 %v4113, %v4112
    %v4115 = vmul.f32 %v4109, %v3902
    %v4116 = vadd.f32 %v4114, %v4115
    %4117 = vst [vmem:[#allocation5 + $0x30] sm:$0xff] %v4116
    %v4118 = vld [vmem:[#allocation4 + $0xa8] sm:$0xff]
    %v4119 = vld [vmem:[#allocation4 + $0xb0] sm:$0xff]
    %v4120 = vld [vmem:[#allocation4 + $0xb8] sm:$0xff]
    %v4121 = vld [vmem:[#allocation13] sm:$0xff]
    %v4122 = vld [vmem:[#allocation13 + $0x8] sm:$0xff]
    %v4123 = vld [vmem:[#allocation13 + $0x10] sm:$0xff]
    %v4124 = vld [vmem:[#allocation13 + $0x18] sm:$0xff]
    %v4125 = vld [vmem:[#allocation13 + $0x20] sm:$0xff]
    %v4126 = vld [vmem:[#allocation13 + $0x28] sm:$0xff]
    %v4127 = vld [vmem:[#allocation13 + $0x30] sm:$0xff]
    %v4128 = vld [vmem:[#allocation13 + $0x38] sm:$0xff]
    %v4129 = vld [vmem:[#allocation13 + $0x40] sm:$0xff]
    %v4130 = vld [vmem:[#allocation13 + $0x48] sm:$0xff]
    %v4131 = vld [vmem:[#allocation13 + $0x50] sm:$0xff]
    %v4132 = vld [vmem:[#allocation13 + $0x58] sm:$0xff]
    %v4133 = vld [vmem:[#allocation13 + $0x60] sm:$0xff]
    %v4134 = vld [vmem:[#allocation13 + $0x68] sm:$0xff]
    %v4135 = vld [vmem:[#allocation13 + $0x70] sm:$0xff]
    %v4136 = vld [vmem:[#allocation13 + $0x78] sm:$0xff]
    %v4137 = vld [vmem:[#allocation13 + $0x80] sm:$0xff]
    %v4138 = vld [vmem:[#allocation13 + $0x88] sm:$0xff]
    %v4139 = vld [vmem:[#allocation13 + $0x90] sm:$0xff]
    %v4140 = vld [vmem:[#allocation13 + $0x98] sm:$0xff]
    %v4141 = vld [vmem:[#allocation13 + $0xa0] sm:$0xff]
    %v4142 = vld [vmem:[#allocation13 + $0xa8] sm:$0xff]
    %v4143 = vld [vmem:[#allocation13 + $0xb0] sm:$0xff]
    %v4144 = vld [vmem:[#allocation13 + $0xb8] sm:$0xff]
    %v4145 = vld [vmem:[#allocation13 + $0xc0] sm:$0xff]
    %v4146 = vld [vmem:[#allocation13 + $0xc8] sm:$0xff]
    %v4147 = vld [vmem:[#allocation13 + $0xd0] sm:$0xff]
    %v4148 = vld [vmem:[#allocation13 + $0xd8] sm:$0xff]
    %v4149 = vld [vmem:[#allocation13 + $0xe0] sm:$0xff]
    %v4150 = vld [vmem:[#allocation13 + $0xe8] sm:$0xff]
    %v4151 = vld [vmem:[#allocation13 + $0xf0] sm:$0xff]
    %v4152 = vld [vmem:[#allocation13 + $0xf8] sm:$0xff]
    %v4153 = vld [vmem:[#allocation13 + $0x100] sm:$0xff]
    %v4154 = vld [vmem:[#allocation13 + $0x108] sm:$0xff]
    %v4155 = vld [vmem:[#allocation13 + $0x110] sm:$0xff]
    %v4156 = vld [vmem:[#allocation13 + $0x118] sm:$0xff]
    %v4157 = vld [vmem:[#allocation13 + $0x120] sm:$0xff]
    %v4158 = vld [vmem:[#allocation13 + $0x128] sm:$0xff]
    %v4159 = vld [vmem:[#allocation13 + $0x130] sm:$0xff]
    %v4160 = vld [vmem:[#allocation13 + $0x138] sm:$0xff]
    %v4161 = vld [vmem:[#allocation13 + $0x140] sm:$0xff]
    %v4162 = vld [vmem:[#allocation13 + $0x148] sm:$0xff]
    %v4163 = vld [vmem:[#allocation13 + $0x150] sm:$0xff]
    %v4164 = vld [vmem:[#allocation13 + $0x158] sm:$0xff]
    %v4165 = vld [vmem:[#allocation13 + $0x160] sm:$0xff]
    %v4166 = vld [vmem:[#allocation13 + $0x168] sm:$0xff]
    %v4167 = vld [vmem:[#allocation13 + $0x170] sm:$0xff]
    %v4168 = vld [vmem:[#allocation13 + $0x178] sm:$0xff]
    %4169 = vmatprep.subr.mxu0 %v4122
    %4170 = vmatpush1.msra.mxu0 %v4121
    %4171 = vmatprep.subr.mxu0 %v4125
    %4172 = vmatpush1.msra.mxu0 %v4124
    %4173 = vmatprep.subr.mxu0 %v4128
    %4174 = vmatpush1.msra.mxu0 %v4127
    %4175 = vmatprep.subr.mxu0 %v4131
    %4176 = vmatpush1.msra.mxu0 %v4130
    %4177 = vmatprep.subr.mxu0 %v4134
    %4178 = vmatpush1.msra.mxu0 %v4133
    %4179 = vmatprep.subr.mxu0 %v4137
    %4180 = vmatpush1.msra.mxu0 %v4136
    %4181 = vmatprep.subr.mxu0 %v4140
    %4182 = vmatpush1.msra.mxu0 %v4139
    %4183 = vmatprep.subr.mxu0 %v4143
    %4184 = vmatpush1.msra.mxu0 %v4142
    %4185 = vmatprep.subr.mxu0 %v4146
    %4186 = vmatpush1.msra.mxu0 %v4145
    %4187 = vmatprep.subr.mxu0 %v4149
    %4188 = vmatpush1.msra.mxu0 %v4148
    %4189 = vmatprep.subr.mxu0 %v4152
    %4190 = vmatpush1.msra.mxu0 %v4151
    %4191 = vmatprep.subr.mxu0 %v4155
    %4192 = vmatpush1.msra.mxu0 %v4154
    %4193 = vmatprep.subr.mxu0 %v4158
    %4194 = vmatpush1.msra.mxu0 %v4157
    %4195 = vmatprep.subr.mxu0 %v4161
    %4196 = vmatpush1.msra.mxu0 %v4160
    %4197 = vmatprep.subr.mxu0 %v4164
    %4198 = vmatpush1.msra.mxu0 %v4163
    %4199 = vmatprep.subr.mxu0 %v4167
    %4200 = vmatpush1.msra.mxu0 %v4166
    %4201 = vmatprep.subr.mxu0 0.0
    %4202 = vmatpush1.msra.mxu0 0.0
    %4203 = vmatprep.subr.mxu0 0.0
    %4204 = vmatpush1.msra.mxu0 0.0
    %4205 = vmatprep.subr.mxu0 0.0
    %4206 = vmatpush1.msra.mxu0 0.0
    %4207 = vmatprep.subr.mxu0 0.0
    %4208 = vmatpush1.msra.mxu0 0.0
    %4209 = vmatprep.subr.mxu0 0.0
    %4210 = vmatpush1.msra.mxu0 0.0
    %4211 = vmatprep.subr.mxu0 0.0
    %4212 = vmatpush1.msra.mxu0 0.0
    %4213 = vmatprep.subr.mxu0 0.0
    %4214 = vmatpush1.msra.mxu0 0.0
    %4215 = vmatprep.subr.mxu0 0.0
    %4216 = vmatpush1.msra.mxu0 0.0
    %4217 = vmatprep.subr.mxu0 0.0
    %4218 = vmatpush1.msra.mxu0 0.0
    %4219 = vmatprep.subr.mxu0 0.0
    %4220 = vmatpush1.msra.mxu0 0.0
    %4221 = vmatprep.subr.mxu0 0.0
    %4222 = vmatpush1.msra.mxu0 0.0
    %4223 = vmatprep.subr.mxu0 0.0
    %4224 = vmatpush1.msra.mxu0 0.0
    %4225 = vmatprep.subr.mxu0 0.0
    %4226 = vmatpush1.msra.mxu0 0.0
    %4227 = vmatprep.subr.mxu0 0.0
    %4228 = vmatpush1.msra.mxu0 0.0
    %4229 = vmatprep.subr.mxu0 0.0
    %4230 = vmatpush1.msra.mxu0 0.0
    %4231 = vmatprep.subr.mxu0 0.0
    %4232 = vmatpush1.msra.mxu0 0.0
    %4233 = vmatprep.mubr.f32.mxu0 0.0
    %4234 = vmatmul.mubr.f32.gmra.mrb[0].mxu0 %v4116
    %v4235 = vpop.f32.mrb[0].mxu0
    %v4236 = vadd.f32 %v2659, %v4235
    %v4237 = vpop.f32.mrb[0].mxu0
    %v4238 = vadd.f32 %v2663, %v4237
    %4239 = vdwg.mxu0
    %4240 = vmatprep.subr.mxu0 0.0
    %4241 = vmatpush1.msra.mxu0 %v4123
    %4242 = vmatprep.subr.mxu0 0.0
    %4243 = vmatpush1.msra.mxu0 %v4126
    %4244 = vmatprep.subr.mxu0 0.0
    %4245 = vmatpush1.msra.mxu0 %v4129
    %4246 = vmatprep.subr.mxu0 0.0
    %4247 = vmatpush1.msra.mxu0 %v4132
    %4248 = vmatprep.subr.mxu0 0.0
    %4249 = vmatpush1.msra.mxu0 %v4135
    %4250 = vmatprep.subr.mxu0 0.0
    %4251 = vmatpush1.msra.mxu0 %v4138
    %4252 = vmatprep.subr.mxu0 0.0
    %4253 = vmatpush1.msra.mxu0 %v4141
    %4254 = vmatprep.subr.mxu0 0.0
    %4255 = vmatpush1.msra.mxu0 %v4144
    %4256 = vmatprep.subr.mxu0 0.0
    %4257 = vmatpush1.msra.mxu0 %v4147
    %4258 = vmatprep.subr.mxu0 0.0
    %4259 = vmatpush1.msra.mxu0 %v4150
    %4260 = vmatprep.subr.mxu0 0.0
    %4261 = vmatpush1.msra.mxu0 %v4153
    %4262 = vmatprep.subr.mxu0 0.0
    %4263 = vmatpush1.msra.mxu0 %v4156
    %4264 = vmatprep.subr.mxu0 0.0
    %4265 = vmatpush1.msra.mxu0 %v4159
    %4266 = vmatprep.subr.mxu0 0.0
    %4267 = vmatpush1.msra.mxu0 %v4162
    %4268 = vmatprep.subr.mxu0 0.0
    %4269 = vmatpush1.msra.mxu0 %v4165
    %4270 = vmatprep.subr.mxu0 0.0
    %4271 = vmatpush1.msra.mxu0 %v4168
    %4272 = vmatprep.subr.mxu0 0.0
    %4273 = vmatpush1.msra.mxu0 0.0
    %4274 = vmatprep.subr.mxu0 0.0
    %4275 = vmatpush1.msra.mxu0 0.0
    %4276 = vmatprep.subr.mxu0 0.0
    %4277 = vmatpush1.msra.mxu0 0.0
    %4278 = vmatprep.subr.mxu0 0.0
    %4279 = vmatpush1.msra.mxu0 0.0
    %4280 = vmatprep.subr.mxu0 0.0
    %4281 = vmatpush1.msra.mxu0 0.0
    %4282 = vmatprep.subr.mxu0 0.0
    %4283 = vmatpush1.msra.mxu0 0.0
    %4284 = vmatprep.subr.mxu0 0.0
    %4285 = vmatpush1.msra.mxu0 0.0
    %4286 = vmatprep.subr.mxu0 0.0
    %4287 = vmatpush1.msra.mxu0 0.0
    %4288 = vmatprep.subr.mxu0 0.0
    %4289 = vmatpush1.msra.mxu0 0.0
    %4290 = vmatprep.subr.mxu0 0.0
    %4291 = vmatpush1.msra.mxu0 0.0
    %4292 = vmatprep.subr.mxu0 0.0
    %4293 = vmatpush1.msra.mxu0 0.0
    %4294 = vmatprep.subr.mxu0 0.0
    %4295 = vmatpush1.msra.mxu0 0.0
    %4296 = vmatprep.subr.mxu0 0.0
    %4297 = vmatpush1.msra.mxu0 0.0
    %4298 = vmatprep.subr.mxu0 0.0
    %4299 = vmatpush1.msra.mxu0 0.0
    %4300 = vmatprep.subr.mxu0 0.0
    %4301 = vmatpush1.msra.mxu0 0.0
    %4302 = vmatprep.subr.mxu0 0.0
    %4303 = vmatpush1.msra.mxu0 0.0
    %4304 = vmatprep.mubr.f32.mxu0 0.0
    %4305 = vmatmul.mubr.f32.gmra.mrb[0].mxu0 %v4116
    %v4306 = vpop.f32.mrb[0].mxu0
    %v4307 = vadd.f32 %v2667, %v4306
    %v4308 = vpop.f32.mrb[0].mxu0
    %4309 = vdwg.mxu0
    %v4310 = vadd.f32 %v4118, %v4236
    %v4311 = vxor.u32 %v4310, 2147483648
    %v4312 = vmul.f32 %v4311, 1.442695
    %v4313 = vpow.pop %v4312
    %v4314 = vadd.f32 %v4313, 1.0
    %v4315 = vrcp.pop %v4314
    %v4316 = vmul.f32 1.0, %v4315
    %v4317 = vadd.f32 %v4119, %v4238
    %v4318 = vxor.u32 %v4317, 2147483648
    %v4319 = vmul.f32 %v4318, 1.442695
    %v4320 = vpow.pop %v4319
    %v4321 = vadd.f32 %v4320, 1.0
    %v4322 = vrcp.pop %v4321
    %v4323 = vmul.f32 1.0, %v4322
    %v4324 = vmul.f32 %v4316, %v4307
    %v4325 = vadd.f32 %v4120, %v4324
    %v4326 = vtanh.pop %v4325
    %v4327 = vsub.f32 1.0, %v4323
    %v4328 = vmul.f32 %v4327, %v4326
    %v4329 = vmul.f32 %v4323, %v4116
    %v4330 = vadd.f32 %v4328, %v4329
    %4331 = vst [vmem:[#allocation5 + $0x38] sm:$0xff] %v4330
    %v4332 = vld [vmem:[#allocation5] sm:$0xff]
    %v4333 = vld [vmem:[#allocation5 + $0x8] sm:$0xff]
    %v4334 = vld [vmem:[#allocation5 + $0x10] sm:$0xff]
    %v4335 = vld [vmem:[#allocation5 + $0x18] sm:$0xff]
    %v4336 = vld [vmem:[#allocation5 + $0x20] sm:$0xff]
    %v4337 = vld [vmem:[#allocation5 + $0x28] sm:$0xff]
    %v4338 = vld [vmem:[#allocation5 + $0x30] sm:$0xff]
    %v4339 = vld [vmem:[#allocation5 + $0x38] sm:$0xff]
    %v4340 = vld [vmem:[#allocation14] sm:$0xff]
    %v4341 = vld [vmem:[#allocation14 + $0x8] sm:$0xff]
    %v4342 = vld [vmem:[#allocation14 + $0x10] sm:$0xff]
    %v4343 = vld [vmem:[#allocation14 + $0x18] sm:$0xff]
    %v4344 = vld [vmem:[#allocation14 + $0x20] sm:$0xff]
    %v4345 = vld [vmem:[#allocation14 + $0x28] sm:$0xff]
    %v4346 = vld [vmem:[#allocation14 + $0x30] sm:$0xff]
    %v4347 = vld [vmem:[#allocation14 + $0x38] sm:$0xff]
    %v4348 = vld [vmem:[#allocation14 + $0x40] sm:$0xff]
    %v4349 = vld [vmem:[#allocation14 + $0x48] sm:$0xff]
    %v4350 = vld [vmem:[#allocation14 + $0x50] sm:$0xff]
    %v4351 = vld [vmem:[#allocation14 + $0x58] sm:$0xff]
    %v4352 = vld [vmem:[#allocation14 + $0x60] sm:$0xff]
    %v4353 = vld [vmem:[#allocation14 + $0x68] sm:$0xff]
    %v4354 = vld [vmem:[#allocation14 + $0x70] sm:$0xff]
    %v4355 = vld [vmem:[#allocation14 + $0x78] sm:$0xff]
    %v4356 = vld [vmem:[%s12] sm:$0x1]
    %v4358 = vlaneseq
    %v4359 = vshrl.u32 %v4358, 7
    %v4360 = vsub.s32 0, %v4359
    %v4361 = vrot.slane %v4356, %v4360
    %4363 = vmatprep.subr.mxu0 0.0
    %4364 = vmatpush1.msra.mxu0 %v4340
    %4365 = vmatprep.subr.mxu0 0.0
    %4366 = vmatpush1.msra.mxu0 %v4341
    %4367 = vmatprep.subr.mxu0 0.0
    %4368 = vmatpush1.msra.mxu0 %v4342
    %4369 = vmatprep.subr.mxu0 0.0
    %4370 = vmatpush1.msra.mxu0 %v4343
    %4371 = vmatprep.subr.mxu0 0.0
    %4372 = vmatpush1.msra.mxu0 %v4344
    %4373 = vmatprep.subr.mxu0 0.0
    %4374 = vmatpush1.msra.mxu0 %v4345
    %4375 = vmatprep.subr.mxu0 0.0
    %4376 = vmatpush1.msra.mxu0 %v4346
    %4377 = vmatprep.subr.mxu0 0.0
    %4378 = vmatpush1.msra.mxu0 %v4347
    %4379 = vmatprep.subr.mxu0 0.0
    %4380 = vmatpush1.msra.mxu0 %v4348
    %4381 = vmatprep.subr.mxu0 0.0
    %4382 = vmatpush1.msra.mxu0 %v4349
    %4383 = vmatprep.subr.mxu0 0.0
    %4384 = vmatpush1.msra.mxu0 %v4350
    %4385 = vmatprep.subr.mxu0 0.0
    %4386 = vmatpush1.msra.mxu0 %v4351
    %4387 = vmatprep.subr.mxu0 0.0
    %4388 = vmatpush1.msra.mxu0 %v4352
    %4389 = vmatprep.subr.mxu0 0.0
    %4390 = vmatpush1.msra.mxu0 %v4353
    %4391 = vmatprep.subr.mxu0 0.0
    %4392 = vmatpush1.msra.mxu0 %v4354
    %4393 = vmatprep.subr.mxu0 0.0
    %4394 = vmatpush1.msra.mxu0 %v4355
    %4395 = vmatprep.subr.mxu0 0.0
    %4396 = vmatpush1.msra.mxu0 0.0
    %4397 = vmatprep.subr.mxu0 0.0
    %4398 = vmatpush1.msra.mxu0 0.0
    %4399 = vmatprep.subr.mxu0 0.0
    %4400 = vmatpush1.msra.mxu0 0.0
    %4401 = vmatprep.subr.mxu0 0.0
    %4402 = vmatpush1.msra.mxu0 0.0
    %4403 = vmatprep.subr.mxu0 0.0
    %4404 = vmatpush1.msra.mxu0 0.0
    %4405 = vmatprep.subr.mxu0 0.0
    %4406 = vmatpush1.msra.mxu0 0.0
    %4407 = vmatprep.subr.mxu0 0.0
    %4408 = vmatpush1.msra.mxu0 0.0
    %4409 = vmatprep.subr.mxu0 0.0
    %4410 = vmatpush1.msra.mxu0 0.0
    %4411 = vmatprep.subr.mxu0 0.0
    %4412 = vmatpush1.msra.mxu0 0.0
    %4413 = vmatprep.subr.mxu0 0.0
    %4414 = vmatpush1.msra.mxu0 0.0
    %4415 = vmatprep.subr.mxu0 0.0
    %4416 = vmatpush1.msra.mxu0 0.0
    %4417 = vmatprep.subr.mxu0 0.0
    %4418 = vmatpush1.msra.mxu0 0.0
    %4419 = vmatprep.subr.mxu0 0.0
    %4420 = vmatpush1.msra.mxu0 0.0
    %4421 = vmatprep.subr.mxu0 0.0
    %4422 = vmatpush1.msra.mxu0 0.0
    %4423 = vmatprep.subr.mxu0 0.0
    %4424 = vmatpush1.msra.mxu0 0.0
    %4425 = vmatprep.subr.mxu0 0.0
    %4426 = vmatpush1.msra.mxu0 0.0
    %4427 = vmatprep.mubr.f32.mxu0 0.0
    %4428 = vmatmul.mubr.f32.gmra.mrb[0].mxu0 %v4332
    %v4429 = vpop.f32.mrb[0].mxu0
    %v4430 = vadd.f32 %v4361, %v4429
    %v4431 = vpop.f32.mrb[0].mxu0
    %4432 = vmatprep.mubr.f32.mxu0 0.0
    %4433 = vmatmul.mubr.f32.gmra.mrb[0].mxu0 %v4333
    %v4434 = vpop.f32.mrb[0].mxu0
    %v4435 = vadd.f32 %v4361, %v4434
    %v4436 = vpop.f32.mrb[0].mxu0
    %4437 = vmatprep.mubr.f32.mxu0 0.0
    %4438 = vmatmul.mubr.f32.gmra.mrb[0].mxu0 %v4334
    %v4439 = vpop.f32.mrb[0].mxu0
    %v4440 = vadd.f32 %v4361, %v4439
    %v4441 = vpop.f32.mrb[0].mxu0
    %4442 = vmatprep.mubr.f32.mxu0 0.0
    %4443 = vmatmul.mubr.f32.gmra.mrb[0].mxu0 %v4335
    %v4444 = vpop.f32.mrb[0].mxu0
    %v4445 = vadd.f32 %v4361, %v4444
    %v4446 = vpop.f32.mrb[0].mxu0
    %4447 = vmatprep.mubr.f32.mxu0 0.0
    %4448 = vmatmul.mubr.f32.gmra.mrb[0].mxu0 %v4336
    %v4449 = vpop.f32.mrb[0].mxu0
    %v4450 = vadd.f32 %v4361, %v4449
    %v4451 = vpop.f32.mrb[0].mxu0
    %4452 = vmatprep.mubr.f32.mxu0 0.0
    %4453 = vmatmul.mubr.f32.gmra.mrb[0].mxu0 %v4337
    %v4454 = vpop.f32.mrb[0].mxu0
    %v4455 = vadd.f32 %v4361, %v4454
    %v4456 = vpop.f32.mrb[0].mxu0
    %4457 = vmatprep.mubr.f32.mxu0 0.0
    %4458 = vmatmul.mubr.f32.gmra.mrb[0].mxu0 %v4338
    %v4459 = vpop.f32.mrb[0].mxu0
    %v4460 = vadd.f32 %v4361, %v4459
    %v4461 = vpop.f32.mrb[0].mxu0
    %4462 = vmatprep.mubr.f32.mxu0 0.0
    %4463 = vmatmul.mubr.f32.gmra.mrb[0].mxu0 %v4339
    %v4464 = vpop.f32.mrb[0].mxu0
    %v4465 = vadd.f32 %v4361, %v4464
    %v4466 = vpop.f32.mrb[0].mxu0
    %4467 = vdwg.mxu0
    %v4468 = vlaneseq
    %v4469 = vshrl.u32 %v4468, 7
    %v4470 = vadd.s32 %v4469, 8
    %v4471 = vadd.s32 %v4469, 16
    %v4472 = vadd.s32 %v4469, 24
    %v4473 = vadd.s32 %v4469, 32
    %v4474 = vadd.s32 %v4469, 40
    %v4475 = vadd.s32 %v4469, 48
    %v4476 = vadd.s32 %v4469, 56
    %vm4477 = vcmp.lt.s32.totalorder %v4469, 0
    %v4478 = vsub.s32 0, %v4469
    %v4479 = vsel %vm4477, %v4478, %v4469
    %v4480 = vshrl.u32 %v4479, 3
    %v4481 = vand.u32 %v4479, 7
    %v4482 = vsub.s32 0, %v4481
    %v4483 = vsel %vm4477, %v4482, %v4481
    %vm4484 = vcmp.lt.s32.totalorder %v4470, 0
    %v4485 = vsub.s32 0, %v4470
    %v4486 = vsel %vm4484, %v4485, %v4470
    %v4487 = vshrl.u32 %v4486, 3
    %v4488 = vand.u32 %v4486, 7
    %v4489 = vsub.s32 0, %v4488
    %v4490 = vsel %vm4484, %v4489, %v4488
    %vm4491 = vcmp.lt.s32.totalorder %v4471, 0
    %v4492 = vsub.s32 0, %v4471
    %v4493 = vsel %vm4491, %v4492, %v4471
    %v4494 = vshrl.u32 %v4493, 3
    %v4495 = vand.u32 %v4493, 7
    %v4496 = vsub.s32 0, %v4495
    %v4497 = vsel %vm4491, %v4496, %v4495
    %vm4498 = vcmp.lt.s32.totalorder %v4472, 0
    %v4499 = vsub.s32 0, %v4472
    %v4500 = vsel %vm4498, %v4499, %v4472
    %v4501 = vshrl.u32 %v4500, 3
    %v4502 = vand.u32 %v4500, 7
    %v4503 = vsub.s32 0, %v4502
    %v4504 = vsel %vm4498, %v4503, %v4502
    %vm4505 = vcmp.lt.s32.totalorder %v4473, 0
    %v4506 = vsub.s32 0, %v4473
    %v4507 = vsel %vm4505, %v4506, %v4473
    %v4508 = vshrl.u32 %v4507, 3
    %v4509 = vand.u32 %v4507, 7
    %v4510 = vsub.s32 0, %v4509
    %v4511 = vsel %vm4505, %v4510, %v4509
    %vm4512 = vcmp.lt.s32.totalorder %v4474, 0
    %v4513 = vsub.s32 0, %v4474
    %v4514 = vsel %vm4512, %v4513, %v4474
    %v4515 = vshrl.u32 %v4514, 3
    %v4516 = vand.u32 %v4514, 7
    %v4517 = vsub.s32 0, %v4516
    %v4518 = vsel %vm4512, %v4517, %v4516
    %vm4519 = vcmp.lt.s32.totalorder %v4475, 0
    %v4520 = vsub.s32 0, %v4475
    %v4521 = vsel %vm4519, %v4520, %v4475
    %v4522 = vshrl.u32 %v4521, 3
    %v4523 = vand.u32 %v4521, 7
    %v4524 = vsub.s32 0, %v4523
    %v4525 = vsel %vm4519, %v4524, %v4523
    %vm4526 = vcmp.lt.s32.totalorder %v4476, 0
    %v4527 = vsub.s32 0, %v4476
    %v4528 = vsel %vm4526, %v4527, %v4476
    %v4529 = vshrl.u32 %v4528, 3
    %v4530 = vand.u32 %v4528, 7
    %v4531 = vsub.s32 0, %v4530
    %v4532 = vsel %vm4526, %v4531, %v4530
    %vm4533 = vcmp.ne.s32.totalorder %v4483, 0
    %vm4534 = vcmp.ne.s32.totalorder %v4490, 0
    %vm4535 = vcmp.ne.s32.totalorder %v4497, 0
    %vm4536 = vcmp.ne.s32.totalorder %v4504, 0
    %vm4537 = vcmp.ne.s32.totalorder %v4511, 0
    %vm4538 = vcmp.ne.s32.totalorder %v4518, 0
    %vm4539 = vcmp.ne.s32.totalorder %v4525, 0
    %vm4540 = vcmp.ne.s32.totalorder %v4532, 0
    %vm4541 = vcmp.lt.s32.totalorder %v4483, 0
    %vm4542 = vcmp.lt.s32.totalorder %v4490, 0
    %vm4543 = vcmp.lt.s32.totalorder %v4497, 0
    %vm4544 = vcmp.lt.s32.totalorder %v4504, 0
    %vm4545 = vcmp.lt.s32.totalorder %v4511, 0
    %vm4546 = vcmp.lt.s32.totalorder %v4518, 0
    %vm4547 = vcmp.lt.s32.totalorder %v4525, 0
    %vm4548 = vcmp.lt.s32.totalorder %v4532, 0
    %vm4549 = vmand %vm4541, %vm4533
    %vm4550 = vmand %vm4542, %vm4534
    %vm4551 = vmand %vm4543, %vm4535
    %vm4552 = vmand %vm4544, %vm4536
    %vm4553 = vmand %vm4545, %vm4537
    %vm4554 = vmand %vm4546, %vm4538
    %vm4555 = vmand %vm4547, %vm4539
    %vm4556 = vmand %vm4548, %vm4540
    %v4557 = vadd.s32 %v4483, 8
    %v4558 = vadd.s32 %v4490, 8
    %v4559 = vadd.s32 %v4497, 8
    %v4560 = vadd.s32 %v4504, 8
    %v4561 = vadd.s32 %v4511, 8
    %v4562 = vadd.s32 %v4518, 8
    %v4563 = vadd.s32 %v4525, 8
    %v4564 = vadd.s32 %v4532, 8
    %v4565 = vsel %vm4549, %v4557, %v4483
    %v4566 = vsel %vm4550, %v4558, %v4490
    %v4567 = vsel %vm4551, %v4559, %v4497
    %v4568 = vsel %vm4552, %v4560, %v4504
    %v4569 = vsel %vm4553, %v4561, %v4511
    %v4570 = vsel %vm4554, %v4562, %v4518
    %v4571 = vsel %vm4555, %v4563, %v4525
    %v4572 = vsel %vm4556, %v4564, %v4532
    %vm4573 = vcmp.lt.s32.totalorder %v4565, 2
    %vm4574 = vcmp.lt.s32.totalorder %v4566, 2
    %vm4575 = vcmp.lt.s32.totalorder %v4567, 2
    %vm4576 = vcmp.lt.s32.totalorder %v4568, 2
    %vm4577 = vcmp.lt.s32.totalorder %v4569, 2
    %vm4578 = vcmp.lt.s32.totalorder %v4570, 2
    %vm4579 = vcmp.lt.s32.totalorder %v4571, 2
    %vm4580 = vcmp.lt.s32.totalorder %v4572, 2
    %v4581 = vsel %vm4573, 1, 0
    %v4582 = vsel %vm4574, 1, 0
    %v4583 = vsel %vm4575, 1, 0
    %v4584 = vsel %vm4576, 1, 0
    %v4585 = vsel %vm4577, 1, 0
    %v4586 = vsel %vm4578, 1, 0
    %v4587 = vsel %vm4579, 1, 0
    %v4588 = vsel %vm4580, 1, 0
    %v4589 = vcvt.s32.f32 %v4581
    %v4590 = vcvt.s32.f32 %v4582
    %v4591 = vcvt.s32.f32 %v4583
    %v4592 = vcvt.s32.f32 %v4584
    %v4593 = vcvt.s32.f32 %v4585
    %v4594 = vcvt.s32.f32 %v4586
    %v4595 = vcvt.s32.f32 %v4587
    %v4596 = vcvt.s32.f32 %v4588
    %v4597 = vmul.f32 %v4430, %v4589
    %v4598 = vmul.f32 %v4435, %v4590
    %v4599 = vmul.f32 %v4440, %v4591
    %v4600 = vmul.f32 %v4445, %v4592
    %v4601 = vmul.f32 %v4450, %v4593
    %v4602 = vmul.f32 %v4455, %v4594
    %v4603 = vmul.f32 %v4460, %v4595
    %v4604 = vmul.f32 %v4465, %v4596
    %v4605 = vadd.f32 %v4597, %v4598
    %v4606 = vadd.f32 %v4605, %v4599
    %v4607 = vadd.f32 %v4606, %v4600
    %v4608 = vadd.f32 %v4607, %v4601
    %v4609 = vadd.f32 %v4608, %v4602
    %v4610 = vadd.f32 %v4609, %v4603
    %v4611 = vadd.f32 %v4610, %v4604
    %v4612 = vrot.slane %v4611, 4
    %v4613 = vadd.f32 %v4611, %v4612
    %v4614 = vrot.slane %v4613, 2
    %v4615 = vadd.f32 %v4613, %v4614
    %v4616 = vrot.slane %v4615, 1
    %v4617 = vadd.f32 %v4615, %v4616
    %v4618 = vmul.f32 %v4617, 0.0625
    %v4619 = vsub.f32 %v4430, %v4618
    %v4620 = vsub.f32 %v4435, %v4618
    %v4621 = vsub.f32 %v4440, %v4618
    %v4622 = vsub.f32 %v4445, %v4618
    %v4623 = vsub.f32 %v4450, %v4618
    %v4624 = vsub.f32 %v4455, %v4618
    %v4625 = vsub.f32 %v4460, %v4618
    %v4626 = vsub.f32 %v4465, %v4618
    %v4627 = vmul.f32 %v4619, %v4589
    %v4628 = vmul.f32 %v4620, %v4590
    %v4629 = vmul.f32 %v4621, %v4591
    %v4630 = vmul.f32 %v4622, %v4592
    %v4631 = vmul.f32 %v4623, %v4593
    %v4632 = vmul.f32 %v4624, %v4594
    %v4633 = vmul.f32 %v4625, %v4595
    %v4634 = vmul.f32 %v4626, %v4596
    %v4635 = vmul.f32 %v4627, %v4627
    %v4636 = vmul.f32 %v4628, %v4628
    %v4637 = vmul.f32 %v4629, %v4629
    %v4638 = vmul.f32 %v4630, %v4630
    %v4639 = vmul.f32 %v4631, %v4631
    %v4640 = vmul.f32 %v4632, %v4632
    %v4641 = vmul.f32 %v4633, %v4633
    %v4642 = vmul.f32 %v4634, %v4634
    %v4643 = vadd.f32 %v4635, %v4636
    %v4644 = vadd.f32 %v4643, %v4637
    %v4645 = vadd.f32 %v4644, %v4638
    %v4646 = vadd.f32 %v4645, %v4639
    %v4647 = vadd.f32 %v4646, %v4640
    %v4648 = vadd.f32 %v4647, %v4641
    %v4649 = vadd.f32 %v4648, %v4642
    %v4650 = vrot.slane %v4649, 4
    %v4651 = vadd.f32 %v4649, %v4650
    %v4652 = vrot.slane %v4651, 2
    %v4653 = vadd.f32 %v4651, %v4652
    %v4654 = vrot.slane %v4653, 1
    %v4655 = vadd.f32 %v4653, %v4654
    %v4656 = vmul.f32 %v4655, 0.0625
    %v4657 = vadd.f32 %v4656, 1e-05
    %v4658 = vrsqrt.pop %v4657
    %v4659 = vmul.f32 %v4619, %v4658
    %v4660 = vmul.f32 %v4620, %v4658
    %v4661 = vmul.f32 %v4621, %v4658
    %v4662 = vmul.f32 %v4622, %v4658
    %v4663 = vmul.f32 %v4623, %v4658
    %v4664 = vmul.f32 %v4624, %v4658
    %v4665 = vmul.f32 %v4625, %v4658
    %v4666 = vmul.f32 %v4626, %v4658
    %v4667 = vld [vmem:[%s13] sm:$0x1]
    %v4669 = vlaneseq
    %v4670 = vshrl.u32 %v4669, 7
    %v4671 = vsub.s32 0, %v4670
    %v4672 = vrot.slane %v4667, %v4671
    %v4674 = vmul.f32 %v4659, %v4672
    %v4675 = vmul.f32 %v4660, %v4672
    %v4676 = vmul.f32 %v4661, %v4672
    %v4677 = vmul.f32 %v4662, %v4672
    %v4678 = vmul.f32 %v4663, %v4672
    %v4679 = vmul.f32 %v4664, %v4672
    %v4680 = vmul.f32 %v4665, %v4672
    %v4681 = vmul.f32 %v4666, %v4672
    %v4682 = vld [vmem:[%s14] sm:$0x1]
    %v4684 = vlaneseq
    %v4685 = vshrl.u32 %v4684, 7
    %v4686 = vsub.s32 0, %v4685
    %v4687 = vrot.slane %v4682, %v4686
    %v4689 = vadd.f32 %v4674, %v4687
    %v4690 = vadd.f32 %v4675, %v4687
    %v4691 = vadd.f32 %v4676, %v4687
    %v4692 = vadd.f32 %v4677, %v4687
    %v4693 = vadd.f32 %v4678, %v4687
    %v4694 = vadd.f32 %v4679, %v4687
    %v4695 = vadd.f32 %v4680, %v4687
    %v4696 = vadd.f32 %v4681, %v4687
    %4697 = vst [vmem:[%s15] sm:$0xff] %v4689
    %4698 = vst [vmem:[%s15 + $0x8] sm:$0xff] %v4690
    %4699 = vst [vmem:[%s15 + $0x10] sm:$0xff] %v4691
    %4700 = vst [vmem:[%s15 + $0x18] sm:$0xff] %v4692
    %4701 = vst [vmem:[%s15 + $0x20] sm:$0xff] %v4693
    %4702 = vst [vmem:[%s15 + $0x28] sm:$0xff] %v4694
    %4703 = vst [vmem:[%s15 + $0x30] sm:$0xff] %v4695
    %4704 = vst [vmem:[%s15 + $0x38] sm:$0xff] %v4696
    // Predicated region
    $region86: #{_lambda_.1} parent=1 // pred_check
      _
    $region87: #{_lambda_.1} parent=1 // pred_check_branch
      %4706 = sbr.rel (0) target = $region89
    $region88: #{_lambda_.1} parent=1 // pred_region
      _
    $region89: #{_lambda_.1} parent=1 // pred_fallthru
      _
    // Predicated region
    $region90: #{_lambda_.1} parent=1 // pred_check
      _
    $region91: #{_lambda_.1} parent=1 // pred_check_branch
      %4708 = sbr.rel (0) target = $region93
    $region92: #{_lambda_.1} parent=1 // pred_region
      _
    $region93: #{_lambda_.1} parent=1 // pred_fallthru
      _
    %4709 = vsyncpa [#allocation7], 1
    %4710 = vsyncpa [#allocation9], 1
    %4711 = vsyncpa [#allocation12], 1
    %4712 = vsyncpa [#allocation15], 1

</llo_original>
